<compile_context>
chip_gen: v6e
topology: v6e:2x2x1
jax: 0.10.0
libtpu: 0.0.40
codegen_flags: <defaults>
</compile_context>

<pallas_src>
import jax
import jax.numpy as jnp
from jax.experimental import pallas as pl
from jax.experimental.pallas import tpu as pltpu

# ----------------------------- hyper-parameters ------------------------------
N_NODES = 64      # number of points in the cloud
IN_DIM = 8        # in_dim
PROP_DIM = 8      # prop_dim  (gravnet out_channels = 2 * prop_dim = 16)
SPACE_DIM = 8     # space_dim
K = 4             # k nearest neighbours
HIDDEN_DIM = 32   # hidden_dim
OUTPUT_DIM = 8    # output_dim
NUM_GRAVNET_LAYERS = 4
OUT_CH = 2 * PROP_DIM

ROW_ALIGN = 8     # sublane alignment of every block inside the weight slab
LANE_PAD = 128    # slab lane width (one full vreg row)

assert N_NODES & (N_NODES - 1) == 0, "index bit-packing assumes power-of-two N"


def _relu(v):
    return jnp.maximum(v, 0.0)


# ----------------------------- in-kernel helpers ------------------------------
def _gravnet_block(x, wcat, bcat, wo2m, wo2x):
    """One GravNetConv on a [N, Fin] activation (all values in vregs/VMEM)."""
    n = x.shape[0]

    # Single fused projection: [lin_s | lin_h | lin_out1], with the lin_out2
    # bias folded into the lin_out1 slice of the bias (lin_out1 has no bias).
    proj = jnp.dot(x, wcat, preferred_element_type=jnp.float32) + bcat
    s = proj[:, :SPACE_DIM]                                   # [N, S]
    h = proj[:, SPACE_DIM:SPACE_DIM + PROP_DIM]               # [N, P]
    out1 = proj[:, SPACE_DIM + PROP_DIM:]                     # x@wo1 + bo2

    # Pairwise squared distances with ONE augmented matmul:
    #   d2[i,j] = [-2*s_i | 1 | ||s_i||^2] . [s_j | ||s_j||^2 | 1]
    #           = ||s_i||^2 + ||s_j||^2 - 2<s_i, s_j>
    sq = jnp.sum(s * s, axis=-1, keepdims=True)               # [N, 1]
    ones_col = jnp.ones((n, 1), jnp.float32)
    a_aug = jnp.concatenate([s * (-2.0), ones_col, sq], axis=1)   # [N, S+2]
    b_aug = jnp.concatenate([s, sq, ones_col], axis=1)            # [N, S+2]
    d2 = jax.lax.dot_general(a_aug, b_aug, (((1,), (1,)), ((), ())),
                             preferred_element_type=jnp.float32)  # [N, N]
    d2 = jnp.maximum(d2, 0.0)

    # Pack the column index into the low 6 mantissa bits of the non-negative
    # d2 so that min-distance AND arg-min come out of a SINGLE lane reduction
    # (bit pattern order == float order for non-negative floats; lowest-index
    # wins on ties, matching the previous kernel).  The selected distance is
    # truncated in its low 6 mantissa bits (<= 2^-18 relative perturbation of
    # the exp(-10*d2) argument).
    col_iota = jax.lax.broadcasted_iota(jnp.int32, (n, n), dimension=1)
    idx_mask = n - 1                                   # 63 -> 6 index bits
    clear_mask = jnp.int32(~idx_mask)                  # -64: clears low 6 bits
    packed_bits = (pltpu.bitcast(d2, jnp.int32) & clear_mask) | col_iota
    dwork = pltpu.bitcast(packed_bits, jnp.float32)    # [N, N] packed dist+idx

    big = jnp.float32(1e30)
    mean_acc = jnp.zeros((n, PROP_DIM), jnp.float32)
    max_acc = jnp.full((n, PROP_DIM), -big, jnp.float32)

    # Iterative k-NN selection (k small & static -> unrolled), ONE reduction
    # per step.
    for _ in range(K):
        sel = jnp.min(dwork, axis=-1, keepdims=True)             # [N, 1]
        sel_bits = pltpu.bitcast(sel, jnp.int32)
        nbr = sel_bits & idx_mask                                 # arg-min col
        dmin = pltpu.bitcast(sel_bits & clear_mask, jnp.float32)  # min dist
        mask = col_iota == nbr                                    # [N, N] bool
        w = jnp.exp(-10.0 * dmin)                                 # [N, 1]
        hj = jnp.dot(mask.astype(jnp.float32), h,
                     preferred_element_type=jnp.float32)          # [N, P]
        msg = w * hj
        mean_acc = mean_acc + msg
        max_acc = jnp.maximum(max_acc, msg)
        dwork = jnp.where(mask, big, dwork)

    mean_acc = mean_acc * (1.0 / K)

    return (out1
            + jnp.dot(mean_acc, wo2m, preferred_element_type=jnp.float32)
            + jnp.dot(max_acc, wo2x, preferred_element_type=jnp.float32))


def _make_kernel(layout):
    """Build the fused forward kernel for a given static slab layout."""
    lay = list(layout)  # list of (row_offset, rows, cols) in consumption order

    def kernel(x_ref, slab_ref, o_ref):
        pos = iter(range(len(lay)))

        def take():
            off, r, c = lay[next(pos)]
            return slab_ref[off:off + r, 0:c]   # static, sublane-aligned slice

        x = x_ref[...]

        # fc1, fc2
        w, b = take(), take()
        x = _relu(jnp.dot(x, w, preferred_element_type=jnp.float32) + b)
        w, b = take(), take()
        x = _relu(jnp.dot(x, w, preferred_element_type=jnp.float32) + b)

        for _ in range(NUM_GRAVNET_LAYERS):
            wcat, bcat, wo2m, wo2x = take(), take(), take(), take()
            x = _gravnet_block(x, wcat, bcat, wo2m, wo2x)
            for _ in range(3):                   # dense_after_gravnet (3x ReLU)
                w, b = take(), take()
                x = _relu(jnp.dot(x, w, preferred_element_type=jnp.float32) + b)

        # fc3 (+ReLU), fc4 (no ReLU)
        w, b = take(), take()
        x = _relu(jnp.dot(x, w, preferred_element_type=jnp.float32) + b)
        w, b = take(), take()
        x = jnp.dot(x, w, preferred_element_type=jnp.float32) + b

        o_ref[...] = x

    return kernel


# ------------------------------ parameter setup -------------------------------
def _init_linear(key, din, dout, bias=True):
    kw, kb = jax.random.split(key)
    bound = 1.0 / (din ** 0.5)
    w = jax.random.uniform(kw, (din, dout), jnp.float32, -bound, bound)
    b = (jax.random.uniform(kb, (1, dout), jnp.float32, -bound, bound)
         if bias else jnp.zeros((1, dout), jnp.float32))
    return w, b


def init_params(key):
    keys = iter(jax.random.split(key, 64))
    params = {
        "fc1": _init_linear(next(keys), IN_DIM, HIDDEN_DIM),
        "fc2": _init_linear(next(keys), HIDDEN_DIM, HIDDEN_DIM),
        "gravnet": [],
        "dense": [],
    }
    for layer in range(NUM_GRAVNET_LAYERS):
        fin = HIDDEN_DIM if layer == 0 else OUT_CH
        ws, bs = _init_linear(next(keys), fin, SPACE_DIM)
        wh, bh = _init_linear(next(keys), fin, PROP_DIM)
        wo1, _ = _init_linear(next(keys), fin, OUT_CH, bias=False)  # no bias
        wo2, bo2 = _init_linear(next(keys), OUT_CH, OUT_CH)
        # Host-side fusion of the three projections + fold lin_out2 bias into
        # the lin_out1 slice of the concatenated bias.
        wcat = jnp.concatenate([ws, wh, wo1], axis=1)        # [fin, S+P+2P]
        bcat = jnp.concatenate([bs, bh, bo2], axis=1)        # [1, S+P+2P]
        params["gravnet"].append({
            "wcat": wcat, "bcat": bcat,
            "wo2m": wo2[:PROP_DIM], "wo2x": wo2[PROP_DIM:],
        })
        params["dense"].append([
            _init_linear(next(keys), OUT_CH, HIDDEN_DIM),
            _init_linear(next(keys), HIDDEN_DIM, HIDDEN_DIM),
            _init_linear(next(keys), HIDDEN_DIM, OUT_CH),
        ])
    params["fc3"] = _init_linear(next(keys), OUT_CH, HIDDEN_DIM)
    params["fc4"] = _init_linear(next(keys), HIDDEN_DIM, OUTPUT_DIM)
    return params


def _pack_params(params):
    """Pack every weight/bias into one lane-padded f32 slab + static layout."""
    entries = [params["fc1"][0], params["fc1"][1],
               params["fc2"][0], params["fc2"][1]]
    for i in range(NUM_GRAVNET_LAYERS):
        g = params["gravnet"][i]
        entries += [g["wcat"], g["bcat"], g["wo2m"], g["wo2x"]]
        for w, b in params["dense"][i]:
            entries += [w, b]
    entries += [params["fc3"][0], params["fc3"][1],
                params["fc4"][0], params["fc4"][1]]

    layout = []
    blocks = []
    off = 0
    for a in entries:
        a = jnp.asarray(a, jnp.float32)
        r, c = a.shape
        layout.append((off, r, c))
        rpad = ((r + ROW_ALIGN - 1) // ROW_ALIGN) * ROW_ALIGN
        block = jnp.zeros((rpad, LANE_PAD), jnp.float32).at[:r, :c].set(a)
        blocks.append(block)
        off += rpad
    slab = jnp.concatenate(blocks, axis=0)        # one [rows, 128] f32 buffer
    return slab, tuple(layout)


# --------------------------------- forward -----------------------------------
def make_forward(params):
    slab, layout = _pack_params(params)
    kernel = _make_kernel(layout)

    @jax.jit
    def forward(slab, x):
        # TODO(synk): for throughput, lane-pack 2 clouds per [64,128] vreg
        # (block-diagonal distance masking) and add a leading batch grid axis
        # marked "parallel" (fills both v7x TensorCores); single-cloud
        # semantics of the reference module are kept here, so the tiny [64,8]
        # output store and f32 matmuls are left as-is.
        return pl.pallas_call(
            kernel,
            out_shape=jax.ShapeDtypeStruct((x.shape[0], OUTPUT_DIM), jnp.float32),
        )(x, slab)

    return forward, slab


if __name__ == "__main__":
    key = jax.random.PRNGKey(0)
    k_param, k_x = jax.random.split(key)
    params = init_params(k_param)
    forward, slab = make_forward(params)
    x = jax.random.normal(k_x, (N_NODES, IN_DIM), jnp.float32)

    out = jax.block_until_ready(forward(slab, x))
    assert out.shape == (N_NODES, OUTPUT_DIM)
    assert jnp.all(jnp.isfinite(out))
    print("KERNEL_OK")
</pallas_src>

<mosaic_0001>
module attributes {stable_mosaic.version = 11 : i64} {
  func.func @kernel(%arg0: memref<64x8xf32, #tpu.memory_space<vmem>>, %arg1: memref<712x128xf32, #tpu.memory_space<vmem>>, %arg2: memref<64x8xf32, #tpu.memory_space<vmem>>) attributes {dimension_semantics = [], scalar_prefetch = 0 : i64, scratch_operands = 0 : i64, tpu.core_type = #tpu.core_type<tc>} {
    %c0 = arith.constant 0 : index
    %c0_0 = arith.constant 0 : index
    %0 = vector.load %arg0[%c0, %c0_0] : memref<64x8xf32, #tpu.memory_space<vmem>>, vector<64x8xf32>
    %c0_1 = arith.constant 0 : index
    %c0_2 = arith.constant 0 : index
    %1 = vector.load %arg1[%c0_1, %c0_2] : memref<712x128xf32, #tpu.memory_space<vmem>>, vector<8x32xf32>
    %c8 = arith.constant 8 : index
    %c0_3 = arith.constant 0 : index
    %2 = vector.load %arg1[%c8, %c0_3] : memref<712x128xf32, #tpu.memory_space<vmem>>, vector<1x32xf32>
    %cst = arith.constant dense<0.000000e+00> : vector<64x32xf32>
    %3 = tpu.matmul %0, %1, %cst {dimension_numbers = #tpu.dot_dimension_numbers<[1], [0], [0], [1], [0, 0, 1, 1], [], []>} : vector<64x8xf32>, vector<8x32xf32>, vector<64x32xf32> -> vector<64x32xf32>
    %4 = vector.broadcast %2 : vector<1x32xf32> to vector<64x32xf32>
    %5 = arith.addf %3, %4 : vector<64x32xf32>
    %cst_4 = arith.constant 0.000000e+00 : f32
    %6 = vector.broadcast %cst_4 : f32 to vector<64x32xf32>
    %7 = arith.maximumf %5, %6 : vector<64x32xf32>
    %c16 = arith.constant 16 : index
    %c0_5 = arith.constant 0 : index
    %8 = vector.load %arg1[%c16, %c0_5] : memref<712x128xf32, #tpu.memory_space<vmem>>, vector<32x32xf32>
    %c48 = arith.constant 48 : index
    %c0_6 = arith.constant 0 : index
    %9 = vector.load %arg1[%c48, %c0_6] : memref<712x128xf32, #tpu.memory_space<vmem>>, vector<1x32xf32>
    %cst_7 = arith.constant dense<0.000000e+00> : vector<64x32xf32>
    %10 = tpu.matmul %7, %8, %cst_7 {dimension_numbers = #tpu.dot_dimension_numbers<[1], [0], [0], [1], [0, 0, 1, 1], [], []>} : vector<64x32xf32>, vector<32x32xf32>, vector<64x32xf32> -> vector<64x32xf32>
    %11 = vector.broadcast %9 : vector<1x32xf32> to vector<64x32xf32>
    %12 = arith.addf %10, %11 : vector<64x32xf32>
    %cst_8 = arith.constant 0.000000e+00 : f32
    %13 = vector.broadcast %cst_8 : f32 to vector<64x32xf32>
    %14 = arith.maximumf %12, %13 : vector<64x32xf32>
    %c56 = arith.constant 56 : index
    %c0_9 = arith.constant 0 : index
    %15 = vector.load %arg1[%c56, %c0_9] : memref<712x128xf32, #tpu.memory_space<vmem>>, vector<32x32xf32>
    %c88 = arith.constant 88 : index
    %c0_10 = arith.constant 0 : index
    %16 = vector.load %arg1[%c88, %c0_10] : memref<712x128xf32, #tpu.memory_space<vmem>>, vector<1x32xf32>
    %c96 = arith.constant 96 : index
    %c0_11 = arith.constant 0 : index
    %17 = vector.load %arg1[%c96, %c0_11] : memref<712x128xf32, #tpu.memory_space<vmem>>, vector<8x16xf32>
    %c104 = arith.constant 104 : index
    %c0_12 = arith.constant 0 : index
    %18 = vector.load %arg1[%c104, %c0_12] : memref<712x128xf32, #tpu.memory_space<vmem>>, vector<8x16xf32>
    %cst_13 = arith.constant dense<0.000000e+00> : vector<64x32xf32>
    %19 = tpu.matmul %14, %15, %cst_13 {dimension_numbers = #tpu.dot_dimension_numbers<[1], [0], [0], [1], [0, 0, 1, 1], [], []>} : vector<64x32xf32>, vector<32x32xf32>, vector<64x32xf32> -> vector<64x32xf32>
    %20 = vector.broadcast %16 : vector<1x32xf32> to vector<64x32xf32>
    %21 = arith.addf %19, %20 : vector<64x32xf32>
    %22 = vector.extract_strided_slice %21 {offsets = [0, 0], sizes = [64, 8], strides = [1, 1]} : vector<64x32xf32> to vector<64x8xf32>
    %23 = vector.extract_strided_slice %21 {offsets = [0, 8], sizes = [64, 8], strides = [1, 1]} : vector<64x32xf32> to vector<64x8xf32>
    %24 = vector.extract_strided_slice %21 {offsets = [0, 16], sizes = [64, 16], strides = [1, 1]} : vector<64x32xf32> to vector<64x16xf32>
    %25 = arith.mulf %22, %22 : vector<64x8xf32>
    %cst_14 = arith.constant dense<0.000000e+00> : vector<64xf32>
    %26 = vector.multi_reduction <add>, %25, %cst_14 [1] : vector<64x8xf32> to vector<64xf32>
    %27 = vector.shape_cast %26 : vector<64xf32> to vector<64x1xf32>
    %cst_15 = arith.constant 1.000000e+00 : f32
    %28 = vector.broadcast %cst_15 : f32 to vector<64x1xf32>
    %cst_16 = arith.constant -2.000000e+00 : f32
    %29 = vector.broadcast %cst_16 : f32 to vector<64x8xf32>
    %30 = arith.mulf %22, %29 : vector<64x8xf32>
    %31 = tpu.concatenate %30, %28, %27 in 1 : vector<64x8xf32>, vector<64x1xf32>, vector<64x1xf32> -> vector<64x10xf32>
    %32 = tpu.concatenate %22, %27, %28 in 1 : vector<64x8xf32>, vector<64x1xf32>, vector<64x1xf32> -> vector<64x10xf32>
    %cst_17 = arith.constant dense<0.000000e+00> : vector<64x64xf32>
    %33 = tpu.matmul %31, %32, %cst_17 {dimension_numbers = #tpu.dot_dimension_numbers<[1], [1], [0], [0], [0, 0, 1, 0], [], []>} : vector<64x10xf32>, vector<64x10xf32>, vector<64x64xf32> -> vector<64x64xf32>
    %cst_18 = arith.constant 0.000000e+00 : f32
    %34 = vector.broadcast %cst_18 : f32 to vector<64x64xf32>
    %35 = arith.maximumf %33, %34 : vector<64x64xf32>
    %36 = tpu.iota {dimensions = array<i32: 1>} : vector<64x64xi32>
    %37 = tpu.bitcast %35 : vector<64x64xf32> -> vector<64x64xi32>
    %c-64_i32 = arith.constant -64 : i32
    %38 = vector.broadcast %c-64_i32 : i32 to vector<64x64xi32>
    %39 = arith.andi %37, %38 : vector<64x64xi32>
    %40 = arith.ori %39, %36 : vector<64x64xi32>
    %41 = tpu.bitcast %40 : vector<64x64xi32> -> vector<64x64xf32>
    %cst_19 = arith.constant 0.000000e+00 : f32
    %42 = vector.broadcast %cst_19 : f32 to vector<64x8xf32>
    %cst_20 = arith.constant 0.000000e+00 : f32
    %cst_21 = arith.constant 1.000000e+30 : f32
    %43 = arith.subf %cst_20, %cst_21 : f32
    %44 = vector.broadcast %43 : f32 to vector<64x8xf32>
    %cst_22 = arith.constant dense<0x7F800000> : vector<64xf32>
    %45 = vector.multi_reduction <minimumf>, %41, %cst_22 [1] : vector<64x64xf32> to vector<64xf32>
    %46 = vector.shape_cast %45 : vector<64xf32> to vector<64x1xf32>
    %47 = tpu.bitcast %46 : vector<64x1xf32> -> vector<64x1xi32>
    %c63_i32 = arith.constant 63 : i32
    %48 = vector.broadcast %c63_i32 : i32 to vector<64x1xi32>
    %49 = arith.andi %47, %48 : vector<64x1xi32>
    %c-64_i32_23 = arith.constant -64 : i32
    %50 = vector.broadcast %c-64_i32_23 : i32 to vector<64x1xi32>
    %51 = arith.andi %47, %50 : vector<64x1xi32>
    %52 = tpu.bitcast %51 : vector<64x1xi32> -> vector<64x1xf32>
    %53 = vector.broadcast %49 : vector<64x1xi32> to vector<64x64xi32>
    %54 = arith.cmpi eq, %36, %53 : vector<64x64xi32>
    %cst_24 = arith.constant -1.000000e+01 : f32
    %55 = vector.broadcast %cst_24 : f32 to vector<64x1xf32>
    %56 = arith.mulf %55, %52 : vector<64x1xf32>
    %57 = math.exp %56 : vector<64x1xf32>
    %58 = arith.extui %54 : vector<64x64xi1> to vector<64x64xi32>
    %59 = arith.sitofp %58 : vector<64x64xi32> to vector<64x64xf32>
    %cst_25 = arith.constant dense<0.000000e+00> : vector<64x8xf32>
    %60 = tpu.matmul %59, %23, %cst_25 {dimension_numbers = #tpu.dot_dimension_numbers<[1], [0], [0], [1], [0, 0, 1, 1], [], []>} : vector<64x64xf32>, vector<64x8xf32>, vector<64x8xf32> -> vector<64x8xf32>
    %61 = vector.broadcast %57 : vector<64x1xf32> to vector<64x8xf32>
    %62 = arith.mulf %61, %60 : vector<64x8xf32>
    %63 = arith.addf %42, %62 : vector<64x8xf32>
    %64 = arith.maximumf %44, %62 : vector<64x8xf32>
    %cst_26 = arith.constant 1.000000e+30 : f32
    %65 = vector.broadcast %cst_26 : f32 to vector<64x64xf32>
    %66 = arith.select %54, %65, %41 : vector<64x64xi1>, vector<64x64xf32>
    %cst_27 = arith.constant dense<0x7F800000> : vector<64xf32>
    %67 = vector.multi_reduction <minimumf>, %66, %cst_27 [1] : vector<64x64xf32> to vector<64xf32>
    %68 = vector.shape_cast %67 : vector<64xf32> to vector<64x1xf32>
    %69 = tpu.bitcast %68 : vector<64x1xf32> -> vector<64x1xi32>
    %c63_i32_28 = arith.constant 63 : i32
    %70 = vector.broadcast %c63_i32_28 : i32 to vector<64x1xi32>
    %71 = arith.andi %69, %70 : vector<64x1xi32>
    %c-64_i32_29 = arith.constant -64 : i32
    %72 = vector.broadcast %c-64_i32_29 : i32 to vector<64x1xi32>
    %73 = arith.andi %69, %72 : vector<64x1xi32>
    %74 = tpu.bitcast %73 : vector<64x1xi32> -> vector<64x1xf32>
    %75 = vector.broadcast %71 : vector<64x1xi32> to vector<64x64xi32>
    %76 = arith.cmpi eq, %36, %75 : vector<64x64xi32>
    %cst_30 = arith.constant -1.000000e+01 : f32
    %77 = vector.broadcast %cst_30 : f32 to vector<64x1xf32>
    %78 = arith.mulf %77, %74 : vector<64x1xf32>
    %79 = math.exp %78 : vector<64x1xf32>
    %80 = arith.extui %76 : vector<64x64xi1> to vector<64x64xi32>
    %81 = arith.sitofp %80 : vector<64x64xi32> to vector<64x64xf32>
    %cst_31 = arith.constant dense<0.000000e+00> : vector<64x8xf32>
    %82 = tpu.matmul %81, %23, %cst_31 {dimension_numbers = #tpu.dot_dimension_numbers<[1], [0], [0], [1], [0, 0, 1, 1], [], []>} : vector<64x64xf32>, vector<64x8xf32>, vector<64x8xf32> -> vector<64x8xf32>
    %83 = vector.broadcast %79 : vector<64x1xf32> to vector<64x8xf32>
    %84 = arith.mulf %83, %82 : vector<64x8xf32>
    %85 = arith.addf %63, %84 : vector<64x8xf32>
    %86 = arith.maximumf %64, %84 : vector<64x8xf32>
    %cst_32 = arith.constant 1.000000e+30 : f32
    %87 = vector.broadcast %cst_32 : f32 to vector<64x64xf32>
    %88 = arith.select %76, %87, %66 : vector<64x64xi1>, vector<64x64xf32>
    %cst_33 = arith.constant dense<0x7F800000> : vector<64xf32>
    %89 = vector.multi_reduction <minimumf>, %88, %cst_33 [1] : vector<64x64xf32> to vector<64xf32>
    %90 = vector.shape_cast %89 : vector<64xf32> to vector<64x1xf32>
    %91 = tpu.bitcast %90 : vector<64x1xf32> -> vector<64x1xi32>
    %c63_i32_34 = arith.constant 63 : i32
    %92 = vector.broadcast %c63_i32_34 : i32 to vector<64x1xi32>
    %93 = arith.andi %91, %92 : vector<64x1xi32>
    %c-64_i32_35 = arith.constant -64 : i32
    %94 = vector.broadcast %c-64_i32_35 : i32 to vector<64x1xi32>
    %95 = arith.andi %91, %94 : vector<64x1xi32>
    %96 = tpu.bitcast %95 : vector<64x1xi32> -> vector<64x1xf32>
    %97 = vector.broadcast %93 : vector<64x1xi32> to vector<64x64xi32>
    %98 = arith.cmpi eq, %36, %97 : vector<64x64xi32>
    %cst_36 = arith.constant -1.000000e+01 : f32
    %99 = vector.broadcast %cst_36 : f32 to vector<64x1xf32>
    %100 = arith.mulf %99, %96 : vector<64x1xf32>
    %101 = math.exp %100 : vector<64x1xf32>
    %102 = arith.extui %98 : vector<64x64xi1> to vector<64x64xi32>
    %103 = arith.sitofp %102 : vector<64x64xi32> to vector<64x64xf32>
    %cst_37 = arith.constant dense<0.000000e+00> : vector<64x8xf32>
    %104 = tpu.matmul %103, %23, %cst_37 {dimension_numbers = #tpu.dot_dimension_numbers<[1], [0], [0], [1], [0, 0, 1, 1], [], []>} : vector<64x64xf32>, vector<64x8xf32>, vector<64x8xf32> -> vector<64x8xf32>
    %105 = vector.broadcast %101 : vector<64x1xf32> to vector<64x8xf32>
    %106 = arith.mulf %105, %104 : vector<64x8xf32>
    %107 = arith.addf %85, %106 : vector<64x8xf32>
    %108 = arith.maximumf %86, %106 : vector<64x8xf32>
    %cst_38 = arith.constant 1.000000e+30 : f32
    %109 = vector.broadcast %cst_38 : f32 to vector<64x64xf32>
    %110 = arith.select %98, %109, %88 : vector<64x64xi1>, vector<64x64xf32>
    %cst_39 = arith.constant dense<0x7F800000> : vector<64xf32>
    %111 = vector.multi_reduction <minimumf>, %110, %cst_39 [1] : vector<64x64xf32> to vector<64xf32>
    %112 = vector.shape_cast %111 : vector<64xf32> to vector<64x1xf32>
    %113 = tpu.bitcast %112 : vector<64x1xf32> -> vector<64x1xi32>
    %c63_i32_40 = arith.constant 63 : i32
    %114 = vector.broadcast %c63_i32_40 : i32 to vector<64x1xi32>
    %115 = arith.andi %113, %114 : vector<64x1xi32>
    %c-64_i32_41 = arith.constant -64 : i32
    %116 = vector.broadcast %c-64_i32_41 : i32 to vector<64x1xi32>
    %117 = arith.andi %113, %116 : vector<64x1xi32>
    %118 = tpu.bitcast %117 : vector<64x1xi32> -> vector<64x1xf32>
    %119 = vector.broadcast %115 : vector<64x1xi32> to vector<64x64xi32>
    %120 = arith.cmpi eq, %36, %119 : vector<64x64xi32>
    %cst_42 = arith.constant -1.000000e+01 : f32
    %121 = vector.broadcast %cst_42 : f32 to vector<64x1xf32>
    %122 = arith.mulf %121, %118 : vector<64x1xf32>
    %123 = math.exp %122 : vector<64x1xf32>
    %124 = arith.extui %120 : vector<64x64xi1> to vector<64x64xi32>
    %125 = arith.sitofp %124 : vector<64x64xi32> to vector<64x64xf32>
    %cst_43 = arith.constant dense<0.000000e+00> : vector<64x8xf32>
    %126 = tpu.matmul %125, %23, %cst_43 {dimension_numbers = #tpu.dot_dimension_numbers<[1], [0], [0], [1], [0, 0, 1, 1], [], []>} : vector<64x64xf32>, vector<64x8xf32>, vector<64x8xf32> -> vector<64x8xf32>
    %127 = vector.broadcast %123 : vector<64x1xf32> to vector<64x8xf32>
    %128 = arith.mulf %127, %126 : vector<64x8xf32>
    %129 = arith.addf %107, %128 : vector<64x8xf32>
    %130 = arith.maximumf %108, %128 : vector<64x8xf32>
    %cst_44 = arith.constant 2.500000e-01 : f32
    %131 = vector.broadcast %cst_44 : f32 to vector<64x8xf32>
    %132 = arith.mulf %129, %131 : vector<64x8xf32>
    %cst_45 = arith.constant dense<0.000000e+00> : vector<64x16xf32>
    %133 = tpu.matmul %132, %17, %cst_45 {dimension_numbers = #tpu.dot_dimension_numbers<[1], [0], [0], [1], [0, 0, 1, 1], [], []>} : vector<64x8xf32>, vector<8x16xf32>, vector<64x16xf32> -> vector<64x16xf32>
    %134 = arith.addf %24, %133 : vector<64x16xf32>
    %cst_46 = arith.constant dense<0.000000e+00> : vector<64x16xf32>
    %135 = tpu.matmul %130, %18, %cst_46 {dimension_numbers = #tpu.dot_dimension_numbers<[1], [0], [0], [1], [0, 0, 1, 1], [], []>} : vector<64x8xf32>, vector<8x16xf32>, vector<64x16xf32> -> vector<64x16xf32>
    %136 = arith.addf %134, %135 : vector<64x16xf32>
    %c112 = arith.constant 112 : index
    %c0_47 = arith.constant 0 : index
    %137 = vector.load %arg1[%c112, %c0_47] : memref<712x128xf32, #tpu.memory_space<vmem>>, vector<16x32xf32>
    %c128 = arith.constant 128 : index
    %c0_48 = arith.constant 0 : index
    %138 = vector.load %arg1[%c128, %c0_48] : memref<712x128xf32, #tpu.memory_space<vmem>>, vector<1x32xf32>
    %cst_49 = arith.constant dense<0.000000e+00> : vector<64x32xf32>
    %139 = tpu.matmul %136, %137, %cst_49 {dimension_numbers = #tpu.dot_dimension_numbers<[1], [0], [0], [1], [0, 0, 1, 1], [], []>} : vector<64x16xf32>, vector<16x32xf32>, vector<64x32xf32> -> vector<64x32xf32>
    %140 = vector.broadcast %138 : vector<1x32xf32> to vector<64x32xf32>
    %141 = arith.addf %139, %140 : vector<64x32xf32>
    %cst_50 = arith.constant 0.000000e+00 : f32
    %142 = vector.broadcast %cst_50 : f32 to vector<64x32xf32>
    %143 = arith.maximumf %141, %142 : vector<64x32xf32>
    %c136 = arith.constant 136 : index
    %c0_51 = arith.constant 0 : index
    %144 = vector.load %arg1[%c136, %c0_51] : memref<712x128xf32, #tpu.memory_space<vmem>>, vector<32x32xf32>
    %c168 = arith.constant 168 : index
    %c0_52 = arith.constant 0 : index
    %145 = vector.load %arg1[%c168, %c0_52] : memref<712x128xf32, #tpu.memory_space<vmem>>, vector<1x32xf32>
    %cst_53 = arith.constant dense<0.000000e+00> : vector<64x32xf32>
    %146 = tpu.matmul %143, %144, %cst_53 {dimension_numbers = #tpu.dot_dimension_numbers<[1], [0], [0], [1], [0, 0, 1, 1], [], []>} : vector<64x32xf32>, vector<32x32xf32>, vector<64x32xf32> -> vector<64x32xf32>
    %147 = vector.broadcast %145 : vector<1x32xf32> to vector<64x32xf32>
    %148 = arith.addf %146, %147 : vector<64x32xf32>
    %cst_54 = arith.constant 0.000000e+00 : f32
    %149 = vector.broadcast %cst_54 : f32 to vector<64x32xf32>
    %150 = arith.maximumf %148, %149 : vector<64x32xf32>
    %c176 = arith.constant 176 : index
    %c0_55 = arith.constant 0 : index
    %151 = vector.load %arg1[%c176, %c0_55] : memref<712x128xf32, #tpu.memory_space<vmem>>, vector<32x16xf32>
    %c208 = arith.constant 208 : index
    %c0_56 = arith.constant 0 : index
    %152 = vector.load %arg1[%c208, %c0_56] : memref<712x128xf32, #tpu.memory_space<vmem>>, vector<1x16xf32>
    %cst_57 = arith.constant dense<0.000000e+00> : vector<64x16xf32>
    %153 = tpu.matmul %150, %151, %cst_57 {dimension_numbers = #tpu.dot_dimension_numbers<[1], [0], [0], [1], [0, 0, 1, 1], [], []>} : vector<64x32xf32>, vector<32x16xf32>, vector<64x16xf32> -> vector<64x16xf32>
    %154 = vector.broadcast %152 : vector<1x16xf32> to vector<64x16xf32>
    %155 = arith.addf %153, %154 : vector<64x16xf32>
    %cst_58 = arith.constant 0.000000e+00 : f32
    %156 = vector.broadcast %cst_58 : f32 to vector<64x16xf32>
    %157 = arith.maximumf %155, %156 : vector<64x16xf32>
    %c216 = arith.constant 216 : index
    %c0_59 = arith.constant 0 : index
    %158 = vector.load %arg1[%c216, %c0_59] : memref<712x128xf32, #tpu.memory_space<vmem>>, vector<16x32xf32>
    %c232 = arith.constant 232 : index
    %c0_60 = arith.constant 0 : index
    %159 = vector.load %arg1[%c232, %c0_60] : memref<712x128xf32, #tpu.memory_space<vmem>>, vector<1x32xf32>
    %c240 = arith.constant 240 : index
    %c0_61 = arith.constant 0 : index
    %160 = vector.load %arg1[%c240, %c0_61] : memref<712x128xf32, #tpu.memory_space<vmem>>, vector<8x16xf32>
    %c248 = arith.constant 248 : index
    %c0_62 = arith.constant 0 : index
    %161 = vector.load %arg1[%c248, %c0_62] : memref<712x128xf32, #tpu.memory_space<vmem>>, vector<8x16xf32>
    %cst_63 = arith.constant dense<0.000000e+00> : vector<64x32xf32>
    %162 = tpu.matmul %157, %158, %cst_63 {dimension_numbers = #tpu.dot_dimension_numbers<[1], [0], [0], [1], [0, 0, 1, 1], [], []>} : vector<64x16xf32>, vector<16x32xf32>, vector<64x32xf32> -> vector<64x32xf32>
    %163 = vector.broadcast %159 : vector<1x32xf32> to vector<64x32xf32>
    %164 = arith.addf %162, %163 : vector<64x32xf32>
    %165 = vector.extract_strided_slice %164 {offsets = [0, 0], sizes = [64, 8], strides = [1, 1]} : vector<64x32xf32> to vector<64x8xf32>
    %166 = vector.extract_strided_slice %164 {offsets = [0, 8], sizes = [64, 8], strides = [1, 1]} : vector<64x32xf32> to vector<64x8xf32>
    %167 = vector.extract_strided_slice %164 {offsets = [0, 16], sizes = [64, 16], strides = [1, 1]} : vector<64x32xf32> to vector<64x16xf32>
    %168 = arith.mulf %165, %165 : vector<64x8xf32>
    %cst_64 = arith.constant dense<0.000000e+00> : vector<64xf32>
    %169 = vector.multi_reduction <add>, %168, %cst_64 [1] : vector<64x8xf32> to vector<64xf32>
    %170 = vector.shape_cast %169 : vector<64xf32> to vector<64x1xf32>
    %cst_65 = arith.constant 1.000000e+00 : f32
    %171 = vector.broadcast %cst_65 : f32 to vector<64x1xf32>
    %cst_66 = arith.constant -2.000000e+00 : f32
    %172 = vector.broadcast %cst_66 : f32 to vector<64x8xf32>
    %173 = arith.mulf %165, %172 : vector<64x8xf32>
    %174 = tpu.concatenate %173, %171, %170 in 1 : vector<64x8xf32>, vector<64x1xf32>, vector<64x1xf32> -> vector<64x10xf32>
    %175 = tpu.concatenate %165, %170, %171 in 1 : vector<64x8xf32>, vector<64x1xf32>, vector<64x1xf32> -> vector<64x10xf32>
    %cst_67 = arith.constant dense<0.000000e+00> : vector<64x64xf32>
    %176 = tpu.matmul %174, %175, %cst_67 {dimension_numbers = #tpu.dot_dimension_numbers<[1], [1], [0], [0], [0, 0, 1, 0], [], []>} : vector<64x10xf32>, vector<64x10xf32>, vector<64x64xf32> -> vector<64x64xf32>
    %cst_68 = arith.constant 0.000000e+00 : f32
    %177 = vector.broadcast %cst_68 : f32 to vector<64x64xf32>
    %178 = arith.maximumf %176, %177 : vector<64x64xf32>
    %179 = tpu.iota {dimensions = array<i32: 1>} : vector<64x64xi32>
    %180 = tpu.bitcast %178 : vector<64x64xf32> -> vector<64x64xi32>
    %c-64_i32_69 = arith.constant -64 : i32
    %181 = vector.broadcast %c-64_i32_69 : i32 to vector<64x64xi32>
    %182 = arith.andi %180, %181 : vector<64x64xi32>
    %183 = arith.ori %182, %179 : vector<64x64xi32>
    %184 = tpu.bitcast %183 : vector<64x64xi32> -> vector<64x64xf32>
    %cst_70 = arith.constant 0.000000e+00 : f32
    %185 = vector.broadcast %cst_70 : f32 to vector<64x8xf32>
    %cst_71 = arith.constant 0.000000e+00 : f32
    %cst_72 = arith.constant 1.000000e+30 : f32
    %186 = arith.subf %cst_71, %cst_72 : f32
    %187 = vector.broadcast %186 : f32 to vector<64x8xf32>
    %cst_73 = arith.constant dense<0x7F800000> : vector<64xf32>
    %188 = vector.multi_reduction <minimumf>, %184, %cst_73 [1] : vector<64x64xf32> to vector<64xf32>
    %189 = vector.shape_cast %188 : vector<64xf32> to vector<64x1xf32>
    %190 = tpu.bitcast %189 : vector<64x1xf32> -> vector<64x1xi32>
    %c63_i32_74 = arith.constant 63 : i32
    %191 = vector.broadcast %c63_i32_74 : i32 to vector<64x1xi32>
    %192 = arith.andi %190, %191 : vector<64x1xi32>
    %c-64_i32_75 = arith.constant -64 : i32
    %193 = vector.broadcast %c-64_i32_75 : i32 to vector<64x1xi32>
    %194 = arith.andi %190, %193 : vector<64x1xi32>
    %195 = tpu.bitcast %194 : vector<64x1xi32> -> vector<64x1xf32>
    %196 = vector.broadcast %192 : vector<64x1xi32> to vector<64x64xi32>
    %197 = arith.cmpi eq, %179, %196 : vector<64x64xi32>
    %cst_76 = arith.constant -1.000000e+01 : f32
    %198 = vector.broadcast %cst_76 : f32 to vector<64x1xf32>
    %199 = arith.mulf %198, %195 : vector<64x1xf32>
    %200 = math.exp %199 : vector<64x1xf32>
    %201 = arith.extui %197 : vector<64x64xi1> to vector<64x64xi32>
    %202 = arith.sitofp %201 : vector<64x64xi32> to vector<64x64xf32>
    %cst_77 = arith.constant dense<0.000000e+00> : vector<64x8xf32>
    %203 = tpu.matmul %202, %166, %cst_77 {dimension_numbers = #tpu.dot_dimension_numbers<[1], [0], [0], [1], [0, 0, 1, 1], [], []>} : vector<64x64xf32>, vector<64x8xf32>, vector<64x8xf32> -> vector<64x8xf32>
    %204 = vector.broadcast %200 : vector<64x1xf32> to vector<64x8xf32>
    %205 = arith.mulf %204, %203 : vector<64x8xf32>
    %206 = arith.addf %185, %205 : vector<64x8xf32>
    %207 = arith.maximumf %187, %205 : vector<64x8xf32>
    %cst_78 = arith.constant 1.000000e+30 : f32
    %208 = vector.broadcast %cst_78 : f32 to vector<64x64xf32>
    %209 = arith.select %197, %208, %184 : vector<64x64xi1>, vector<64x64xf32>
    %cst_79 = arith.constant dense<0x7F800000> : vector<64xf32>
    %210 = vector.multi_reduction <minimumf>, %209, %cst_79 [1] : vector<64x64xf32> to vector<64xf32>
    %211 = vector.shape_cast %210 : vector<64xf32> to vector<64x1xf32>
    %212 = tpu.bitcast %211 : vector<64x1xf32> -> vector<64x1xi32>
    %c63_i32_80 = arith.constant 63 : i32
    %213 = vector.broadcast %c63_i32_80 : i32 to vector<64x1xi32>
    %214 = arith.andi %212, %213 : vector<64x1xi32>
    %c-64_i32_81 = arith.constant -64 : i32
    %215 = vector.broadcast %c-64_i32_81 : i32 to vector<64x1xi32>
    %216 = arith.andi %212, %215 : vector<64x1xi32>
    %217 = tpu.bitcast %216 : vector<64x1xi32> -> vector<64x1xf32>
    %218 = vector.broadcast %214 : vector<64x1xi32> to vector<64x64xi32>
    %219 = arith.cmpi eq, %179, %218 : vector<64x64xi32>
    %cst_82 = arith.constant -1.000000e+01 : f32
    %220 = vector.broadcast %cst_82 : f32 to vector<64x1xf32>
    %221 = arith.mulf %220, %217 : vector<64x1xf32>
    %222 = math.exp %221 : vector<64x1xf32>
    %223 = arith.extui %219 : vector<64x64xi1> to vector<64x64xi32>
    %224 = arith.sitofp %223 : vector<64x64xi32> to vector<64x64xf32>
    %cst_83 = arith.constant dense<0.000000e+00> : vector<64x8xf32>
    %225 = tpu.matmul %224, %166, %cst_83 {dimension_numbers = #tpu.dot_dimension_numbers<[1], [0], [0], [1], [0, 0, 1, 1], [], []>} : vector<64x64xf32>, vector<64x8xf32>, vector<64x8xf32> -> vector<64x8xf32>
    %226 = vector.broadcast %222 : vector<64x1xf32> to vector<64x8xf32>
    %227 = arith.mulf %226, %225 : vector<64x8xf32>
    %228 = arith.addf %206, %227 : vector<64x8xf32>
    %229 = arith.maximumf %207, %227 : vector<64x8xf32>
    %cst_84 = arith.constant 1.000000e+30 : f32
    %230 = vector.broadcast %cst_84 : f32 to vector<64x64xf32>
    %231 = arith.select %219, %230, %209 : vector<64x64xi1>, vector<64x64xf32>
    %cst_85 = arith.constant dense<0x7F800000> : vector<64xf32>
    %232 = vector.multi_reduction <minimumf>, %231, %cst_85 [1] : vector<64x64xf32> to vector<64xf32>
    %233 = vector.shape_cast %232 : vector<64xf32> to vector<64x1xf32>
    %234 = tpu.bitcast %233 : vector<64x1xf32> -> vector<64x1xi32>
    %c63_i32_86 = arith.constant 63 : i32
    %235 = vector.broadcast %c63_i32_86 : i32 to vector<64x1xi32>
    %236 = arith.andi %234, %235 : vector<64x1xi32>
    %c-64_i32_87 = arith.constant -64 : i32
    %237 = vector.broadcast %c-64_i32_87 : i32 to vector<64x1xi32>
    %238 = arith.andi %234, %237 : vector<64x1xi32>
    %239 = tpu.bitcast %238 : vector<64x1xi32> -> vector<64x1xf32>
    %240 = vector.broadcast %236 : vector<64x1xi32> to vector<64x64xi32>
    %241 = arith.cmpi eq, %179, %240 : vector<64x64xi32>
    %cst_88 = arith.constant -1.000000e+01 : f32
    %242 = vector.broadcast %cst_88 : f32 to vector<64x1xf32>
    %243 = arith.mulf %242, %239 : vector<64x1xf32>
    %244 = math.exp %243 : vector<64x1xf32>
    %245 = arith.extui %241 : vector<64x64xi1> to vector<64x64xi32>
    %246 = arith.sitofp %245 : vector<64x64xi32> to vector<64x64xf32>
    %cst_89 = arith.constant dense<0.000000e+00> : vector<64x8xf32>
    %247 = tpu.matmul %246, %166, %cst_89 {dimension_numbers = #tpu.dot_dimension_numbers<[1], [0], [0], [1], [0, 0, 1, 1], [], []>} : vector<64x64xf32>, vector<64x8xf32>, vector<64x8xf32> -> vector<64x8xf32>
    %248 = vector.broadcast %244 : vector<64x1xf32> to vector<64x8xf32>
    %249 = arith.mulf %248, %247 : vector<64x8xf32>
    %250 = arith.addf %228, %249 : vector<64x8xf32>
    %251 = arith.maximumf %229, %249 : vector<64x8xf32>
    %cst_90 = arith.constant 1.000000e+30 : f32
    %252 = vector.broadcast %cst_90 : f32 to vector<64x64xf32>
    %253 = arith.select %241, %252, %231 : vector<64x64xi1>, vector<64x64xf32>
    %cst_91 = arith.constant dense<0x7F800000> : vector<64xf32>
    %254 = vector.multi_reduction <minimumf>, %253, %cst_91 [1] : vector<64x64xf32> to vector<64xf32>
    %255 = vector.shape_cast %254 : vector<64xf32> to vector<64x1xf32>
    %256 = tpu.bitcast %255 : vector<64x1xf32> -> vector<64x1xi32>
    %c63_i32_92 = arith.constant 63 : i32
    %257 = vector.broadcast %c63_i32_92 : i32 to vector<64x1xi32>
    %258 = arith.andi %256, %257 : vector<64x1xi32>
    %c-64_i32_93 = arith.constant -64 : i32
    %259 = vector.broadcast %c-64_i32_93 : i32 to vector<64x1xi32>
    %260 = arith.andi %256, %259 : vector<64x1xi32>
    %261 = tpu.bitcast %260 : vector<64x1xi32> -> vector<64x1xf32>
    %262 = vector.broadcast %258 : vector<64x1xi32> to vector<64x64xi32>
    %263 = arith.cmpi eq, %179, %262 : vector<64x64xi32>
    %cst_94 = arith.constant -1.000000e+01 : f32
    %264 = vector.broadcast %cst_94 : f32 to vector<64x1xf32>
    %265 = arith.mulf %264, %261 : vector<64x1xf32>
    %266 = math.exp %265 : vector<64x1xf32>
    %267 = arith.extui %263 : vector<64x64xi1> to vector<64x64xi32>
    %268 = arith.sitofp %267 : vector<64x64xi32> to vector<64x64xf32>
    %cst_95 = arith.constant dense<0.000000e+00> : vector<64x8xf32>
    %269 = tpu.matmul %268, %166, %cst_95 {dimension_numbers = #tpu.dot_dimension_numbers<[1], [0], [0], [1], [0, 0, 1, 1], [], []>} : vector<64x64xf32>, vector<64x8xf32>, vector<64x8xf32> -> vector<64x8xf32>
    %270 = vector.broadcast %266 : vector<64x1xf32> to vector<64x8xf32>
    %271 = arith.mulf %270, %269 : vector<64x8xf32>
    %272 = arith.addf %250, %271 : vector<64x8xf32>
    %273 = arith.maximumf %251, %271 : vector<64x8xf32>
    %cst_96 = arith.constant 2.500000e-01 : f32
    %274 = vector.broadcast %cst_96 : f32 to vector<64x8xf32>
    %275 = arith.mulf %272, %274 : vector<64x8xf32>
    %cst_97 = arith.constant dense<0.000000e+00> : vector<64x16xf32>
    %276 = tpu.matmul %275, %160, %cst_97 {dimension_numbers = #tpu.dot_dimension_numbers<[1], [0], [0], [1], [0, 0, 1, 1], [], []>} : vector<64x8xf32>, vector<8x16xf32>, vector<64x16xf32> -> vector<64x16xf32>
    %277 = arith.addf %167, %276 : vector<64x16xf32>
    %cst_98 = arith.constant dense<0.000000e+00> : vector<64x16xf32>
    %278 = tpu.matmul %273, %161, %cst_98 {dimension_numbers = #tpu.dot_dimension_numbers<[1], [0], [0], [1], [0, 0, 1, 1], [], []>} : vector<64x8xf32>, vector<8x16xf32>, vector<64x16xf32> -> vector<64x16xf32>
    %279 = arith.addf %277, %278 : vector<64x16xf32>
    %c256 = arith.constant 256 : index
    %c0_99 = arith.constant 0 : index
    %280 = vector.load %arg1[%c256, %c0_99] : memref<712x128xf32, #tpu.memory_space<vmem>>, vector<16x32xf32>
    %c272 = arith.constant 272 : index
    %c0_100 = arith.constant 0 : index
    %281 = vector.load %arg1[%c272, %c0_100] : memref<712x128xf32, #tpu.memory_space<vmem>>, vector<1x32xf32>
    %cst_101 = arith.constant dense<0.000000e+00> : vector<64x32xf32>
    %282 = tpu.matmul %279, %280, %cst_101 {dimension_numbers = #tpu.dot_dimension_numbers<[1], [0], [0], [1], [0, 0, 1, 1], [], []>} : vector<64x16xf32>, vector<16x32xf32>, vector<64x32xf32> -> vector<64x32xf32>
    %283 = vector.broadcast %281 : vector<1x32xf32> to vector<64x32xf32>
    %284 = arith.addf %282, %283 : vector<64x32xf32>
    %cst_102 = arith.constant 0.000000e+00 : f32
    %285 = vector.broadcast %cst_102 : f32 to vector<64x32xf32>
    %286 = arith.maximumf %284, %285 : vector<64x32xf32>
    %c280 = arith.constant 280 : index
    %c0_103 = arith.constant 0 : index
    %287 = vector.load %arg1[%c280, %c0_103] : memref<712x128xf32, #tpu.memory_space<vmem>>, vector<32x32xf32>
    %c312 = arith.constant 312 : index
    %c0_104 = arith.constant 0 : index
    %288 = vector.load %arg1[%c312, %c0_104] : memref<712x128xf32, #tpu.memory_space<vmem>>, vector<1x32xf32>
    %cst_105 = arith.constant dense<0.000000e+00> : vector<64x32xf32>
    %289 = tpu.matmul %286, %287, %cst_105 {dimension_numbers = #tpu.dot_dimension_numbers<[1], [0], [0], [1], [0, 0, 1, 1], [], []>} : vector<64x32xf32>, vector<32x32xf32>, vector<64x32xf32> -> vector<64x32xf32>
    %290 = vector.broadcast %288 : vector<1x32xf32> to vector<64x32xf32>
    %291 = arith.addf %289, %290 : vector<64x32xf32>
    %cst_106 = arith.constant 0.000000e+00 : f32
    %292 = vector.broadcast %cst_106 : f32 to vector<64x32xf32>
    %293 = arith.maximumf %291, %292 : vector<64x32xf32>
    %c320 = arith.constant 320 : index
    %c0_107 = arith.constant 0 : index
    %294 = vector.load %arg1[%c320, %c0_107] : memref<712x128xf32, #tpu.memory_space<vmem>>, vector<32x16xf32>
    %c352 = arith.constant 352 : index
    %c0_108 = arith.constant 0 : index
    %295 = vector.load %arg1[%c352, %c0_108] : memref<712x128xf32, #tpu.memory_space<vmem>>, vector<1x16xf32>
    %cst_109 = arith.constant dense<0.000000e+00> : vector<64x16xf32>
    %296 = tpu.matmul %293, %294, %cst_109 {dimension_numbers = #tpu.dot_dimension_numbers<[1], [0], [0], [1], [0, 0, 1, 1], [], []>} : vector<64x32xf32>, vector<32x16xf32>, vector<64x16xf32> -> vector<64x16xf32>
    %297 = vector.broadcast %295 : vector<1x16xf32> to vector<64x16xf32>
    %298 = arith.addf %296, %297 : vector<64x16xf32>
    %cst_110 = arith.constant 0.000000e+00 : f32
    %299 = vector.broadcast %cst_110 : f32 to vector<64x16xf32>
    %300 = arith.maximumf %298, %299 : vector<64x16xf32>
    %c360 = arith.constant 360 : index
    %c0_111 = arith.constant 0 : index
    %301 = vector.load %arg1[%c360, %c0_111] : memref<712x128xf32, #tpu.memory_space<vmem>>, vector<16x32xf32>
    %c376 = arith.constant 376 : index
    %c0_112 = arith.constant 0 : index
    %302 = vector.load %arg1[%c376, %c0_112] : memref<712x128xf32, #tpu.memory_space<vmem>>, vector<1x32xf32>
    %c384 = arith.constant 384 : index
    %c0_113 = arith.constant 0 : index
    %303 = vector.load %arg1[%c384, %c0_113] : memref<712x128xf32, #tpu.memory_space<vmem>>, vector<8x16xf32>
    %c392 = arith.constant 392 : index
    %c0_114 = arith.constant 0 : index
    %304 = vector.load %arg1[%c392, %c0_114] : memref<712x128xf32, #tpu.memory_space<vmem>>, vector<8x16xf32>
    %cst_115 = arith.constant dense<0.000000e+00> : vector<64x32xf32>
    %305 = tpu.matmul %300, %301, %cst_115 {dimension_numbers = #tpu.dot_dimension_numbers<[1], [0], [0], [1], [0, 0, 1, 1], [], []>} : vector<64x16xf32>, vector<16x32xf32>, vector<64x32xf32> -> vector<64x32xf32>
    %306 = vector.broadcast %302 : vector<1x32xf32> to vector<64x32xf32>
    %307 = arith.addf %305, %306 : vector<64x32xf32>
    %308 = vector.extract_strided_slice %307 {offsets = [0, 0], sizes = [64, 8], strides = [1, 1]} : vector<64x32xf32> to vector<64x8xf32>
    %309 = vector.extract_strided_slice %307 {offsets = [0, 8], sizes = [64, 8], strides = [1, 1]} : vector<64x32xf32> to vector<64x8xf32>
    %310 = vector.extract_strided_slice %307 {offsets = [0, 16], sizes = [64, 16], strides = [1, 1]} : vector<64x32xf32> to vector<64x16xf32>
    %311 = arith.mulf %308, %308 : vector<64x8xf32>
    %cst_116 = arith.constant dense<0.000000e+00> : vector<64xf32>
    %312 = vector.multi_reduction <add>, %311, %cst_116 [1] : vector<64x8xf32> to vector<64xf32>
    %313 = vector.shape_cast %312 : vector<64xf32> to vector<64x1xf32>
    %cst_117 = arith.constant 1.000000e+00 : f32
    %314 = vector.broadcast %cst_117 : f32 to vector<64x1xf32>
    %cst_118 = arith.constant -2.000000e+00 : f32
    %315 = vector.broadcast %cst_118 : f32 to vector<64x8xf32>
    %316 = arith.mulf %308, %315 : vector<64x8xf32>
    %317 = tpu.concatenate %316, %314, %313 in 1 : vector<64x8xf32>, vector<64x1xf32>, vector<64x1xf32> -> vector<64x10xf32>
    %318 = tpu.concatenate %308, %313, %314 in 1 : vector<64x8xf32>, vector<64x1xf32>, vector<64x1xf32> -> vector<64x10xf32>
    %cst_119 = arith.constant dense<0.000000e+00> : vector<64x64xf32>
    %319 = tpu.matmul %317, %318, %cst_119 {dimension_numbers = #tpu.dot_dimension_numbers<[1], [1], [0], [0], [0, 0, 1, 0], [], []>} : vector<64x10xf32>, vector<64x10xf32>, vector<64x64xf32> -> vector<64x64xf32>
    %cst_120 = arith.constant 0.000000e+00 : f32
    %320 = vector.broadcast %cst_120 : f32 to vector<64x64xf32>
    %321 = arith.maximumf %319, %320 : vector<64x64xf32>
    %322 = tpu.iota {dimensions = array<i32: 1>} : vector<64x64xi32>
    %323 = tpu.bitcast %321 : vector<64x64xf32> -> vector<64x64xi32>
    %c-64_i32_121 = arith.constant -64 : i32
    %324 = vector.broadcast %c-64_i32_121 : i32 to vector<64x64xi32>
    %325 = arith.andi %323, %324 : vector<64x64xi32>
    %326 = arith.ori %325, %322 : vector<64x64xi32>
    %327 = tpu.bitcast %326 : vector<64x64xi32> -> vector<64x64xf32>
    %cst_122 = arith.constant 0.000000e+00 : f32
    %328 = vector.broadcast %cst_122 : f32 to vector<64x8xf32>
    %cst_123 = arith.constant 0.000000e+00 : f32
    %cst_124 = arith.constant 1.000000e+30 : f32
    %329 = arith.subf %cst_123, %cst_124 : f32
    %330 = vector.broadcast %329 : f32 to vector<64x8xf32>
    %cst_125 = arith.constant dense<0x7F800000> : vector<64xf32>
    %331 = vector.multi_reduction <minimumf>, %327, %cst_125 [1] : vector<64x64xf32> to vector<64xf32>
    %332 = vector.shape_cast %331 : vector<64xf32> to vector<64x1xf32>
    %333 = tpu.bitcast %332 : vector<64x1xf32> -> vector<64x1xi32>
    %c63_i32_126 = arith.constant 63 : i32
    %334 = vector.broadcast %c63_i32_126 : i32 to vector<64x1xi32>
    %335 = arith.andi %333, %334 : vector<64x1xi32>
    %c-64_i32_127 = arith.constant -64 : i32
    %336 = vector.broadcast %c-64_i32_127 : i32 to vector<64x1xi32>
    %337 = arith.andi %333, %336 : vector<64x1xi32>
    %338 = tpu.bitcast %337 : vector<64x1xi32> -> vector<64x1xf32>
    %339 = vector.broadcast %335 : vector<64x1xi32> to vector<64x64xi32>
    %340 = arith.cmpi eq, %322, %339 : vector<64x64xi32>
    %cst_128 = arith.constant -1.000000e+01 : f32
    %341 = vector.broadcast %cst_128 : f32 to vector<64x1xf32>
    %342 = arith.mulf %341, %338 : vector<64x1xf32>
    %343 = math.exp %342 : vector<64x1xf32>
    %344 = arith.extui %340 : vector<64x64xi1> to vector<64x64xi32>
    %345 = arith.sitofp %344 : vector<64x64xi32> to vector<64x64xf32>
    %cst_129 = arith.constant dense<0.000000e+00> : vector<64x8xf32>
    %346 = tpu.matmul %345, %309, %cst_129 {dimension_numbers = #tpu.dot_dimension_numbers<[1], [0], [0], [1], [0, 0, 1, 1], [], []>} : vector<64x64xf32>, vector<64x8xf32>, vector<64x8xf32> -> vector<64x8xf32>
    %347 = vector.broadcast %343 : vector<64x1xf32> to vector<64x8xf32>
    %348 = arith.mulf %347, %346 : vector<64x8xf32>
    %349 = arith.addf %328, %348 : vector<64x8xf32>
    %350 = arith.maximumf %330, %348 : vector<64x8xf32>
    %cst_130 = arith.constant 1.000000e+30 : f32
    %351 = vector.broadcast %cst_130 : f32 to vector<64x64xf32>
    %352 = arith.select %340, %351, %327 : vector<64x64xi1>, vector<64x64xf32>
    %cst_131 = arith.constant dense<0x7F800000> : vector<64xf32>
    %353 = vector.multi_reduction <minimumf>, %352, %cst_131 [1] : vector<64x64xf32> to vector<64xf32>
    %354 = vector.shape_cast %353 : vector<64xf32> to vector<64x1xf32>
    %355 = tpu.bitcast %354 : vector<64x1xf32> -> vector<64x1xi32>
    %c63_i32_132 = arith.constant 63 : i32
    %356 = vector.broadcast %c63_i32_132 : i32 to vector<64x1xi32>
    %357 = arith.andi %355, %356 : vector<64x1xi32>
    %c-64_i32_133 = arith.constant -64 : i32
    %358 = vector.broadcast %c-64_i32_133 : i32 to vector<64x1xi32>
    %359 = arith.andi %355, %358 : vector<64x1xi32>
    %360 = tpu.bitcast %359 : vector<64x1xi32> -> vector<64x1xf32>
    %361 = vector.broadcast %357 : vector<64x1xi32> to vector<64x64xi32>
    %362 = arith.cmpi eq, %322, %361 : vector<64x64xi32>
    %cst_134 = arith.constant -1.000000e+01 : f32
    %363 = vector.broadcast %cst_134 : f32 to vector<64x1xf32>
    %364 = arith.mulf %363, %360 : vector<64x1xf32>
    %365 = math.exp %364 : vector<64x1xf32>
    %366 = arith.extui %362 : vector<64x64xi1> to vector<64x64xi32>
    %367 = arith.sitofp %366 : vector<64x64xi32> to vector<64x64xf32>
    %cst_135 = arith.constant dense<0.000000e+00> : vector<64x8xf32>
    %368 = tpu.matmul %367, %309, %cst_135 {dimension_numbers = #tpu.dot_dimension_numbers<[1], [0], [0], [1], [0, 0, 1, 1], [], []>} : vector<64x64xf32>, vector<64x8xf32>, vector<64x8xf32> -> vector<64x8xf32>
    %369 = vector.broadcast %365 : vector<64x1xf32> to vector<64x8xf32>
    %370 = arith.mulf %369, %368 : vector<64x8xf32>
    %371 = arith.addf %349, %370 : vector<64x8xf32>
    %372 = arith.maximumf %350, %370 : vector<64x8xf32>
    %cst_136 = arith.constant 1.000000e+30 : f32
    %373 = vector.broadcast %cst_136 : f32 to vector<64x64xf32>
    %374 = arith.select %362, %373, %352 : vector<64x64xi1>, vector<64x64xf32>
    %cst_137 = arith.constant dense<0x7F800000> : vector<64xf32>
    %375 = vector.multi_reduction <minimumf>, %374, %cst_137 [1] : vector<64x64xf32> to vector<64xf32>
    %376 = vector.shape_cast %375 : vector<64xf32> to vector<64x1xf32>
    %377 = tpu.bitcast %376 : vector<64x1xf32> -> vector<64x1xi32>
    %c63_i32_138 = arith.constant 63 : i32
    %378 = vector.broadcast %c63_i32_138 : i32 to vector<64x1xi32>
    %379 = arith.andi %377, %378 : vector<64x1xi32>
    %c-64_i32_139 = arith.constant -64 : i32
    %380 = vector.broadcast %c-64_i32_139 : i32 to vector<64x1xi32>
    %381 = arith.andi %377, %380 : vector<64x1xi32>
    %382 = tpu.bitcast %381 : vector<64x1xi32> -> vector<64x1xf32>
    %383 = vector.broadcast %379 : vector<64x1xi32> to vector<64x64xi32>
    %384 = arith.cmpi eq, %322, %383 : vector<64x64xi32>
    %cst_140 = arith.constant -1.000000e+01 : f32
    %385 = vector.broadcast %cst_140 : f32 to vector<64x1xf32>
    %386 = arith.mulf %385, %382 : vector<64x1xf32>
    %387 = math.exp %386 : vector<64x1xf32>
    %388 = arith.extui %384 : vector<64x64xi1> to vector<64x64xi32>
    %389 = arith.sitofp %388 : vector<64x64xi32> to vector<64x64xf32>
    %cst_141 = arith.constant dense<0.000000e+00> : vector<64x8xf32>
    %390 = tpu.matmul %389, %309, %cst_141 {dimension_numbers = #tpu.dot_dimension_numbers<[1], [0], [0], [1], [0, 0, 1, 1], [], []>} : vector<64x64xf32>, vector<64x8xf32>, vector<64x8xf32> -> vector<64x8xf32>
    %391 = vector.broadcast %387 : vector<64x1xf32> to vector<64x8xf32>
    %392 = arith.mulf %391, %390 : vector<64x8xf32>
    %393 = arith.addf %371, %392 : vector<64x8xf32>
    %394 = arith.maximumf %372, %392 : vector<64x8xf32>
    %cst_142 = arith.constant 1.000000e+30 : f32
    %395 = vector.broadcast %cst_142 : f32 to vector<64x64xf32>
    %396 = arith.select %384, %395, %374 : vector<64x64xi1>, vector<64x64xf32>
    %cst_143 = arith.constant dense<0x7F800000> : vector<64xf32>
    %397 = vector.multi_reduction <minimumf>, %396, %cst_143 [1] : vector<64x64xf32> to vector<64xf32>
    %398 = vector.shape_cast %397 : vector<64xf32> to vector<64x1xf32>
    %399 = tpu.bitcast %398 : vector<64x1xf32> -> vector<64x1xi32>
    %c63_i32_144 = arith.constant 63 : i32
    %400 = vector.broadcast %c63_i32_144 : i32 to vector<64x1xi32>
    %401 = arith.andi %399, %400 : vector<64x1xi32>
    %c-64_i32_145 = arith.constant -64 : i32
    %402 = vector.broadcast %c-64_i32_145 : i32 to vector<64x1xi32>
    %403 = arith.andi %399, %402 : vector<64x1xi32>
    %404 = tpu.bitcast %403 : vector<64x1xi32> -> vector<64x1xf32>
    %405 = vector.broadcast %401 : vector<64x1xi32> to vector<64x64xi32>
    %406 = arith.cmpi eq, %322, %405 : vector<64x64xi32>
    %cst_146 = arith.constant -1.000000e+01 : f32
    %407 = vector.broadcast %cst_146 : f32 to vector<64x1xf32>
    %408 = arith.mulf %407, %404 : vector<64x1xf32>
    %409 = math.exp %408 : vector<64x1xf32>
    %410 = arith.extui %406 : vector<64x64xi1> to vector<64x64xi32>
    %411 = arith.sitofp %410 : vector<64x64xi32> to vector<64x64xf32>
    %cst_147 = arith.constant dense<0.000000e+00> : vector<64x8xf32>
    %412 = tpu.matmul %411, %309, %cst_147 {dimension_numbers = #tpu.dot_dimension_numbers<[1], [0], [0], [1], [0, 0, 1, 1], [], []>} : vector<64x64xf32>, vector<64x8xf32>, vector<64x8xf32> -> vector<64x8xf32>
    %413 = vector.broadcast %409 : vector<64x1xf32> to vector<64x8xf32>
    %414 = arith.mulf %413, %412 : vector<64x8xf32>
    %415 = arith.addf %393, %414 : vector<64x8xf32>
    %416 = arith.maximumf %394, %414 : vector<64x8xf32>
    %cst_148 = arith.constant 2.500000e-01 : f32
    %417 = vector.broadcast %cst_148 : f32 to vector<64x8xf32>
    %418 = arith.mulf %415, %417 : vector<64x8xf32>
    %cst_149 = arith.constant dense<0.000000e+00> : vector<64x16xf32>
    %419 = tpu.matmul %418, %303, %cst_149 {dimension_numbers = #tpu.dot_dimension_numbers<[1], [0], [0], [1], [0, 0, 1, 1], [], []>} : vector<64x8xf32>, vector<8x16xf32>, vector<64x16xf32> -> vector<64x16xf32>
    %420 = arith.addf %310, %419 : vector<64x16xf32>
    %cst_150 = arith.constant dense<0.000000e+00> : vector<64x16xf32>
    %421 = tpu.matmul %416, %304, %cst_150 {dimension_numbers = #tpu.dot_dimension_numbers<[1], [0], [0], [1], [0, 0, 1, 1], [], []>} : vector<64x8xf32>, vector<8x16xf32>, vector<64x16xf32> -> vector<64x16xf32>
    %422 = arith.addf %420, %421 : vector<64x16xf32>
    %c400 = arith.constant 400 : index
    %c0_151 = arith.constant 0 : index
    %423 = vector.load %arg1[%c400, %c0_151] : memref<712x128xf32, #tpu.memory_space<vmem>>, vector<16x32xf32>
    %c416 = arith.constant 416 : index
    %c0_152 = arith.constant 0 : index
    %424 = vector.load %arg1[%c416, %c0_152] : memref<712x128xf32, #tpu.memory_space<vmem>>, vector<1x32xf32>
    %cst_153 = arith.constant dense<0.000000e+00> : vector<64x32xf32>
    %425 = tpu.matmul %422, %423, %cst_153 {dimension_numbers = #tpu.dot_dimension_numbers<[1], [0], [0], [1], [0, 0, 1, 1], [], []>} : vector<64x16xf32>, vector<16x32xf32>, vector<64x32xf32> -> vector<64x32xf32>
    %426 = vector.broadcast %424 : vector<1x32xf32> to vector<64x32xf32>
    %427 = arith.addf %425, %426 : vector<64x32xf32>
    %cst_154 = arith.constant 0.000000e+00 : f32
    %428 = vector.broadcast %cst_154 : f32 to vector<64x32xf32>
    %429 = arith.maximumf %427, %428 : vector<64x32xf32>
    %c424 = arith.constant 424 : index
    %c0_155 = arith.constant 0 : index
    %430 = vector.load %arg1[%c424, %c0_155] : memref<712x128xf32, #tpu.memory_space<vmem>>, vector<32x32xf32>
    %c456 = arith.constant 456 : index
    %c0_156 = arith.constant 0 : index
    %431 = vector.load %arg1[%c456, %c0_156] : memref<712x128xf32, #tpu.memory_space<vmem>>, vector<1x32xf32>
    %cst_157 = arith.constant dense<0.000000e+00> : vector<64x32xf32>
    %432 = tpu.matmul %429, %430, %cst_157 {dimension_numbers = #tpu.dot_dimension_numbers<[1], [0], [0], [1], [0, 0, 1, 1], [], []>} : vector<64x32xf32>, vector<32x32xf32>, vector<64x32xf32> -> vector<64x32xf32>
    %433 = vector.broadcast %431 : vector<1x32xf32> to vector<64x32xf32>
    %434 = arith.addf %432, %433 : vector<64x32xf32>
    %cst_158 = arith.constant 0.000000e+00 : f32
    %435 = vector.broadcast %cst_158 : f32 to vector<64x32xf32>
    %436 = arith.maximumf %434, %435 : vector<64x32xf32>
    %c464 = arith.constant 464 : index
    %c0_159 = arith.constant 0 : index
    %437 = vector.load %arg1[%c464, %c0_159] : memref<712x128xf32, #tpu.memory_space<vmem>>, vector<32x16xf32>
    %c496 = arith.constant 496 : index
    %c0_160 = arith.constant 0 : index
    %438 = vector.load %arg1[%c496, %c0_160] : memref<712x128xf32, #tpu.memory_space<vmem>>, vector<1x16xf32>
    %cst_161 = arith.constant dense<0.000000e+00> : vector<64x16xf32>
    %439 = tpu.matmul %436, %437, %cst_161 {dimension_numbers = #tpu.dot_dimension_numbers<[1], [0], [0], [1], [0, 0, 1, 1], [], []>} : vector<64x32xf32>, vector<32x16xf32>, vector<64x16xf32> -> vector<64x16xf32>
    %440 = vector.broadcast %438 : vector<1x16xf32> to vector<64x16xf32>
    %441 = arith.addf %439, %440 : vector<64x16xf32>
    %cst_162 = arith.constant 0.000000e+00 : f32
    %442 = vector.broadcast %cst_162 : f32 to vector<64x16xf32>
    %443 = arith.maximumf %441, %442 : vector<64x16xf32>
    %c504 = arith.constant 504 : index
    %c0_163 = arith.constant 0 : index
    %444 = vector.load %arg1[%c504, %c0_163] : memref<712x128xf32, #tpu.memory_space<vmem>>, vector<16x32xf32>
    %c520 = arith.constant 520 : index
    %c0_164 = arith.constant 0 : index
    %445 = vector.load %arg1[%c520, %c0_164] : memref<712x128xf32, #tpu.memory_space<vmem>>, vector<1x32xf32>
    %c528 = arith.constant 528 : index
    %c0_165 = arith.constant 0 : index
    %446 = vector.load %arg1[%c528, %c0_165] : memref<712x128xf32, #tpu.memory_space<vmem>>, vector<8x16xf32>
    %c536 = arith.constant 536 : index
    %c0_166 = arith.constant 0 : index
    %447 = vector.load %arg1[%c536, %c0_166] : memref<712x128xf32, #tpu.memory_space<vmem>>, vector<8x16xf32>
    %cst_167 = arith.constant dense<0.000000e+00> : vector<64x32xf32>
    %448 = tpu.matmul %443, %444, %cst_167 {dimension_numbers = #tpu.dot_dimension_numbers<[1], [0], [0], [1], [0, 0, 1, 1], [], []>} : vector<64x16xf32>, vector<16x32xf32>, vector<64x32xf32> -> vector<64x32xf32>
    %449 = vector.broadcast %445 : vector<1x32xf32> to vector<64x32xf32>
    %450 = arith.addf %448, %449 : vector<64x32xf32>
    %451 = vector.extract_strided_slice %450 {offsets = [0, 0], sizes = [64, 8], strides = [1, 1]} : vector<64x32xf32> to vector<64x8xf32>
    %452 = vector.extract_strided_slice %450 {offsets = [0, 8], sizes = [64, 8], strides = [1, 1]} : vector<64x32xf32> to vector<64x8xf32>
    %453 = vector.extract_strided_slice %450 {offsets = [0, 16], sizes = [64, 16], strides = [1, 1]} : vector<64x32xf32> to vector<64x16xf32>
    %454 = arith.mulf %451, %451 : vector<64x8xf32>
    %cst_168 = arith.constant dense<0.000000e+00> : vector<64xf32>
    %455 = vector.multi_reduction <add>, %454, %cst_168 [1] : vector<64x8xf32> to vector<64xf32>
    %456 = vector.shape_cast %455 : vector<64xf32> to vector<64x1xf32>
    %cst_169 = arith.constant 1.000000e+00 : f32
    %457 = vector.broadcast %cst_169 : f32 to vector<64x1xf32>
    %cst_170 = arith.constant -2.000000e+00 : f32
    %458 = vector.broadcast %cst_170 : f32 to vector<64x8xf32>
    %459 = arith.mulf %451, %458 : vector<64x8xf32>
    %460 = tpu.concatenate %459, %457, %456 in 1 : vector<64x8xf32>, vector<64x1xf32>, vector<64x1xf32> -> vector<64x10xf32>
    %461 = tpu.concatenate %451, %456, %457 in 1 : vector<64x8xf32>, vector<64x1xf32>, vector<64x1xf32> -> vector<64x10xf32>
    %cst_171 = arith.constant dense<0.000000e+00> : vector<64x64xf32>
    %462 = tpu.matmul %460, %461, %cst_171 {dimension_numbers = #tpu.dot_dimension_numbers<[1], [1], [0], [0], [0, 0, 1, 0], [], []>} : vector<64x10xf32>, vector<64x10xf32>, vector<64x64xf32> -> vector<64x64xf32>
    %cst_172 = arith.constant 0.000000e+00 : f32
    %463 = vector.broadcast %cst_172 : f32 to vector<64x64xf32>
    %464 = arith.maximumf %462, %463 : vector<64x64xf32>
    %465 = tpu.iota {dimensions = array<i32: 1>} : vector<64x64xi32>
    %466 = tpu.bitcast %464 : vector<64x64xf32> -> vector<64x64xi32>
    %c-64_i32_173 = arith.constant -64 : i32
    %467 = vector.broadcast %c-64_i32_173 : i32 to vector<64x64xi32>
    %468 = arith.andi %466, %467 : vector<64x64xi32>
    %469 = arith.ori %468, %465 : vector<64x64xi32>
    %470 = tpu.bitcast %469 : vector<64x64xi32> -> vector<64x64xf32>
    %cst_174 = arith.constant 0.000000e+00 : f32
    %471 = vector.broadcast %cst_174 : f32 to vector<64x8xf32>
    %cst_175 = arith.constant 0.000000e+00 : f32
    %cst_176 = arith.constant 1.000000e+30 : f32
    %472 = arith.subf %cst_175, %cst_176 : f32
    %473 = vector.broadcast %472 : f32 to vector<64x8xf32>
    %cst_177 = arith.constant dense<0x7F800000> : vector<64xf32>
    %474 = vector.multi_reduction <minimumf>, %470, %cst_177 [1] : vector<64x64xf32> to vector<64xf32>
    %475 = vector.shape_cast %474 : vector<64xf32> to vector<64x1xf32>
    %476 = tpu.bitcast %475 : vector<64x1xf32> -> vector<64x1xi32>
    %c63_i32_178 = arith.constant 63 : i32
    %477 = vector.broadcast %c63_i32_178 : i32 to vector<64x1xi32>
    %478 = arith.andi %476, %477 : vector<64x1xi32>
    %c-64_i32_179 = arith.constant -64 : i32
    %479 = vector.broadcast %c-64_i32_179 : i32 to vector<64x1xi32>
    %480 = arith.andi %476, %479 : vector<64x1xi32>
    %481 = tpu.bitcast %480 : vector<64x1xi32> -> vector<64x1xf32>
    %482 = vector.broadcast %478 : vector<64x1xi32> to vector<64x64xi32>
    %483 = arith.cmpi eq, %465, %482 : vector<64x64xi32>
    %cst_180 = arith.constant -1.000000e+01 : f32
    %484 = vector.broadcast %cst_180 : f32 to vector<64x1xf32>
    %485 = arith.mulf %484, %481 : vector<64x1xf32>
    %486 = math.exp %485 : vector<64x1xf32>
    %487 = arith.extui %483 : vector<64x64xi1> to vector<64x64xi32>
    %488 = arith.sitofp %487 : vector<64x64xi32> to vector<64x64xf32>
    %cst_181 = arith.constant dense<0.000000e+00> : vector<64x8xf32>
    %489 = tpu.matmul %488, %452, %cst_181 {dimension_numbers = #tpu.dot_dimension_numbers<[1], [0], [0], [1], [0, 0, 1, 1], [], []>} : vector<64x64xf32>, vector<64x8xf32>, vector<64x8xf32> -> vector<64x8xf32>
    %490 = vector.broadcast %486 : vector<64x1xf32> to vector<64x8xf32>
    %491 = arith.mulf %490, %489 : vector<64x8xf32>
    %492 = arith.addf %471, %491 : vector<64x8xf32>
    %493 = arith.maximumf %473, %491 : vector<64x8xf32>
    %cst_182 = arith.constant 1.000000e+30 : f32
    %494 = vector.broadcast %cst_182 : f32 to vector<64x64xf32>
    %495 = arith.select %483, %494, %470 : vector<64x64xi1>, vector<64x64xf32>
    %cst_183 = arith.constant dense<0x7F800000> : vector<64xf32>
    %496 = vector.multi_reduction <minimumf>, %495, %cst_183 [1] : vector<64x64xf32> to vector<64xf32>
    %497 = vector.shape_cast %496 : vector<64xf32> to vector<64x1xf32>
    %498 = tpu.bitcast %497 : vector<64x1xf32> -> vector<64x1xi32>
    %c63_i32_184 = arith.constant 63 : i32
    %499 = vector.broadcast %c63_i32_184 : i32 to vector<64x1xi32>
    %500 = arith.andi %498, %499 : vector<64x1xi32>
    %c-64_i32_185 = arith.constant -64 : i32
    %501 = vector.broadcast %c-64_i32_185 : i32 to vector<64x1xi32>
    %502 = arith.andi %498, %501 : vector<64x1xi32>
    %503 = tpu.bitcast %502 : vector<64x1xi32> -> vector<64x1xf32>
    %504 = vector.broadcast %500 : vector<64x1xi32> to vector<64x64xi32>
    %505 = arith.cmpi eq, %465, %504 : vector<64x64xi32>
    %cst_186 = arith.constant -1.000000e+01 : f32
    %506 = vector.broadcast %cst_186 : f32 to vector<64x1xf32>
    %507 = arith.mulf %506, %503 : vector<64x1xf32>
    %508 = math.exp %507 : vector<64x1xf32>
    %509 = arith.extui %505 : vector<64x64xi1> to vector<64x64xi32>
    %510 = arith.sitofp %509 : vector<64x64xi32> to vector<64x64xf32>
    %cst_187 = arith.constant dense<0.000000e+00> : vector<64x8xf32>
    %511 = tpu.matmul %510, %452, %cst_187 {dimension_numbers = #tpu.dot_dimension_numbers<[1], [0], [0], [1], [0, 0, 1, 1], [], []>} : vector<64x64xf32>, vector<64x8xf32>, vector<64x8xf32> -> vector<64x8xf32>
    %512 = vector.broadcast %508 : vector<64x1xf32> to vector<64x8xf32>
    %513 = arith.mulf %512, %511 : vector<64x8xf32>
    %514 = arith.addf %492, %513 : vector<64x8xf32>
    %515 = arith.maximumf %493, %513 : vector<64x8xf32>
    %cst_188 = arith.constant 1.000000e+30 : f32
    %516 = vector.broadcast %cst_188 : f32 to vector<64x64xf32>
    %517 = arith.select %505, %516, %495 : vector<64x64xi1>, vector<64x64xf32>
    %cst_189 = arith.constant dense<0x7F800000> : vector<64xf32>
    %518 = vector.multi_reduction <minimumf>, %517, %cst_189 [1] : vector<64x64xf32> to vector<64xf32>
    %519 = vector.shape_cast %518 : vector<64xf32> to vector<64x1xf32>
    %520 = tpu.bitcast %519 : vector<64x1xf32> -> vector<64x1xi32>
    %c63_i32_190 = arith.constant 63 : i32
    %521 = vector.broadcast %c63_i32_190 : i32 to vector<64x1xi32>
    %522 = arith.andi %520, %521 : vector<64x1xi32>
    %c-64_i32_191 = arith.constant -64 : i32
    %523 = vector.broadcast %c-64_i32_191 : i32 to vector<64x1xi32>
    %524 = arith.andi %520, %523 : vector<64x1xi32>
    %525 = tpu.bitcast %524 : vector<64x1xi32> -> vector<64x1xf32>
    %526 = vector.broadcast %522 : vector<64x1xi32> to vector<64x64xi32>
    %527 = arith.cmpi eq, %465, %526 : vector<64x64xi32>
    %cst_192 = arith.constant -1.000000e+01 : f32
    %528 = vector.broadcast %cst_192 : f32 to vector<64x1xf32>
    %529 = arith.mulf %528, %525 : vector<64x1xf32>
    %530 = math.exp %529 : vector<64x1xf32>
    %531 = arith.extui %527 : vector<64x64xi1> to vector<64x64xi32>
    %532 = arith.sitofp %531 : vector<64x64xi32> to vector<64x64xf32>
    %cst_193 = arith.constant dense<0.000000e+00> : vector<64x8xf32>
    %533 = tpu.matmul %532, %452, %cst_193 {dimension_numbers = #tpu.dot_dimension_numbers<[1], [0], [0], [1], [0, 0, 1, 1], [], []>} : vector<64x64xf32>, vector<64x8xf32>, vector<64x8xf32> -> vector<64x8xf32>
    %534 = vector.broadcast %530 : vector<64x1xf32> to vector<64x8xf32>
    %535 = arith.mulf %534, %533 : vector<64x8xf32>
    %536 = arith.addf %514, %535 : vector<64x8xf32>
    %537 = arith.maximumf %515, %535 : vector<64x8xf32>
    %cst_194 = arith.constant 1.000000e+30 : f32
    %538 = vector.broadcast %cst_194 : f32 to vector<64x64xf32>
    %539 = arith.select %527, %538, %517 : vector<64x64xi1>, vector<64x64xf32>
    %cst_195 = arith.constant dense<0x7F800000> : vector<64xf32>
    %540 = vector.multi_reduction <minimumf>, %539, %cst_195 [1] : vector<64x64xf32> to vector<64xf32>
    %541 = vector.shape_cast %540 : vector<64xf32> to vector<64x1xf32>
    %542 = tpu.bitcast %541 : vector<64x1xf32> -> vector<64x1xi32>
    %c63_i32_196 = arith.constant 63 : i32
    %543 = vector.broadcast %c63_i32_196 : i32 to vector<64x1xi32>
    %544 = arith.andi %542, %543 : vector<64x1xi32>
    %c-64_i32_197 = arith.constant -64 : i32
    %545 = vector.broadcast %c-64_i32_197 : i32 to vector<64x1xi32>
    %546 = arith.andi %542, %545 : vector<64x1xi32>
    %547 = tpu.bitcast %546 : vector<64x1xi32> -> vector<64x1xf32>
    %548 = vector.broadcast %544 : vector<64x1xi32> to vector<64x64xi32>
    %549 = arith.cmpi eq, %465, %548 : vector<64x64xi32>
    %cst_198 = arith.constant -1.000000e+01 : f32
    %550 = vector.broadcast %cst_198 : f32 to vector<64x1xf32>
    %551 = arith.mulf %550, %547 : vector<64x1xf32>
    %552 = math.exp %551 : vector<64x1xf32>
    %553 = arith.extui %549 : vector<64x64xi1> to vector<64x64xi32>
    %554 = arith.sitofp %553 : vector<64x64xi32> to vector<64x64xf32>
    %cst_199 = arith.constant dense<0.000000e+00> : vector<64x8xf32>
    %555 = tpu.matmul %554, %452, %cst_199 {dimension_numbers = #tpu.dot_dimension_numbers<[1], [0], [0], [1], [0, 0, 1, 1], [], []>} : vector<64x64xf32>, vector<64x8xf32>, vector<64x8xf32> -> vector<64x8xf32>
    %556 = vector.broadcast %552 : vector<64x1xf32> to vector<64x8xf32>
    %557 = arith.mulf %556, %555 : vector<64x8xf32>
    %558 = arith.addf %536, %557 : vector<64x8xf32>
    %559 = arith.maximumf %537, %557 : vector<64x8xf32>
    %cst_200 = arith.constant 2.500000e-01 : f32
    %560 = vector.broadcast %cst_200 : f32 to vector<64x8xf32>
    %561 = arith.mulf %558, %560 : vector<64x8xf32>
    %cst_201 = arith.constant dense<0.000000e+00> : vector<64x16xf32>
    %562 = tpu.matmul %561, %446, %cst_201 {dimension_numbers = #tpu.dot_dimension_numbers<[1], [0], [0], [1], [0, 0, 1, 1], [], []>} : vector<64x8xf32>, vector<8x16xf32>, vector<64x16xf32> -> vector<64x16xf32>
    %563 = arith.addf %453, %562 : vector<64x16xf32>
    %cst_202 = arith.constant dense<0.000000e+00> : vector<64x16xf32>
    %564 = tpu.matmul %559, %447, %cst_202 {dimension_numbers = #tpu.dot_dimension_numbers<[1], [0], [0], [1], [0, 0, 1, 1], [], []>} : vector<64x8xf32>, vector<8x16xf32>, vector<64x16xf32> -> vector<64x16xf32>
    %565 = arith.addf %563, %564 : vector<64x16xf32>
    %c544 = arith.constant 544 : index
    %c0_203 = arith.constant 0 : index
    %566 = vector.load %arg1[%c544, %c0_203] : memref<712x128xf32, #tpu.memory_space<vmem>>, vector<16x32xf32>
    %c560 = arith.constant 560 : index
    %c0_204 = arith.constant 0 : index
    %567 = vector.load %arg1[%c560, %c0_204] : memref<712x128xf32, #tpu.memory_space<vmem>>, vector<1x32xf32>
    %cst_205 = arith.constant dense<0.000000e+00> : vector<64x32xf32>
    %568 = tpu.matmul %565, %566, %cst_205 {dimension_numbers = #tpu.dot_dimension_numbers<[1], [0], [0], [1], [0, 0, 1, 1], [], []>} : vector<64x16xf32>, vector<16x32xf32>, vector<64x32xf32> -> vector<64x32xf32>
    %569 = vector.broadcast %567 : vector<1x32xf32> to vector<64x32xf32>
    %570 = arith.addf %568, %569 : vector<64x32xf32>
    %cst_206 = arith.constant 0.000000e+00 : f32
    %571 = vector.broadcast %cst_206 : f32 to vector<64x32xf32>
    %572 = arith.maximumf %570, %571 : vector<64x32xf32>
    %c568 = arith.constant 568 : index
    %c0_207 = arith.constant 0 : index
    %573 = vector.load %arg1[%c568, %c0_207] : memref<712x128xf32, #tpu.memory_space<vmem>>, vector<32x32xf32>
    %c600 = arith.constant 600 : index
    %c0_208 = arith.constant 0 : index
    %574 = vector.load %arg1[%c600, %c0_208] : memref<712x128xf32, #tpu.memory_space<vmem>>, vector<1x32xf32>
    %cst_209 = arith.constant dense<0.000000e+00> : vector<64x32xf32>
    %575 = tpu.matmul %572, %573, %cst_209 {dimension_numbers = #tpu.dot_dimension_numbers<[1], [0], [0], [1], [0, 0, 1, 1], [], []>} : vector<64x32xf32>, vector<32x32xf32>, vector<64x32xf32> -> vector<64x32xf32>
    %576 = vector.broadcast %574 : vector<1x32xf32> to vector<64x32xf32>
    %577 = arith.addf %575, %576 : vector<64x32xf32>
    %cst_210 = arith.constant 0.000000e+00 : f32
    %578 = vector.broadcast %cst_210 : f32 to vector<64x32xf32>
    %579 = arith.maximumf %577, %578 : vector<64x32xf32>
    %c608 = arith.constant 608 : index
    %c0_211 = arith.constant 0 : index
    %580 = vector.load %arg1[%c608, %c0_211] : memref<712x128xf32, #tpu.memory_space<vmem>>, vector<32x16xf32>
    %c640 = arith.constant 640 : index
    %c0_212 = arith.constant 0 : index
    %581 = vector.load %arg1[%c640, %c0_212] : memref<712x128xf32, #tpu.memory_space<vmem>>, vector<1x16xf32>
    %cst_213 = arith.constant dense<0.000000e+00> : vector<64x16xf32>
    %582 = tpu.matmul %579, %580, %cst_213 {dimension_numbers = #tpu.dot_dimension_numbers<[1], [0], [0], [1], [0, 0, 1, 1], [], []>} : vector<64x32xf32>, vector<32x16xf32>, vector<64x16xf32> -> vector<64x16xf32>
    %583 = vector.broadcast %581 : vector<1x16xf32> to vector<64x16xf32>
    %584 = arith.addf %582, %583 : vector<64x16xf32>
    %cst_214 = arith.constant 0.000000e+00 : f32
    %585 = vector.broadcast %cst_214 : f32 to vector<64x16xf32>
    %586 = arith.maximumf %584, %585 : vector<64x16xf32>
    %c648 = arith.constant 648 : index
    %c0_215 = arith.constant 0 : index
    %587 = vector.load %arg1[%c648, %c0_215] : memref<712x128xf32, #tpu.memory_space<vmem>>, vector<16x32xf32>
    %c664 = arith.constant 664 : index
    %c0_216 = arith.constant 0 : index
    %588 = vector.load %arg1[%c664, %c0_216] : memref<712x128xf32, #tpu.memory_space<vmem>>, vector<1x32xf32>
    %cst_217 = arith.constant dense<0.000000e+00> : vector<64x32xf32>
    %589 = tpu.matmul %586, %587, %cst_217 {dimension_numbers = #tpu.dot_dimension_numbers<[1], [0], [0], [1], [0, 0, 1, 1], [], []>} : vector<64x16xf32>, vector<16x32xf32>, vector<64x32xf32> -> vector<64x32xf32>
    %590 = vector.broadcast %588 : vector<1x32xf32> to vector<64x32xf32>
    %591 = arith.addf %589, %590 : vector<64x32xf32>
    %cst_218 = arith.constant 0.000000e+00 : f32
    %592 = vector.broadcast %cst_218 : f32 to vector<64x32xf32>
    %593 = arith.maximumf %591, %592 : vector<64x32xf32>
    %c672 = arith.constant 672 : index
    %c0_219 = arith.constant 0 : index
    %594 = vector.load %arg1[%c672, %c0_219] : memref<712x128xf32, #tpu.memory_space<vmem>>, vector<32x8xf32>
    %c704 = arith.constant 704 : index
    %c0_220 = arith.constant 0 : index
    %595 = vector.load %arg1[%c704, %c0_220] : memref<712x128xf32, #tpu.memory_space<vmem>>, vector<1x8xf32>
    %cst_221 = arith.constant dense<0.000000e+00> : vector<64x8xf32>
    %596 = tpu.matmul %593, %594, %cst_221 {dimension_numbers = #tpu.dot_dimension_numbers<[1], [0], [0], [1], [0, 0, 1, 1], [], []>} : vector<64x32xf32>, vector<32x8xf32>, vector<64x8xf32> -> vector<64x8xf32>
    %597 = vector.broadcast %595 : vector<1x8xf32> to vector<64x8xf32>
    %598 = arith.addf %596, %597 : vector<64x8xf32>
    %c0_222 = arith.constant 0 : index
    %c0_223 = arith.constant 0 : index
    %599 = vector.load %arg2[%c0_222, %c0_223] : memref<64x8xf32, #tpu.memory_space<vmem>>, vector<64x8xf32>
    tpu.vector_store %arg2[%c0_222, %c0_223], %598 {strides = array<i32>} : memref<64x8xf32, #tpu.memory_space<vmem>>, vector<64x8xf32>,
    return
  }
}

</mosaic_0001>

<llo_original>
// kernel: forward.1
$region0: #{forward.1}
  #allocation0 [shape = 'u32[]', space=smem, size = 0x4, offset = 0x4, fixed_abs, tag = 'smem constant byte address 0x4 - core index']
  #allocation1 [shape = 'u32[144,128]{1,0:T(1,128)}', space=vmem, size = 0x12000, scoped, tag = 'internal scratch']
  %s0 = inlined_call_operand.vmem [shape: f32[64,8], index: 0, kind: input, shape index: {}]
  %s1 = inlined_call_operand.hbm [shape: f32[712,128], index: 1, kind: input, shape index: {}]
  %s2 = inlined_call_operand.vmem [shape: f32[64,8], index: 2, kind: output, shape index: {}]
  %s3 = sld [smem:[#allocation0]]
  $region22: #{forward.1} parent=0
    _
  %s5 = ssub.s32 1, %s3
  %s6 = scalar_select 0, %s5, %s3
  $region1: #{forward.1} parent=0
    #allocation2 [shape = 'u8[364544]{0}', space=vmem, size = 0x59000, scoped, tag = 'input window, operand 1, single buffered']
    #allocation3 [shape = 's32[1]{0}', space=sflag, size = 0x4, scoped, tag = 'scoped memory for forward.1']
    %7 = vsyncpa [#allocation3], 0
    // Predicated region
    $region2: #{forward.1} parent=1 // pred_check
      _
    $region3: #{forward.1} parent=1 // pred_check_branch
      %9 = sbr.rel (0) target = $region5
    $region4: #{forward.1} parent=1 // pred_region
      _
    $region5: #{forward.1} parent=1 // pred_fallthru
      _
    // Predicated region
    $region6: #{forward.1} parent=1 // pred_check
      _
    $region7: #{forward.1} parent=1 // pred_check_branch
      %11 = sbr.rel (0) target = $region9
    $region8: #{forward.1} parent=1 // pred_region
      %s13 = ssub.s32 11392, 11392
      %14 = vsyncadd [#allocation3], %s13
      %s15 = sshll.u32 [#allocation2], 4
      %s16 = int_to_ptr.vmem [resolvable:$true] %s15
      %21 = dma.hbm_to_vmem [thread:$0]  %s1, 11392, %s16, [#allocation3], 128, 128, 8
    $region9: #{forward.1} parent=1 // pred_fallthru
      _
    // Predicated region
    $region10: #{forward.1} parent=1 // pred_check
      _
    $region11: #{forward.1} parent=1 // pred_check_branch
      %23 = sbr.rel (0) target = $region13
    $region12: #{forward.1} parent=1 // pred_region
      %24 = dma.done [#allocation3], 11392
    $region13: #{forward.1} parent=1 // pred_fallthru
      _
    %v25 = vld [vmem:[%s0] sm:$0xff]
    %v26 = vld [vmem:[%s0 + $0x8] sm:$0xff]
    %v27 = vld [vmem:[%s0 + $0x10] sm:$0xff]
    %v28 = vld [vmem:[%s0 + $0x18] sm:$0xff]
    %v29 = vld [vmem:[%s0 + $0x20] sm:$0xff]
    %v30 = vld [vmem:[%s0 + $0x28] sm:$0xff]
    %v31 = vld [vmem:[%s0 + $0x30] sm:$0xff]
    %v32 = vld [vmem:[%s0 + $0x38] sm:$0xff]
    %v33 = vld [vmem:[#allocation2] sm:$0xff]
    %v34 = vld [vmem:[#allocation2 + $0x8] sm:$0x1]
    %v35 = vlaneseq
    %v36 = vshrl.u32 %v35, 7
    %v37 = vsub.s32 0, %v36
    %v38 = vrot.slane %v34, %v37
    %vm39 = vcmask 64512
    %v41 = vsel %vm39, %v25, 0
    %v44 = vsel %vm39, %v26, 0
    %v47 = vsel %vm39, %v27, 0
    %v50 = vsel %vm39, %v28, 0
    %v53 = vsel %vm39, %v29, 0
    %v56 = vsel %vm39, %v30, 0
    %v59 = vsel %vm39, %v31, 0
    %v62 = vsel %vm39, %v32, 0
    %64 = vmatprep.subr.mxu0 0.0
    %65 = vmatpush1.msra.mxu0 0.0
    %66 = vmatprep.subr.mxu0 0.0
    %67 = vmatpush1.msra.mxu0 0.0
    %68 = vmatprep.subr.mxu0 0.0
    %69 = vmatpush1.msra.mxu0 0.0
    %70 = vmatprep.subr.mxu0 0.0
    %71 = vmatpush1.msra.mxu0 0.0
    %72 = vmatprep.subr.mxu0 0.0
    %73 = vmatpush1.msra.mxu0 0.0
    %74 = vmatprep.subr.mxu0 0.0
    %75 = vmatpush1.msra.mxu0 0.0
    %76 = vmatprep.subr.mxu0 0.0
    %77 = vmatpush1.msra.mxu0 0.0
    %78 = vmatprep.subr.mxu0 0.0
    %79 = vmatpush1.msra.mxu0 0.0
    %80 = vmatprep.subr.mxu0 0.0
    %81 = vmatpush1.msra.mxu0 0.0
    %82 = vmatprep.subr.mxu0 0.0
    %83 = vmatpush1.msra.mxu0 0.0
    %84 = vmatprep.subr.mxu0 0.0
    %85 = vmatpush1.msra.mxu0 0.0
    %86 = vmatprep.subr.mxu0 0.0
    %87 = vmatpush1.msra.mxu0 0.0
    %88 = vmatprep.subr.mxu0 0.0
    %89 = vmatpush1.msra.mxu0 0.0
    %90 = vmatprep.subr.mxu0 0.0
    %91 = vmatpush1.msra.mxu0 0.0
    %92 = vmatprep.subr.mxu0 0.0
    %93 = vmatpush1.msra.mxu0 0.0
    %94 = vmatprep.subr.mxu0 0.0
    %95 = vmatpush1.msra.mxu0 %v33
    %96 = vmatprep.subr.mxu0 0.0
    %97 = vmatpush2.msra.mxu0 0.0
    %98 = vmatprep.subr.mxu0 0.0
    %99 = vmatpush2.msra.mxu0 0.0
    %100 = vmatprep.subr.mxu0 0.0
    %101 = vmatpush2.msra.mxu0 0.0
    %102 = vmatprep.subr.mxu0 0.0
    %103 = vmatpush2.msra.mxu0 0.0
    %104 = vmatprep.subr.mxu0 0.0
    %105 = vmatpush2.msra.mxu0 0.0
    %106 = vmatprep.subr.mxu0 0.0
    %107 = vmatpush2.msra.mxu0 0.0
    %108 = vmatprep.subr.mxu0 0.0
    %109 = vmatpush2.msra.mxu0 0.0
    %110 = vmatprep.subr.mxu0 0.0
    %111 = vmatpush2.msra.mxu0 0.0
    %112 = vmatprep.subr.mxu0 0.0
    %113 = vmatpush2.msra.mxu0 0.0
    %114 = vmatprep.subr.mxu0 0.0
    %115 = vmatpush2.msra.mxu0 0.0
    %116 = vmatprep.subr.mxu0 0.0
    %117 = vmatpush2.msra.mxu0 0.0
    %118 = vmatprep.subr.mxu0 0.0
    %119 = vmatpush2.msra.mxu0 0.0
    %120 = vmatprep.subr.mxu0 0.0
    %121 = vmatpush2.msra.mxu0 0.0
    %122 = vmatprep.subr.mxu0 0.0
    %123 = vmatpush2.msra.mxu0 0.0
    %124 = vmatprep.subr.mxu0 0.0
    %125 = vmatpush2.msra.mxu0 0.0
    %126 = vmatprep.subr.mxu0 0.0
    %127 = vmatpush2.msra.mxu0 0.0
    %128 = vmatprep.mubr.f32.mxu0 0.0
    %129 = vmatmul.mubr.f32.gmra.mxu0 %v41
    %v130 = vpop.f32.mrf.mxu0
    %v131 = vadd.f32 %v38, %v130
    %v132 = vpop.f32.mrf.mxu0
    %133 = vmatprep.mubr.f32.mxu0 0.0
    %134 = vmatmul.mubr.f32.gmra.mxu0 %v44
    %v135 = vpop.f32.mrf.mxu0
    %v136 = vadd.f32 %v38, %v135
    %v137 = vpop.f32.mrf.mxu0
    %138 = vmatprep.mubr.f32.mxu0 0.0
    %139 = vmatmul.mubr.f32.gmra.mxu0 %v47
    %v140 = vpop.f32.mrf.mxu0
    %v141 = vadd.f32 %v38, %v140
    %v142 = vpop.f32.mrf.mxu0
    %143 = vmatprep.mubr.f32.mxu0 0.0
    %144 = vmatmul.mubr.f32.gmra.mxu0 %v50
    %v145 = vpop.f32.mrf.mxu0
    %v146 = vadd.f32 %v38, %v145
    %v147 = vpop.f32.mrf.mxu0
    %148 = vmatprep.mubr.f32.mxu0 0.0
    %149 = vmatmul.mubr.f32.gmra.mxu0 %v53
    %v150 = vpop.f32.mrf.mxu0
    %v151 = vadd.f32 %v38, %v150
    %v152 = vpop.f32.mrf.mxu0
    %153 = vmatprep.mubr.f32.mxu0 0.0
    %154 = vmatmul.mubr.f32.gmra.mxu0 %v56
    %v155 = vpop.f32.mrf.mxu0
    %v156 = vadd.f32 %v38, %v155
    %v157 = vpop.f32.mrf.mxu0
    %158 = vmatprep.mubr.f32.mxu0 0.0
    %159 = vmatmul.mubr.f32.gmra.mxu0 %v59
    %v160 = vpop.f32.mrf.mxu0
    %v161 = vadd.f32 %v38, %v160
    %v162 = vpop.f32.mrf.mxu0
    %163 = vmatprep.mubr.f32.mxu0 0.0
    %164 = vmatmul.mubr.f32.gmra.mxu0 %v62
    %v165 = vpop.f32.mrf.mxu0
    %v166 = vadd.f32 %v38, %v165
    %v167 = vpop.f32.mrf.mxu0
    %168 = vdwg.mxu0
    %v169 = vmax.f32 %v131, 0.0
    %v170 = vmax.f32 %v136, 0.0
    %v171 = vmax.f32 %v141, 0.0
    %v172 = vmax.f32 %v146, 0.0
    %v173 = vmax.f32 %v151, 0.0
    %v174 = vmax.f32 %v156, 0.0
    %v175 = vmax.f32 %v161, 0.0
    %v176 = vmax.f32 %v166, 0.0
    %v177 = vld [vmem:[#allocation2 + $0x10] sm:$0xff]
    %v178 = vld [vmem:[#allocation2 + $0x18] sm:$0xff]
    %v179 = vld [vmem:[#allocation2 + $0x20] sm:$0xff]
    %v180 = vld [vmem:[#allocation2 + $0x28] sm:$0xff]
    %v181 = vld [vmem:[#allocation2 + $0x30] sm:$0x1]
    %v182 = vlaneseq
    %v183 = vshrl.u32 %v182, 7
    %v184 = vsub.s32 0, %v183
    %v185 = vrot.slane %v181, %v184
    %vm186 = vcmask 261120
    %v188 = vsel %vm186, %v169, 0
    %v191 = vsel %vm186, %v170, 0
    %v194 = vsel %vm186, %v171, 0
    %v197 = vsel %vm186, %v172, 0
    %v200 = vsel %vm186, %v173, 0
    %v203 = vsel %vm186, %v174, 0
    %v206 = vsel %vm186, %v175, 0
    %v209 = vsel %vm186, %v176, 0
    %211 = vmatprep.subr.mxu0 0.0
    %212 = vmatpush1.msra.mxu0 0.0
    %213 = vmatprep.subr.mxu0 0.0
    %214 = vmatpush1.msra.mxu0 0.0
    %215 = vmatprep.subr.mxu0 0.0
    %216 = vmatpush1.msra.mxu0 0.0
    %217 = vmatprep.subr.mxu0 0.0
    %218 = vmatpush1.msra.mxu0 0.0
    %219 = vmatprep.subr.mxu0 0.0
    %220 = vmatpush1.msra.mxu0 0.0
    %221 = vmatprep.subr.mxu0 0.0
    %222 = vmatpush1.msra.mxu0 0.0
    %223 = vmatprep.subr.mxu0 0.0
    %224 = vmatpush1.msra.mxu0 0.0
    %225 = vmatprep.subr.mxu0 0.0
    %226 = vmatpush1.msra.mxu0 0.0
    %227 = vmatprep.subr.mxu0 0.0
    %228 = vmatpush1.msra.mxu0 0.0
    %229 = vmatprep.subr.mxu0 0.0
    %230 = vmatpush1.msra.mxu0 0.0
    %231 = vmatprep.subr.mxu0 0.0
    %232 = vmatpush1.msra.mxu0 0.0
    %233 = vmatprep.subr.mxu0 0.0
    %234 = vmatpush1.msra.mxu0 0.0
    %235 = vmatprep.subr.mxu0 0.0
    %236 = vmatpush1.msra.mxu0 %v180
    %237 = vmatprep.subr.mxu0 0.0
    %238 = vmatpush1.msra.mxu0 %v179
    %239 = vmatprep.subr.mxu0 0.0
    %240 = vmatpush1.msra.mxu0 %v178
    %241 = vmatprep.subr.mxu0 0.0
    %242 = vmatpush1.msra.mxu0 %v177
    %243 = vmatprep.subr.mxu0 0.0
    %244 = vmatpush2.msra.mxu0 0.0
    %245 = vmatprep.subr.mxu0 0.0
    %246 = vmatpush2.msra.mxu0 0.0
    %247 = vmatprep.subr.mxu0 0.0
    %248 = vmatpush2.msra.mxu0 0.0
    %249 = vmatprep.subr.mxu0 0.0
    %250 = vmatpush2.msra.mxu0 0.0
    %251 = vmatprep.subr.mxu0 0.0
    %252 = vmatpush2.msra.mxu0 0.0
    %253 = vmatprep.subr.mxu0 0.0
    %254 = vmatpush2.msra.mxu0 0.0
    %255 = vmatprep.subr.mxu0 0.0
    %256 = vmatpush2.msra.mxu0 0.0
    %257 = vmatprep.subr.mxu0 0.0
    %258 = vmatpush2.msra.mxu0 0.0
    %259 = vmatprep.subr.mxu0 0.0
    %260 = vmatpush2.msra.mxu0 0.0
    %261 = vmatprep.subr.mxu0 0.0
    %262 = vmatpush2.msra.mxu0 0.0
    %263 = vmatprep.subr.mxu0 0.0
    %264 = vmatpush2.msra.mxu0 0.0
    %265 = vmatprep.subr.mxu0 0.0
    %266 = vmatpush2.msra.mxu0 0.0
    %267 = vmatprep.subr.mxu0 0.0
    %268 = vmatpush2.msra.mxu0 0.0
    %269 = vmatprep.subr.mxu0 0.0
    %270 = vmatpush2.msra.mxu0 0.0
    %271 = vmatprep.subr.mxu0 0.0
    %272 = vmatpush2.msra.mxu0 0.0
    %273 = vmatprep.subr.mxu0 0.0
    %274 = vmatpush2.msra.mxu0 0.0
    %275 = vmatprep.mubr.f32.mxu0 0.0
    %276 = vmatmul.mubr.f32.gmra.mxu0 %v188
    %v277 = vpop.f32.mrf.mxu0
    %v278 = vadd.f32 %v185, %v277
    %v279 = vpop.f32.mrf.mxu0
    %280 = vmatprep.mubr.f32.mxu0 0.0
    %281 = vmatmul.mubr.f32.gmra.mxu0 %v191
    %v282 = vpop.f32.mrf.mxu0
    %v283 = vadd.f32 %v185, %v282
    %v284 = vpop.f32.mrf.mxu0
    %285 = vmatprep.mubr.f32.mxu0 0.0
    %286 = vmatmul.mubr.f32.gmra.mxu0 %v194
    %v287 = vpop.f32.mrf.mxu0
    %v288 = vadd.f32 %v185, %v287
    %v289 = vpop.f32.mrf.mxu0
    %290 = vmatprep.mubr.f32.mxu0 0.0
    %291 = vmatmul.mubr.f32.gmra.mxu0 %v197
    %v292 = vpop.f32.mrf.mxu0
    %v293 = vadd.f32 %v185, %v292
    %v294 = vpop.f32.mrf.mxu0
    %295 = vmatprep.mubr.f32.mxu0 0.0
    %296 = vmatmul.mubr.f32.gmra.mxu0 %v200
    %v297 = vpop.f32.mrf.mxu0
    %v298 = vadd.f32 %v185, %v297
    %v299 = vpop.f32.mrf.mxu0
    %300 = vmatprep.mubr.f32.mxu0 0.0
    %301 = vmatmul.mubr.f32.gmra.mxu0 %v203
    %v302 = vpop.f32.mrf.mxu0
    %v303 = vadd.f32 %v185, %v302
    %v304 = vpop.f32.mrf.mxu0
    %305 = vmatprep.mubr.f32.mxu0 0.0
    %306 = vmatmul.mubr.f32.gmra.mxu0 %v206
    %v307 = vpop.f32.mrf.mxu0
    %v308 = vadd.f32 %v185, %v307
    %v309 = vpop.f32.mrf.mxu0
    %310 = vmatprep.mubr.f32.mxu0 0.0
    %311 = vmatmul.mubr.f32.gmra.mxu0 %v209
    %v312 = vpop.f32.mrf.mxu0
    %v313 = vadd.f32 %v185, %v312
    %v314 = vpop.f32.mrf.mxu0
    %315 = vdwg.mxu0
    %v316 = vmax.f32 %v278, 0.0
    %v317 = vmax.f32 %v283, 0.0
    %v318 = vmax.f32 %v288, 0.0
    %v319 = vmax.f32 %v293, 0.0
    %v320 = vmax.f32 %v298, 0.0
    %v321 = vmax.f32 %v303, 0.0
    %v322 = vmax.f32 %v308, 0.0
    %v323 = vmax.f32 %v313, 0.0
    %v324 = vld [vmem:[#allocation2 + $0x38] sm:$0xff]
    %v325 = vld [vmem:[#allocation2 + $0x40] sm:$0xff]
    %v326 = vld [vmem:[#allocation2 + $0x48] sm:$0xff]
    %v327 = vld [vmem:[#allocation2 + $0x50] sm:$0xff]
    %v328 = vld [vmem:[#allocation2 + $0x58] sm:$0x1]
    %v329 = vld [vmem:[#allocation2 + $0x60] sm:$0xff]
    %v330 = vld [vmem:[#allocation2 + $0x68] sm:$0xff]
    %v331 = vlaneseq
    %v332 = vshrl.u32 %v331, 7
    %v333 = vsub.s32 0, %v332
    %v334 = vrot.slane %v328, %v333
    %v336 = vsel %vm186, %v316, 0
    %v339 = vsel %vm186, %v317, 0
    %v342 = vsel %vm186, %v318, 0
    %v345 = vsel %vm186, %v319, 0
    %v348 = vsel %vm186, %v320, 0
    %v351 = vsel %vm186, %v321, 0
    %v354 = vsel %vm186, %v322, 0
    %v357 = vsel %vm186, %v323, 0
    %359 = vmatprep.subr.mxu0 0.0
    %360 = vmatpush1.msra.mxu0 0.0
    %361 = vmatprep.subr.mxu0 0.0
    %362 = vmatpush1.msra.mxu0 0.0
    %363 = vmatprep.subr.mxu0 0.0
    %364 = vmatpush1.msra.mxu0 0.0
    %365 = vmatprep.subr.mxu0 0.0
    %366 = vmatpush1.msra.mxu0 0.0
    %367 = vmatprep.subr.mxu0 0.0
    %368 = vmatpush1.msra.mxu0 0.0
    %369 = vmatprep.subr.mxu0 0.0
    %370 = vmatpush1.msra.mxu0 0.0
    %371 = vmatprep.subr.mxu0 0.0
    %372 = vmatpush1.msra.mxu0 0.0
    %373 = vmatprep.subr.mxu0 0.0
    %374 = vmatpush1.msra.mxu0 0.0
    %375 = vmatprep.subr.mxu0 0.0
    %376 = vmatpush1.msra.mxu0 0.0
    %377 = vmatprep.subr.mxu0 0.0
    %378 = vmatpush1.msra.mxu0 0.0
    %379 = vmatprep.subr.mxu0 0.0
    %380 = vmatpush1.msra.mxu0 0.0
    %381 = vmatprep.subr.mxu0 0.0
    %382 = vmatpush1.msra.mxu0 0.0
    %383 = vmatprep.subr.mxu0 0.0
    %384 = vmatpush1.msra.mxu0 %v327
    %385 = vmatprep.subr.mxu0 0.0
    %386 = vmatpush1.msra.mxu0 %v326
    %387 = vmatprep.subr.mxu0 0.0
    %388 = vmatpush1.msra.mxu0 %v325
    %389 = vmatprep.subr.mxu0 0.0
    %390 = vmatpush1.msra.mxu0 %v324
    %391 = vmatprep.subr.mxu0 0.0
    %392 = vmatpush2.msra.mxu0 0.0
    %393 = vmatprep.subr.mxu0 0.0
    %394 = vmatpush2.msra.mxu0 0.0
    %395 = vmatprep.subr.mxu0 0.0
    %396 = vmatpush2.msra.mxu0 0.0
    %397 = vmatprep.subr.mxu0 0.0
    %398 = vmatpush2.msra.mxu0 0.0
    %399 = vmatprep.subr.mxu0 0.0
    %400 = vmatpush2.msra.mxu0 0.0
    %401 = vmatprep.subr.mxu0 0.0
    %402 = vmatpush2.msra.mxu0 0.0
    %403 = vmatprep.subr.mxu0 0.0
    %404 = vmatpush2.msra.mxu0 0.0
    %405 = vmatprep.subr.mxu0 0.0
    %406 = vmatpush2.msra.mxu0 0.0
    %407 = vmatprep.subr.mxu0 0.0
    %408 = vmatpush2.msra.mxu0 0.0
    %409 = vmatprep.subr.mxu0 0.0
    %410 = vmatpush2.msra.mxu0 0.0
    %411 = vmatprep.subr.mxu0 0.0
    %412 = vmatpush2.msra.mxu0 0.0
    %413 = vmatprep.subr.mxu0 0.0
    %414 = vmatpush2.msra.mxu0 0.0
    %415 = vmatprep.subr.mxu0 0.0
    %416 = vmatpush2.msra.mxu0 0.0
    %417 = vmatprep.subr.mxu0 0.0
    %418 = vmatpush2.msra.mxu0 0.0
    %419 = vmatprep.subr.mxu0 0.0
    %420 = vmatpush2.msra.mxu0 0.0
    %421 = vmatprep.subr.mxu0 0.0
    %422 = vmatpush2.msra.mxu0 0.0
    %423 = vmatprep.mubr.f32.mxu0 0.0
    %424 = vmatmul.mubr.f32.gmra.mxu0 %v336
    %v425 = vpop.f32.mrf.mxu0
    %v426 = vadd.f32 %v334, %v425
    %v427 = vpop.f32.mrf.mxu0
    %428 = vmatprep.mubr.f32.mxu0 0.0
    %429 = vmatmul.mubr.f32.gmra.mxu0 %v339
    %v430 = vpop.f32.mrf.mxu0
    %v431 = vadd.f32 %v334, %v430
    %v432 = vpop.f32.mrf.mxu0
    %433 = vmatprep.mubr.f32.mxu0 0.0
    %434 = vmatmul.mubr.f32.gmra.mxu0 %v342
    %v435 = vpop.f32.mrf.mxu0
    %v436 = vadd.f32 %v334, %v435
    %v437 = vpop.f32.mrf.mxu0
    %438 = vmatprep.mubr.f32.mxu0 0.0
    %439 = vmatmul.mubr.f32.gmra.mxu0 %v345
    %v440 = vpop.f32.mrf.mxu0
    %v441 = vadd.f32 %v334, %v440
    %v442 = vpop.f32.mrf.mxu0
    %443 = vmatprep.mubr.f32.mxu0 0.0
    %444 = vmatmul.mubr.f32.gmra.mxu0 %v348
    %v445 = vpop.f32.mrf.mxu0
    %v446 = vadd.f32 %v334, %v445
    %v447 = vpop.f32.mrf.mxu0
    %448 = vmatprep.mubr.f32.mxu0 0.0
    %449 = vmatmul.mubr.f32.gmra.mxu0 %v351
    %v450 = vpop.f32.mrf.mxu0
    %v451 = vadd.f32 %v334, %v450
    %v452 = vpop.f32.mrf.mxu0
    %453 = vmatprep.mubr.f32.mxu0 0.0
    %454 = vmatmul.mubr.f32.gmra.mxu0 %v354
    %v455 = vpop.f32.mrf.mxu0
    %v456 = vadd.f32 %v334, %v455
    %v457 = vpop.f32.mrf.mxu0
    %458 = vmatprep.mubr.f32.mxu0 0.0
    %459 = vmatmul.mubr.f32.gmra.mxu0 %v357
    %v460 = vpop.f32.mrf.mxu0
    %v461 = vadd.f32 %v334, %v460
    %v462 = vpop.f32.mrf.mxu0
    %463 = vdwg.mxu0
    %v464 = vmul.f32 %v426, %v426
    %v465 = vmul.f32 %v431, %v431
    %v466 = vmul.f32 %v436, %v436
    %v467 = vmul.f32 %v441, %v441
    %v468 = vmul.f32 %v446, %v446
    %v469 = vmul.f32 %v451, %v451
    %v470 = vmul.f32 %v456, %v456
    %v471 = vmul.f32 %v461, %v461
    %v472 = vsel %vm39, %v464, 0.0
    %473 = vadd.xlane.f32.xlu0 %v472
    %v474 = vpop.xlane.xlu0 %473
    %v475 = vsel %vm39, %v465, 0.0
    %476 = vadd.xlane.f32.xlu0 %v475
    %v477 = vpop.xlane.xlu0 %476
    %v478 = vsel %vm39, %v466, 0.0
    %479 = vadd.xlane.f32.xlu0 %v478
    %v480 = vpop.xlane.xlu0 %479
    %v481 = vsel %vm39, %v467, 0.0
    %482 = vadd.xlane.f32.xlu0 %v481
    %v483 = vpop.xlane.xlu0 %482
    %v484 = vsel %vm39, %v468, 0.0
    %485 = vadd.xlane.f32.xlu0 %v484
    %v486 = vpop.xlane.xlu0 %485
    %v487 = vsel %vm39, %v469, 0.0
    %488 = vadd.xlane.f32.xlu0 %v487
    %v489 = vpop.xlane.xlu0 %488
    %v490 = vsel %vm39, %v470, 0.0
    %491 = vadd.xlane.f32.xlu0 %v490
    %v492 = vpop.xlane.xlu0 %491
    %v493 = vsel %vm39, %v471, 0.0
    %494 = vadd.xlane.f32.xlu0 %v493
    %v495 = vpop.xlane.xlu0 %494
    %v496 = vmul.f32 %v426, -2.0
    %v497 = vmul.f32 %v431, -2.0
    %v498 = vmul.f32 %v436, -2.0
    %v499 = vmul.f32 %v441, -2.0
    %v500 = vmul.f32 %v446, -2.0
    %v501 = vmul.f32 %v451, -2.0
    %v502 = vmul.f32 %v456, -2.0
    %v503 = vmul.f32 %v461, -2.0
    %v504 = vsel %vm39, %v496, 1.0
    %v505 = vsel %vm39, %v497, 1.0
    %v506 = vsel %vm39, %v498, 1.0
    %v507 = vsel %vm39, %v499, 1.0
    %v508 = vsel %vm39, %v500, 1.0
    %v509 = vsel %vm39, %v501, 1.0
    %v510 = vsel %vm39, %v502, 1.0
    %v511 = vsel %vm39, %v503, 1.0
    %vm512 = vcmask 72704
    %v513 = vsel %vm512, %v504, %v474
    %v514 = vsel %vm512, %v505, %v477
    %v515 = vsel %vm512, %v506, %v480
    %v516 = vsel %vm512, %v507, %v483
    %v517 = vsel %vm512, %v508, %v486
    %v518 = vsel %vm512, %v509, %v489
    %v519 = vsel %vm512, %v510, %v492
    %v520 = vsel %vm512, %v511, %v495
    %v521 = vsel %vm39, %v426, %v474
    %v522 = vsel %vm39, %v431, %v477
    %v523 = vsel %vm39, %v436, %v480
    %v524 = vsel %vm39, %v441, %v483
    %v525 = vsel %vm39, %v446, %v486
    %v526 = vsel %vm39, %v451, %v489
    %v527 = vsel %vm39, %v456, %v492
    %v528 = vsel %vm39, %v461, %v495
    %v529 = vsel %vm512, %v521, 1.0
    %v530 = vsel %vm512, %v522, 1.0
    %v531 = vsel %vm512, %v523, 1.0
    %v532 = vsel %vm512, %v524, 1.0
    %v533 = vsel %vm512, %v525, 1.0
    %v534 = vsel %vm512, %v526, 1.0
    %v535 = vsel %vm512, %v527, 1.0
    %v536 = vsel %vm512, %v528, 1.0
    %vm537 = vcmask 80896
    %v539 = vsel %vm537, %v513, 0
    %v542 = vsel %vm537, %v514, 0
    %v545 = vsel %vm537, %v515, 0
    %v548 = vsel %vm537, %v516, 0
    %v551 = vsel %vm537, %v517, 0
    %v554 = vsel %vm537, %v518, 0
    %v557 = vsel %vm537, %v519, 0
    %v560 = vsel %vm537, %v520, 0
    %v563 = vsel %vm537, %v529, 0
    %v566 = vsel %vm537, %v530, 0
    %v569 = vsel %vm537, %v531, 0
    %v572 = vsel %vm537, %v532, 0
    %v575 = vsel %vm537, %v533, 0
    %v578 = vsel %vm537, %v534, 0
    %v581 = vsel %vm537, %v535, 0
    %v584 = vsel %vm537, %v536, 0
    %586 = vmatprep.subr.mxu0 0.0
    %587 = vmatpush1.xpose.msra.mxu0 0.0
    %588 = vmatprep.subr.mxu0 0.0
    %589 = vmatpush1.xpose.msra.mxu0 0.0
    %590 = vmatprep.subr.mxu0 0.0
    %591 = vmatpush1.xpose.msra.mxu0 0.0
    %592 = vmatprep.subr.mxu0 0.0
    %593 = vmatpush1.xpose.msra.mxu0 0.0
    %594 = vmatprep.subr.mxu0 0.0
    %595 = vmatpush1.xpose.msra.mxu0 0.0
    %596 = vmatprep.subr.mxu0 0.0
    %597 = vmatpush1.xpose.msra.mxu0 0.0
    %598 = vmatprep.subr.mxu0 0.0
    %599 = vmatpush1.xpose.msra.mxu0 0.0
    %600 = vmatprep.subr.mxu0 0.0
    %601 = vmatpush1.xpose.msra.mxu0 0.0
    %602 = vmatprep.subr.mxu0 0.0
    %603 = vmatpush1.xpose.msra.mxu0 %v584
    %604 = vmatprep.subr.mxu0 0.0
    %605 = vmatpush1.xpose.msra.mxu0 %v581
    %606 = vmatprep.subr.mxu0 0.0
    %607 = vmatpush1.xpose.msra.mxu0 %v578
    %608 = vmatprep.subr.mxu0 0.0
    %609 = vmatpush1.xpose.msra.mxu0 %v575
    %610 = vmatprep.subr.mxu0 0.0
    %611 = vmatpush1.xpose.msra.mxu0 %v572
    %612 = vmatprep.subr.mxu0 0.0
    %613 = vmatpush1.xpose.msra.mxu0 %v569
    %614 = vmatprep.subr.mxu0 0.0
    %615 = vmatpush1.xpose.msra.mxu0 %v566
    %616 = vmatprep.subr.mxu0 0.0
    %617 = vmatpush1.xpose.msra.mxu0 %v563
    %618 = vmatprep.subr.mxu0 0.0
    %619 = vmatpush2.xpose.msra.mxu0 0.0
    %620 = vmatprep.subr.mxu0 0.0
    %621 = vmatpush2.xpose.msra.mxu0 0.0
    %622 = vmatprep.subr.mxu0 0.0
    %623 = vmatpush2.xpose.msra.mxu0 0.0
    %624 = vmatprep.subr.mxu0 0.0
    %625 = vmatpush2.xpose.msra.mxu0 0.0
    %626 = vmatprep.subr.mxu0 0.0
    %627 = vmatpush2.xpose.msra.mxu0 0.0
    %628 = vmatprep.subr.mxu0 0.0
    %629 = vmatpush2.xpose.msra.mxu0 0.0
    %630 = vmatprep.subr.mxu0 0.0
    %631 = vmatpush2.xpose.msra.mxu0 0.0
    %632 = vmatprep.subr.mxu0 0.0
    %633 = vmatpush2.xpose.msra.mxu0 0.0
    %634 = vmatprep.subr.mxu0 0.0
    %635 = vmatpush2.xpose.msra.mxu0 0.0
    %636 = vmatprep.subr.mxu0 0.0
    %637 = vmatpush2.xpose.msra.mxu0 0.0
    %638 = vmatprep.subr.mxu0 0.0
    %639 = vmatpush2.xpose.msra.mxu0 0.0
    %640 = vmatprep.subr.mxu0 0.0
    %641 = vmatpush2.xpose.msra.mxu0 0.0
    %642 = vmatprep.subr.mxu0 0.0
    %643 = vmatpush2.xpose.msra.mxu0 0.0
    %644 = vmatprep.subr.mxu0 0.0
    %645 = vmatpush2.xpose.msra.mxu0 0.0
    %646 = vmatprep.subr.mxu0 0.0
    %647 = vmatpush2.xpose.msra.mxu0 0.0
    %648 = vmatprep.subr.mxu0 0.0
    %649 = vmatpush2.xpose.msra.mxu0 0.0
    %650 = vmatprep.mubr.f32.mxu0 0.0
    %651 = vmatmul.mubr.f32.gmra.mxu0 %v539
    %v652 = vpop.f32.mrf.mxu0
    %v653 = vadd.f32 0.0, %v652
    %v654 = vpop.f32.mrf.mxu0
    %655 = vmatprep.mubr.f32.mxu0 0.0
    %656 = vmatmul.mubr.f32.gmra.mxu0 %v542
    %v657 = vpop.f32.mrf.mxu0
    %v658 = vadd.f32 0.0, %v657
    %v659 = vpop.f32.mrf.mxu0
    %660 = vmatprep.mubr.f32.mxu0 0.0
    %661 = vmatmul.mubr.f32.gmra.mxu0 %v545
    %v662 = vpop.f32.mrf.mxu0
    %v663 = vadd.f32 0.0, %v662
    %v664 = vpop.f32.mrf.mxu0
    %665 = vmatprep.mubr.f32.mxu0 0.0
    %666 = vmatmul.mubr.f32.gmra.mxu0 %v548
    %v667 = vpop.f32.mrf.mxu0
    %v668 = vadd.f32 0.0, %v667
    %v669 = vpop.f32.mrf.mxu0
    %670 = vmatprep.mubr.f32.mxu0 0.0
    %671 = vmatmul.mubr.f32.gmra.mxu0 %v551
    %v672 = vpop.f32.mrf.mxu0
    %v673 = vadd.f32 0.0, %v672
    %v674 = vpop.f32.mrf.mxu0
    %675 = vmatprep.mubr.f32.mxu0 0.0
    %676 = vmatmul.mubr.f32.gmra.mxu0 %v554
    %v677 = vpop.f32.mrf.mxu0
    %v678 = vadd.f32 0.0, %v677
    %v679 = vpop.f32.mrf.mxu0
    %680 = vmatprep.mubr.f32.mxu0 0.0
    %681 = vmatmul.mubr.f32.gmra.mxu0 %v557
    %v682 = vpop.f32.mrf.mxu0
    %v683 = vadd.f32 0.0, %v682
    %v684 = vpop.f32.mrf.mxu0
    %685 = vmatprep.mubr.f32.mxu0 0.0
    %686 = vmatmul.mubr.f32.gmra.mxu0 %v560
    %v687 = vpop.f32.mrf.mxu0
    %v688 = vadd.f32 0.0, %v687
    %v689 = vpop.f32.mrf.mxu0
    %690 = vdwg.mxu0
    %v691 = vmax.f32 %v653, 0.0
    %v692 = vmax.f32 %v658, 0.0
    %v693 = vmax.f32 %v663, 0.0
    %v694 = vmax.f32 %v668, 0.0
    %v695 = vmax.f32 %v673, 0.0
    %v696 = vmax.f32 %v678, 0.0
    %v697 = vmax.f32 %v683, 0.0
    %v698 = vmax.f32 %v688, 0.0
    %v699 = vlaneseq
    %v700 = vand.u32 %v699, 127
    %v709 = vand.u32 %v691, 4294967232
    %v710 = vand.u32 %v692, 4294967232
    %v711 = vand.u32 %v693, 4294967232
    %v712 = vand.u32 %v694, 4294967232
    %v713 = vand.u32 %v695, 4294967232
    %v714 = vand.u32 %v696, 4294967232
    %v715 = vand.u32 %v697, 4294967232
    %v716 = vand.u32 %v698, 4294967232
    %v717 = vor.u32 %v709, %v700
    %v718 = vor.u32 %v710, %v700
    %v719 = vor.u32 %v711, %v700
    %v720 = vor.u32 %v712, %v700
    %v721 = vor.u32 %v713, %v700
    %v722 = vor.u32 %v714, %v700
    %v723 = vor.u32 %v715, %v700
    %v724 = vor.u32 %v716, %v700
    %vm733 = vcmask 523264
    %v734 = vsel %vm733, %v717, inf
    %735 = vmin.xlane.f32.xlu0 %v734
    %v736 = vpop.xlane.xlu0 %735
    %v737 = vsel %vm733, %v718, inf
    %738 = vmin.xlane.f32.xlu0 %v737
    %v739 = vpop.xlane.xlu0 %738
    %v740 = vsel %vm733, %v719, inf
    %741 = vmin.xlane.f32.xlu0 %v740
    %v742 = vpop.xlane.xlu0 %741
    %v743 = vsel %vm733, %v720, inf
    %744 = vmin.xlane.f32.xlu0 %v743
    %v745 = vpop.xlane.xlu0 %744
    %v746 = vsel %vm733, %v721, inf
    %747 = vmin.xlane.f32.xlu0 %v746
    %v748 = vpop.xlane.xlu0 %747
    %v749 = vsel %vm733, %v722, inf
    %750 = vmin.xlane.f32.xlu0 %v749
    %v751 = vpop.xlane.xlu0 %750
    %v752 = vsel %vm733, %v723, inf
    %753 = vmin.xlane.f32.xlu0 %v752
    %v754 = vpop.xlane.xlu0 %753
    %v755 = vsel %vm733, %v724, inf
    %756 = vmin.xlane.f32.xlu0 %v755
    %v757 = vpop.xlane.xlu0 %756
    %v766 = vand.u32 %v736, 63
    %v767 = vand.u32 %v739, 63
    %v768 = vand.u32 %v742, 63
    %v769 = vand.u32 %v745, 63
    %v770 = vand.u32 %v748, 63
    %v771 = vand.u32 %v751, 63
    %v772 = vand.u32 %v754, 63
    %v773 = vand.u32 %v757, 63
    %v774 = vand.u32 %v736, 4294967232
    %v775 = vand.u32 %v739, 4294967232
    %v776 = vand.u32 %v742, 4294967232
    %v777 = vand.u32 %v745, 4294967232
    %v778 = vand.u32 %v748, 4294967232
    %v779 = vand.u32 %v751, 4294967232
    %v780 = vand.u32 %v754, 4294967232
    %v781 = vand.u32 %v757, 4294967232
    %vm790 = vcmp.eq.s32.totalorder %v700, %v766
    %vm791 = vcmp.eq.s32.totalorder %v700, %v767
    %vm792 = vcmp.eq.s32.totalorder %v700, %v768
    %vm793 = vcmp.eq.s32.totalorder %v700, %v769
    %vm794 = vcmp.eq.s32.totalorder %v700, %v770
    %vm795 = vcmp.eq.s32.totalorder %v700, %v771
    %vm796 = vcmp.eq.s32.totalorder %v700, %v772
    %vm797 = vcmp.eq.s32.totalorder %v700, %v773
    %v798 = vmul.f32 %v774, -10.0
    %v799 = vmul.f32 %v775, -10.0
    %v800 = vmul.f32 %v776, -10.0
    %v801 = vmul.f32 %v777, -10.0
    %v802 = vmul.f32 %v778, -10.0
    %v803 = vmul.f32 %v779, -10.0
    %v804 = vmul.f32 %v780, -10.0
    %v805 = vmul.f32 %v781, -10.0
    %v806 = vmul.f32 %v798, 1.442695
    %v807 = vpow.pop %v806
    %v808 = vmul.f32 %v799, 1.442695
    %v809 = vpow.pop %v808
    %v810 = vmul.f32 %v800, 1.442695
    %v811 = vpow.pop %v810
    %v812 = vmul.f32 %v801, 1.442695
    %v813 = vpow.pop %v812
    %v814 = vmul.f32 %v802, 1.442695
    %v815 = vpow.pop %v814
    %v816 = vmul.f32 %v803, 1.442695
    %v817 = vpow.pop %v816
    %v818 = vmul.f32 %v804, 1.442695
    %v819 = vpow.pop %v818
    %v820 = vmul.f32 %v805, 1.442695
    %v821 = vpow.pop %v820
    %v822 = vsel %vm790, 1, 0
    %v823 = vsel %vm791, 1, 0
    %v824 = vsel %vm792, 1, 0
    %v825 = vsel %vm793, 1, 0
    %v826 = vsel %vm794, 1, 0
    %v827 = vsel %vm795, 1, 0
    %v828 = vsel %vm796, 1, 0
    %v829 = vsel %vm797, 1, 0
    %v830 = vcvt.s32.f32 %v822
    %v831 = vcvt.s32.f32 %v823
    %v832 = vcvt.s32.f32 %v824
    %v833 = vcvt.s32.f32 %v825
    %v834 = vcvt.s32.f32 %v826
    %v835 = vcvt.s32.f32 %v827
    %v836 = vcvt.s32.f32 %v828
    %v837 = vcvt.s32.f32 %v829
    %846 = vrot.lane.b32.xlu0 %v426, 120
    %v847 = vpop.permute.xlu0 %846
    %848 = vrot.lane.b32.xlu0 %v431, 120
    %v849 = vpop.permute.xlu0 %848
    %850 = vrot.lane.b32.xlu0 %v436, 120
    %v851 = vpop.permute.xlu0 %850
    %852 = vrot.lane.b32.xlu0 %v441, 120
    %v853 = vpop.permute.xlu0 %852
    %854 = vrot.lane.b32.xlu0 %v446, 120
    %v855 = vpop.permute.xlu0 %854
    %856 = vrot.lane.b32.xlu0 %v451, 120
    %v857 = vpop.permute.xlu0 %856
    %858 = vrot.lane.b32.xlu0 %v456, 120
    %v859 = vpop.permute.xlu0 %858
    %860 = vrot.lane.b32.xlu0 %v461, 120
    %v861 = vpop.permute.xlu0 %860
    %v871 = vsel %vm733, %v830, 0
    %v874 = vsel %vm733, %v831, 0
    %v877 = vsel %vm733, %v832, 0
    %v880 = vsel %vm733, %v833, 0
    %v883 = vsel %vm733, %v834, 0
    %v886 = vsel %vm733, %v835, 0
    %v889 = vsel %vm733, %v836, 0
    %v892 = vsel %vm733, %v837, 0
    %894 = vmatprep.subr.mxu0 0.0
    %895 = vmatpush1.msra.mxu0 0.0
    %896 = vmatprep.subr.mxu0 0.0
    %897 = vmatpush1.msra.mxu0 0.0
    %898 = vmatprep.subr.mxu0 0.0
    %899 = vmatpush1.msra.mxu0 0.0
    %900 = vmatprep.subr.mxu0 0.0
    %901 = vmatpush1.msra.mxu0 0.0
    %902 = vmatprep.subr.mxu0 0.0
    %903 = vmatpush1.msra.mxu0 0.0
    %904 = vmatprep.subr.mxu0 0.0
    %905 = vmatpush1.msra.mxu0 0.0
    %906 = vmatprep.subr.mxu0 0.0
    %907 = vmatpush1.msra.mxu0 0.0
    %908 = vmatprep.subr.mxu0 0.0
    %909 = vmatpush1.msra.mxu0 0.0
    %910 = vmatprep.subr.mxu0 0.0
    %911 = vmatpush1.msra.mxu0 %v861
    %912 = vmatprep.subr.mxu0 0.0
    %913 = vmatpush1.msra.mxu0 %v859
    %914 = vmatprep.subr.mxu0 0.0
    %915 = vmatpush1.msra.mxu0 %v857
    %916 = vmatprep.subr.mxu0 0.0
    %917 = vmatpush1.msra.mxu0 %v855
    %918 = vmatprep.subr.mxu0 0.0
    %919 = vmatpush1.msra.mxu0 %v853
    %920 = vmatprep.subr.mxu0 0.0
    %921 = vmatpush1.msra.mxu0 %v851
    %922 = vmatprep.subr.mxu0 0.0
    %923 = vmatpush1.msra.mxu0 %v849
    %924 = vmatprep.subr.mxu0 0.0
    %925 = vmatpush1.msra.mxu0 %v847
    %926 = vmatprep.subr.mxu0 0.0
    %927 = vmatpush2.msra.mxu0 0.0
    %928 = vmatprep.subr.mxu0 0.0
    %929 = vmatpush2.msra.mxu0 0.0
    %930 = vmatprep.subr.mxu0 0.0
    %931 = vmatpush2.msra.mxu0 0.0
    %932 = vmatprep.subr.mxu0 0.0
    %933 = vmatpush2.msra.mxu0 0.0
    %934 = vmatprep.subr.mxu0 0.0
    %935 = vmatpush2.msra.mxu0 0.0
    %936 = vmatprep.subr.mxu0 0.0
    %937 = vmatpush2.msra.mxu0 0.0
    %938 = vmatprep.subr.mxu0 0.0
    %939 = vmatpush2.msra.mxu0 0.0
    %940 = vmatprep.subr.mxu0 0.0
    %941 = vmatpush2.msra.mxu0 0.0
    %942 = vmatprep.subr.mxu0 0.0
    %943 = vmatpush2.msra.mxu0 0.0
    %944 = vmatprep.subr.mxu0 0.0
    %945 = vmatpush2.msra.mxu0 0.0
    %946 = vmatprep.subr.mxu0 0.0
    %947 = vmatpush2.msra.mxu0 0.0
    %948 = vmatprep.subr.mxu0 0.0
    %949 = vmatpush2.msra.mxu0 0.0
    %950 = vmatprep.subr.mxu0 0.0
    %951 = vmatpush2.msra.mxu0 0.0
    %952 = vmatprep.subr.mxu0 0.0
    %953 = vmatpush2.msra.mxu0 0.0
    %954 = vmatprep.subr.mxu0 0.0
    %955 = vmatpush2.msra.mxu0 0.0
    %956 = vmatprep.subr.mxu0 0.0
    %957 = vmatpush2.msra.mxu0 0.0
    %958 = vmatprep.mubr.f32.mxu0 0.0
    %959 = vmatmul.mubr.f32.gmra.mxu0 %v871
    %v960 = vpop.f32.mrf.mxu0
    %v961 = vadd.f32 0.0, %v960
    %v962 = vpop.f32.mrf.mxu0
    %963 = vmatprep.mubr.f32.mxu0 0.0
    %964 = vmatmul.mubr.f32.gmra.mxu0 %v874
    %v965 = vpop.f32.mrf.mxu0
    %v966 = vadd.f32 0.0, %v965
    %v967 = vpop.f32.mrf.mxu0
    %968 = vmatprep.mubr.f32.mxu0 0.0
    %969 = vmatmul.mubr.f32.gmra.mxu0 %v877
    %v970 = vpop.f32.mrf.mxu0
    %v971 = vadd.f32 0.0, %v970
    %v972 = vpop.f32.mrf.mxu0
    %973 = vmatprep.mubr.f32.mxu0 0.0
    %974 = vmatmul.mubr.f32.gmra.mxu0 %v880
    %v975 = vpop.f32.mrf.mxu0
    %v976 = vadd.f32 0.0, %v975
    %v977 = vpop.f32.mrf.mxu0
    %978 = vmatprep.mubr.f32.mxu0 0.0
    %979 = vmatmul.mubr.f32.gmra.mxu0 %v883
    %v980 = vpop.f32.mrf.mxu0
    %v981 = vadd.f32 0.0, %v980
    %v982 = vpop.f32.mrf.mxu0
    %983 = vmatprep.mubr.f32.mxu0 0.0
    %984 = vmatmul.mubr.f32.gmra.mxu0 %v886
    %v985 = vpop.f32.mrf.mxu0
    %v986 = vadd.f32 0.0, %v985
    %v987 = vpop.f32.mrf.mxu0
    %988 = vmatprep.mubr.f32.mxu0 0.0
    %989 = vmatmul.mubr.f32.gmra.mxu0 %v889
    %v990 = vpop.f32.mrf.mxu0
    %v991 = vadd.f32 0.0, %v990
    %v992 = vpop.f32.mrf.mxu0
    %993 = vmatprep.mubr.f32.mxu0 0.0
    %994 = vmatmul.mubr.f32.gmra.mxu0 %v892
    %v995 = vpop.f32.mrf.mxu0
    %v996 = vadd.f32 0.0, %v995
    %v997 = vpop.f32.mrf.mxu0
    %998 = vdwg.mxu0
    %v999 = vmul.f32 %v807, %v961
    %v1000 = vmul.f32 %v809, %v966
    %v1001 = vmul.f32 %v811, %v971
    %v1002 = vmul.f32 %v813, %v976
    %v1003 = vmul.f32 %v815, %v981
    %v1004 = vmul.f32 %v817, %v986
    %v1005 = vmul.f32 %v819, %v991
    %v1006 = vmul.f32 %v821, %v996
    %v1007 = vadd.f32 %v999, 0.0
    %v1008 = vadd.f32 %v1000, 0.0
    %v1009 = vadd.f32 %v1001, 0.0
    %v1010 = vadd.f32 %v1002, 0.0
    %v1011 = vadd.f32 %v1003, 0.0
    %v1012 = vadd.f32 %v1004, 0.0
    %v1013 = vadd.f32 %v1005, 0.0
    %v1014 = vadd.f32 %v1006, 0.0
    %v1015 = vmax.f32 %v999, -1e+30
    %v1016 = vmax.f32 %v1000, -1e+30
    %v1017 = vmax.f32 %v1001, -1e+30
    %v1018 = vmax.f32 %v1002, -1e+30
    %v1019 = vmax.f32 %v1003, -1e+30
    %v1020 = vmax.f32 %v1004, -1e+30
    %v1021 = vmax.f32 %v1005, -1e+30
    %v1022 = vmax.f32 %v1006, -1e+30
    %v1023 = vsel %vm790, 1e+30, %v717
    %v1024 = vsel %vm791, 1e+30, %v718
    %v1025 = vsel %vm792, 1e+30, %v719
    %v1026 = vsel %vm793, 1e+30, %v720
    %v1027 = vsel %vm794, 1e+30, %v721
    %v1028 = vsel %vm795, 1e+30, %v722
    %v1029 = vsel %vm796, 1e+30, %v723
    %v1030 = vsel %vm797, 1e+30, %v724
    %v1031 = vsel %vm733, %v1023, inf
    %1032 = vmin.xlane.f32.xlu0 %v1031
    %v1033 = vpop.xlane.xlu0 %1032
    %v1034 = vsel %vm733, %v1024, inf
    %1035 = vmin.xlane.f32.xlu0 %v1034
    %v1036 = vpop.xlane.xlu0 %1035
    %v1037 = vsel %vm733, %v1025, inf
    %1038 = vmin.xlane.f32.xlu0 %v1037
    %v1039 = vpop.xlane.xlu0 %1038
    %v1040 = vsel %vm733, %v1026, inf
    %1041 = vmin.xlane.f32.xlu0 %v1040
    %v1042 = vpop.xlane.xlu0 %1041
    %v1043 = vsel %vm733, %v1027, inf
    %1044 = vmin.xlane.f32.xlu0 %v1043
    %v1045 = vpop.xlane.xlu0 %1044
    %v1046 = vsel %vm733, %v1028, inf
    %1047 = vmin.xlane.f32.xlu0 %v1046
    %v1048 = vpop.xlane.xlu0 %1047
    %v1049 = vsel %vm733, %v1029, inf
    %1050 = vmin.xlane.f32.xlu0 %v1049
    %v1051 = vpop.xlane.xlu0 %1050
    %v1052 = vsel %vm733, %v1030, inf
    %1053 = vmin.xlane.f32.xlu0 %v1052
    %v1054 = vpop.xlane.xlu0 %1053
    %v1063 = vand.u32 %v1033, 63
    %v1064 = vand.u32 %v1036, 63
    %v1065 = vand.u32 %v1039, 63
    %v1066 = vand.u32 %v1042, 63
    %v1067 = vand.u32 %v1045, 63
    %v1068 = vand.u32 %v1048, 63
    %v1069 = vand.u32 %v1051, 63
    %v1070 = vand.u32 %v1054, 63
    %v1071 = vand.u32 %v1033, 4294967232
    %v1072 = vand.u32 %v1036, 4294967232
    %v1073 = vand.u32 %v1039, 4294967232
    %v1074 = vand.u32 %v1042, 4294967232
    %v1075 = vand.u32 %v1045, 4294967232
    %v1076 = vand.u32 %v1048, 4294967232
    %v1077 = vand.u32 %v1051, 4294967232
    %v1078 = vand.u32 %v1054, 4294967232
    %vm1087 = vcmp.eq.s32.totalorder %v700, %v1063
    %vm1088 = vcmp.eq.s32.totalorder %v700, %v1064
    %vm1089 = vcmp.eq.s32.totalorder %v700, %v1065
    %vm1090 = vcmp.eq.s32.totalorder %v700, %v1066
    %vm1091 = vcmp.eq.s32.totalorder %v700, %v1067
    %vm1092 = vcmp.eq.s32.totalorder %v700, %v1068
    %vm1093 = vcmp.eq.s32.totalorder %v700, %v1069
    %vm1094 = vcmp.eq.s32.totalorder %v700, %v1070
    %v1095 = vmul.f32 %v1071, -10.0
    %v1096 = vmul.f32 %v1072, -10.0
    %v1097 = vmul.f32 %v1073, -10.0
    %v1098 = vmul.f32 %v1074, -10.0
    %v1099 = vmul.f32 %v1075, -10.0
    %v1100 = vmul.f32 %v1076, -10.0
    %v1101 = vmul.f32 %v1077, -10.0
    %v1102 = vmul.f32 %v1078, -10.0
    %v1103 = vmul.f32 %v1095, 1.442695
    %v1104 = vpow.pop %v1103
    %v1105 = vmul.f32 %v1096, 1.442695
    %v1106 = vpow.pop %v1105
    %v1107 = vmul.f32 %v1097, 1.442695
    %v1108 = vpow.pop %v1107
    %v1109 = vmul.f32 %v1098, 1.442695
    %v1110 = vpow.pop %v1109
    %v1111 = vmul.f32 %v1099, 1.442695
    %v1112 = vpow.pop %v1111
    %v1113 = vmul.f32 %v1100, 1.442695
    %v1114 = vpow.pop %v1113
    %v1115 = vmul.f32 %v1101, 1.442695
    %v1116 = vpow.pop %v1115
    %v1117 = vmul.f32 %v1102, 1.442695
    %v1118 = vpow.pop %v1117
    %v1119 = vsel %vm1087, 1, 0
    %v1120 = vsel %vm1088, 1, 0
    %v1121 = vsel %vm1089, 1, 0
    %v1122 = vsel %vm1090, 1, 0
    %v1123 = vsel %vm1091, 1, 0
    %v1124 = vsel %vm1092, 1, 0
    %v1125 = vsel %vm1093, 1, 0
    %v1126 = vsel %vm1094, 1, 0
    %v1127 = vcvt.s32.f32 %v1119
    %v1128 = vcvt.s32.f32 %v1120
    %v1129 = vcvt.s32.f32 %v1121
    %v1130 = vcvt.s32.f32 %v1122
    %v1131 = vcvt.s32.f32 %v1123
    %v1132 = vcvt.s32.f32 %v1124
    %v1133 = vcvt.s32.f32 %v1125
    %v1134 = vcvt.s32.f32 %v1126
    %v1136 = vsel %vm733, %v1127, 0
    %v1139 = vsel %vm733, %v1128, 0
    %v1142 = vsel %vm733, %v1129, 0
    %v1145 = vsel %vm733, %v1130, 0
    %v1148 = vsel %vm733, %v1131, 0
    %v1151 = vsel %vm733, %v1132, 0
    %v1154 = vsel %vm733, %v1133, 0
    %v1157 = vsel %vm733, %v1134, 0
    %1159 = vmatprep.subr.mxu0 0.0
    %1160 = vmatpush1.msra.mxu0 0.0
    %1161 = vmatprep.subr.mxu0 0.0
    %1162 = vmatpush1.msra.mxu0 0.0
    %1163 = vmatprep.subr.mxu0 0.0
    %1164 = vmatpush1.msra.mxu0 0.0
    %1165 = vmatprep.subr.mxu0 0.0
    %1166 = vmatpush1.msra.mxu0 0.0
    %1167 = vmatprep.subr.mxu0 0.0
    %1168 = vmatpush1.msra.mxu0 0.0
    %1169 = vmatprep.subr.mxu0 0.0
    %1170 = vmatpush1.msra.mxu0 0.0
    %1171 = vmatprep.subr.mxu0 0.0
    %1172 = vmatpush1.msra.mxu0 0.0
    %1173 = vmatprep.subr.mxu0 0.0
    %1174 = vmatpush1.msra.mxu0 0.0
    %1175 = vmatprep.subr.mxu0 0.0
    %1176 = vmatpush1.msra.mxu0 %v861
    %1177 = vmatprep.subr.mxu0 0.0
    %1178 = vmatpush1.msra.mxu0 %v859
    %1179 = vmatprep.subr.mxu0 0.0
    %1180 = vmatpush1.msra.mxu0 %v857
    %1181 = vmatprep.subr.mxu0 0.0
    %1182 = vmatpush1.msra.mxu0 %v855
    %1183 = vmatprep.subr.mxu0 0.0
    %1184 = vmatpush1.msra.mxu0 %v853
    %1185 = vmatprep.subr.mxu0 0.0
    %1186 = vmatpush1.msra.mxu0 %v851
    %1187 = vmatprep.subr.mxu0 0.0
    %1188 = vmatpush1.msra.mxu0 %v849
    %1189 = vmatprep.subr.mxu0 0.0
    %1190 = vmatpush1.msra.mxu0 %v847
    %1191 = vmatprep.subr.mxu0 0.0
    %1192 = vmatpush2.msra.mxu0 0.0
    %1193 = vmatprep.subr.mxu0 0.0
    %1194 = vmatpush2.msra.mxu0 0.0
    %1195 = vmatprep.subr.mxu0 0.0
    %1196 = vmatpush2.msra.mxu0 0.0
    %1197 = vmatprep.subr.mxu0 0.0
    %1198 = vmatpush2.msra.mxu0 0.0
    %1199 = vmatprep.subr.mxu0 0.0
    %1200 = vmatpush2.msra.mxu0 0.0
    %1201 = vmatprep.subr.mxu0 0.0
    %1202 = vmatpush2.msra.mxu0 0.0
    %1203 = vmatprep.subr.mxu0 0.0
    %1204 = vmatpush2.msra.mxu0 0.0
    %1205 = vmatprep.subr.mxu0 0.0
    %1206 = vmatpush2.msra.mxu0 0.0
    %1207 = vmatprep.subr.mxu0 0.0
    %1208 = vmatpush2.msra.mxu0 0.0
    %1209 = vmatprep.subr.mxu0 0.0
    %1210 = vmatpush2.msra.mxu0 0.0
    %1211 = vmatprep.subr.mxu0 0.0
    %1212 = vmatpush2.msra.mxu0 0.0
    %1213 = vmatprep.subr.mxu0 0.0
    %1214 = vmatpush2.msra.mxu0 0.0
    %1215 = vmatprep.subr.mxu0 0.0
    %1216 = vmatpush2.msra.mxu0 0.0
    %1217 = vmatprep.subr.mxu0 0.0
    %1218 = vmatpush2.msra.mxu0 0.0
    %1219 = vmatprep.subr.mxu0 0.0
    %1220 = vmatpush2.msra.mxu0 0.0
    %1221 = vmatprep.subr.mxu0 0.0
    %1222 = vmatpush2.msra.mxu0 0.0
    %1223 = vmatprep.mubr.f32.mxu0 0.0
    %1224 = vmatmul.mubr.f32.gmra.mxu0 %v1136
    %v1225 = vpop.f32.mrf.mxu0
    %v1226 = vadd.f32 0.0, %v1225
    %v1227 = vpop.f32.mrf.mxu0
    %1228 = vmatprep.mubr.f32.mxu0 0.0
    %1229 = vmatmul.mubr.f32.gmra.mxu0 %v1139
    %v1230 = vpop.f32.mrf.mxu0
    %v1231 = vadd.f32 0.0, %v1230
    %v1232 = vpop.f32.mrf.mxu0
    %1233 = vmatprep.mubr.f32.mxu0 0.0
    %1234 = vmatmul.mubr.f32.gmra.mxu0 %v1142
    %v1235 = vpop.f32.mrf.mxu0
    %v1236 = vadd.f32 0.0, %v1235
    %v1237 = vpop.f32.mrf.mxu0
    %1238 = vmatprep.mubr.f32.mxu0 0.0
    %1239 = vmatmul.mubr.f32.gmra.mxu0 %v1145
    %v1240 = vpop.f32.mrf.mxu0
    %v1241 = vadd.f32 0.0, %v1240
    %v1242 = vpop.f32.mrf.mxu0
    %1243 = vmatprep.mubr.f32.mxu0 0.0
    %1244 = vmatmul.mubr.f32.gmra.mxu0 %v1148
    %v1245 = vpop.f32.mrf.mxu0
    %v1246 = vadd.f32 0.0, %v1245
    %v1247 = vpop.f32.mrf.mxu0
    %1248 = vmatprep.mubr.f32.mxu0 0.0
    %1249 = vmatmul.mubr.f32.gmra.mxu0 %v1151
    %v1250 = vpop.f32.mrf.mxu0
    %v1251 = vadd.f32 0.0, %v1250
    %v1252 = vpop.f32.mrf.mxu0
    %1253 = vmatprep.mubr.f32.mxu0 0.0
    %1254 = vmatmul.mubr.f32.gmra.mxu0 %v1154
    %v1255 = vpop.f32.mrf.mxu0
    %v1256 = vadd.f32 0.0, %v1255
    %v1257 = vpop.f32.mrf.mxu0
    %1258 = vmatprep.mubr.f32.mxu0 0.0
    %1259 = vmatmul.mubr.f32.gmra.mxu0 %v1157
    %v1260 = vpop.f32.mrf.mxu0
    %v1261 = vadd.f32 0.0, %v1260
    %v1262 = vpop.f32.mrf.mxu0
    %1263 = vdwg.mxu0
    %v1264 = vmul.f32 %v1104, %v1226
    %v1265 = vmul.f32 %v1106, %v1231
    %v1266 = vmul.f32 %v1108, %v1236
    %v1267 = vmul.f32 %v1110, %v1241
    %v1268 = vmul.f32 %v1112, %v1246
    %v1269 = vmul.f32 %v1114, %v1251
    %v1270 = vmul.f32 %v1116, %v1256
    %v1271 = vmul.f32 %v1118, %v1261
    %v1272 = vadd.f32 %v1007, %v1264
    %v1273 = vadd.f32 %v1008, %v1265
    %v1274 = vadd.f32 %v1009, %v1266
    %v1275 = vadd.f32 %v1010, %v1267
    %v1276 = vadd.f32 %v1011, %v1268
    %v1277 = vadd.f32 %v1012, %v1269
    %v1278 = vadd.f32 %v1013, %v1270
    %v1279 = vadd.f32 %v1014, %v1271
    %v1280 = vmax.f32 %v1015, %v1264
    %v1281 = vmax.f32 %v1016, %v1265
    %v1282 = vmax.f32 %v1017, %v1266
    %v1283 = vmax.f32 %v1018, %v1267
    %v1284 = vmax.f32 %v1019, %v1268
    %v1285 = vmax.f32 %v1020, %v1269
    %v1286 = vmax.f32 %v1021, %v1270
    %v1287 = vmax.f32 %v1022, %v1271
    %v1288 = vsel %vm1087, 1e+30, %v1023
    %v1289 = vsel %vm1088, 1e+30, %v1024
    %v1290 = vsel %vm1089, 1e+30, %v1025
    %v1291 = vsel %vm1090, 1e+30, %v1026
    %v1292 = vsel %vm1091, 1e+30, %v1027
    %v1293 = vsel %vm1092, 1e+30, %v1028
    %v1294 = vsel %vm1093, 1e+30, %v1029
    %v1295 = vsel %vm1094, 1e+30, %v1030
    %v1296 = vsel %vm733, %v1288, inf
    %1297 = vmin.xlane.f32.xlu0 %v1296
    %v1298 = vpop.xlane.xlu0 %1297
    %v1299 = vsel %vm733, %v1289, inf
    %1300 = vmin.xlane.f32.xlu0 %v1299
    %v1301 = vpop.xlane.xlu0 %1300
    %v1302 = vsel %vm733, %v1290, inf
    %1303 = vmin.xlane.f32.xlu0 %v1302
    %v1304 = vpop.xlane.xlu0 %1303
    %v1305 = vsel %vm733, %v1291, inf
    %1306 = vmin.xlane.f32.xlu0 %v1305
    %v1307 = vpop.xlane.xlu0 %1306
    %v1308 = vsel %vm733, %v1292, inf
    %1309 = vmin.xlane.f32.xlu0 %v1308
    %v1310 = vpop.xlane.xlu0 %1309
    %v1311 = vsel %vm733, %v1293, inf
    %1312 = vmin.xlane.f32.xlu0 %v1311
    %v1313 = vpop.xlane.xlu0 %1312
    %v1314 = vsel %vm733, %v1294, inf
    %1315 = vmin.xlane.f32.xlu0 %v1314
    %v1316 = vpop.xlane.xlu0 %1315
    %v1317 = vsel %vm733, %v1295, inf
    %1318 = vmin.xlane.f32.xlu0 %v1317
    %v1319 = vpop.xlane.xlu0 %1318
    %v1328 = vand.u32 %v1298, 63
    %v1329 = vand.u32 %v1301, 63
    %v1330 = vand.u32 %v1304, 63
    %v1331 = vand.u32 %v1307, 63
    %v1332 = vand.u32 %v1310, 63
    %v1333 = vand.u32 %v1313, 63
    %v1334 = vand.u32 %v1316, 63
    %v1335 = vand.u32 %v1319, 63
    %v1336 = vand.u32 %v1298, 4294967232
    %v1337 = vand.u32 %v1301, 4294967232
    %v1338 = vand.u32 %v1304, 4294967232
    %v1339 = vand.u32 %v1307, 4294967232
    %v1340 = vand.u32 %v1310, 4294967232
    %v1341 = vand.u32 %v1313, 4294967232
    %v1342 = vand.u32 %v1316, 4294967232
    %v1343 = vand.u32 %v1319, 4294967232
    %vm1352 = vcmp.eq.s32.totalorder %v700, %v1328
    %vm1353 = vcmp.eq.s32.totalorder %v700, %v1329
    %vm1354 = vcmp.eq.s32.totalorder %v700, %v1330
    %vm1355 = vcmp.eq.s32.totalorder %v700, %v1331
    %vm1356 = vcmp.eq.s32.totalorder %v700, %v1332
    %vm1357 = vcmp.eq.s32.totalorder %v700, %v1333
    %vm1358 = vcmp.eq.s32.totalorder %v700, %v1334
    %vm1359 = vcmp.eq.s32.totalorder %v700, %v1335
    %v1360 = vmul.f32 %v1336, -10.0
    %v1361 = vmul.f32 %v1337, -10.0
    %v1362 = vmul.f32 %v1338, -10.0
    %v1363 = vmul.f32 %v1339, -10.0
    %v1364 = vmul.f32 %v1340, -10.0
    %v1365 = vmul.f32 %v1341, -10.0
    %v1366 = vmul.f32 %v1342, -10.0
    %v1367 = vmul.f32 %v1343, -10.0
    %v1368 = vmul.f32 %v1360, 1.442695
    %v1369 = vpow.pop %v1368
    %v1370 = vmul.f32 %v1361, 1.442695
    %v1371 = vpow.pop %v1370
    %v1372 = vmul.f32 %v1362, 1.442695
    %v1373 = vpow.pop %v1372
    %v1374 = vmul.f32 %v1363, 1.442695
    %v1375 = vpow.pop %v1374
    %v1376 = vmul.f32 %v1364, 1.442695
    %v1377 = vpow.pop %v1376
    %v1378 = vmul.f32 %v1365, 1.442695
    %v1379 = vpow.pop %v1378
    %v1380 = vmul.f32 %v1366, 1.442695
    %v1381 = vpow.pop %v1380
    %v1382 = vmul.f32 %v1367, 1.442695
    %v1383 = vpow.pop %v1382
    %v1384 = vsel %vm1352, 1, 0
    %v1385 = vsel %vm1353, 1, 0
    %v1386 = vsel %vm1354, 1, 0
    %v1387 = vsel %vm1355, 1, 0
    %v1388 = vsel %vm1356, 1, 0
    %v1389 = vsel %vm1357, 1, 0
    %v1390 = vsel %vm1358, 1, 0
    %v1391 = vsel %vm1359, 1, 0
    %v1392 = vcvt.s32.f32 %v1384
    %v1393 = vcvt.s32.f32 %v1385
    %v1394 = vcvt.s32.f32 %v1386
    %v1395 = vcvt.s32.f32 %v1387
    %v1396 = vcvt.s32.f32 %v1388
    %v1397 = vcvt.s32.f32 %v1389
    %v1398 = vcvt.s32.f32 %v1390
    %v1399 = vcvt.s32.f32 %v1391
    %v1401 = vsel %vm733, %v1392, 0
    %v1404 = vsel %vm733, %v1393, 0
    %v1407 = vsel %vm733, %v1394, 0
    %v1410 = vsel %vm733, %v1395, 0
    %v1413 = vsel %vm733, %v1396, 0
    %v1416 = vsel %vm733, %v1397, 0
    %v1419 = vsel %vm733, %v1398, 0
    %v1422 = vsel %vm733, %v1399, 0
    %1424 = vmatprep.subr.mxu0 0.0
    %1425 = vmatpush1.msra.mxu0 0.0
    %1426 = vmatprep.subr.mxu0 0.0
    %1427 = vmatpush1.msra.mxu0 0.0
    %1428 = vmatprep.subr.mxu0 0.0
    %1429 = vmatpush1.msra.mxu0 0.0
    %1430 = vmatprep.subr.mxu0 0.0
    %1431 = vmatpush1.msra.mxu0 0.0
    %1432 = vmatprep.subr.mxu0 0.0
    %1433 = vmatpush1.msra.mxu0 0.0
    %1434 = vmatprep.subr.mxu0 0.0
    %1435 = vmatpush1.msra.mxu0 0.0
    %1436 = vmatprep.subr.mxu0 0.0
    %1437 = vmatpush1.msra.mxu0 0.0
    %1438 = vmatprep.subr.mxu0 0.0
    %1439 = vmatpush1.msra.mxu0 0.0
    %1440 = vmatprep.subr.mxu0 0.0
    %1441 = vmatpush1.msra.mxu0 %v861
    %1442 = vmatprep.subr.mxu0 0.0
    %1443 = vmatpush1.msra.mxu0 %v859
    %1444 = vmatprep.subr.mxu0 0.0
    %1445 = vmatpush1.msra.mxu0 %v857
    %1446 = vmatprep.subr.mxu0 0.0
    %1447 = vmatpush1.msra.mxu0 %v855
    %1448 = vmatprep.subr.mxu0 0.0
    %1449 = vmatpush1.msra.mxu0 %v853
    %1450 = vmatprep.subr.mxu0 0.0
    %1451 = vmatpush1.msra.mxu0 %v851
    %1452 = vmatprep.subr.mxu0 0.0
    %1453 = vmatpush1.msra.mxu0 %v849
    %1454 = vmatprep.subr.mxu0 0.0
    %1455 = vmatpush1.msra.mxu0 %v847
    %1456 = vmatprep.subr.mxu0 0.0
    %1457 = vmatpush2.msra.mxu0 0.0
    %1458 = vmatprep.subr.mxu0 0.0
    %1459 = vmatpush2.msra.mxu0 0.0
    %1460 = vmatprep.subr.mxu0 0.0
    %1461 = vmatpush2.msra.mxu0 0.0
    %1462 = vmatprep.subr.mxu0 0.0
    %1463 = vmatpush2.msra.mxu0 0.0
    %1464 = vmatprep.subr.mxu0 0.0
    %1465 = vmatpush2.msra.mxu0 0.0
    %1466 = vmatprep.subr.mxu0 0.0
    %1467 = vmatpush2.msra.mxu0 0.0
    %1468 = vmatprep.subr.mxu0 0.0
    %1469 = vmatpush2.msra.mxu0 0.0
    %1470 = vmatprep.subr.mxu0 0.0
    %1471 = vmatpush2.msra.mxu0 0.0
    %1472 = vmatprep.subr.mxu0 0.0
    %1473 = vmatpush2.msra.mxu0 0.0
    %1474 = vmatprep.subr.mxu0 0.0
    %1475 = vmatpush2.msra.mxu0 0.0
    %1476 = vmatprep.subr.mxu0 0.0
    %1477 = vmatpush2.msra.mxu0 0.0
    %1478 = vmatprep.subr.mxu0 0.0
    %1479 = vmatpush2.msra.mxu0 0.0
    %1480 = vmatprep.subr.mxu0 0.0
    %1481 = vmatpush2.msra.mxu0 0.0
    %1482 = vmatprep.subr.mxu0 0.0
    %1483 = vmatpush2.msra.mxu0 0.0
    %1484 = vmatprep.subr.mxu0 0.0
    %1485 = vmatpush2.msra.mxu0 0.0
    %1486 = vmatprep.subr.mxu0 0.0
    %1487 = vmatpush2.msra.mxu0 0.0
    %1488 = vmatprep.mubr.f32.mxu0 0.0
    %1489 = vmatmul.mubr.f32.gmra.mxu0 %v1401
    %v1490 = vpop.f32.mrf.mxu0
    %v1491 = vadd.f32 0.0, %v1490
    %v1492 = vpop.f32.mrf.mxu0
    %1493 = vmatprep.mubr.f32.mxu0 0.0
    %1494 = vmatmul.mubr.f32.gmra.mxu0 %v1404
    %v1495 = vpop.f32.mrf.mxu0
    %v1496 = vadd.f32 0.0, %v1495
    %v1497 = vpop.f32.mrf.mxu0
    %1498 = vmatprep.mubr.f32.mxu0 0.0
    %1499 = vmatmul.mubr.f32.gmra.mxu0 %v1407
    %v1500 = vpop.f32.mrf.mxu0
    %v1501 = vadd.f32 0.0, %v1500
    %v1502 = vpop.f32.mrf.mxu0
    %1503 = vmatprep.mubr.f32.mxu0 0.0
    %1504 = vmatmul.mubr.f32.gmra.mxu0 %v1410
    %v1505 = vpop.f32.mrf.mxu0
    %v1506 = vadd.f32 0.0, %v1505
    %v1507 = vpop.f32.mrf.mxu0
    %1508 = vmatprep.mubr.f32.mxu0 0.0
    %1509 = vmatmul.mubr.f32.gmra.mxu0 %v1413
    %v1510 = vpop.f32.mrf.mxu0
    %v1511 = vadd.f32 0.0, %v1510
    %v1512 = vpop.f32.mrf.mxu0
    %1513 = vmatprep.mubr.f32.mxu0 0.0
    %1514 = vmatmul.mubr.f32.gmra.mxu0 %v1416
    %v1515 = vpop.f32.mrf.mxu0
    %v1516 = vadd.f32 0.0, %v1515
    %v1517 = vpop.f32.mrf.mxu0
    %1518 = vmatprep.mubr.f32.mxu0 0.0
    %1519 = vmatmul.mubr.f32.gmra.mxu0 %v1419
    %v1520 = vpop.f32.mrf.mxu0
    %v1521 = vadd.f32 0.0, %v1520
    %v1522 = vpop.f32.mrf.mxu0
    %1523 = vmatprep.mubr.f32.mxu0 0.0
    %1524 = vmatmul.mubr.f32.gmra.mxu0 %v1422
    %v1525 = vpop.f32.mrf.mxu0
    %v1526 = vadd.f32 0.0, %v1525
    %v1527 = vpop.f32.mrf.mxu0
    %1528 = vdwg.mxu0
    %v1529 = vmul.f32 %v1369, %v1491
    %v1530 = vmul.f32 %v1371, %v1496
    %v1531 = vmul.f32 %v1373, %v1501
    %v1532 = vmul.f32 %v1375, %v1506
    %v1533 = vmul.f32 %v1377, %v1511
    %v1534 = vmul.f32 %v1379, %v1516
    %v1535 = vmul.f32 %v1381, %v1521
    %v1536 = vmul.f32 %v1383, %v1526
    %v1537 = vadd.f32 %v1272, %v1529
    %v1538 = vadd.f32 %v1273, %v1530
    %v1539 = vadd.f32 %v1274, %v1531
    %v1540 = vadd.f32 %v1275, %v1532
    %v1541 = vadd.f32 %v1276, %v1533
    %v1542 = vadd.f32 %v1277, %v1534
    %v1543 = vadd.f32 %v1278, %v1535
    %v1544 = vadd.f32 %v1279, %v1536
    %v1545 = vmax.f32 %v1280, %v1529
    %v1546 = vmax.f32 %v1281, %v1530
    %v1547 = vmax.f32 %v1282, %v1531
    %v1548 = vmax.f32 %v1283, %v1532
    %v1549 = vmax.f32 %v1284, %v1533
    %v1550 = vmax.f32 %v1285, %v1534
    %v1551 = vmax.f32 %v1286, %v1535
    %v1552 = vmax.f32 %v1287, %v1536
    %v1553 = vsel %vm1352, 1e+30, %v1288
    %v1554 = vsel %vm1353, 1e+30, %v1289
    %v1555 = vsel %vm1354, 1e+30, %v1290
    %v1556 = vsel %vm1355, 1e+30, %v1291
    %v1557 = vsel %vm1356, 1e+30, %v1292
    %v1558 = vsel %vm1357, 1e+30, %v1293
    %v1559 = vsel %vm1358, 1e+30, %v1294
    %v1560 = vsel %vm1359, 1e+30, %v1295
    %v1561 = vsel %vm733, %v1553, inf
    %1562 = vmin.xlane.f32.xlu0 %v1561
    %v1563 = vpop.xlane.xlu0 %1562
    %v1564 = vsel %vm733, %v1554, inf
    %1565 = vmin.xlane.f32.xlu0 %v1564
    %v1566 = vpop.xlane.xlu0 %1565
    %v1567 = vsel %vm733, %v1555, inf
    %1568 = vmin.xlane.f32.xlu0 %v1567
    %v1569 = vpop.xlane.xlu0 %1568
    %v1570 = vsel %vm733, %v1556, inf
    %1571 = vmin.xlane.f32.xlu0 %v1570
    %v1572 = vpop.xlane.xlu0 %1571
    %v1573 = vsel %vm733, %v1557, inf
    %1574 = vmin.xlane.f32.xlu0 %v1573
    %v1575 = vpop.xlane.xlu0 %1574
    %v1576 = vsel %vm733, %v1558, inf
    %1577 = vmin.xlane.f32.xlu0 %v1576
    %v1578 = vpop.xlane.xlu0 %1577
    %v1579 = vsel %vm733, %v1559, inf
    %1580 = vmin.xlane.f32.xlu0 %v1579
    %v1581 = vpop.xlane.xlu0 %1580
    %v1582 = vsel %vm733, %v1560, inf
    %1583 = vmin.xlane.f32.xlu0 %v1582
    %v1584 = vpop.xlane.xlu0 %1583
    %v1593 = vand.u32 %v1563, 63
    %v1594 = vand.u32 %v1566, 63
    %v1595 = vand.u32 %v1569, 63
    %v1596 = vand.u32 %v1572, 63
    %v1597 = vand.u32 %v1575, 63
    %v1598 = vand.u32 %v1578, 63
    %v1599 = vand.u32 %v1581, 63
    %v1600 = vand.u32 %v1584, 63
    %v1601 = vand.u32 %v1563, 4294967232
    %v1602 = vand.u32 %v1566, 4294967232
    %v1603 = vand.u32 %v1569, 4294967232
    %v1604 = vand.u32 %v1572, 4294967232
    %v1605 = vand.u32 %v1575, 4294967232
    %v1606 = vand.u32 %v1578, 4294967232
    %v1607 = vand.u32 %v1581, 4294967232
    %v1608 = vand.u32 %v1584, 4294967232
    %vm1617 = vcmp.eq.s32.totalorder %v700, %v1593
    %vm1618 = vcmp.eq.s32.totalorder %v700, %v1594
    %vm1619 = vcmp.eq.s32.totalorder %v700, %v1595
    %vm1620 = vcmp.eq.s32.totalorder %v700, %v1596
    %vm1621 = vcmp.eq.s32.totalorder %v700, %v1597
    %vm1622 = vcmp.eq.s32.totalorder %v700, %v1598
    %vm1623 = vcmp.eq.s32.totalorder %v700, %v1599
    %vm1624 = vcmp.eq.s32.totalorder %v700, %v1600
    %v1625 = vmul.f32 %v1601, -10.0
    %v1626 = vmul.f32 %v1602, -10.0
    %v1627 = vmul.f32 %v1603, -10.0
    %v1628 = vmul.f32 %v1604, -10.0
    %v1629 = vmul.f32 %v1605, -10.0
    %v1630 = vmul.f32 %v1606, -10.0
    %v1631 = vmul.f32 %v1607, -10.0
    %v1632 = vmul.f32 %v1608, -10.0
    %v1633 = vmul.f32 %v1625, 1.442695
    %v1634 = vpow.pop %v1633
    %v1635 = vmul.f32 %v1626, 1.442695
    %v1636 = vpow.pop %v1635
    %v1637 = vmul.f32 %v1627, 1.442695
    %v1638 = vpow.pop %v1637
    %v1639 = vmul.f32 %v1628, 1.442695
    %v1640 = vpow.pop %v1639
    %v1641 = vmul.f32 %v1629, 1.442695
    %v1642 = vpow.pop %v1641
    %v1643 = vmul.f32 %v1630, 1.442695
    %v1644 = vpow.pop %v1643
    %v1645 = vmul.f32 %v1631, 1.442695
    %v1646 = vpow.pop %v1645
    %v1647 = vmul.f32 %v1632, 1.442695
    %v1648 = vpow.pop %v1647
    %v1649 = vsel %vm1617, 1, 0
    %v1650 = vsel %vm1618, 1, 0
    %v1651 = vsel %vm1619, 1, 0
    %v1652 = vsel %vm1620, 1, 0
    %v1653 = vsel %vm1621, 1, 0
    %v1654 = vsel %vm1622, 1, 0
    %v1655 = vsel %vm1623, 1, 0
    %v1656 = vsel %vm1624, 1, 0
    %v1657 = vcvt.s32.f32 %v1649
    %v1658 = vcvt.s32.f32 %v1650
    %v1659 = vcvt.s32.f32 %v1651
    %v1660 = vcvt.s32.f32 %v1652
    %v1661 = vcvt.s32.f32 %v1653
    %v1662 = vcvt.s32.f32 %v1654
    %v1663 = vcvt.s32.f32 %v1655
    %v1664 = vcvt.s32.f32 %v1656
    %v1666 = vsel %vm733, %v1657, 0
    %v1669 = vsel %vm733, %v1658, 0
    %v1672 = vsel %vm733, %v1659, 0
    %v1675 = vsel %vm733, %v1660, 0
    %v1678 = vsel %vm733, %v1661, 0
    %v1681 = vsel %vm733, %v1662, 0
    %v1684 = vsel %vm733, %v1663, 0
    %v1687 = vsel %vm733, %v1664, 0
    %1689 = vmatprep.subr.mxu0 0.0
    %1690 = vmatpush1.msra.mxu0 0.0
    %1691 = vmatprep.subr.mxu0 0.0
    %1692 = vmatpush1.msra.mxu0 0.0
    %1693 = vmatprep.subr.mxu0 0.0
    %1694 = vmatpush1.msra.mxu0 0.0
    %1695 = vmatprep.subr.mxu0 0.0
    %1696 = vmatpush1.msra.mxu0 0.0
    %1697 = vmatprep.subr.mxu0 0.0
    %1698 = vmatpush1.msra.mxu0 0.0
    %1699 = vmatprep.subr.mxu0 0.0
    %1700 = vmatpush1.msra.mxu0 0.0
    %1701 = vmatprep.subr.mxu0 0.0
    %1702 = vmatpush1.msra.mxu0 0.0
    %1703 = vmatprep.subr.mxu0 0.0
    %1704 = vmatpush1.msra.mxu0 0.0
    %1705 = vmatprep.subr.mxu0 0.0
    %1706 = vmatpush1.msra.mxu0 %v861
    %1707 = vmatprep.subr.mxu0 0.0
    %1708 = vmatpush1.msra.mxu0 %v859
    %1709 = vmatprep.subr.mxu0 0.0
    %1710 = vmatpush1.msra.mxu0 %v857
    %1711 = vmatprep.subr.mxu0 0.0
    %1712 = vmatpush1.msra.mxu0 %v855
    %1713 = vmatprep.subr.mxu0 0.0
    %1714 = vmatpush1.msra.mxu0 %v853
    %1715 = vmatprep.subr.mxu0 0.0
    %1716 = vmatpush1.msra.mxu0 %v851
    %1717 = vmatprep.subr.mxu0 0.0
    %1718 = vmatpush1.msra.mxu0 %v849
    %1719 = vmatprep.subr.mxu0 0.0
    %1720 = vmatpush1.msra.mxu0 %v847
    %1721 = vmatprep.subr.mxu0 0.0
    %1722 = vmatpush2.msra.mxu0 0.0
    %1723 = vmatprep.subr.mxu0 0.0
    %1724 = vmatpush2.msra.mxu0 0.0
    %1725 = vmatprep.subr.mxu0 0.0
    %1726 = vmatpush2.msra.mxu0 0.0
    %1727 = vmatprep.subr.mxu0 0.0
    %1728 = vmatpush2.msra.mxu0 0.0
    %1729 = vmatprep.subr.mxu0 0.0
    %1730 = vmatpush2.msra.mxu0 0.0
    %1731 = vmatprep.subr.mxu0 0.0
    %1732 = vmatpush2.msra.mxu0 0.0
    %1733 = vmatprep.subr.mxu0 0.0
    %1734 = vmatpush2.msra.mxu0 0.0
    %1735 = vmatprep.subr.mxu0 0.0
    %1736 = vmatpush2.msra.mxu0 0.0
    %1737 = vmatprep.subr.mxu0 0.0
    %1738 = vmatpush2.msra.mxu0 0.0
    %1739 = vmatprep.subr.mxu0 0.0
    %1740 = vmatpush2.msra.mxu0 0.0
    %1741 = vmatprep.subr.mxu0 0.0
    %1742 = vmatpush2.msra.mxu0 0.0
    %1743 = vmatprep.subr.mxu0 0.0
    %1744 = vmatpush2.msra.mxu0 0.0
    %1745 = vmatprep.subr.mxu0 0.0
    %1746 = vmatpush2.msra.mxu0 0.0
    %1747 = vmatprep.subr.mxu0 0.0
    %1748 = vmatpush2.msra.mxu0 0.0
    %1749 = vmatprep.subr.mxu0 0.0
    %1750 = vmatpush2.msra.mxu0 0.0
    %1751 = vmatprep.subr.mxu0 0.0
    %1752 = vmatpush2.msra.mxu0 0.0
    %1753 = vmatprep.mubr.f32.mxu0 0.0
    %1754 = vmatmul.mubr.f32.gmra.mxu0 %v1666
    %v1755 = vpop.f32.mrf.mxu0
    %v1756 = vadd.f32 0.0, %v1755
    %v1757 = vpop.f32.mrf.mxu0
    %1758 = vmatprep.mubr.f32.mxu0 0.0
    %1759 = vmatmul.mubr.f32.gmra.mxu0 %v1669
    %v1760 = vpop.f32.mrf.mxu0
    %v1761 = vadd.f32 0.0, %v1760
    %v1762 = vpop.f32.mrf.mxu0
    %1763 = vmatprep.mubr.f32.mxu0 0.0
    %1764 = vmatmul.mubr.f32.gmra.mxu0 %v1672
    %v1765 = vpop.f32.mrf.mxu0
    %v1766 = vadd.f32 0.0, %v1765
    %v1767 = vpop.f32.mrf.mxu0
    %1768 = vmatprep.mubr.f32.mxu0 0.0
    %1769 = vmatmul.mubr.f32.gmra.mxu0 %v1675
    %v1770 = vpop.f32.mrf.mxu0
    %v1771 = vadd.f32 0.0, %v1770
    %v1772 = vpop.f32.mrf.mxu0
    %1773 = vmatprep.mubr.f32.mxu0 0.0
    %1774 = vmatmul.mubr.f32.gmra.mxu0 %v1678
    %v1775 = vpop.f32.mrf.mxu0
    %v1776 = vadd.f32 0.0, %v1775
    %v1777 = vpop.f32.mrf.mxu0
    %1778 = vmatprep.mubr.f32.mxu0 0.0
    %1779 = vmatmul.mubr.f32.gmra.mxu0 %v1681
    %v1780 = vpop.f32.mrf.mxu0
    %v1781 = vadd.f32 0.0, %v1780
    %v1782 = vpop.f32.mrf.mxu0
    %1783 = vmatprep.mubr.f32.mxu0 0.0
    %1784 = vmatmul.mubr.f32.gmra.mxu0 %v1684
    %v1785 = vpop.f32.mrf.mxu0
    %v1786 = vadd.f32 0.0, %v1785
    %v1787 = vpop.f32.mrf.mxu0
    %1788 = vmatprep.mubr.f32.mxu0 0.0
    %1789 = vmatmul.mubr.f32.gmra.mxu0 %v1687
    %v1790 = vpop.f32.mrf.mxu0
    %v1791 = vadd.f32 0.0, %v1790
    %v1792 = vpop.f32.mrf.mxu0
    %1793 = vdwg.mxu0
    %v1794 = vmul.f32 %v1634, %v1756
    %v1795 = vmul.f32 %v1636, %v1761
    %v1796 = vmul.f32 %v1638, %v1766
    %v1797 = vmul.f32 %v1640, %v1771
    %v1798 = vmul.f32 %v1642, %v1776
    %v1799 = vmul.f32 %v1644, %v1781
    %v1800 = vmul.f32 %v1646, %v1786
    %v1801 = vmul.f32 %v1648, %v1791
    %v1802 = vadd.f32 %v1537, %v1794
    %v1803 = vadd.f32 %v1538, %v1795
    %v1804 = vadd.f32 %v1539, %v1796
    %v1805 = vadd.f32 %v1540, %v1797
    %v1806 = vadd.f32 %v1541, %v1798
    %v1807 = vadd.f32 %v1542, %v1799
    %v1808 = vadd.f32 %v1543, %v1800
    %v1809 = vadd.f32 %v1544, %v1801
    %v1810 = vmax.f32 %v1545, %v1794
    %v1811 = vmax.f32 %v1546, %v1795
    %v1812 = vmax.f32 %v1547, %v1796
    %v1813 = vmax.f32 %v1548, %v1797
    %v1814 = vmax.f32 %v1549, %v1798
    %v1815 = vmax.f32 %v1550, %v1799
    %v1816 = vmax.f32 %v1551, %v1800
    %v1817 = vmax.f32 %v1552, %v1801
    %v1818 = vmul.f32 %v1802, 0.25
    %v1819 = vmul.f32 %v1803, 0.25
    %v1820 = vmul.f32 %v1804, 0.25
    %v1821 = vmul.f32 %v1805, 0.25
    %v1822 = vmul.f32 %v1806, 0.25
    %v1823 = vmul.f32 %v1807, 0.25
    %v1824 = vmul.f32 %v1808, 0.25
    %v1825 = vmul.f32 %v1809, 0.25
    %v1827 = vsel %vm39, %v1818, 0
    %v1830 = vsel %vm39, %v1819, 0
    %v1833 = vsel %vm39, %v1820, 0
    %v1836 = vsel %vm39, %v1821, 0
    %v1839 = vsel %vm39, %v1822, 0
    %v1842 = vsel %vm39, %v1823, 0
    %v1845 = vsel %vm39, %v1824, 0
    %v1848 = vsel %vm39, %v1825, 0
    %1850 = vmatprep.subr.mxu0 0.0
    %1851 = vmatpush1.msra.mxu0 0.0
    %1852 = vmatprep.subr.mxu0 0.0
    %1853 = vmatpush1.msra.mxu0 0.0
    %1854 = vmatprep.subr.mxu0 0.0
    %1855 = vmatpush1.msra.mxu0 0.0
    %1856 = vmatprep.subr.mxu0 0.0
    %1857 = vmatpush1.msra.mxu0 0.0
    %1858 = vmatprep.subr.mxu0 0.0
    %1859 = vmatpush1.msra.mxu0 0.0
    %1860 = vmatprep.subr.mxu0 0.0
    %1861 = vmatpush1.msra.mxu0 0.0
    %1862 = vmatprep.subr.mxu0 0.0
    %1863 = vmatpush1.msra.mxu0 0.0
    %1864 = vmatprep.subr.mxu0 0.0
    %1865 = vmatpush1.msra.mxu0 0.0
    %1866 = vmatprep.subr.mxu0 0.0
    %1867 = vmatpush1.msra.mxu0 0.0
    %1868 = vmatprep.subr.mxu0 0.0
    %1869 = vmatpush1.msra.mxu0 0.0
    %1870 = vmatprep.subr.mxu0 0.0
    %1871 = vmatpush1.msra.mxu0 0.0
    %1872 = vmatprep.subr.mxu0 0.0
    %1873 = vmatpush1.msra.mxu0 0.0
    %1874 = vmatprep.subr.mxu0 0.0
    %1875 = vmatpush1.msra.mxu0 0.0
    %1876 = vmatprep.subr.mxu0 0.0
    %1877 = vmatpush1.msra.mxu0 0.0
    %1878 = vmatprep.subr.mxu0 0.0
    %1879 = vmatpush1.msra.mxu0 0.0
    %1880 = vmatprep.subr.mxu0 0.0
    %1881 = vmatpush1.msra.mxu0 %v329
    %1882 = vmatprep.subr.mxu0 0.0
    %1883 = vmatpush2.msra.mxu0 0.0
    %1884 = vmatprep.subr.mxu0 0.0
    %1885 = vmatpush2.msra.mxu0 0.0
    %1886 = vmatprep.subr.mxu0 0.0
    %1887 = vmatpush2.msra.mxu0 0.0
    %1888 = vmatprep.subr.mxu0 0.0
    %1889 = vmatpush2.msra.mxu0 0.0
    %1890 = vmatprep.subr.mxu0 0.0
    %1891 = vmatpush2.msra.mxu0 0.0
    %1892 = vmatprep.subr.mxu0 0.0
    %1893 = vmatpush2.msra.mxu0 0.0
    %1894 = vmatprep.subr.mxu0 0.0
    %1895 = vmatpush2.msra.mxu0 0.0
    %1896 = vmatprep.subr.mxu0 0.0
    %1897 = vmatpush2.msra.mxu0 0.0
    %1898 = vmatprep.subr.mxu0 0.0
    %1899 = vmatpush2.msra.mxu0 0.0
    %1900 = vmatprep.subr.mxu0 0.0
    %1901 = vmatpush2.msra.mxu0 0.0
    %1902 = vmatprep.subr.mxu0 0.0
    %1903 = vmatpush2.msra.mxu0 0.0
    %1904 = vmatprep.subr.mxu0 0.0
    %1905 = vmatpush2.msra.mxu0 0.0
    %1906 = vmatprep.subr.mxu0 0.0
    %1907 = vmatpush2.msra.mxu0 0.0
    %1908 = vmatprep.subr.mxu0 0.0
    %1909 = vmatpush2.msra.mxu0 0.0
    %1910 = vmatprep.subr.mxu0 0.0
    %1911 = vmatpush2.msra.mxu0 0.0
    %1912 = vmatprep.subr.mxu0 0.0
    %1913 = vmatpush2.msra.mxu0 0.0
    %1914 = vmatprep.mubr.f32.mxu0 0.0
    %1915 = vmatmul.mubr.f32.gmra.mxu0 %v1827
    %v1916 = vpop.f32.mrf.mxu0
    %v1917 = vadd.f32 0.0, %v1916
    %v1918 = vpop.f32.mrf.mxu0
    %1919 = vmatprep.mubr.f32.mxu0 0.0
    %1920 = vmatmul.mubr.f32.gmra.mxu0 %v1830
    %v1921 = vpop.f32.mrf.mxu0
    %v1922 = vadd.f32 0.0, %v1921
    %v1923 = vpop.f32.mrf.mxu0
    %1924 = vmatprep.mubr.f32.mxu0 0.0
    %1925 = vmatmul.mubr.f32.gmra.mxu0 %v1833
    %v1926 = vpop.f32.mrf.mxu0
    %v1927 = vadd.f32 0.0, %v1926
    %v1928 = vpop.f32.mrf.mxu0
    %1929 = vmatprep.mubr.f32.mxu0 0.0
    %1930 = vmatmul.mubr.f32.gmra.mxu0 %v1836
    %v1931 = vpop.f32.mrf.mxu0
    %v1932 = vadd.f32 0.0, %v1931
    %v1933 = vpop.f32.mrf.mxu0
    %1934 = vmatprep.mubr.f32.mxu0 0.0
    %1935 = vmatmul.mubr.f32.gmra.mxu0 %v1839
    %v1936 = vpop.f32.mrf.mxu0
    %v1937 = vadd.f32 0.0, %v1936
    %v1938 = vpop.f32.mrf.mxu0
    %1939 = vmatprep.mubr.f32.mxu0 0.0
    %1940 = vmatmul.mubr.f32.gmra.mxu0 %v1842
    %v1941 = vpop.f32.mrf.mxu0
    %v1942 = vadd.f32 0.0, %v1941
    %v1943 = vpop.f32.mrf.mxu0
    %1944 = vmatprep.mubr.f32.mxu0 0.0
    %1945 = vmatmul.mubr.f32.gmra.mxu0 %v1845
    %v1946 = vpop.f32.mrf.mxu0
    %v1947 = vadd.f32 0.0, %v1946
    %v1948 = vpop.f32.mrf.mxu0
    %1949 = vmatprep.mubr.f32.mxu0 0.0
    %1950 = vmatmul.mubr.f32.gmra.mxu0 %v1848
    %v1951 = vpop.f32.mrf.mxu0
    %v1952 = vadd.f32 0.0, %v1951
    %v1953 = vpop.f32.mrf.mxu0
    %1954 = vdwg.mxu0
    %1963 = vrot.lane.b32.xlu0 %v1917, 16
    %v1964 = vpop.permute.xlu0 %1963
    %1965 = vrot.lane.b32.xlu0 %v1922, 16
    %v1966 = vpop.permute.xlu0 %1965
    %1967 = vrot.lane.b32.xlu0 %v1927, 16
    %v1968 = vpop.permute.xlu0 %1967
    %1969 = vrot.lane.b32.xlu0 %v1932, 16
    %v1970 = vpop.permute.xlu0 %1969
    %1971 = vrot.lane.b32.xlu0 %v1937, 16
    %v1972 = vpop.permute.xlu0 %1971
    %1973 = vrot.lane.b32.xlu0 %v1942, 16
    %v1974 = vpop.permute.xlu0 %1973
    %1975 = vrot.lane.b32.xlu0 %v1947, 16
    %v1976 = vpop.permute.xlu0 %1975
    %1977 = vrot.lane.b32.xlu0 %v1952, 16
    %v1978 = vpop.permute.xlu0 %1977
    %v1987 = vadd.f32 %v426, %v1964
    %v1988 = vadd.f32 %v431, %v1966
    %v1989 = vadd.f32 %v436, %v1968
    %v1990 = vadd.f32 %v441, %v1970
    %v1991 = vadd.f32 %v446, %v1972
    %v1992 = vadd.f32 %v451, %v1974
    %v1993 = vadd.f32 %v456, %v1976
    %v1994 = vadd.f32 %v461, %v1978
    %v1996 = vsel %vm39, %v1810, 0
    %v1999 = vsel %vm39, %v1811, 0
    %v2002 = vsel %vm39, %v1812, 0
    %v2005 = vsel %vm39, %v1813, 0
    %v2008 = vsel %vm39, %v1814, 0
    %v2011 = vsel %vm39, %v1815, 0
    %v2014 = vsel %vm39, %v1816, 0
    %v2017 = vsel %vm39, %v1817, 0
    %2019 = vmatprep.subr.mxu0 0.0
    %2020 = vmatpush1.msra.mxu0 0.0
    %2021 = vmatprep.subr.mxu0 0.0
    %2022 = vmatpush1.msra.mxu0 0.0
    %2023 = vmatprep.subr.mxu0 0.0
    %2024 = vmatpush1.msra.mxu0 0.0
    %2025 = vmatprep.subr.mxu0 0.0
    %2026 = vmatpush1.msra.mxu0 0.0
    %2027 = vmatprep.subr.mxu0 0.0
    %2028 = vmatpush1.msra.mxu0 0.0
    %2029 = vmatprep.subr.mxu0 0.0
    %2030 = vmatpush1.msra.mxu0 0.0
    %2031 = vmatprep.subr.mxu0 0.0
    %2032 = vmatpush1.msra.mxu0 0.0
    %2033 = vmatprep.subr.mxu0 0.0
    %2034 = vmatpush1.msra.mxu0 0.0
    %2035 = vmatprep.subr.mxu0 0.0
    %2036 = vmatpush1.msra.mxu0 0.0
    %2037 = vmatprep.subr.mxu0 0.0
    %2038 = vmatpush1.msra.mxu0 0.0
    %2039 = vmatprep.subr.mxu0 0.0
    %2040 = vmatpush1.msra.mxu0 0.0
    %2041 = vmatprep.subr.mxu0 0.0
    %2042 = vmatpush1.msra.mxu0 0.0
    %2043 = vmatprep.subr.mxu0 0.0
    %2044 = vmatpush1.msra.mxu0 0.0
    %2045 = vmatprep.subr.mxu0 0.0
    %2046 = vmatpush1.msra.mxu0 0.0
    %2047 = vmatprep.subr.mxu0 0.0
    %2048 = vmatpush1.msra.mxu0 0.0
    %2049 = vmatprep.subr.mxu0 0.0
    %2050 = vmatpush1.msra.mxu0 %v330
    %2051 = vmatprep.subr.mxu0 0.0
    %2052 = vmatpush2.msra.mxu0 0.0
    %2053 = vmatprep.subr.mxu0 0.0
    %2054 = vmatpush2.msra.mxu0 0.0
    %2055 = vmatprep.subr.mxu0 0.0
    %2056 = vmatpush2.msra.mxu0 0.0
    %2057 = vmatprep.subr.mxu0 0.0
    %2058 = vmatpush2.msra.mxu0 0.0
    %2059 = vmatprep.subr.mxu0 0.0
    %2060 = vmatpush2.msra.mxu0 0.0
    %2061 = vmatprep.subr.mxu0 0.0
    %2062 = vmatpush2.msra.mxu0 0.0
    %2063 = vmatprep.subr.mxu0 0.0
    %2064 = vmatpush2.msra.mxu0 0.0
    %2065 = vmatprep.subr.mxu0 0.0
    %2066 = vmatpush2.msra.mxu0 0.0
    %2067 = vmatprep.subr.mxu0 0.0
    %2068 = vmatpush2.msra.mxu0 0.0
    %2069 = vmatprep.subr.mxu0 0.0
    %2070 = vmatpush2.msra.mxu0 0.0
    %2071 = vmatprep.subr.mxu0 0.0
    %2072 = vmatpush2.msra.mxu0 0.0
    %2073 = vmatprep.subr.mxu0 0.0
    %2074 = vmatpush2.msra.mxu0 0.0
    %2075 = vmatprep.subr.mxu0 0.0
    %2076 = vmatpush2.msra.mxu0 0.0
    %2077 = vmatprep.subr.mxu0 0.0
    %2078 = vmatpush2.msra.mxu0 0.0
    %2079 = vmatprep.subr.mxu0 0.0
    %2080 = vmatpush2.msra.mxu0 0.0
    %2081 = vmatprep.subr.mxu0 0.0
    %2082 = vmatpush2.msra.mxu0 0.0
    %2083 = vmatprep.mubr.f32.mxu0 0.0
    %2084 = vmatmul.mubr.f32.gmra.mxu0 %v1996
    %v2085 = vpop.f32.mrf.mxu0
    %v2086 = vadd.f32 0.0, %v2085
    %v2087 = vpop.f32.mrf.mxu0
    %2088 = vmatprep.mubr.f32.mxu0 0.0
    %2089 = vmatmul.mubr.f32.gmra.mxu0 %v1999
    %v2090 = vpop.f32.mrf.mxu0
    %v2091 = vadd.f32 0.0, %v2090
    %v2092 = vpop.f32.mrf.mxu0
    %2093 = vmatprep.mubr.f32.mxu0 0.0
    %2094 = vmatmul.mubr.f32.gmra.mxu0 %v2002
    %v2095 = vpop.f32.mrf.mxu0
    %v2096 = vadd.f32 0.0, %v2095
    %v2097 = vpop.f32.mrf.mxu0
    %2098 = vmatprep.mubr.f32.mxu0 0.0
    %2099 = vmatmul.mubr.f32.gmra.mxu0 %v2005
    %v2100 = vpop.f32.mrf.mxu0
    %v2101 = vadd.f32 0.0, %v2100
    %v2102 = vpop.f32.mrf.mxu0
    %2103 = vmatprep.mubr.f32.mxu0 0.0
    %2104 = vmatmul.mubr.f32.gmra.mxu0 %v2008
    %v2105 = vpop.f32.mrf.mxu0
    %v2106 = vadd.f32 0.0, %v2105
    %v2107 = vpop.f32.mrf.mxu0
    %2108 = vmatprep.mubr.f32.mxu0 0.0
    %2109 = vmatmul.mubr.f32.gmra.mxu0 %v2011
    %v2110 = vpop.f32.mrf.mxu0
    %v2111 = vadd.f32 0.0, %v2110
    %v2112 = vpop.f32.mrf.mxu0
    %2113 = vmatprep.mubr.f32.mxu0 0.0
    %2114 = vmatmul.mubr.f32.gmra.mxu0 %v2014
    %v2115 = vpop.f32.mrf.mxu0
    %v2116 = vadd.f32 0.0, %v2115
    %v2117 = vpop.f32.mrf.mxu0
    %2118 = vmatprep.mubr.f32.mxu0 0.0
    %2119 = vmatmul.mubr.f32.gmra.mxu0 %v2017
    %v2120 = vpop.f32.mrf.mxu0
    %v2121 = vadd.f32 0.0, %v2120
    %v2122 = vpop.f32.mrf.mxu0
    %2123 = vdwg.mxu0
    %2132 = vrot.lane.b32.xlu0 %v2086, 16
    %v2133 = vpop.permute.xlu0 %2132
    %2134 = vrot.lane.b32.xlu0 %v2091, 16
    %v2135 = vpop.permute.xlu0 %2134
    %2136 = vrot.lane.b32.xlu0 %v2096, 16
    %v2137 = vpop.permute.xlu0 %2136
    %2138 = vrot.lane.b32.xlu0 %v2101, 16
    %v2139 = vpop.permute.xlu0 %2138
    %2140 = vrot.lane.b32.xlu0 %v2106, 16
    %v2141 = vpop.permute.xlu0 %2140
    %2142 = vrot.lane.b32.xlu0 %v2111, 16
    %v2143 = vpop.permute.xlu0 %2142
    %2144 = vrot.lane.b32.xlu0 %v2116, 16
    %v2145 = vpop.permute.xlu0 %2144
    %2146 = vrot.lane.b32.xlu0 %v2121, 16
    %v2147 = vpop.permute.xlu0 %2146
    %v2156 = vadd.f32 %v1987, %v2133
    %v2157 = vadd.f32 %v1988, %v2135
    %v2158 = vadd.f32 %v1989, %v2137
    %v2159 = vadd.f32 %v1990, %v2139
    %v2160 = vadd.f32 %v1991, %v2141
    %v2161 = vadd.f32 %v1992, %v2143
    %v2162 = vadd.f32 %v1993, %v2145
    %v2163 = vadd.f32 %v1994, %v2147
    %v2164 = vld [vmem:[#allocation2 + $0x70] sm:$0xff]
    %v2165 = vld [vmem:[#allocation2 + $0x78] sm:$0xff]
    %v2166 = vld [vmem:[#allocation2 + $0x80] sm:$0x1]
    %v2167 = vlaneseq
    %v2168 = vshrl.u32 %v2167, 7
    %v2169 = vsub.s32 0, %v2168
    %v2170 = vrot.slane %v2166, %v2169
    %2179 = vrot.lane.b32.xlu0 %v2156, 112
    %v2180 = vpop.permute.xlu0 %2179
    %2181 = vrot.lane.b32.xlu0 %v2157, 112
    %v2182 = vpop.permute.xlu0 %2181
    %2183 = vrot.lane.b32.xlu0 %v2158, 112
    %v2184 = vpop.permute.xlu0 %2183
    %2185 = vrot.lane.b32.xlu0 %v2159, 112
    %v2186 = vpop.permute.xlu0 %2185
    %2187 = vrot.lane.b32.xlu0 %v2160, 112
    %v2188 = vpop.permute.xlu0 %2187
    %2189 = vrot.lane.b32.xlu0 %v2161, 112
    %v2190 = vpop.permute.xlu0 %2189
    %2191 = vrot.lane.b32.xlu0 %v2162, 112
    %v2192 = vpop.permute.xlu0 %2191
    %2193 = vrot.lane.b32.xlu0 %v2163, 112
    %v2194 = vpop.permute.xlu0 %2193
    %vm2195 = vcmask 130048
    %v2196 = vsel %vm2195, %v2180, 0
    %v2198 = vsel %vm2195, %v2182, 0
    %v2200 = vsel %vm2195, %v2184, 0
    %v2202 = vsel %vm2195, %v2186, 0
    %v2204 = vsel %vm2195, %v2188, 0
    %v2206 = vsel %vm2195, %v2190, 0
    %v2208 = vsel %vm2195, %v2192, 0
    %v2210 = vsel %vm2195, %v2194, 0
    %2212 = vmatprep.subr.mxu0 0.0
    %2213 = vmatpush1.msra.mxu0 0.0
    %2214 = vmatprep.subr.mxu0 0.0
    %2215 = vmatpush1.msra.mxu0 0.0
    %2216 = vmatprep.subr.mxu0 0.0
    %2217 = vmatpush1.msra.mxu0 0.0
    %2218 = vmatprep.subr.mxu0 0.0
    %2219 = vmatpush1.msra.mxu0 0.0
    %2220 = vmatprep.subr.mxu0 0.0
    %2221 = vmatpush1.msra.mxu0 0.0
    %2222 = vmatprep.subr.mxu0 0.0
    %2223 = vmatpush1.msra.mxu0 0.0
    %2224 = vmatprep.subr.mxu0 0.0
    %2225 = vmatpush1.msra.mxu0 0.0
    %2226 = vmatprep.subr.mxu0 0.0
    %2227 = vmatpush1.msra.mxu0 0.0
    %2228 = vmatprep.subr.mxu0 0.0
    %2229 = vmatpush1.msra.mxu0 0.0
    %2230 = vmatprep.subr.mxu0 0.0
    %2231 = vmatpush1.msra.mxu0 0.0
    %2232 = vmatprep.subr.mxu0 0.0
    %2233 = vmatpush1.msra.mxu0 0.0
    %2234 = vmatprep.subr.mxu0 0.0
    %2235 = vmatpush1.msra.mxu0 0.0
    %2236 = vmatprep.subr.mxu0 0.0
    %2237 = vmatpush1.msra.mxu0 0.0
    %2238 = vmatprep.subr.mxu0 0.0
    %2239 = vmatpush1.msra.mxu0 0.0
    %2240 = vmatprep.subr.mxu0 0.0
    %2241 = vmatpush1.msra.mxu0 %v2165
    %2242 = vmatprep.subr.mxu0 0.0
    %2243 = vmatpush1.msra.mxu0 %v2164
    %2244 = vmatprep.subr.mxu0 0.0
    %2245 = vmatpush2.msra.mxu0 0.0
    %2246 = vmatprep.subr.mxu0 0.0
    %2247 = vmatpush2.msra.mxu0 0.0
    %2248 = vmatprep.subr.mxu0 0.0
    %2249 = vmatpush2.msra.mxu0 0.0
    %2250 = vmatprep.subr.mxu0 0.0
    %2251 = vmatpush2.msra.mxu0 0.0
    %2252 = vmatprep.subr.mxu0 0.0
    %2253 = vmatpush2.msra.mxu0 0.0
    %2254 = vmatprep.subr.mxu0 0.0
    %2255 = vmatpush2.msra.mxu0 0.0
    %2256 = vmatprep.subr.mxu0 0.0
    %2257 = vmatpush2.msra.mxu0 0.0
    %2258 = vmatprep.subr.mxu0 0.0
    %2259 = vmatpush2.msra.mxu0 0.0
    %2260 = vmatprep.subr.mxu0 0.0
    %2261 = vmatpush2.msra.mxu0 0.0
    %2262 = vmatprep.subr.mxu0 0.0
    %2263 = vmatpush2.msra.mxu0 0.0
    %2264 = vmatprep.subr.mxu0 0.0
    %2265 = vmatpush2.msra.mxu0 0.0
    %2266 = vmatprep.subr.mxu0 0.0
    %2267 = vmatpush2.msra.mxu0 0.0
    %2268 = vmatprep.subr.mxu0 0.0
    %2269 = vmatpush2.msra.mxu0 0.0
    %2270 = vmatprep.subr.mxu0 0.0
    %2271 = vmatpush2.msra.mxu0 0.0
    %2272 = vmatprep.subr.mxu0 0.0
    %2273 = vmatpush2.msra.mxu0 0.0
    %2274 = vmatprep.subr.mxu0 0.0
    %2275 = vmatpush2.msra.mxu0 0.0
    %2276 = vmatprep.mubr.f32.mxu0 0.0
    %2277 = vmatmul.mubr.f32.gmra.mxu0 %v2196
    %v2278 = vpop.f32.mrf.mxu0
    %v2279 = vadd.f32 %v2170, %v2278
    %v2280 = vpop.f32.mrf.mxu0
    %2281 = vmatprep.mubr.f32.mxu0 0.0
    %2282 = vmatmul.mubr.f32.gmra.mxu0 %v2198
    %v2283 = vpop.f32.mrf.mxu0
    %v2284 = vadd.f32 %v2170, %v2283
    %v2285 = vpop.f32.mrf.mxu0
    %2286 = vmatprep.mubr.f32.mxu0 0.0
    %2287 = vmatmul.mubr.f32.gmra.mxu0 %v2200
    %v2288 = vpop.f32.mrf.mxu0
    %v2289 = vadd.f32 %v2170, %v2288
    %v2290 = vpop.f32.mrf.mxu0
    %2291 = vmatprep.mubr.f32.mxu0 0.0
    %2292 = vmatmul.mubr.f32.gmra.mxu0 %v2202
    %v2293 = vpop.f32.mrf.mxu0
    %v2294 = vadd.f32 %v2170, %v2293
    %v2295 = vpop.f32.mrf.mxu0
    %2296 = vmatprep.mubr.f32.mxu0 0.0
    %2297 = vmatmul.mubr.f32.gmra.mxu0 %v2204
    %v2298 = vpop.f32.mrf.mxu0
    %v2299 = vadd.f32 %v2170, %v2298
    %v2300 = vpop.f32.mrf.mxu0
    %2301 = vmatprep.mubr.f32.mxu0 0.0
    %2302 = vmatmul.mubr.f32.gmra.mxu0 %v2206
    %v2303 = vpop.f32.mrf.mxu0
    %v2304 = vadd.f32 %v2170, %v2303
    %v2305 = vpop.f32.mrf.mxu0
    %2306 = vmatprep.mubr.f32.mxu0 0.0
    %2307 = vmatmul.mubr.f32.gmra.mxu0 %v2208
    %v2308 = vpop.f32.mrf.mxu0
    %v2309 = vadd.f32 %v2170, %v2308
    %v2310 = vpop.f32.mrf.mxu0
    %2311 = vmatprep.mubr.f32.mxu0 0.0
    %2312 = vmatmul.mubr.f32.gmra.mxu0 %v2210
    %v2313 = vpop.f32.mrf.mxu0
    %v2314 = vadd.f32 %v2170, %v2313
    %v2315 = vpop.f32.mrf.mxu0
    %2316 = vdwg.mxu0
    %v2317 = vmax.f32 %v2279, 0.0
    %v2318 = vmax.f32 %v2284, 0.0
    %v2319 = vmax.f32 %v2289, 0.0
    %v2320 = vmax.f32 %v2294, 0.0
    %v2321 = vmax.f32 %v2299, 0.0
    %v2322 = vmax.f32 %v2304, 0.0
    %v2323 = vmax.f32 %v2309, 0.0
    %v2324 = vmax.f32 %v2314, 0.0
    %v2325 = vld [vmem:[#allocation2 + $0x88] sm:$0xff]
    %v2326 = vld [vmem:[#allocation2 + $0x90] sm:$0xff]
    %v2327 = vld [vmem:[#allocation2 + $0x98] sm:$0xff]
    %v2328 = vld [vmem:[#allocation2 + $0xa0] sm:$0xff]
    %v2329 = vld [vmem:[#allocation2 + $0xa8] sm:$0x1]
    %v2330 = vlaneseq
    %v2331 = vshrl.u32 %v2330, 7
    %v2332 = vsub.s32 0, %v2331
    %v2333 = vrot.slane %v2329, %v2332
    %v2335 = vsel %vm186, %v2317, 0
    %v2338 = vsel %vm186, %v2318, 0
    %v2341 = vsel %vm186, %v2319, 0
    %v2344 = vsel %vm186, %v2320, 0
    %v2347 = vsel %vm186, %v2321, 0
    %v2350 = vsel %vm186, %v2322, 0
    %v2353 = vsel %vm186, %v2323, 0
    %v2356 = vsel %vm186, %v2324, 0
    %2358 = vmatprep.subr.mxu0 0.0
    %2359 = vmatpush1.msra.mxu0 0.0
    %2360 = vmatprep.subr.mxu0 0.0
    %2361 = vmatpush1.msra.mxu0 0.0
    %2362 = vmatprep.subr.mxu0 0.0
    %2363 = vmatpush1.msra.mxu0 0.0
    %2364 = vmatprep.subr.mxu0 0.0
    %2365 = vmatpush1.msra.mxu0 0.0
    %2366 = vmatprep.subr.mxu0 0.0
    %2367 = vmatpush1.msra.mxu0 0.0
    %2368 = vmatprep.subr.mxu0 0.0
    %2369 = vmatpush1.msra.mxu0 0.0
    %2370 = vmatprep.subr.mxu0 0.0
    %2371 = vmatpush1.msra.mxu0 0.0
    %2372 = vmatprep.subr.mxu0 0.0
    %2373 = vmatpush1.msra.mxu0 0.0
    %2374 = vmatprep.subr.mxu0 0.0
    %2375 = vmatpush1.msra.mxu0 0.0
    %2376 = vmatprep.subr.mxu0 0.0
    %2377 = vmatpush1.msra.mxu0 0.0
    %2378 = vmatprep.subr.mxu0 0.0
    %2379 = vmatpush1.msra.mxu0 0.0
    %2380 = vmatprep.subr.mxu0 0.0
    %2381 = vmatpush1.msra.mxu0 0.0
    %2382 = vmatprep.subr.mxu0 0.0
    %2383 = vmatpush1.msra.mxu0 %v2328
    %2384 = vmatprep.subr.mxu0 0.0
    %2385 = vmatpush1.msra.mxu0 %v2327
    %2386 = vmatprep.subr.mxu0 0.0
    %2387 = vmatpush1.msra.mxu0 %v2326
    %2388 = vmatprep.subr.mxu0 0.0
    %2389 = vmatpush1.msra.mxu0 %v2325
    %2390 = vmatprep.subr.mxu0 0.0
    %2391 = vmatpush2.msra.mxu0 0.0
    %2392 = vmatprep.subr.mxu0 0.0
    %2393 = vmatpush2.msra.mxu0 0.0
    %2394 = vmatprep.subr.mxu0 0.0
    %2395 = vmatpush2.msra.mxu0 0.0
    %2396 = vmatprep.subr.mxu0 0.0
    %2397 = vmatpush2.msra.mxu0 0.0
    %2398 = vmatprep.subr.mxu0 0.0
    %2399 = vmatpush2.msra.mxu0 0.0
    %2400 = vmatprep.subr.mxu0 0.0
    %2401 = vmatpush2.msra.mxu0 0.0
    %2402 = vmatprep.subr.mxu0 0.0
    %2403 = vmatpush2.msra.mxu0 0.0
    %2404 = vmatprep.subr.mxu0 0.0
    %2405 = vmatpush2.msra.mxu0 0.0
    %2406 = vmatprep.subr.mxu0 0.0
    %2407 = vmatpush2.msra.mxu0 0.0
    %2408 = vmatprep.subr.mxu0 0.0
    %2409 = vmatpush2.msra.mxu0 0.0
    %2410 = vmatprep.subr.mxu0 0.0
    %2411 = vmatpush2.msra.mxu0 0.0
    %2412 = vmatprep.subr.mxu0 0.0
    %2413 = vmatpush2.msra.mxu0 0.0
    %2414 = vmatprep.subr.mxu0 0.0
    %2415 = vmatpush2.msra.mxu0 0.0
    %2416 = vmatprep.subr.mxu0 0.0
    %2417 = vmatpush2.msra.mxu0 0.0
    %2418 = vmatprep.subr.mxu0 0.0
    %2419 = vmatpush2.msra.mxu0 0.0
    %2420 = vmatprep.subr.mxu0 0.0
    %2421 = vmatpush2.msra.mxu0 0.0
    %2422 = vmatprep.mubr.f32.mxu0 0.0
    %2423 = vmatmul.mubr.f32.gmra.mxu0 %v2335
    %v2424 = vpop.f32.mrf.mxu0
    %v2425 = vadd.f32 %v2333, %v2424
    %v2426 = vpop.f32.mrf.mxu0
    %2427 = vmatprep.mubr.f32.mxu0 0.0
    %2428 = vmatmul.mubr.f32.gmra.mxu0 %v2338
    %v2429 = vpop.f32.mrf.mxu0
    %v2430 = vadd.f32 %v2333, %v2429
    %v2431 = vpop.f32.mrf.mxu0
    %2432 = vmatprep.mubr.f32.mxu0 0.0
    %2433 = vmatmul.mubr.f32.gmra.mxu0 %v2341
    %v2434 = vpop.f32.mrf.mxu0
    %v2435 = vadd.f32 %v2333, %v2434
    %v2436 = vpop.f32.mrf.mxu0
    %2437 = vmatprep.mubr.f32.mxu0 0.0
    %2438 = vmatmul.mubr.f32.gmra.mxu0 %v2344
    %v2439 = vpop.f32.mrf.mxu0
    %v2440 = vadd.f32 %v2333, %v2439
    %v2441 = vpop.f32.mrf.mxu0
    %2442 = vmatprep.mubr.f32.mxu0 0.0
    %2443 = vmatmul.mubr.f32.gmra.mxu0 %v2347
    %v2444 = vpop.f32.mrf.mxu0
    %v2445 = vadd.f32 %v2333, %v2444
    %v2446 = vpop.f32.mrf.mxu0
    %2447 = vmatprep.mubr.f32.mxu0 0.0
    %2448 = vmatmul.mubr.f32.gmra.mxu0 %v2350
    %v2449 = vpop.f32.mrf.mxu0
    %v2450 = vadd.f32 %v2333, %v2449
    %v2451 = vpop.f32.mrf.mxu0
    %2452 = vmatprep.mubr.f32.mxu0 0.0
    %2453 = vmatmul.mubr.f32.gmra.mxu0 %v2353
    %v2454 = vpop.f32.mrf.mxu0
    %v2455 = vadd.f32 %v2333, %v2454
    %v2456 = vpop.f32.mrf.mxu0
    %2457 = vmatprep.mubr.f32.mxu0 0.0
    %2458 = vmatmul.mubr.f32.gmra.mxu0 %v2356
    %v2459 = vpop.f32.mrf.mxu0
    %v2460 = vadd.f32 %v2333, %v2459
    %v2461 = vpop.f32.mrf.mxu0
    %2462 = vdwg.mxu0
    %v2463 = vmax.f32 %v2425, 0.0
    %v2464 = vmax.f32 %v2430, 0.0
    %v2465 = vmax.f32 %v2435, 0.0
    %v2466 = vmax.f32 %v2440, 0.0
    %v2467 = vmax.f32 %v2445, 0.0
    %v2468 = vmax.f32 %v2450, 0.0
    %v2469 = vmax.f32 %v2455, 0.0
    %v2470 = vmax.f32 %v2460, 0.0
    %v2471 = vld [vmem:[#allocation2 + $0xb0] sm:$0xff]
    %v2472 = vld [vmem:[#allocation2 + $0xb8] sm:$0xff]
    %v2473 = vld [vmem:[#allocation2 + $0xc0] sm:$0xff]
    %v2474 = vld [vmem:[#allocation2 + $0xc8] sm:$0xff]
    %v2475 = vld [vmem:[#allocation2 + $0xd0] sm:$0x1]
    %v2476 = vlaneseq
    %v2477 = vshrl.u32 %v2476, 7
    %v2478 = vsub.s32 0, %v2477
    %v2479 = vrot.slane %v2475, %v2478
    %v2481 = vsel %vm186, %v2463, 0
    %v2484 = vsel %vm186, %v2464, 0
    %v2487 = vsel %vm186, %v2465, 0
    %v2490 = vsel %vm186, %v2466, 0
    %v2493 = vsel %vm186, %v2467, 0
    %v2496 = vsel %vm186, %v2468, 0
    %v2499 = vsel %vm186, %v2469, 0
    %v2502 = vsel %vm186, %v2470, 0
    %2504 = vmatprep.subr.mxu0 0.0
    %2505 = vmatpush1.msra.mxu0 0.0
    %2506 = vmatprep.subr.mxu0 0.0
    %2507 = vmatpush1.msra.mxu0 0.0
    %2508 = vmatprep.subr.mxu0 0.0
    %2509 = vmatpush1.msra.mxu0 0.0
    %2510 = vmatprep.subr.mxu0 0.0
    %2511 = vmatpush1.msra.mxu0 0.0
    %2512 = vmatprep.subr.mxu0 0.0
    %2513 = vmatpush1.msra.mxu0 0.0
    %2514 = vmatprep.subr.mxu0 0.0
    %2515 = vmatpush1.msra.mxu0 0.0
    %2516 = vmatprep.subr.mxu0 0.0
    %2517 = vmatpush1.msra.mxu0 0.0
    %2518 = vmatprep.subr.mxu0 0.0
    %2519 = vmatpush1.msra.mxu0 0.0
    %2520 = vmatprep.subr.mxu0 0.0
    %2521 = vmatpush1.msra.mxu0 0.0
    %2522 = vmatprep.subr.mxu0 0.0
    %2523 = vmatpush1.msra.mxu0 0.0
    %2524 = vmatprep.subr.mxu0 0.0
    %2525 = vmatpush1.msra.mxu0 0.0
    %2526 = vmatprep.subr.mxu0 0.0
    %2527 = vmatpush1.msra.mxu0 0.0
    %2528 = vmatprep.subr.mxu0 0.0
    %2529 = vmatpush1.msra.mxu0 %v2474
    %2530 = vmatprep.subr.mxu0 0.0
    %2531 = vmatpush1.msra.mxu0 %v2473
    %2532 = vmatprep.subr.mxu0 0.0
    %2533 = vmatpush1.msra.mxu0 %v2472
    %2534 = vmatprep.subr.mxu0 0.0
    %2535 = vmatpush1.msra.mxu0 %v2471
    %2536 = vmatprep.subr.mxu0 0.0
    %2537 = vmatpush2.msra.mxu0 0.0
    %2538 = vmatprep.subr.mxu0 0.0
    %2539 = vmatpush2.msra.mxu0 0.0
    %2540 = vmatprep.subr.mxu0 0.0
    %2541 = vmatpush2.msra.mxu0 0.0
    %2542 = vmatprep.subr.mxu0 0.0
    %2543 = vmatpush2.msra.mxu0 0.0
    %2544 = vmatprep.subr.mxu0 0.0
    %2545 = vmatpush2.msra.mxu0 0.0
    %2546 = vmatprep.subr.mxu0 0.0
    %2547 = vmatpush2.msra.mxu0 0.0
    %2548 = vmatprep.subr.mxu0 0.0
    %2549 = vmatpush2.msra.mxu0 0.0
    %2550 = vmatprep.subr.mxu0 0.0
    %2551 = vmatpush2.msra.mxu0 0.0
    %2552 = vmatprep.subr.mxu0 0.0
    %2553 = vmatpush2.msra.mxu0 0.0
    %2554 = vmatprep.subr.mxu0 0.0
    %2555 = vmatpush2.msra.mxu0 0.0
    %2556 = vmatprep.subr.mxu0 0.0
    %2557 = vmatpush2.msra.mxu0 0.0
    %2558 = vmatprep.subr.mxu0 0.0
    %2559 = vmatpush2.msra.mxu0 0.0
    %2560 = vmatprep.subr.mxu0 0.0
    %2561 = vmatpush2.msra.mxu0 0.0
    %2562 = vmatprep.subr.mxu0 0.0
    %2563 = vmatpush2.msra.mxu0 0.0
    %2564 = vmatprep.subr.mxu0 0.0
    %2565 = vmatpush2.msra.mxu0 0.0
    %2566 = vmatprep.subr.mxu0 0.0
    %2567 = vmatpush2.msra.mxu0 0.0
    %2568 = vmatprep.mubr.f32.mxu0 0.0
    %2569 = vmatmul.mubr.f32.gmra.mxu0 %v2481
    %v2570 = vpop.f32.mrf.mxu0
    %v2571 = vadd.f32 %v2479, %v2570
    %v2572 = vpop.f32.mrf.mxu0
    %2573 = vmatprep.mubr.f32.mxu0 0.0
    %2574 = vmatmul.mubr.f32.gmra.mxu0 %v2484
    %v2575 = vpop.f32.mrf.mxu0
    %v2576 = vadd.f32 %v2479, %v2575
    %v2577 = vpop.f32.mrf.mxu0
    %2578 = vmatprep.mubr.f32.mxu0 0.0
    %2579 = vmatmul.mubr.f32.gmra.mxu0 %v2487
    %v2580 = vpop.f32.mrf.mxu0
    %v2581 = vadd.f32 %v2479, %v2580
    %v2582 = vpop.f32.mrf.mxu0
    %2583 = vmatprep.mubr.f32.mxu0 0.0
    %2584 = vmatmul.mubr.f32.gmra.mxu0 %v2490
    %v2585 = vpop.f32.mrf.mxu0
    %v2586 = vadd.f32 %v2479, %v2585
    %v2587 = vpop.f32.mrf.mxu0
    %2588 = vmatprep.mubr.f32.mxu0 0.0
    %2589 = vmatmul.mubr.f32.gmra.mxu0 %v2493
    %v2590 = vpop.f32.mrf.mxu0
    %v2591 = vadd.f32 %v2479, %v2590
    %v2592 = vpop.f32.mrf.mxu0
    %2593 = vmatprep.mubr.f32.mxu0 0.0
    %2594 = vmatmul.mubr.f32.gmra.mxu0 %v2496
    %v2595 = vpop.f32.mrf.mxu0
    %v2596 = vadd.f32 %v2479, %v2595
    %v2597 = vpop.f32.mrf.mxu0
    %2598 = vmatprep.mubr.f32.mxu0 0.0
    %2599 = vmatmul.mubr.f32.gmra.mxu0 %v2499
    %v2600 = vpop.f32.mrf.mxu0
    %v2601 = vadd.f32 %v2479, %v2600
    %v2602 = vpop.f32.mrf.mxu0
    %2603 = vmatprep.mubr.f32.mxu0 0.0
    %2604 = vmatmul.mubr.f32.gmra.mxu0 %v2502
    %v2605 = vpop.f32.mrf.mxu0
    %v2606 = vadd.f32 %v2479, %v2605
    %v2607 = vpop.f32.mrf.mxu0
    %2608 = vdwg.mxu0
    %v2609 = vmax.f32 %v2571, 0.0
    %v2610 = vmax.f32 %v2576, 0.0
    %v2611 = vmax.f32 %v2581, 0.0
    %v2612 = vmax.f32 %v2586, 0.0
    %v2613 = vmax.f32 %v2591, 0.0
    %v2614 = vmax.f32 %v2596, 0.0
    %v2615 = vmax.f32 %v2601, 0.0
    %v2616 = vmax.f32 %v2606, 0.0
    %v2617 = vld [vmem:[#allocation2 + $0xd8] sm:$0xff]
    %v2618 = vld [vmem:[#allocation2 + $0xe0] sm:$0xff]
    %v2619 = vld [vmem:[#allocation2 + $0xe8] sm:$0x1]
    %v2620 = vld [vmem:[#allocation2 + $0xf0] sm:$0xff]
    %v2621 = vld [vmem:[#allocation2 + $0xf8] sm:$0xff]
    %v2622 = vlaneseq
    %v2623 = vshrl.u32 %v2622, 7
    %v2624 = vsub.s32 0, %v2623
    %v2625 = vrot.slane %v2619, %v2624
    %v2627 = vsel %vm2195, %v2609, 0
    %v2630 = vsel %vm2195, %v2610, 0
    %v2633 = vsel %vm2195, %v2611, 0
    %v2636 = vsel %vm2195, %v2612, 0
    %v2639 = vsel %vm2195, %v2613, 0
    %v2642 = vsel %vm2195, %v2614, 0
    %v2645 = vsel %vm2195, %v2615, 0
    %v2648 = vsel %vm2195, %v2616, 0
    %2650 = vmatprep.subr.mxu0 0.0
    %2651 = vmatpush1.msra.mxu0 0.0
    %2652 = vmatprep.subr.mxu0 0.0
    %2653 = vmatpush1.msra.mxu0 0.0
    %2654 = vmatprep.subr.mxu0 0.0
    %2655 = vmatpush1.msra.mxu0 0.0
    %2656 = vmatprep.subr.mxu0 0.0
    %2657 = vmatpush1.msra.mxu0 0.0
    %2658 = vmatprep.subr.mxu0 0.0
    %2659 = vmatpush1.msra.mxu0 0.0
    %2660 = vmatprep.subr.mxu0 0.0
    %2661 = vmatpush1.msra.mxu0 0.0
    %2662 = vmatprep.subr.mxu0 0.0
    %2663 = vmatpush1.msra.mxu0 0.0
    %2664 = vmatprep.subr.mxu0 0.0
    %2665 = vmatpush1.msra.mxu0 0.0
    %2666 = vmatprep.subr.mxu0 0.0
    %2667 = vmatpush1.msra.mxu0 0.0
    %2668 = vmatprep.subr.mxu0 0.0
    %2669 = vmatpush1.msra.mxu0 0.0
    %2670 = vmatprep.subr.mxu0 0.0
    %2671 = vmatpush1.msra.mxu0 0.0
    %2672 = vmatprep.subr.mxu0 0.0
    %2673 = vmatpush1.msra.mxu0 0.0
    %2674 = vmatprep.subr.mxu0 0.0
    %2675 = vmatpush1.msra.mxu0 0.0
    %2676 = vmatprep.subr.mxu0 0.0
    %2677 = vmatpush1.msra.mxu0 0.0
    %2678 = vmatprep.subr.mxu0 0.0
    %2679 = vmatpush1.msra.mxu0 %v2618
    %2680 = vmatprep.subr.mxu0 0.0
    %2681 = vmatpush1.msra.mxu0 %v2617
    %2682 = vmatprep.subr.mxu0 0.0
    %2683 = vmatpush2.msra.mxu0 0.0
    %2684 = vmatprep.subr.mxu0 0.0
    %2685 = vmatpush2.msra.mxu0 0.0
    %2686 = vmatprep.subr.mxu0 0.0
    %2687 = vmatpush2.msra.mxu0 0.0
    %2688 = vmatprep.subr.mxu0 0.0
    %2689 = vmatpush2.msra.mxu0 0.0
    %2690 = vmatprep.subr.mxu0 0.0
    %2691 = vmatpush2.msra.mxu0 0.0
    %2692 = vmatprep.subr.mxu0 0.0
    %2693 = vmatpush2.msra.mxu0 0.0
    %2694 = vmatprep.subr.mxu0 0.0
    %2695 = vmatpush2.msra.mxu0 0.0
    %2696 = vmatprep.subr.mxu0 0.0
    %2697 = vmatpush2.msra.mxu0 0.0
    %2698 = vmatprep.subr.mxu0 0.0
    %2699 = vmatpush2.msra.mxu0 0.0
    %2700 = vmatprep.subr.mxu0 0.0
    %2701 = vmatpush2.msra.mxu0 0.0
    %2702 = vmatprep.subr.mxu0 0.0
    %2703 = vmatpush2.msra.mxu0 0.0
    %2704 = vmatprep.subr.mxu0 0.0
    %2705 = vmatpush2.msra.mxu0 0.0
    %2706 = vmatprep.subr.mxu0 0.0
    %2707 = vmatpush2.msra.mxu0 0.0
    %2708 = vmatprep.subr.mxu0 0.0
    %2709 = vmatpush2.msra.mxu0 0.0
    %2710 = vmatprep.subr.mxu0 0.0
    %2711 = vmatpush2.msra.mxu0 0.0
    %2712 = vmatprep.subr.mxu0 0.0
    %2713 = vmatpush2.msra.mxu0 0.0
    %2714 = vmatprep.mubr.f32.mxu0 0.0
    %2715 = vmatmul.mubr.f32.gmra.mxu0 %v2627
    %v2716 = vpop.f32.mrf.mxu0
    %v2717 = vadd.f32 %v2625, %v2716
    %v2718 = vpop.f32.mrf.mxu0
    %2719 = vmatprep.mubr.f32.mxu0 0.0
    %2720 = vmatmul.mubr.f32.gmra.mxu0 %v2630
    %v2721 = vpop.f32.mrf.mxu0
    %v2722 = vadd.f32 %v2625, %v2721
    %v2723 = vpop.f32.mrf.mxu0
    %2724 = vmatprep.mubr.f32.mxu0 0.0
    %2725 = vmatmul.mubr.f32.gmra.mxu0 %v2633
    %v2726 = vpop.f32.mrf.mxu0
    %v2727 = vadd.f32 %v2625, %v2726
    %v2728 = vpop.f32.mrf.mxu0
    %2729 = vmatprep.mubr.f32.mxu0 0.0
    %2730 = vmatmul.mubr.f32.gmra.mxu0 %v2636
    %v2731 = vpop.f32.mrf.mxu0
    %v2732 = vadd.f32 %v2625, %v2731
    %v2733 = vpop.f32.mrf.mxu0
    %2734 = vmatprep.mubr.f32.mxu0 0.0
    %2735 = vmatmul.mubr.f32.gmra.mxu0 %v2639
    %v2736 = vpop.f32.mrf.mxu0
    %v2737 = vadd.f32 %v2625, %v2736
    %v2738 = vpop.f32.mrf.mxu0
    %2739 = vmatprep.mubr.f32.mxu0 0.0
    %2740 = vmatmul.mubr.f32.gmra.mxu0 %v2642
    %v2741 = vpop.f32.mrf.mxu0
    %v2742 = vadd.f32 %v2625, %v2741
    %v2743 = vpop.f32.mrf.mxu0
    %2744 = vmatprep.mubr.f32.mxu0 0.0
    %2745 = vmatmul.mubr.f32.gmra.mxu0 %v2645
    %v2746 = vpop.f32.mrf.mxu0
    %v2747 = vadd.f32 %v2625, %v2746
    %v2748 = vpop.f32.mrf.mxu0
    %2749 = vmatprep.mubr.f32.mxu0 0.0
    %2750 = vmatmul.mubr.f32.gmra.mxu0 %v2648
    %v2751 = vpop.f32.mrf.mxu0
    %v2752 = vadd.f32 %v2625, %v2751
    %v2753 = vpop.f32.mrf.mxu0
    %2754 = vdwg.mxu0
    %v2755 = vmul.f32 %v2717, %v2717
    %v2756 = vmul.f32 %v2722, %v2722
    %v2757 = vmul.f32 %v2727, %v2727
    %v2758 = vmul.f32 %v2732, %v2732
    %v2759 = vmul.f32 %v2737, %v2737
    %v2760 = vmul.f32 %v2742, %v2742
    %v2761 = vmul.f32 %v2747, %v2747
    %v2762 = vmul.f32 %v2752, %v2752
    %v2763 = vsel %vm39, %v2755, 0.0
    %2764 = vadd.xlane.f32.xlu0 %v2763
    %v2765 = vpop.xlane.xlu0 %2764
    %v2766 = vsel %vm39, %v2756, 0.0
    %2767 = vadd.xlane.f32.xlu0 %v2766
    %v2768 = vpop.xlane.xlu0 %2767
    %v2769 = vsel %vm39, %v2757, 0.0
    %2770 = vadd.xlane.f32.xlu0 %v2769
    %v2771 = vpop.xlane.xlu0 %2770
    %v2772 = vsel %vm39, %v2758, 0.0
    %2773 = vadd.xlane.f32.xlu0 %v2772
    %v2774 = vpop.xlane.xlu0 %2773
    %v2775 = vsel %vm39, %v2759, 0.0
    %2776 = vadd.xlane.f32.xlu0 %v2775
    %v2777 = vpop.xlane.xlu0 %2776
    %v2778 = vsel %vm39, %v2760, 0.0
    %2779 = vadd.xlane.f32.xlu0 %v2778
    %v2780 = vpop.xlane.xlu0 %2779
    %v2781 = vsel %vm39, %v2761, 0.0
    %2782 = vadd.xlane.f32.xlu0 %v2781
    %v2783 = vpop.xlane.xlu0 %2782
    %v2784 = vsel %vm39, %v2762, 0.0
    %2785 = vadd.xlane.f32.xlu0 %v2784
    %v2786 = vpop.xlane.xlu0 %2785
    %v2787 = vmul.f32 %v2717, -2.0
    %v2788 = vmul.f32 %v2722, -2.0
    %v2789 = vmul.f32 %v2727, -2.0
    %v2790 = vmul.f32 %v2732, -2.0
    %v2791 = vmul.f32 %v2737, -2.0
    %v2792 = vmul.f32 %v2742, -2.0
    %v2793 = vmul.f32 %v2747, -2.0
    %v2794 = vmul.f32 %v2752, -2.0
    %v2795 = vsel %vm39, %v2787, 1.0
    %v2796 = vsel %vm39, %v2788, 1.0
    %v2797 = vsel %vm39, %v2789, 1.0
    %v2798 = vsel %vm39, %v2790, 1.0
    %v2799 = vsel %vm39, %v2791, 1.0
    %v2800 = vsel %vm39, %v2792, 1.0
    %v2801 = vsel %vm39, %v2793, 1.0
    %v2802 = vsel %vm39, %v2794, 1.0
    %v2803 = vsel %vm512, %v2795, %v2765
    %v2804 = vsel %vm512, %v2796, %v2768
    %v2805 = vsel %vm512, %v2797, %v2771
    %v2806 = vsel %vm512, %v2798, %v2774
    %v2807 = vsel %vm512, %v2799, %v2777
    %v2808 = vsel %vm512, %v2800, %v2780
    %v2809 = vsel %vm512, %v2801, %v2783
    %v2810 = vsel %vm512, %v2802, %v2786
    %v2811 = vsel %vm39, %v2717, %v2765
    %v2812 = vsel %vm39, %v2722, %v2768
    %v2813 = vsel %vm39, %v2727, %v2771
    %v2814 = vsel %vm39, %v2732, %v2774
    %v2815 = vsel %vm39, %v2737, %v2777
    %v2816 = vsel %vm39, %v2742, %v2780
    %v2817 = vsel %vm39, %v2747, %v2783
    %v2818 = vsel %vm39, %v2752, %v2786
    %v2819 = vsel %vm512, %v2811, 1.0
    %v2820 = vsel %vm512, %v2812, 1.0
    %v2821 = vsel %vm512, %v2813, 1.0
    %v2822 = vsel %vm512, %v2814, 1.0
    %v2823 = vsel %vm512, %v2815, 1.0
    %v2824 = vsel %vm512, %v2816, 1.0
    %v2825 = vsel %vm512, %v2817, 1.0
    %v2826 = vsel %vm512, %v2818, 1.0
    %v2828 = vsel %vm537, %v2803, 0
    %v2831 = vsel %vm537, %v2804, 0
    %v2834 = vsel %vm537, %v2805, 0
    %v2837 = vsel %vm537, %v2806, 0
    %v2840 = vsel %vm537, %v2807, 0
    %v2843 = vsel %vm537, %v2808, 0
    %v2846 = vsel %vm537, %v2809, 0
    %v2849 = vsel %vm537, %v2810, 0
    %v2852 = vsel %vm537, %v2819, 0
    %v2855 = vsel %vm537, %v2820, 0
    %v2858 = vsel %vm537, %v2821, 0
    %v2861 = vsel %vm537, %v2822, 0
    %v2864 = vsel %vm537, %v2823, 0
    %v2867 = vsel %vm537, %v2824, 0
    %v2870 = vsel %vm537, %v2825, 0
    %v2873 = vsel %vm537, %v2826, 0
    %2875 = vmatprep.subr.mxu0 0.0
    %2876 = vmatpush1.xpose.msra.mxu0 0.0
    %2877 = vmatprep.subr.mxu0 0.0
    %2878 = vmatpush1.xpose.msra.mxu0 0.0
    %2879 = vmatprep.subr.mxu0 0.0
    %2880 = vmatpush1.xpose.msra.mxu0 0.0
    %2881 = vmatprep.subr.mxu0 0.0
    %2882 = vmatpush1.xpose.msra.mxu0 0.0
    %2883 = vmatprep.subr.mxu0 0.0
    %2884 = vmatpush1.xpose.msra.mxu0 0.0
    %2885 = vmatprep.subr.mxu0 0.0
    %2886 = vmatpush1.xpose.msra.mxu0 0.0
    %2887 = vmatprep.subr.mxu0 0.0
    %2888 = vmatpush1.xpose.msra.mxu0 0.0
    %2889 = vmatprep.subr.mxu0 0.0
    %2890 = vmatpush1.xpose.msra.mxu0 0.0
    %2891 = vmatprep.subr.mxu0 0.0
    %2892 = vmatpush1.xpose.msra.mxu0 %v2873
    %2893 = vmatprep.subr.mxu0 0.0
    %2894 = vmatpush1.xpose.msra.mxu0 %v2870
    %2895 = vmatprep.subr.mxu0 0.0
    %2896 = vmatpush1.xpose.msra.mxu0 %v2867
    %2897 = vmatprep.subr.mxu0 0.0
    %2898 = vmatpush1.xpose.msra.mxu0 %v2864
    %2899 = vmatprep.subr.mxu0 0.0
    %2900 = vmatpush1.xpose.msra.mxu0 %v2861
    %2901 = vmatprep.subr.mxu0 0.0
    %2902 = vmatpush1.xpose.msra.mxu0 %v2858
    %2903 = vmatprep.subr.mxu0 0.0
    %2904 = vmatpush1.xpose.msra.mxu0 %v2855
    %2905 = vmatprep.subr.mxu0 0.0
    %2906 = vmatpush1.xpose.msra.mxu0 %v2852
    %2907 = vmatprep.subr.mxu0 0.0
    %2908 = vmatpush2.xpose.msra.mxu0 0.0
    %2909 = vmatprep.subr.mxu0 0.0
    %2910 = vmatpush2.xpose.msra.mxu0 0.0
    %2911 = vmatprep.subr.mxu0 0.0
    %2912 = vmatpush2.xpose.msra.mxu0 0.0
    %2913 = vmatprep.subr.mxu0 0.0
    %2914 = vmatpush2.xpose.msra.mxu0 0.0
    %2915 = vmatprep.subr.mxu0 0.0
    %2916 = vmatpush2.xpose.msra.mxu0 0.0
    %2917 = vmatprep.subr.mxu0 0.0
    %2918 = vmatpush2.xpose.msra.mxu0 0.0
    %2919 = vmatprep.subr.mxu0 0.0
    %2920 = vmatpush2.xpose.msra.mxu0 0.0
    %2921 = vmatprep.subr.mxu0 0.0
    %2922 = vmatpush2.xpose.msra.mxu0 0.0
    %2923 = vmatprep.subr.mxu0 0.0
    %2924 = vmatpush2.xpose.msra.mxu0 0.0
    %2925 = vmatprep.subr.mxu0 0.0
    %2926 = vmatpush2.xpose.msra.mxu0 0.0
    %2927 = vmatprep.subr.mxu0 0.0
    %2928 = vmatpush2.xpose.msra.mxu0 0.0
    %2929 = vmatprep.subr.mxu0 0.0
    %2930 = vmatpush2.xpose.msra.mxu0 0.0
    %2931 = vmatprep.subr.mxu0 0.0
    %2932 = vmatpush2.xpose.msra.mxu0 0.0
    %2933 = vmatprep.subr.mxu0 0.0
    %2934 = vmatpush2.xpose.msra.mxu0 0.0
    %2935 = vmatprep.subr.mxu0 0.0
    %2936 = vmatpush2.xpose.msra.mxu0 0.0
    %2937 = vmatprep.subr.mxu0 0.0
    %2938 = vmatpush2.xpose.msra.mxu0 0.0
    %2939 = vmatprep.mubr.f32.mxu0 0.0
    %2940 = vmatmul.mubr.f32.gmra.mxu0 %v2828
    %v2941 = vpop.f32.mrf.mxu0
    %v2942 = vadd.f32 0.0, %v2941
    %v2943 = vpop.f32.mrf.mxu0
    %2944 = vmatprep.mubr.f32.mxu0 0.0
    %2945 = vmatmul.mubr.f32.gmra.mxu0 %v2831
    %v2946 = vpop.f32.mrf.mxu0
    %v2947 = vadd.f32 0.0, %v2946
    %v2948 = vpop.f32.mrf.mxu0
    %2949 = vmatprep.mubr.f32.mxu0 0.0
    %2950 = vmatmul.mubr.f32.gmra.mxu0 %v2834
    %v2951 = vpop.f32.mrf.mxu0
    %v2952 = vadd.f32 0.0, %v2951
    %v2953 = vpop.f32.mrf.mxu0
    %2954 = vmatprep.mubr.f32.mxu0 0.0
    %2955 = vmatmul.mubr.f32.gmra.mxu0 %v2837
    %v2956 = vpop.f32.mrf.mxu0
    %v2957 = vadd.f32 0.0, %v2956
    %v2958 = vpop.f32.mrf.mxu0
    %2959 = vmatprep.mubr.f32.mxu0 0.0
    %2960 = vmatmul.mubr.f32.gmra.mxu0 %v2840
    %v2961 = vpop.f32.mrf.mxu0
    %v2962 = vadd.f32 0.0, %v2961
    %v2963 = vpop.f32.mrf.mxu0
    %2964 = vmatprep.mubr.f32.mxu0 0.0
    %2965 = vmatmul.mubr.f32.gmra.mxu0 %v2843
    %v2966 = vpop.f32.mrf.mxu0
    %v2967 = vadd.f32 0.0, %v2966
    %v2968 = vpop.f32.mrf.mxu0
    %2969 = vmatprep.mubr.f32.mxu0 0.0
    %2970 = vmatmul.mubr.f32.gmra.mxu0 %v2846
    %v2971 = vpop.f32.mrf.mxu0
    %v2972 = vadd.f32 0.0, %v2971
    %v2973 = vpop.f32.mrf.mxu0
    %2974 = vmatprep.mubr.f32.mxu0 0.0
    %2975 = vmatmul.mubr.f32.gmra.mxu0 %v2849
    %v2976 = vpop.f32.mrf.mxu0
    %v2977 = vadd.f32 0.0, %v2976
    %v2978 = vpop.f32.mrf.mxu0
    %2979 = vdwg.mxu0
    %v2980 = vmax.f32 %v2942, 0.0
    %v2981 = vmax.f32 %v2947, 0.0
    %v2982 = vmax.f32 %v2952, 0.0
    %v2983 = vmax.f32 %v2957, 0.0
    %v2984 = vmax.f32 %v2962, 0.0
    %v2985 = vmax.f32 %v2967, 0.0
    %v2986 = vmax.f32 %v2972, 0.0
    %v2987 = vmax.f32 %v2977, 0.0
    %v2996 = vand.u32 %v2980, 4294967232
    %v2997 = vand.u32 %v2981, 4294967232
    %v2998 = vand.u32 %v2982, 4294967232
    %v2999 = vand.u32 %v2983, 4294967232
    %v3000 = vand.u32 %v2984, 4294967232
    %v3001 = vand.u32 %v2985, 4294967232
    %v3002 = vand.u32 %v2986, 4294967232
    %v3003 = vand.u32 %v2987, 4294967232
    %v3004 = vor.u32 %v2996, %v700
    %v3005 = vor.u32 %v2997, %v700
    %v3006 = vor.u32 %v2998, %v700
    %v3007 = vor.u32 %v2999, %v700
    %v3008 = vor.u32 %v3000, %v700
    %v3009 = vor.u32 %v3001, %v700
    %v3010 = vor.u32 %v3002, %v700
    %v3011 = vor.u32 %v3003, %v700
    %v3020 = vsel %vm733, %v3004, inf
    %3021 = vmin.xlane.f32.xlu0 %v3020
    %v3022 = vpop.xlane.xlu0 %3021
    %v3023 = vsel %vm733, %v3005, inf
    %3024 = vmin.xlane.f32.xlu0 %v3023
    %v3025 = vpop.xlane.xlu0 %3024
    %v3026 = vsel %vm733, %v3006, inf
    %3027 = vmin.xlane.f32.xlu0 %v3026
    %v3028 = vpop.xlane.xlu0 %3027
    %v3029 = vsel %vm733, %v3007, inf
    %3030 = vmin.xlane.f32.xlu0 %v3029
    %v3031 = vpop.xlane.xlu0 %3030
    %v3032 = vsel %vm733, %v3008, inf
    %3033 = vmin.xlane.f32.xlu0 %v3032
    %v3034 = vpop.xlane.xlu0 %3033
    %v3035 = vsel %vm733, %v3009, inf
    %3036 = vmin.xlane.f32.xlu0 %v3035
    %v3037 = vpop.xlane.xlu0 %3036
    %v3038 = vsel %vm733, %v3010, inf
    %3039 = vmin.xlane.f32.xlu0 %v3038
    %v3040 = vpop.xlane.xlu0 %3039
    %v3041 = vsel %vm733, %v3011, inf
    %3042 = vmin.xlane.f32.xlu0 %v3041
    %v3043 = vpop.xlane.xlu0 %3042
    %v3052 = vand.u32 %v3022, 63
    %v3053 = vand.u32 %v3025, 63
    %v3054 = vand.u32 %v3028, 63
    %v3055 = vand.u32 %v3031, 63
    %v3056 = vand.u32 %v3034, 63
    %v3057 = vand.u32 %v3037, 63
    %v3058 = vand.u32 %v3040, 63
    %v3059 = vand.u32 %v3043, 63
    %v3060 = vand.u32 %v3022, 4294967232
    %v3061 = vand.u32 %v3025, 4294967232
    %v3062 = vand.u32 %v3028, 4294967232
    %v3063 = vand.u32 %v3031, 4294967232
    %v3064 = vand.u32 %v3034, 4294967232
    %v3065 = vand.u32 %v3037, 4294967232
    %v3066 = vand.u32 %v3040, 4294967232
    %v3067 = vand.u32 %v3043, 4294967232
    %vm3076 = vcmp.eq.s32.totalorder %v700, %v3052
    %vm3077 = vcmp.eq.s32.totalorder %v700, %v3053
    %vm3078 = vcmp.eq.s32.totalorder %v700, %v3054
    %vm3079 = vcmp.eq.s32.totalorder %v700, %v3055
    %vm3080 = vcmp.eq.s32.totalorder %v700, %v3056
    %vm3081 = vcmp.eq.s32.totalorder %v700, %v3057
    %vm3082 = vcmp.eq.s32.totalorder %v700, %v3058
    %vm3083 = vcmp.eq.s32.totalorder %v700, %v3059
    %v3084 = vmul.f32 %v3060, -10.0
    %v3085 = vmul.f32 %v3061, -10.0
    %v3086 = vmul.f32 %v3062, -10.0
    %v3087 = vmul.f32 %v3063, -10.0
    %v3088 = vmul.f32 %v3064, -10.0
    %v3089 = vmul.f32 %v3065, -10.0
    %v3090 = vmul.f32 %v3066, -10.0
    %v3091 = vmul.f32 %v3067, -10.0
    %v3092 = vmul.f32 %v3084, 1.442695
    %v3093 = vpow.pop %v3092
    %v3094 = vmul.f32 %v3085, 1.442695
    %v3095 = vpow.pop %v3094
    %v3096 = vmul.f32 %v3086, 1.442695
    %v3097 = vpow.pop %v3096
    %v3098 = vmul.f32 %v3087, 1.442695
    %v3099 = vpow.pop %v3098
    %v3100 = vmul.f32 %v3088, 1.442695
    %v3101 = vpow.pop %v3100
    %v3102 = vmul.f32 %v3089, 1.442695
    %v3103 = vpow.pop %v3102
    %v3104 = vmul.f32 %v3090, 1.442695
    %v3105 = vpow.pop %v3104
    %v3106 = vmul.f32 %v3091, 1.442695
    %v3107 = vpow.pop %v3106
    %v3108 = vsel %vm3076, 1, 0
    %v3109 = vsel %vm3077, 1, 0
    %v3110 = vsel %vm3078, 1, 0
    %v3111 = vsel %vm3079, 1, 0
    %v3112 = vsel %vm3080, 1, 0
    %v3113 = vsel %vm3081, 1, 0
    %v3114 = vsel %vm3082, 1, 0
    %v3115 = vsel %vm3083, 1, 0
    %v3116 = vcvt.s32.f32 %v3108
    %v3117 = vcvt.s32.f32 %v3109
    %v3118 = vcvt.s32.f32 %v3110
    %v3119 = vcvt.s32.f32 %v3111
    %v3120 = vcvt.s32.f32 %v3112
    %v3121 = vcvt.s32.f32 %v3113
    %v3122 = vcvt.s32.f32 %v3114
    %v3123 = vcvt.s32.f32 %v3115
    %3132 = vrot.lane.b32.xlu0 %v2717, 120
    %v3133 = vpop.permute.xlu0 %3132
    %3134 = vrot.lane.b32.xlu0 %v2722, 120
    %v3135 = vpop.permute.xlu0 %3134
    %3136 = vrot.lane.b32.xlu0 %v2727, 120
    %v3137 = vpop.permute.xlu0 %3136
    %3138 = vrot.lane.b32.xlu0 %v2732, 120
    %v3139 = vpop.permute.xlu0 %3138
    %3140 = vrot.lane.b32.xlu0 %v2737, 120
    %v3141 = vpop.permute.xlu0 %3140
    %3142 = vrot.lane.b32.xlu0 %v2742, 120
    %v3143 = vpop.permute.xlu0 %3142
    %3144 = vrot.lane.b32.xlu0 %v2747, 120
    %v3145 = vpop.permute.xlu0 %3144
    %3146 = vrot.lane.b32.xlu0 %v2752, 120
    %v3147 = vpop.permute.xlu0 %3146
    %v3157 = vsel %vm733, %v3116, 0
    %v3160 = vsel %vm733, %v3117, 0
    %v3163 = vsel %vm733, %v3118, 0
    %v3166 = vsel %vm733, %v3119, 0
    %v3169 = vsel %vm733, %v3120, 0
    %v3172 = vsel %vm733, %v3121, 0
    %v3175 = vsel %vm733, %v3122, 0
    %v3178 = vsel %vm733, %v3123, 0
    %3180 = vmatprep.subr.mxu0 0.0
    %3181 = vmatpush1.msra.mxu0 0.0
    %3182 = vmatprep.subr.mxu0 0.0
    %3183 = vmatpush1.msra.mxu0 0.0
    %3184 = vmatprep.subr.mxu0 0.0
    %3185 = vmatpush1.msra.mxu0 0.0
    %3186 = vmatprep.subr.mxu0 0.0
    %3187 = vmatpush1.msra.mxu0 0.0
    %3188 = vmatprep.subr.mxu0 0.0
    %3189 = vmatpush1.msra.mxu0 0.0
    %3190 = vmatprep.subr.mxu0 0.0
    %3191 = vmatpush1.msra.mxu0 0.0
    %3192 = vmatprep.subr.mxu0 0.0
    %3193 = vmatpush1.msra.mxu0 0.0
    %3194 = vmatprep.subr.mxu0 0.0
    %3195 = vmatpush1.msra.mxu0 0.0
    %3196 = vmatprep.subr.mxu0 0.0
    %3197 = vmatpush1.msra.mxu0 %v3147
    %3198 = vmatprep.subr.mxu0 0.0
    %3199 = vmatpush1.msra.mxu0 %v3145
    %3200 = vmatprep.subr.mxu0 0.0
    %3201 = vmatpush1.msra.mxu0 %v3143
    %3202 = vmatprep.subr.mxu0 0.0
    %3203 = vmatpush1.msra.mxu0 %v3141
    %3204 = vmatprep.subr.mxu0 0.0
    %3205 = vmatpush1.msra.mxu0 %v3139
    %3206 = vmatprep.subr.mxu0 0.0
    %3207 = vmatpush1.msra.mxu0 %v3137
    %3208 = vmatprep.subr.mxu0 0.0
    %3209 = vmatpush1.msra.mxu0 %v3135
    %3210 = vmatprep.subr.mxu0 0.0
    %3211 = vmatpush1.msra.mxu0 %v3133
    %3212 = vmatprep.subr.mxu0 0.0
    %3213 = vmatpush2.msra.mxu0 0.0
    %3214 = vmatprep.subr.mxu0 0.0
    %3215 = vmatpush2.msra.mxu0 0.0
    %3216 = vmatprep.subr.mxu0 0.0
    %3217 = vmatpush2.msra.mxu0 0.0
    %3218 = vmatprep.subr.mxu0 0.0
    %3219 = vmatpush2.msra.mxu0 0.0
    %3220 = vmatprep.subr.mxu0 0.0
    %3221 = vmatpush2.msra.mxu0 0.0
    %3222 = vmatprep.subr.mxu0 0.0
    %3223 = vmatpush2.msra.mxu0 0.0
    %3224 = vmatprep.subr.mxu0 0.0
    %3225 = vmatpush2.msra.mxu0 0.0
    %3226 = vmatprep.subr.mxu0 0.0
    %3227 = vmatpush2.msra.mxu0 0.0
    %3228 = vmatprep.subr.mxu0 0.0
    %3229 = vmatpush2.msra.mxu0 0.0
    %3230 = vmatprep.subr.mxu0 0.0
    %3231 = vmatpush2.msra.mxu0 0.0
    %3232 = vmatprep.subr.mxu0 0.0
    %3233 = vmatpush2.msra.mxu0 0.0
    %3234 = vmatprep.subr.mxu0 0.0
    %3235 = vmatpush2.msra.mxu0 0.0
    %3236 = vmatprep.subr.mxu0 0.0
    %3237 = vmatpush2.msra.mxu0 0.0
    %3238 = vmatprep.subr.mxu0 0.0
    %3239 = vmatpush2.msra.mxu0 0.0
    %3240 = vmatprep.subr.mxu0 0.0
    %3241 = vmatpush2.msra.mxu0 0.0
    %3242 = vmatprep.subr.mxu0 0.0
    %3243 = vmatpush2.msra.mxu0 0.0
    %3244 = vmatprep.mubr.f32.mxu0 0.0
    %3245 = vmatmul.mubr.f32.gmra.mxu0 %v3157
    %v3246 = vpop.f32.mrf.mxu0
    %v3247 = vadd.f32 0.0, %v3246
    %v3248 = vpop.f32.mrf.mxu0
    %3249 = vmatprep.mubr.f32.mxu0 0.0
    %3250 = vmatmul.mubr.f32.gmra.mxu0 %v3160
    %v3251 = vpop.f32.mrf.mxu0
    %v3252 = vadd.f32 0.0, %v3251
    %v3253 = vpop.f32.mrf.mxu0
    %3254 = vmatprep.mubr.f32.mxu0 0.0
    %3255 = vmatmul.mubr.f32.gmra.mxu0 %v3163
    %v3256 = vpop.f32.mrf.mxu0
    %v3257 = vadd.f32 0.0, %v3256
    %v3258 = vpop.f32.mrf.mxu0
    %3259 = vmatprep.mubr.f32.mxu0 0.0
    %3260 = vmatmul.mubr.f32.gmra.mxu0 %v3166
    %v3261 = vpop.f32.mrf.mxu0
    %v3262 = vadd.f32 0.0, %v3261
    %v3263 = vpop.f32.mrf.mxu0
    %3264 = vmatprep.mubr.f32.mxu0 0.0
    %3265 = vmatmul.mubr.f32.gmra.mxu0 %v3169
    %v3266 = vpop.f32.mrf.mxu0
    %v3267 = vadd.f32 0.0, %v3266
    %v3268 = vpop.f32.mrf.mxu0
    %3269 = vmatprep.mubr.f32.mxu0 0.0
    %3270 = vmatmul.mubr.f32.gmra.mxu0 %v3172
    %v3271 = vpop.f32.mrf.mxu0
    %v3272 = vadd.f32 0.0, %v3271
    %v3273 = vpop.f32.mrf.mxu0
    %3274 = vmatprep.mubr.f32.mxu0 0.0
    %3275 = vmatmul.mubr.f32.gmra.mxu0 %v3175
    %v3276 = vpop.f32.mrf.mxu0
    %v3277 = vadd.f32 0.0, %v3276
    %v3278 = vpop.f32.mrf.mxu0
    %3279 = vmatprep.mubr.f32.mxu0 0.0
    %3280 = vmatmul.mubr.f32.gmra.mxu0 %v3178
    %v3281 = vpop.f32.mrf.mxu0
    %v3282 = vadd.f32 0.0, %v3281
    %v3283 = vpop.f32.mrf.mxu0
    %3284 = vdwg.mxu0
    %v3285 = vmul.f32 %v3093, %v3247
    %v3286 = vmul.f32 %v3095, %v3252
    %v3287 = vmul.f32 %v3097, %v3257
    %v3288 = vmul.f32 %v3099, %v3262
    %v3289 = vmul.f32 %v3101, %v3267
    %v3290 = vmul.f32 %v3103, %v3272
    %v3291 = vmul.f32 %v3105, %v3277
    %v3292 = vmul.f32 %v3107, %v3282
    %v3293 = vadd.f32 %v3285, 0.0
    %v3294 = vadd.f32 %v3286, 0.0
    %v3295 = vadd.f32 %v3287, 0.0
    %v3296 = vadd.f32 %v3288, 0.0
    %v3297 = vadd.f32 %v3289, 0.0
    %v3298 = vadd.f32 %v3290, 0.0
    %v3299 = vadd.f32 %v3291, 0.0
    %v3300 = vadd.f32 %v3292, 0.0
    %v3301 = vmax.f32 %v3285, -1e+30
    %v3302 = vmax.f32 %v3286, -1e+30
    %v3303 = vmax.f32 %v3287, -1e+30
    %v3304 = vmax.f32 %v3288, -1e+30
    %v3305 = vmax.f32 %v3289, -1e+30
    %v3306 = vmax.f32 %v3290, -1e+30
    %v3307 = vmax.f32 %v3291, -1e+30
    %v3308 = vmax.f32 %v3292, -1e+30
    %v3309 = vsel %vm3076, 1e+30, %v3004
    %v3310 = vsel %vm3077, 1e+30, %v3005
    %v3311 = vsel %vm3078, 1e+30, %v3006
    %v3312 = vsel %vm3079, 1e+30, %v3007
    %v3313 = vsel %vm3080, 1e+30, %v3008
    %v3314 = vsel %vm3081, 1e+30, %v3009
    %v3315 = vsel %vm3082, 1e+30, %v3010
    %v3316 = vsel %vm3083, 1e+30, %v3011
    %v3317 = vsel %vm733, %v3309, inf
    %3318 = vmin.xlane.f32.xlu0 %v3317
    %v3319 = vpop.xlane.xlu0 %3318
    %v3320 = vsel %vm733, %v3310, inf
    %3321 = vmin.xlane.f32.xlu0 %v3320
    %v3322 = vpop.xlane.xlu0 %3321
    %v3323 = vsel %vm733, %v3311, inf
    %3324 = vmin.xlane.f32.xlu0 %v3323
    %v3325 = vpop.xlane.xlu0 %3324
    %v3326 = vsel %vm733, %v3312, inf
    %3327 = vmin.xlane.f32.xlu0 %v3326
    %v3328 = vpop.xlane.xlu0 %3327
    %v3329 = vsel %vm733, %v3313, inf
    %3330 = vmin.xlane.f32.xlu0 %v3329
    %v3331 = vpop.xlane.xlu0 %3330
    %v3332 = vsel %vm733, %v3314, inf
    %3333 = vmin.xlane.f32.xlu0 %v3332
    %v3334 = vpop.xlane.xlu0 %3333
    %v3335 = vsel %vm733, %v3315, inf
    %3336 = vmin.xlane.f32.xlu0 %v3335
    %v3337 = vpop.xlane.xlu0 %3336
    %v3338 = vsel %vm733, %v3316, inf
    %3339 = vmin.xlane.f32.xlu0 %v3338
    %v3340 = vpop.xlane.xlu0 %3339
    %v3349 = vand.u32 %v3319, 63
    %v3350 = vand.u32 %v3322, 63
    %v3351 = vand.u32 %v3325, 63
    %v3352 = vand.u32 %v3328, 63
    %v3353 = vand.u32 %v3331, 63
    %v3354 = vand.u32 %v3334, 63
    %v3355 = vand.u32 %v3337, 63
    %v3356 = vand.u32 %v3340, 63
    %v3357 = vand.u32 %v3319, 4294967232
    %v3358 = vand.u32 %v3322, 4294967232
    %v3359 = vand.u32 %v3325, 4294967232
    %v3360 = vand.u32 %v3328, 4294967232
    %v3361 = vand.u32 %v3331, 4294967232
    %v3362 = vand.u32 %v3334, 4294967232
    %v3363 = vand.u32 %v3337, 4294967232
    %v3364 = vand.u32 %v3340, 4294967232
    %vm3373 = vcmp.eq.s32.totalorder %v700, %v3349
    %vm3374 = vcmp.eq.s32.totalorder %v700, %v3350
    %vm3375 = vcmp.eq.s32.totalorder %v700, %v3351
    %vm3376 = vcmp.eq.s32.totalorder %v700, %v3352
    %vm3377 = vcmp.eq.s32.totalorder %v700, %v3353
    %vm3378 = vcmp.eq.s32.totalorder %v700, %v3354
    %vm3379 = vcmp.eq.s32.totalorder %v700, %v3355
    %vm3380 = vcmp.eq.s32.totalorder %v700, %v3356
    %v3381 = vmul.f32 %v3357, -10.0
    %v3382 = vmul.f32 %v3358, -10.0
    %v3383 = vmul.f32 %v3359, -10.0
    %v3384 = vmul.f32 %v3360, -10.0
    %v3385 = vmul.f32 %v3361, -10.0
    %v3386 = vmul.f32 %v3362, -10.0
    %v3387 = vmul.f32 %v3363, -10.0
    %v3388 = vmul.f32 %v3364, -10.0
    %v3389 = vmul.f32 %v3381, 1.442695
    %v3390 = vpow.pop %v3389
    %v3391 = vmul.f32 %v3382, 1.442695
    %v3392 = vpow.pop %v3391
    %v3393 = vmul.f32 %v3383, 1.442695
    %v3394 = vpow.pop %v3393
    %v3395 = vmul.f32 %v3384, 1.442695
    %v3396 = vpow.pop %v3395
    %v3397 = vmul.f32 %v3385, 1.442695
    %v3398 = vpow.pop %v3397
    %v3399 = vmul.f32 %v3386, 1.442695
    %v3400 = vpow.pop %v3399
    %v3401 = vmul.f32 %v3387, 1.442695
    %v3402 = vpow.pop %v3401
    %v3403 = vmul.f32 %v3388, 1.442695
    %v3404 = vpow.pop %v3403
    %v3405 = vsel %vm3373, 1, 0
    %v3406 = vsel %vm3374, 1, 0
    %v3407 = vsel %vm3375, 1, 0
    %v3408 = vsel %vm3376, 1, 0
    %v3409 = vsel %vm3377, 1, 0
    %v3410 = vsel %vm3378, 1, 0
    %v3411 = vsel %vm3379, 1, 0
    %v3412 = vsel %vm3380, 1, 0
    %v3413 = vcvt.s32.f32 %v3405
    %v3414 = vcvt.s32.f32 %v3406
    %v3415 = vcvt.s32.f32 %v3407
    %v3416 = vcvt.s32.f32 %v3408
    %v3417 = vcvt.s32.f32 %v3409
    %v3418 = vcvt.s32.f32 %v3410
    %v3419 = vcvt.s32.f32 %v3411
    %v3420 = vcvt.s32.f32 %v3412
    %v3422 = vsel %vm733, %v3413, 0
    %v3425 = vsel %vm733, %v3414, 0
    %v3428 = vsel %vm733, %v3415, 0
    %v3431 = vsel %vm733, %v3416, 0
    %v3434 = vsel %vm733, %v3417, 0
    %v3437 = vsel %vm733, %v3418, 0
    %v3440 = vsel %vm733, %v3419, 0
    %v3443 = vsel %vm733, %v3420, 0
    %3445 = vmatprep.subr.mxu0 0.0
    %3446 = vmatpush1.msra.mxu0 0.0
    %3447 = vmatprep.subr.mxu0 0.0
    %3448 = vmatpush1.msra.mxu0 0.0
    %3449 = vmatprep.subr.mxu0 0.0
    %3450 = vmatpush1.msra.mxu0 0.0
    %3451 = vmatprep.subr.mxu0 0.0
    %3452 = vmatpush1.msra.mxu0 0.0
    %3453 = vmatprep.subr.mxu0 0.0
    %3454 = vmatpush1.msra.mxu0 0.0
    %3455 = vmatprep.subr.mxu0 0.0
    %3456 = vmatpush1.msra.mxu0 0.0
    %3457 = vmatprep.subr.mxu0 0.0
    %3458 = vmatpush1.msra.mxu0 0.0
    %3459 = vmatprep.subr.mxu0 0.0
    %3460 = vmatpush1.msra.mxu0 0.0
    %3461 = vmatprep.subr.mxu0 0.0
    %3462 = vmatpush1.msra.mxu0 %v3147
    %3463 = vmatprep.subr.mxu0 0.0
    %3464 = vmatpush1.msra.mxu0 %v3145
    %3465 = vmatprep.subr.mxu0 0.0
    %3466 = vmatpush1.msra.mxu0 %v3143
    %3467 = vmatprep.subr.mxu0 0.0
    %3468 = vmatpush1.msra.mxu0 %v3141
    %3469 = vmatprep.subr.mxu0 0.0
    %3470 = vmatpush1.msra.mxu0 %v3139
    %3471 = vmatprep.subr.mxu0 0.0
    %3472 = vmatpush1.msra.mxu0 %v3137
    %3473 = vmatprep.subr.mxu0 0.0
    %3474 = vmatpush1.msra.mxu0 %v3135
    %3475 = vmatprep.subr.mxu0 0.0
    %3476 = vmatpush1.msra.mxu0 %v3133
    %3477 = vmatprep.subr.mxu0 0.0
    %3478 = vmatpush2.msra.mxu0 0.0
    %3479 = vmatprep.subr.mxu0 0.0
    %3480 = vmatpush2.msra.mxu0 0.0
    %3481 = vmatprep.subr.mxu0 0.0
    %3482 = vmatpush2.msra.mxu0 0.0
    %3483 = vmatprep.subr.mxu0 0.0
    %3484 = vmatpush2.msra.mxu0 0.0
    %3485 = vmatprep.subr.mxu0 0.0
    %3486 = vmatpush2.msra.mxu0 0.0
    %3487 = vmatprep.subr.mxu0 0.0
    %3488 = vmatpush2.msra.mxu0 0.0
    %3489 = vmatprep.subr.mxu0 0.0
    %3490 = vmatpush2.msra.mxu0 0.0
    %3491 = vmatprep.subr.mxu0 0.0
    %3492 = vmatpush2.msra.mxu0 0.0
    %3493 = vmatprep.subr.mxu0 0.0
    %3494 = vmatpush2.msra.mxu0 0.0
    %3495 = vmatprep.subr.mxu0 0.0
    %3496 = vmatpush2.msra.mxu0 0.0
    %3497 = vmatprep.subr.mxu0 0.0
    %3498 = vmatpush2.msra.mxu0 0.0
    %3499 = vmatprep.subr.mxu0 0.0
    %3500 = vmatpush2.msra.mxu0 0.0
    %3501 = vmatprep.subr.mxu0 0.0
    %3502 = vmatpush2.msra.mxu0 0.0
    %3503 = vmatprep.subr.mxu0 0.0
    %3504 = vmatpush2.msra.mxu0 0.0
    %3505 = vmatprep.subr.mxu0 0.0
    %3506 = vmatpush2.msra.mxu0 0.0
    %3507 = vmatprep.subr.mxu0 0.0
    %3508 = vmatpush2.msra.mxu0 0.0
    %3509 = vmatprep.mubr.f32.mxu0 0.0
    %3510 = vmatmul.mubr.f32.gmra.mxu0 %v3422
    %v3511 = vpop.f32.mrf.mxu0
    %v3512 = vadd.f32 0.0, %v3511
    %v3513 = vpop.f32.mrf.mxu0
    %3514 = vmatprep.mubr.f32.mxu0 0.0
    %3515 = vmatmul.mubr.f32.gmra.mxu0 %v3425
    %v3516 = vpop.f32.mrf.mxu0
    %v3517 = vadd.f32 0.0, %v3516
    %v3518 = vpop.f32.mrf.mxu0
    %3519 = vmatprep.mubr.f32.mxu0 0.0
    %3520 = vmatmul.mubr.f32.gmra.mxu0 %v3428
    %v3521 = vpop.f32.mrf.mxu0
    %v3522 = vadd.f32 0.0, %v3521
    %v3523 = vpop.f32.mrf.mxu0
    %3524 = vmatprep.mubr.f32.mxu0 0.0
    %3525 = vmatmul.mubr.f32.gmra.mxu0 %v3431
    %v3526 = vpop.f32.mrf.mxu0
    %v3527 = vadd.f32 0.0, %v3526
    %v3528 = vpop.f32.mrf.mxu0
    %3529 = vmatprep.mubr.f32.mxu0 0.0
    %3530 = vmatmul.mubr.f32.gmra.mxu0 %v3434
    %v3531 = vpop.f32.mrf.mxu0
    %v3532 = vadd.f32 0.0, %v3531
    %v3533 = vpop.f32.mrf.mxu0
    %3534 = vmatprep.mubr.f32.mxu0 0.0
    %3535 = vmatmul.mubr.f32.gmra.mxu0 %v3437
    %v3536 = vpop.f32.mrf.mxu0
    %v3537 = vadd.f32 0.0, %v3536
    %v3538 = vpop.f32.mrf.mxu0
    %3539 = vmatprep.mubr.f32.mxu0 0.0
    %3540 = vmatmul.mubr.f32.gmra.mxu0 %v3440
    %v3541 = vpop.f32.mrf.mxu0
    %v3542 = vadd.f32 0.0, %v3541
    %v3543 = vpop.f32.mrf.mxu0
    %3544 = vmatprep.mubr.f32.mxu0 0.0
    %3545 = vmatmul.mubr.f32.gmra.mxu0 %v3443
    %v3546 = vpop.f32.mrf.mxu0
    %v3547 = vadd.f32 0.0, %v3546
    %v3548 = vpop.f32.mrf.mxu0
    %3549 = vdwg.mxu0
    %v3550 = vmul.f32 %v3390, %v3512
    %v3551 = vmul.f32 %v3392, %v3517
    %v3552 = vmul.f32 %v3394, %v3522
    %v3553 = vmul.f32 %v3396, %v3527
    %v3554 = vmul.f32 %v3398, %v3532
    %v3555 = vmul.f32 %v3400, %v3537
    %v3556 = vmul.f32 %v3402, %v3542
    %v3557 = vmul.f32 %v3404, %v3547
    %v3558 = vadd.f32 %v3293, %v3550
    %v3559 = vadd.f32 %v3294, %v3551
    %v3560 = vadd.f32 %v3295, %v3552
    %v3561 = vadd.f32 %v3296, %v3553
    %v3562 = vadd.f32 %v3297, %v3554
    %v3563 = vadd.f32 %v3298, %v3555
    %v3564 = vadd.f32 %v3299, %v3556
    %v3565 = vadd.f32 %v3300, %v3557
    %v3566 = vmax.f32 %v3301, %v3550
    %v3567 = vmax.f32 %v3302, %v3551
    %v3568 = vmax.f32 %v3303, %v3552
    %v3569 = vmax.f32 %v3304, %v3553
    %v3570 = vmax.f32 %v3305, %v3554
    %v3571 = vmax.f32 %v3306, %v3555
    %v3572 = vmax.f32 %v3307, %v3556
    %v3573 = vmax.f32 %v3308, %v3557
    %v3574 = vsel %vm3373, 1e+30, %v3309
    %v3575 = vsel %vm3374, 1e+30, %v3310
    %v3576 = vsel %vm3375, 1e+30, %v3311
    %v3577 = vsel %vm3376, 1e+30, %v3312
    %v3578 = vsel %vm3377, 1e+30, %v3313
    %v3579 = vsel %vm3378, 1e+30, %v3314
    %v3580 = vsel %vm3379, 1e+30, %v3315
    %v3581 = vsel %vm3380, 1e+30, %v3316
    %v3582 = vsel %vm733, %v3574, inf
    %3583 = vmin.xlane.f32.xlu0 %v3582
    %v3584 = vpop.xlane.xlu0 %3583
    %v3585 = vsel %vm733, %v3575, inf
    %3586 = vmin.xlane.f32.xlu0 %v3585
    %v3587 = vpop.xlane.xlu0 %3586
    %v3588 = vsel %vm733, %v3576, inf
    %3589 = vmin.xlane.f32.xlu0 %v3588
    %v3590 = vpop.xlane.xlu0 %3589
    %v3591 = vsel %vm733, %v3577, inf
    %3592 = vmin.xlane.f32.xlu0 %v3591
    %v3593 = vpop.xlane.xlu0 %3592
    %v3594 = vsel %vm733, %v3578, inf
    %3595 = vmin.xlane.f32.xlu0 %v3594
    %v3596 = vpop.xlane.xlu0 %3595
    %v3597 = vsel %vm733, %v3579, inf
    %3598 = vmin.xlane.f32.xlu0 %v3597
    %v3599 = vpop.xlane.xlu0 %3598
    %v3600 = vsel %vm733, %v3580, inf
    %3601 = vmin.xlane.f32.xlu0 %v3600
    %v3602 = vpop.xlane.xlu0 %3601
    %v3603 = vsel %vm733, %v3581, inf
    %3604 = vmin.xlane.f32.xlu0 %v3603
    %v3605 = vpop.xlane.xlu0 %3604
    %v3614 = vand.u32 %v3584, 63
    %v3615 = vand.u32 %v3587, 63
    %v3616 = vand.u32 %v3590, 63
    %v3617 = vand.u32 %v3593, 63
    %v3618 = vand.u32 %v3596, 63
    %v3619 = vand.u32 %v3599, 63
    %v3620 = vand.u32 %v3602, 63
    %v3621 = vand.u32 %v3605, 63
    %v3622 = vand.u32 %v3584, 4294967232
    %v3623 = vand.u32 %v3587, 4294967232
    %v3624 = vand.u32 %v3590, 4294967232
    %v3625 = vand.u32 %v3593, 4294967232
    %v3626 = vand.u32 %v3596, 4294967232
    %v3627 = vand.u32 %v3599, 4294967232
    %v3628 = vand.u32 %v3602, 4294967232
    %v3629 = vand.u32 %v3605, 4294967232
    %vm3638 = vcmp.eq.s32.totalorder %v700, %v3614
    %vm3639 = vcmp.eq.s32.totalorder %v700, %v3615
    %vm3640 = vcmp.eq.s32.totalorder %v700, %v3616
    %vm3641 = vcmp.eq.s32.totalorder %v700, %v3617
    %vm3642 = vcmp.eq.s32.totalorder %v700, %v3618
    %vm3643 = vcmp.eq.s32.totalorder %v700, %v3619
    %vm3644 = vcmp.eq.s32.totalorder %v700, %v3620
    %vm3645 = vcmp.eq.s32.totalorder %v700, %v3621
    %v3646 = vmul.f32 %v3622, -10.0
    %v3647 = vmul.f32 %v3623, -10.0
    %v3648 = vmul.f32 %v3624, -10.0
    %v3649 = vmul.f32 %v3625, -10.0
    %v3650 = vmul.f32 %v3626, -10.0
    %v3651 = vmul.f32 %v3627, -10.0
    %v3652 = vmul.f32 %v3628, -10.0
    %v3653 = vmul.f32 %v3629, -10.0
    %v3654 = vmul.f32 %v3646, 1.442695
    %v3655 = vpow.pop %v3654
    %v3656 = vmul.f32 %v3647, 1.442695
    %v3657 = vpow.pop %v3656
    %v3658 = vmul.f32 %v3648, 1.442695
    %v3659 = vpow.pop %v3658
    %v3660 = vmul.f32 %v3649, 1.442695
    %v3661 = vpow.pop %v3660
    %v3662 = vmul.f32 %v3650, 1.442695
    %v3663 = vpow.pop %v3662
    %v3664 = vmul.f32 %v3651, 1.442695
    %v3665 = vpow.pop %v3664
    %v3666 = vmul.f32 %v3652, 1.442695
    %v3667 = vpow.pop %v3666
    %v3668 = vmul.f32 %v3653, 1.442695
    %v3669 = vpow.pop %v3668
    %v3670 = vsel %vm3638, 1, 0
    %v3671 = vsel %vm3639, 1, 0
    %v3672 = vsel %vm3640, 1, 0
    %v3673 = vsel %vm3641, 1, 0
    %v3674 = vsel %vm3642, 1, 0
    %v3675 = vsel %vm3643, 1, 0
    %v3676 = vsel %vm3644, 1, 0
    %v3677 = vsel %vm3645, 1, 0
    %v3678 = vcvt.s32.f32 %v3670
    %v3679 = vcvt.s32.f32 %v3671
    %v3680 = vcvt.s32.f32 %v3672
    %v3681 = vcvt.s32.f32 %v3673
    %v3682 = vcvt.s32.f32 %v3674
    %v3683 = vcvt.s32.f32 %v3675
    %v3684 = vcvt.s32.f32 %v3676
    %v3685 = vcvt.s32.f32 %v3677
    %v3687 = vsel %vm733, %v3678, 0
    %v3690 = vsel %vm733, %v3679, 0
    %v3693 = vsel %vm733, %v3680, 0
    %v3696 = vsel %vm733, %v3681, 0
    %v3699 = vsel %vm733, %v3682, 0
    %v3702 = vsel %vm733, %v3683, 0
    %v3705 = vsel %vm733, %v3684, 0
    %v3708 = vsel %vm733, %v3685, 0
    %3710 = vmatprep.subr.mxu0 0.0
    %3711 = vmatpush1.msra.mxu0 0.0
    %3712 = vmatprep.subr.mxu0 0.0
    %3713 = vmatpush1.msra.mxu0 0.0
    %3714 = vmatprep.subr.mxu0 0.0
    %3715 = vmatpush1.msra.mxu0 0.0
    %3716 = vmatprep.subr.mxu0 0.0
    %3717 = vmatpush1.msra.mxu0 0.0
    %3718 = vmatprep.subr.mxu0 0.0
    %3719 = vmatpush1.msra.mxu0 0.0
    %3720 = vmatprep.subr.mxu0 0.0
    %3721 = vmatpush1.msra.mxu0 0.0
    %3722 = vmatprep.subr.mxu0 0.0
    %3723 = vmatpush1.msra.mxu0 0.0
    %3724 = vmatprep.subr.mxu0 0.0
    %3725 = vmatpush1.msra.mxu0 0.0
    %3726 = vmatprep.subr.mxu0 0.0
    %3727 = vmatpush1.msra.mxu0 %v3147
    %3728 = vmatprep.subr.mxu0 0.0
    %3729 = vmatpush1.msra.mxu0 %v3145
    %3730 = vmatprep.subr.mxu0 0.0
    %3731 = vmatpush1.msra.mxu0 %v3143
    %3732 = vmatprep.subr.mxu0 0.0
    %3733 = vmatpush1.msra.mxu0 %v3141
    %3734 = vmatprep.subr.mxu0 0.0
    %3735 = vmatpush1.msra.mxu0 %v3139
    %3736 = vmatprep.subr.mxu0 0.0
    %3737 = vmatpush1.msra.mxu0 %v3137
    %3738 = vmatprep.subr.mxu0 0.0
    %3739 = vmatpush1.msra.mxu0 %v3135
    %3740 = vmatprep.subr.mxu0 0.0
    %3741 = vmatpush1.msra.mxu0 %v3133
    %3742 = vmatprep.subr.mxu0 0.0
    %3743 = vmatpush2.msra.mxu0 0.0
    %3744 = vmatprep.subr.mxu0 0.0
    %3745 = vmatpush2.msra.mxu0 0.0
    %3746 = vmatprep.subr.mxu0 0.0
    %3747 = vmatpush2.msra.mxu0 0.0
    %3748 = vmatprep.subr.mxu0 0.0
    %3749 = vmatpush2.msra.mxu0 0.0
    %3750 = vmatprep.subr.mxu0 0.0
    %3751 = vmatpush2.msra.mxu0 0.0
    %3752 = vmatprep.subr.mxu0 0.0
    %3753 = vmatpush2.msra.mxu0 0.0
    %3754 = vmatprep.subr.mxu0 0.0
    %3755 = vmatpush2.msra.mxu0 0.0
    %3756 = vmatprep.subr.mxu0 0.0
    %3757 = vmatpush2.msra.mxu0 0.0
    %3758 = vmatprep.subr.mxu0 0.0
    %3759 = vmatpush2.msra.mxu0 0.0
    %3760 = vmatprep.subr.mxu0 0.0
    %3761 = vmatpush2.msra.mxu0 0.0
    %3762 = vmatprep.subr.mxu0 0.0
    %3763 = vmatpush2.msra.mxu0 0.0
    %3764 = vmatprep.subr.mxu0 0.0
    %3765 = vmatpush2.msra.mxu0 0.0
    %3766 = vmatprep.subr.mxu0 0.0
    %3767 = vmatpush2.msra.mxu0 0.0
    %3768 = vmatprep.subr.mxu0 0.0
    %3769 = vmatpush2.msra.mxu0 0.0
    %3770 = vmatprep.subr.mxu0 0.0
    %3771 = vmatpush2.msra.mxu0 0.0
    %3772 = vmatprep.subr.mxu0 0.0
    %3773 = vmatpush2.msra.mxu0 0.0
    %3774 = vmatprep.mubr.f32.mxu0 0.0
    %3775 = vmatmul.mubr.f32.gmra.mxu0 %v3687
    %v3776 = vpop.f32.mrf.mxu0
    %v3777 = vadd.f32 0.0, %v3776
    %v3778 = vpop.f32.mrf.mxu0
    %3779 = vmatprep.mubr.f32.mxu0 0.0
    %3780 = vmatmul.mubr.f32.gmra.mxu0 %v3690
    %v3781 = vpop.f32.mrf.mxu0
    %v3782 = vadd.f32 0.0, %v3781
    %v3783 = vpop.f32.mrf.mxu0
    %3784 = vmatprep.mubr.f32.mxu0 0.0
    %3785 = vmatmul.mubr.f32.gmra.mxu0 %v3693
    %v3786 = vpop.f32.mrf.mxu0
    %v3787 = vadd.f32 0.0, %v3786
    %v3788 = vpop.f32.mrf.mxu0
    %3789 = vmatprep.mubr.f32.mxu0 0.0
    %3790 = vmatmul.mubr.f32.gmra.mxu0 %v3696
    %v3791 = vpop.f32.mrf.mxu0
    %v3792 = vadd.f32 0.0, %v3791
    %v3793 = vpop.f32.mrf.mxu0
    %3794 = vmatprep.mubr.f32.mxu0 0.0
    %3795 = vmatmul.mubr.f32.gmra.mxu0 %v3699
    %v3796 = vpop.f32.mrf.mxu0
    %v3797 = vadd.f32 0.0, %v3796
    %v3798 = vpop.f32.mrf.mxu0
    %3799 = vmatprep.mubr.f32.mxu0 0.0
    %3800 = vmatmul.mubr.f32.gmra.mxu0 %v3702
    %v3801 = vpop.f32.mrf.mxu0
    %v3802 = vadd.f32 0.0, %v3801
    %v3803 = vpop.f32.mrf.mxu0
    %3804 = vmatprep.mubr.f32.mxu0 0.0
    %3805 = vmatmul.mubr.f32.gmra.mxu0 %v3705
    %v3806 = vpop.f32.mrf.mxu0
    %v3807 = vadd.f32 0.0, %v3806
    %v3808 = vpop.f32.mrf.mxu0
    %3809 = vmatprep.mubr.f32.mxu0 0.0
    %3810 = vmatmul.mubr.f32.gmra.mxu0 %v3708
    %v3811 = vpop.f32.mrf.mxu0
    %v3812 = vadd.f32 0.0, %v3811
    %v3813 = vpop.f32.mrf.mxu0
    %3814 = vdwg.mxu0
    %v3815 = vmul.f32 %v3655, %v3777
    %v3816 = vmul.f32 %v3657, %v3782
    %v3817 = vmul.f32 %v3659, %v3787
    %v3818 = vmul.f32 %v3661, %v3792
    %v3819 = vmul.f32 %v3663, %v3797
    %v3820 = vmul.f32 %v3665, %v3802
    %v3821 = vmul.f32 %v3667, %v3807
    %v3822 = vmul.f32 %v3669, %v3812
    %v3823 = vadd.f32 %v3558, %v3815
    %v3824 = vadd.f32 %v3559, %v3816
    %v3825 = vadd.f32 %v3560, %v3817
    %v3826 = vadd.f32 %v3561, %v3818
    %v3827 = vadd.f32 %v3562, %v3819
    %v3828 = vadd.f32 %v3563, %v3820
    %v3829 = vadd.f32 %v3564, %v3821
    %v3830 = vadd.f32 %v3565, %v3822
    %v3831 = vmax.f32 %v3566, %v3815
    %v3832 = vmax.f32 %v3567, %v3816
    %v3833 = vmax.f32 %v3568, %v3817
    %v3834 = vmax.f32 %v3569, %v3818
    %v3835 = vmax.f32 %v3570, %v3819
    %v3836 = vmax.f32 %v3571, %v3820
    %v3837 = vmax.f32 %v3572, %v3821
    %v3838 = vmax.f32 %v3573, %v3822
    %v3839 = vsel %vm3638, 1e+30, %v3574
    %v3840 = vsel %vm3639, 1e+30, %v3575
    %v3841 = vsel %vm3640, 1e+30, %v3576
    %v3842 = vsel %vm3641, 1e+30, %v3577
    %v3843 = vsel %vm3642, 1e+30, %v3578
    %v3844 = vsel %vm3643, 1e+30, %v3579
    %v3845 = vsel %vm3644, 1e+30, %v3580
    %v3846 = vsel %vm3645, 1e+30, %v3581
    %v3847 = vsel %vm733, %v3839, inf
    %3848 = vmin.xlane.f32.xlu0 %v3847
    %v3849 = vpop.xlane.xlu0 %3848
    %v3850 = vsel %vm733, %v3840, inf
    %3851 = vmin.xlane.f32.xlu0 %v3850
    %v3852 = vpop.xlane.xlu0 %3851
    %v3853 = vsel %vm733, %v3841, inf
    %3854 = vmin.xlane.f32.xlu0 %v3853
    %v3855 = vpop.xlane.xlu0 %3854
    %v3856 = vsel %vm733, %v3842, inf
    %3857 = vmin.xlane.f32.xlu0 %v3856
    %v3858 = vpop.xlane.xlu0 %3857
    %v3859 = vsel %vm733, %v3843, inf
    %3860 = vmin.xlane.f32.xlu0 %v3859
    %v3861 = vpop.xlane.xlu0 %3860
    %v3862 = vsel %vm733, %v3844, inf
    %3863 = vmin.xlane.f32.xlu0 %v3862
    %v3864 = vpop.xlane.xlu0 %3863
    %v3865 = vsel %vm733, %v3845, inf
    %3866 = vmin.xlane.f32.xlu0 %v3865
    %v3867 = vpop.xlane.xlu0 %3866
    %v3868 = vsel %vm733, %v3846, inf
    %3869 = vmin.xlane.f32.xlu0 %v3868
    %v3870 = vpop.xlane.xlu0 %3869
    %v3879 = vand.u32 %v3849, 63
    %v3880 = vand.u32 %v3852, 63
    %v3881 = vand.u32 %v3855, 63
    %v3882 = vand.u32 %v3858, 63
    %v3883 = vand.u32 %v3861, 63
    %v3884 = vand.u32 %v3864, 63
    %v3885 = vand.u32 %v3867, 63
    %v3886 = vand.u32 %v3870, 63
    %v3887 = vand.u32 %v3849, 4294967232
    %v3888 = vand.u32 %v3852, 4294967232
    %v3889 = vand.u32 %v3855, 4294967232
    %v3890 = vand.u32 %v3858, 4294967232
    %v3891 = vand.u32 %v3861, 4294967232
    %v3892 = vand.u32 %v3864, 4294967232
    %v3893 = vand.u32 %v3867, 4294967232
    %v3894 = vand.u32 %v3870, 4294967232
    %vm3903 = vcmp.eq.s32.totalorder %v700, %v3879
    %vm3904 = vcmp.eq.s32.totalorder %v700, %v3880
    %vm3905 = vcmp.eq.s32.totalorder %v700, %v3881
    %vm3906 = vcmp.eq.s32.totalorder %v700, %v3882
    %vm3907 = vcmp.eq.s32.totalorder %v700, %v3883
    %vm3908 = vcmp.eq.s32.totalorder %v700, %v3884
    %vm3909 = vcmp.eq.s32.totalorder %v700, %v3885
    %vm3910 = vcmp.eq.s32.totalorder %v700, %v3886
    %v3911 = vmul.f32 %v3887, -10.0
    %v3912 = vmul.f32 %v3888, -10.0
    %v3913 = vmul.f32 %v3889, -10.0
    %v3914 = vmul.f32 %v3890, -10.0
    %v3915 = vmul.f32 %v3891, -10.0
    %v3916 = vmul.f32 %v3892, -10.0
    %v3917 = vmul.f32 %v3893, -10.0
    %v3918 = vmul.f32 %v3894, -10.0
    %v3919 = vmul.f32 %v3911, 1.442695
    %v3920 = vpow.pop %v3919
    %v3921 = vmul.f32 %v3912, 1.442695
    %v3922 = vpow.pop %v3921
    %v3923 = vmul.f32 %v3913, 1.442695
    %v3924 = vpow.pop %v3923
    %v3925 = vmul.f32 %v3914, 1.442695
    %v3926 = vpow.pop %v3925
    %v3927 = vmul.f32 %v3915, 1.442695
    %v3928 = vpow.pop %v3927
    %v3929 = vmul.f32 %v3916, 1.442695
    %v3930 = vpow.pop %v3929
    %v3931 = vmul.f32 %v3917, 1.442695
    %v3932 = vpow.pop %v3931
    %v3933 = vmul.f32 %v3918, 1.442695
    %v3934 = vpow.pop %v3933
    %v3935 = vsel %vm3903, 1, 0
    %v3936 = vsel %vm3904, 1, 0
    %v3937 = vsel %vm3905, 1, 0
    %v3938 = vsel %vm3906, 1, 0
    %v3939 = vsel %vm3907, 1, 0
    %v3940 = vsel %vm3908, 1, 0
    %v3941 = vsel %vm3909, 1, 0
    %v3942 = vsel %vm3910, 1, 0
    %v3943 = vcvt.s32.f32 %v3935
    %v3944 = vcvt.s32.f32 %v3936
    %v3945 = vcvt.s32.f32 %v3937
    %v3946 = vcvt.s32.f32 %v3938
    %v3947 = vcvt.s32.f32 %v3939
    %v3948 = vcvt.s32.f32 %v3940
    %v3949 = vcvt.s32.f32 %v3941
    %v3950 = vcvt.s32.f32 %v3942
    %v3952 = vsel %vm733, %v3943, 0
    %v3955 = vsel %vm733, %v3944, 0
    %v3958 = vsel %vm733, %v3945, 0
    %v3961 = vsel %vm733, %v3946, 0
    %v3964 = vsel %vm733, %v3947, 0
    %v3967 = vsel %vm733, %v3948, 0
    %v3970 = vsel %vm733, %v3949, 0
    %v3973 = vsel %vm733, %v3950, 0
    %3975 = vmatprep.subr.mxu0 0.0
    %3976 = vmatpush1.msra.mxu0 0.0
    %3977 = vmatprep.subr.mxu0 0.0
    %3978 = vmatpush1.msra.mxu0 0.0
    %3979 = vmatprep.subr.mxu0 0.0
    %3980 = vmatpush1.msra.mxu0 0.0
    %3981 = vmatprep.subr.mxu0 0.0
    %3982 = vmatpush1.msra.mxu0 0.0
    %3983 = vmatprep.subr.mxu0 0.0
    %3984 = vmatpush1.msra.mxu0 0.0
    %3985 = vmatprep.subr.mxu0 0.0
    %3986 = vmatpush1.msra.mxu0 0.0
    %3987 = vmatprep.subr.mxu0 0.0
    %3988 = vmatpush1.msra.mxu0 0.0
    %3989 = vmatprep.subr.mxu0 0.0
    %3990 = vmatpush1.msra.mxu0 0.0
    %3991 = vmatprep.subr.mxu0 0.0
    %3992 = vmatpush1.msra.mxu0 %v3147
    %3993 = vmatprep.subr.mxu0 0.0
    %3994 = vmatpush1.msra.mxu0 %v3145
    %3995 = vmatprep.subr.mxu0 0.0
    %3996 = vmatpush1.msra.mxu0 %v3143
    %3997 = vmatprep.subr.mxu0 0.0
    %3998 = vmatpush1.msra.mxu0 %v3141
    %3999 = vmatprep.subr.mxu0 0.0
    %4000 = vmatpush1.msra.mxu0 %v3139
    %4001 = vmatprep.subr.mxu0 0.0
    %4002 = vmatpush1.msra.mxu0 %v3137
    %4003 = vmatprep.subr.mxu0 0.0
    %4004 = vmatpush1.msra.mxu0 %v3135
    %4005 = vmatprep.subr.mxu0 0.0
    %4006 = vmatpush1.msra.mxu0 %v3133
    %4007 = vmatprep.subr.mxu0 0.0
    %4008 = vmatpush2.msra.mxu0 0.0
    %4009 = vmatprep.subr.mxu0 0.0
    %4010 = vmatpush2.msra.mxu0 0.0
    %4011 = vmatprep.subr.mxu0 0.0
    %4012 = vmatpush2.msra.mxu0 0.0
    %4013 = vmatprep.subr.mxu0 0.0
    %4014 = vmatpush2.msra.mxu0 0.0
    %4015 = vmatprep.subr.mxu0 0.0
    %4016 = vmatpush2.msra.mxu0 0.0
    %4017 = vmatprep.subr.mxu0 0.0
    %4018 = vmatpush2.msra.mxu0 0.0
    %4019 = vmatprep.subr.mxu0 0.0
    %4020 = vmatpush2.msra.mxu0 0.0
    %4021 = vmatprep.subr.mxu0 0.0
    %4022 = vmatpush2.msra.mxu0 0.0
    %4023 = vmatprep.subr.mxu0 0.0
    %4024 = vmatpush2.msra.mxu0 0.0
    %4025 = vmatprep.subr.mxu0 0.0
    %4026 = vmatpush2.msra.mxu0 0.0
    %4027 = vmatprep.subr.mxu0 0.0
    %4028 = vmatpush2.msra.mxu0 0.0
    %4029 = vmatprep.subr.mxu0 0.0
    %4030 = vmatpush2.msra.mxu0 0.0
    %4031 = vmatprep.subr.mxu0 0.0
    %4032 = vmatpush2.msra.mxu0 0.0
    %4033 = vmatprep.subr.mxu0 0.0
    %4034 = vmatpush2.msra.mxu0 0.0
    %4035 = vmatprep.subr.mxu0 0.0
    %4036 = vmatpush2.msra.mxu0 0.0
    %4037 = vmatprep.subr.mxu0 0.0
    %4038 = vmatpush2.msra.mxu0 0.0
    %4039 = vmatprep.mubr.f32.mxu0 0.0
    %4040 = vmatmul.mubr.f32.gmra.mxu0 %v3952
    %v4041 = vpop.f32.mrf.mxu0
    %v4042 = vadd.f32 0.0, %v4041
    %v4043 = vpop.f32.mrf.mxu0
    %4044 = vmatprep.mubr.f32.mxu0 0.0
    %4045 = vmatmul.mubr.f32.gmra.mxu0 %v3955
    %v4046 = vpop.f32.mrf.mxu0
    %v4047 = vadd.f32 0.0, %v4046
    %v4048 = vpop.f32.mrf.mxu0
    %4049 = vmatprep.mubr.f32.mxu0 0.0
    %4050 = vmatmul.mubr.f32.gmra.mxu0 %v3958
    %v4051 = vpop.f32.mrf.mxu0
    %v4052 = vadd.f32 0.0, %v4051
    %v4053 = vpop.f32.mrf.mxu0
    %4054 = vmatprep.mubr.f32.mxu0 0.0
    %4055 = vmatmul.mubr.f32.gmra.mxu0 %v3961
    %v4056 = vpop.f32.mrf.mxu0
    %v4057 = vadd.f32 0.0, %v4056
    %v4058 = vpop.f32.mrf.mxu0
    %4059 = vmatprep.mubr.f32.mxu0 0.0
    %4060 = vmatmul.mubr.f32.gmra.mxu0 %v3964
    %v4061 = vpop.f32.mrf.mxu0
    %v4062 = vadd.f32 0.0, %v4061
    %v4063 = vpop.f32.mrf.mxu0
    %4064 = vmatprep.mubr.f32.mxu0 0.0
    %4065 = vmatmul.mubr.f32.gmra.mxu0 %v3967
    %v4066 = vpop.f32.mrf.mxu0
    %v4067 = vadd.f32 0.0, %v4066
    %v4068 = vpop.f32.mrf.mxu0
    %4069 = vmatprep.mubr.f32.mxu0 0.0
    %4070 = vmatmul.mubr.f32.gmra.mxu0 %v3970
    %v4071 = vpop.f32.mrf.mxu0
    %v4072 = vadd.f32 0.0, %v4071
    %v4073 = vpop.f32.mrf.mxu0
    %4074 = vmatprep.mubr.f32.mxu0 0.0
    %4075 = vmatmul.mubr.f32.gmra.mxu0 %v3973
    %v4076 = vpop.f32.mrf.mxu0
    %v4077 = vadd.f32 0.0, %v4076
    %v4078 = vpop.f32.mrf.mxu0
    %4079 = vdwg.mxu0
    %v4080 = vmul.f32 %v3920, %v4042
    %v4081 = vmul.f32 %v3922, %v4047
    %v4082 = vmul.f32 %v3924, %v4052
    %v4083 = vmul.f32 %v3926, %v4057
    %v4084 = vmul.f32 %v3928, %v4062
    %v4085 = vmul.f32 %v3930, %v4067
    %v4086 = vmul.f32 %v3932, %v4072
    %v4087 = vmul.f32 %v3934, %v4077
    %v4088 = vadd.f32 %v3823, %v4080
    %v4089 = vadd.f32 %v3824, %v4081
    %v4090 = vadd.f32 %v3825, %v4082
    %v4091 = vadd.f32 %v3826, %v4083
    %v4092 = vadd.f32 %v3827, %v4084
    %v4093 = vadd.f32 %v3828, %v4085
    %v4094 = vadd.f32 %v3829, %v4086
    %v4095 = vadd.f32 %v3830, %v4087
    %v4096 = vmax.f32 %v3831, %v4080
    %v4097 = vmax.f32 %v3832, %v4081
    %v4098 = vmax.f32 %v3833, %v4082
    %v4099 = vmax.f32 %v3834, %v4083
    %v4100 = vmax.f32 %v3835, %v4084
    %v4101 = vmax.f32 %v3836, %v4085
    %v4102 = vmax.f32 %v3837, %v4086
    %v4103 = vmax.f32 %v3838, %v4087
    %v4104 = vmul.f32 %v4088, 0.25
    %v4105 = vmul.f32 %v4089, 0.25
    %v4106 = vmul.f32 %v4090, 0.25
    %v4107 = vmul.f32 %v4091, 0.25
    %v4108 = vmul.f32 %v4092, 0.25
    %v4109 = vmul.f32 %v4093, 0.25
    %v4110 = vmul.f32 %v4094, 0.25
    %v4111 = vmul.f32 %v4095, 0.25
    %v4113 = vsel %vm39, %v4104, 0
    %v4116 = vsel %vm39, %v4105, 0
    %v4119 = vsel %vm39, %v4106, 0
    %v4122 = vsel %vm39, %v4107, 0
    %v4125 = vsel %vm39, %v4108, 0
    %v4128 = vsel %vm39, %v4109, 0
    %v4131 = vsel %vm39, %v4110, 0
    %v4134 = vsel %vm39, %v4111, 0
    %4136 = vmatprep.subr.mxu0 0.0
    %4137 = vmatpush1.msra.mxu0 0.0
    %4138 = vmatprep.subr.mxu0 0.0
    %4139 = vmatpush1.msra.mxu0 0.0
    %4140 = vmatprep.subr.mxu0 0.0
    %4141 = vmatpush1.msra.mxu0 0.0
    %4142 = vmatprep.subr.mxu0 0.0
    %4143 = vmatpush1.msra.mxu0 0.0
    %4144 = vmatprep.subr.mxu0 0.0
    %4145 = vmatpush1.msra.mxu0 0.0
    %4146 = vmatprep.subr.mxu0 0.0
    %4147 = vmatpush1.msra.mxu0 0.0
    %4148 = vmatprep.subr.mxu0 0.0
    %4149 = vmatpush1.msra.mxu0 0.0
    %4150 = vmatprep.subr.mxu0 0.0
    %4151 = vmatpush1.msra.mxu0 0.0
    %4152 = vmatprep.subr.mxu0 0.0
    %4153 = vmatpush1.msra.mxu0 0.0
    %4154 = vmatprep.subr.mxu0 0.0
    %4155 = vmatpush1.msra.mxu0 0.0
    %4156 = vmatprep.subr.mxu0 0.0
    %4157 = vmatpush1.msra.mxu0 0.0
    %4158 = vmatprep.subr.mxu0 0.0
    %4159 = vmatpush1.msra.mxu0 0.0
    %4160 = vmatprep.subr.mxu0 0.0
    %4161 = vmatpush1.msra.mxu0 0.0
    %4162 = vmatprep.subr.mxu0 0.0
    %4163 = vmatpush1.msra.mxu0 0.0
    %4164 = vmatprep.subr.mxu0 0.0
    %4165 = vmatpush1.msra.mxu0 0.0
    %4166 = vmatprep.subr.mxu0 0.0
    %4167 = vmatpush1.msra.mxu0 %v2620
    %4168 = vmatprep.subr.mxu0 0.0
    %4169 = vmatpush2.msra.mxu0 0.0
    %4170 = vmatprep.subr.mxu0 0.0
    %4171 = vmatpush2.msra.mxu0 0.0
    %4172 = vmatprep.subr.mxu0 0.0
    %4173 = vmatpush2.msra.mxu0 0.0
    %4174 = vmatprep.subr.mxu0 0.0
    %4175 = vmatpush2.msra.mxu0 0.0
    %4176 = vmatprep.subr.mxu0 0.0
    %4177 = vmatpush2.msra.mxu0 0.0
    %4178 = vmatprep.subr.mxu0 0.0
    %4179 = vmatpush2.msra.mxu0 0.0
    %4180 = vmatprep.subr.mxu0 0.0
    %4181 = vmatpush2.msra.mxu0 0.0
    %4182 = vmatprep.subr.mxu0 0.0
    %4183 = vmatpush2.msra.mxu0 0.0
    %4184 = vmatprep.subr.mxu0 0.0
    %4185 = vmatpush2.msra.mxu0 0.0
    %4186 = vmatprep.subr.mxu0 0.0
    %4187 = vmatpush2.msra.mxu0 0.0
    %4188 = vmatprep.subr.mxu0 0.0
    %4189 = vmatpush2.msra.mxu0 0.0
    %4190 = vmatprep.subr.mxu0 0.0
    %4191 = vmatpush2.msra.mxu0 0.0
    %4192 = vmatprep.subr.mxu0 0.0
    %4193 = vmatpush2.msra.mxu0 0.0
    %4194 = vmatprep.subr.mxu0 0.0
    %4195 = vmatpush2.msra.mxu0 0.0
    %4196 = vmatprep.subr.mxu0 0.0
    %4197 = vmatpush2.msra.mxu0 0.0
    %4198 = vmatprep.subr.mxu0 0.0
    %4199 = vmatpush2.msra.mxu0 0.0
    %4200 = vmatprep.mubr.f32.mxu0 0.0
    %4201 = vmatmul.mubr.f32.gmra.mxu0 %v4113
    %v4202 = vpop.f32.mrf.mxu0
    %v4203 = vadd.f32 0.0, %v4202
    %v4204 = vpop.f32.mrf.mxu0
    %4205 = vmatprep.mubr.f32.mxu0 0.0
    %4206 = vmatmul.mubr.f32.gmra.mxu0 %v4116
    %v4207 = vpop.f32.mrf.mxu0
    %v4208 = vadd.f32 0.0, %v4207
    %v4209 = vpop.f32.mrf.mxu0
    %4210 = vmatprep.mubr.f32.mxu0 0.0
    %4211 = vmatmul.mubr.f32.gmra.mxu0 %v4119
    %v4212 = vpop.f32.mrf.mxu0
    %v4213 = vadd.f32 0.0, %v4212
    %v4214 = vpop.f32.mrf.mxu0
    %4215 = vmatprep.mubr.f32.mxu0 0.0
    %4216 = vmatmul.mubr.f32.gmra.mxu0 %v4122
    %v4217 = vpop.f32.mrf.mxu0
    %v4218 = vadd.f32 0.0, %v4217
    %v4219 = vpop.f32.mrf.mxu0
    %4220 = vmatprep.mubr.f32.mxu0 0.0
    %4221 = vmatmul.mubr.f32.gmra.mxu0 %v4125
    %v4222 = vpop.f32.mrf.mxu0
    %v4223 = vadd.f32 0.0, %v4222
    %v4224 = vpop.f32.mrf.mxu0
    %4225 = vmatprep.mubr.f32.mxu0 0.0
    %4226 = vmatmul.mubr.f32.gmra.mxu0 %v4128
    %v4227 = vpop.f32.mrf.mxu0
    %v4228 = vadd.f32 0.0, %v4227
    %v4229 = vpop.f32.mrf.mxu0
    %4230 = vmatprep.mubr.f32.mxu0 0.0
    %4231 = vmatmul.mubr.f32.gmra.mxu0 %v4131
    %v4232 = vpop.f32.mrf.mxu0
    %v4233 = vadd.f32 0.0, %v4232
    %v4234 = vpop.f32.mrf.mxu0
    %4235 = vmatprep.mubr.f32.mxu0 0.0
    %4236 = vmatmul.mubr.f32.gmra.mxu0 %v4134
    %v4237 = vpop.f32.mrf.mxu0
    %v4238 = vadd.f32 0.0, %v4237
    %v4239 = vpop.f32.mrf.mxu0
    %4240 = vdwg.mxu0
    %4249 = vrot.lane.b32.xlu0 %v4203, 16
    %v4250 = vpop.permute.xlu0 %4249
    %4251 = vrot.lane.b32.xlu0 %v4208, 16
    %v4252 = vpop.permute.xlu0 %4251
    %4253 = vrot.lane.b32.xlu0 %v4213, 16
    %v4254 = vpop.permute.xlu0 %4253
    %4255 = vrot.lane.b32.xlu0 %v4218, 16
    %v4256 = vpop.permute.xlu0 %4255
    %4257 = vrot.lane.b32.xlu0 %v4223, 16
    %v4258 = vpop.permute.xlu0 %4257
    %4259 = vrot.lane.b32.xlu0 %v4228, 16
    %v4260 = vpop.permute.xlu0 %4259
    %4261 = vrot.lane.b32.xlu0 %v4233, 16
    %v4262 = vpop.permute.xlu0 %4261
    %4263 = vrot.lane.b32.xlu0 %v4238, 16
    %v4264 = vpop.permute.xlu0 %4263
    %v4273 = vadd.f32 %v2717, %v4250
    %v4274 = vadd.f32 %v2722, %v4252
    %v4275 = vadd.f32 %v2727, %v4254
    %v4276 = vadd.f32 %v2732, %v4256
    %v4277 = vadd.f32 %v2737, %v4258
    %v4278 = vadd.f32 %v2742, %v4260
    %v4279 = vadd.f32 %v2747, %v4262
    %v4280 = vadd.f32 %v2752, %v4264
    %v4282 = vsel %vm39, %v4096, 0
    %v4285 = vsel %vm39, %v4097, 0
    %v4288 = vsel %vm39, %v4098, 0
    %v4291 = vsel %vm39, %v4099, 0
    %v4294 = vsel %vm39, %v4100, 0
    %v4297 = vsel %vm39, %v4101, 0
    %v4300 = vsel %vm39, %v4102, 0
    %v4303 = vsel %vm39, %v4103, 0
    %4305 = vmatprep.subr.mxu0 0.0
    %4306 = vmatpush1.msra.mxu0 0.0
    %4307 = vmatprep.subr.mxu0 0.0
    %4308 = vmatpush1.msra.mxu0 0.0
    %4309 = vmatprep.subr.mxu0 0.0
    %4310 = vmatpush1.msra.mxu0 0.0
    %4311 = vmatprep.subr.mxu0 0.0
    %4312 = vmatpush1.msra.mxu0 0.0
    %4313 = vmatprep.subr.mxu0 0.0
    %4314 = vmatpush1.msra.mxu0 0.0
    %4315 = vmatprep.subr.mxu0 0.0
    %4316 = vmatpush1.msra.mxu0 0.0
    %4317 = vmatprep.subr.mxu0 0.0
    %4318 = vmatpush1.msra.mxu0 0.0
    %4319 = vmatprep.subr.mxu0 0.0
    %4320 = vmatpush1.msra.mxu0 0.0
    %4321 = vmatprep.subr.mxu0 0.0
    %4322 = vmatpush1.msra.mxu0 0.0
    %4323 = vmatprep.subr.mxu0 0.0
    %4324 = vmatpush1.msra.mxu0 0.0
    %4325 = vmatprep.subr.mxu0 0.0
    %4326 = vmatpush1.msra.mxu0 0.0
    %4327 = vmatprep.subr.mxu0 0.0
    %4328 = vmatpush1.msra.mxu0 0.0
    %4329 = vmatprep.subr.mxu0 0.0
    %4330 = vmatpush1.msra.mxu0 0.0
    %4331 = vmatprep.subr.mxu0 0.0
    %4332 = vmatpush1.msra.mxu0 0.0
    %4333 = vmatprep.subr.mxu0 0.0
    %4334 = vmatpush1.msra.mxu0 0.0
    %4335 = vmatprep.subr.mxu0 0.0
    %4336 = vmatpush1.msra.mxu0 %v2621
    %4337 = vmatprep.subr.mxu0 0.0
    %4338 = vmatpush2.msra.mxu0 0.0
    %4339 = vmatprep.subr.mxu0 0.0
    %4340 = vmatpush2.msra.mxu0 0.0
    %4341 = vmatprep.subr.mxu0 0.0
    %4342 = vmatpush2.msra.mxu0 0.0
    %4343 = vmatprep.subr.mxu0 0.0
    %4344 = vmatpush2.msra.mxu0 0.0
    %4345 = vmatprep.subr.mxu0 0.0
    %4346 = vmatpush2.msra.mxu0 0.0
    %4347 = vmatprep.subr.mxu0 0.0
    %4348 = vmatpush2.msra.mxu0 0.0
    %4349 = vmatprep.subr.mxu0 0.0
    %4350 = vmatpush2.msra.mxu0 0.0
    %4351 = vmatprep.subr.mxu0 0.0
    %4352 = vmatpush2.msra.mxu0 0.0
    %4353 = vmatprep.subr.mxu0 0.0
    %4354 = vmatpush2.msra.mxu0 0.0
    %4355 = vmatprep.subr.mxu0 0.0
    %4356 = vmatpush2.msra.mxu0 0.0
    %4357 = vmatprep.subr.mxu0 0.0
    %4358 = vmatpush2.msra.mxu0 0.0
    %4359 = vmatprep.subr.mxu0 0.0
    %4360 = vmatpush2.msra.mxu0 0.0
    %4361 = vmatprep.subr.mxu0 0.0
    %4362 = vmatpush2.msra.mxu0 0.0
    %4363 = vmatprep.subr.mxu0 0.0
    %4364 = vmatpush2.msra.mxu0 0.0
    %4365 = vmatprep.subr.mxu0 0.0
    %4366 = vmatpush2.msra.mxu0 0.0
    %4367 = vmatprep.subr.mxu0 0.0
    %4368 = vmatpush2.msra.mxu0 0.0
    %4369 = vmatprep.mubr.f32.mxu0 0.0
    %4370 = vmatmul.mubr.f32.gmra.mxu0 %v4282
    %v4371 = vpop.f32.mrf.mxu0
    %v4372 = vadd.f32 0.0, %v4371
    %v4373 = vpop.f32.mrf.mxu0
    %4374 = vmatprep.mubr.f32.mxu0 0.0
    %4375 = vmatmul.mubr.f32.gmra.mxu0 %v4285
    %v4376 = vpop.f32.mrf.mxu0
    %v4377 = vadd.f32 0.0, %v4376
    %v4378 = vpop.f32.mrf.mxu0
    %4379 = vmatprep.mubr.f32.mxu0 0.0
    %4380 = vmatmul.mubr.f32.gmra.mxu0 %v4288
    %v4381 = vpop.f32.mrf.mxu0
    %v4382 = vadd.f32 0.0, %v4381
    %v4383 = vpop.f32.mrf.mxu0
    %4384 = vmatprep.mubr.f32.mxu0 0.0
    %4385 = vmatmul.mubr.f32.gmra.mxu0 %v4291
    %v4386 = vpop.f32.mrf.mxu0
    %v4387 = vadd.f32 0.0, %v4386
    %v4388 = vpop.f32.mrf.mxu0
    %4389 = vmatprep.mubr.f32.mxu0 0.0
    %4390 = vmatmul.mubr.f32.gmra.mxu0 %v4294
    %v4391 = vpop.f32.mrf.mxu0
    %v4392 = vadd.f32 0.0, %v4391
    %v4393 = vpop.f32.mrf.mxu0
    %4394 = vmatprep.mubr.f32.mxu0 0.0
    %4395 = vmatmul.mubr.f32.gmra.mxu0 %v4297
    %v4396 = vpop.f32.mrf.mxu0
    %v4397 = vadd.f32 0.0, %v4396
    %v4398 = vpop.f32.mrf.mxu0
    %4399 = vmatprep.mubr.f32.mxu0 0.0
    %4400 = vmatmul.mubr.f32.gmra.mxu0 %v4300
    %v4401 = vpop.f32.mrf.mxu0
    %v4402 = vadd.f32 0.0, %v4401
    %v4403 = vpop.f32.mrf.mxu0
    %4404 = vmatprep.mubr.f32.mxu0 0.0
    %4405 = vmatmul.mubr.f32.gmra.mxu0 %v4303
    %v4406 = vpop.f32.mrf.mxu0
    %v4407 = vadd.f32 0.0, %v4406
    %v4408 = vpop.f32.mrf.mxu0
    %4409 = vdwg.mxu0
    %4418 = vrot.lane.b32.xlu0 %v4372, 16
    %v4419 = vpop.permute.xlu0 %4418
    %4420 = vrot.lane.b32.xlu0 %v4377, 16
    %v4421 = vpop.permute.xlu0 %4420
    %4422 = vrot.lane.b32.xlu0 %v4382, 16
    %v4423 = vpop.permute.xlu0 %4422
    %4424 = vrot.lane.b32.xlu0 %v4387, 16
    %v4425 = vpop.permute.xlu0 %4424
    %4426 = vrot.lane.b32.xlu0 %v4392, 16
    %v4427 = vpop.permute.xlu0 %4426
    %4428 = vrot.lane.b32.xlu0 %v4397, 16
    %v4429 = vpop.permute.xlu0 %4428
    %4430 = vrot.lane.b32.xlu0 %v4402, 16
    %v4431 = vpop.permute.xlu0 %4430
    %4432 = vrot.lane.b32.xlu0 %v4407, 16
    %v4433 = vpop.permute.xlu0 %4432
    %v4442 = vadd.f32 %v4273, %v4419
    %v4443 = vadd.f32 %v4274, %v4421
    %v4444 = vadd.f32 %v4275, %v4423
    %v4445 = vadd.f32 %v4276, %v4425
    %v4446 = vadd.f32 %v4277, %v4427
    %v4447 = vadd.f32 %v4278, %v4429
    %v4448 = vadd.f32 %v4279, %v4431
    %v4449 = vadd.f32 %v4280, %v4433
    %v4450 = vld [vmem:[#allocation2 + $0x100] sm:$0xff]
    %v4451 = vld [vmem:[#allocation2 + $0x108] sm:$0xff]
    %v4452 = vld [vmem:[#allocation2 + $0x110] sm:$0x1]
    %v4453 = vlaneseq
    %v4454 = vshrl.u32 %v4453, 7
    %v4455 = vsub.s32 0, %v4454
    %v4456 = vrot.slane %v4452, %v4455
    %4465 = vrot.lane.b32.xlu0 %v4442, 112
    %v4466 = vpop.permute.xlu0 %4465
    %4467 = vrot.lane.b32.xlu0 %v4443, 112
    %v4468 = vpop.permute.xlu0 %4467
    %4469 = vrot.lane.b32.xlu0 %v4444, 112
    %v4470 = vpop.permute.xlu0 %4469
    %4471 = vrot.lane.b32.xlu0 %v4445, 112
    %v4472 = vpop.permute.xlu0 %4471
    %4473 = vrot.lane.b32.xlu0 %v4446, 112
    %v4474 = vpop.permute.xlu0 %4473
    %4475 = vrot.lane.b32.xlu0 %v4447, 112
    %v4476 = vpop.permute.xlu0 %4475
    %4477 = vrot.lane.b32.xlu0 %v4448, 112
    %v4478 = vpop.permute.xlu0 %4477
    %4479 = vrot.lane.b32.xlu0 %v4449, 112
    %v4480 = vpop.permute.xlu0 %4479
    %v4481 = vsel %vm2195, %v4466, 0
    %v4483 = vsel %vm2195, %v4468, 0
    %v4485 = vsel %vm2195, %v4470, 0
    %v4487 = vsel %vm2195, %v4472, 0
    %v4489 = vsel %vm2195, %v4474, 0
    %v4491 = vsel %vm2195, %v4476, 0
    %v4493 = vsel %vm2195, %v4478, 0
    %v4495 = vsel %vm2195, %v4480, 0
    %4497 = vmatprep.subr.mxu0 0.0
    %4498 = vmatpush1.msra.mxu0 0.0
    %4499 = vmatprep.subr.mxu0 0.0
    %4500 = vmatpush1.msra.mxu0 0.0
    %4501 = vmatprep.subr.mxu0 0.0
    %4502 = vmatpush1.msra.mxu0 0.0
    %4503 = vmatprep.subr.mxu0 0.0
    %4504 = vmatpush1.msra.mxu0 0.0
    %4505 = vmatprep.subr.mxu0 0.0
    %4506 = vmatpush1.msra.mxu0 0.0
    %4507 = vmatprep.subr.mxu0 0.0
    %4508 = vmatpush1.msra.mxu0 0.0
    %4509 = vmatprep.subr.mxu0 0.0
    %4510 = vmatpush1.msra.mxu0 0.0
    %4511 = vmatprep.subr.mxu0 0.0
    %4512 = vmatpush1.msra.mxu0 0.0
    %4513 = vmatprep.subr.mxu0 0.0
    %4514 = vmatpush1.msra.mxu0 0.0
    %4515 = vmatprep.subr.mxu0 0.0
    %4516 = vmatpush1.msra.mxu0 0.0
    %4517 = vmatprep.subr.mxu0 0.0
    %4518 = vmatpush1.msra.mxu0 0.0
    %4519 = vmatprep.subr.mxu0 0.0
    %4520 = vmatpush1.msra.mxu0 0.0
    %4521 = vmatprep.subr.mxu0 0.0
    %4522 = vmatpush1.msra.mxu0 0.0
    %4523 = vmatprep.subr.mxu0 0.0
    %4524 = vmatpush1.msra.mxu0 0.0
    %4525 = vmatprep.subr.mxu0 0.0
    %4526 = vmatpush1.msra.mxu0 %v4451
    %4527 = vmatprep.subr.mxu0 0.0
    %4528 = vmatpush1.msra.mxu0 %v4450
    %4529 = vmatprep.subr.mxu0 0.0
    %4530 = vmatpush2.msra.mxu0 0.0
    %4531 = vmatprep.subr.mxu0 0.0
    %4532 = vmatpush2.msra.mxu0 0.0
    %4533 = vmatprep.subr.mxu0 0.0
    %4534 = vmatpush2.msra.mxu0 0.0
    %4535 = vmatprep.subr.mxu0 0.0
    %4536 = vmatpush2.msra.mxu0 0.0
    %4537 = vmatprep.subr.mxu0 0.0
    %4538 = vmatpush2.msra.mxu0 0.0
    %4539 = vmatprep.subr.mxu0 0.0
    %4540 = vmatpush2.msra.mxu0 0.0
    %4541 = vmatprep.subr.mxu0 0.0
    %4542 = vmatpush2.msra.mxu0 0.0
    %4543 = vmatprep.subr.mxu0 0.0
    %4544 = vmatpush2.msra.mxu0 0.0
    %4545 = vmatprep.subr.mxu0 0.0
    %4546 = vmatpush2.msra.mxu0 0.0
    %4547 = vmatprep.subr.mxu0 0.0
    %4548 = vmatpush2.msra.mxu0 0.0
    %4549 = vmatprep.subr.mxu0 0.0
    %4550 = vmatpush2.msra.mxu0 0.0
    %4551 = vmatprep.subr.mxu0 0.0
    %4552 = vmatpush2.msra.mxu0 0.0
    %4553 = vmatprep.subr.mxu0 0.0
    %4554 = vmatpush2.msra.mxu0 0.0
    %4555 = vmatprep.subr.mxu0 0.0
    %4556 = vmatpush2.msra.mxu0 0.0
    %4557 = vmatprep.subr.mxu0 0.0
    %4558 = vmatpush2.msra.mxu0 0.0
    %4559 = vmatprep.subr.mxu0 0.0
    %4560 = vmatpush2.msra.mxu0 0.0
    %4561 = vmatprep.mubr.f32.mxu0 0.0
    %4562 = vmatmul.mubr.f32.gmra.mxu0 %v4481
    %v4563 = vpop.f32.mrf.mxu0
    %v4564 = vadd.f32 %v4456, %v4563
    %v4565 = vpop.f32.mrf.mxu0
    %4566 = vmatprep.mubr.f32.mxu0 0.0
    %4567 = vmatmul.mubr.f32.gmra.mxu0 %v4483
    %v4568 = vpop.f32.mrf.mxu0
    %v4569 = vadd.f32 %v4456, %v4568
    %v4570 = vpop.f32.mrf.mxu0
    %4571 = vmatprep.mubr.f32.mxu0 0.0
    %4572 = vmatmul.mubr.f32.gmra.mxu0 %v4485
    %v4573 = vpop.f32.mrf.mxu0
    %v4574 = vadd.f32 %v4456, %v4573
    %v4575 = vpop.f32.mrf.mxu0
    %4576 = vmatprep.mubr.f32.mxu0 0.0
    %4577 = vmatmul.mubr.f32.gmra.mxu0 %v4487
    %v4578 = vpop.f32.mrf.mxu0
    %v4579 = vadd.f32 %v4456, %v4578
    %v4580 = vpop.f32.mrf.mxu0
    %4581 = vmatprep.mubr.f32.mxu0 0.0
    %4582 = vmatmul.mubr.f32.gmra.mxu0 %v4489
    %v4583 = vpop.f32.mrf.mxu0
    %v4584 = vadd.f32 %v4456, %v4583
    %v4585 = vpop.f32.mrf.mxu0
    %4586 = vmatprep.mubr.f32.mxu0 0.0
    %4587 = vmatmul.mubr.f32.gmra.mxu0 %v4491
    %v4588 = vpop.f32.mrf.mxu0
    %v4589 = vadd.f32 %v4456, %v4588
    %v4590 = vpop.f32.mrf.mxu0
    %4591 = vmatprep.mubr.f32.mxu0 0.0
    %4592 = vmatmul.mubr.f32.gmra.mxu0 %v4493
    %v4593 = vpop.f32.mrf.mxu0
    %v4594 = vadd.f32 %v4456, %v4593
    %v4595 = vpop.f32.mrf.mxu0
    %4596 = vmatprep.mubr.f32.mxu0 0.0
    %4597 = vmatmul.mubr.f32.gmra.mxu0 %v4495
    %v4598 = vpop.f32.mrf.mxu0
    %v4599 = vadd.f32 %v4456, %v4598
    %v4600 = vpop.f32.mrf.mxu0
    %4601 = vdwg.mxu0
    %v4602 = vmax.f32 %v4564, 0.0
    %v4603 = vmax.f32 %v4569, 0.0
    %v4604 = vmax.f32 %v4574, 0.0
    %v4605 = vmax.f32 %v4579, 0.0
    %v4606 = vmax.f32 %v4584, 0.0
    %v4607 = vmax.f32 %v4589, 0.0
    %v4608 = vmax.f32 %v4594, 0.0
    %v4609 = vmax.f32 %v4599, 0.0
    %v4610 = vld [vmem:[#allocation2 + $0x118] sm:$0xff]
    %v4611 = vld [vmem:[#allocation2 + $0x120] sm:$0xff]
    %v4612 = vld [vmem:[#allocation2 + $0x128] sm:$0xff]
    %v4613 = vld [vmem:[#allocation2 + $0x130] sm:$0xff]
    %v4614 = vld [vmem:[#allocation2 + $0x138] sm:$0x1]
    %v4615 = vlaneseq
    %v4616 = vshrl.u32 %v4615, 7
    %v4617 = vsub.s32 0, %v4616
    %v4618 = vrot.slane %v4614, %v4617
    %v4620 = vsel %vm186, %v4602, 0
    %v4623 = vsel %vm186, %v4603, 0
    %v4626 = vsel %vm186, %v4604, 0
    %v4629 = vsel %vm186, %v4605, 0
    %v4632 = vsel %vm186, %v4606, 0
    %v4635 = vsel %vm186, %v4607, 0
    %v4638 = vsel %vm186, %v4608, 0
    %v4641 = vsel %vm186, %v4609, 0
    %4643 = vmatprep.subr.mxu0 0.0
    %4644 = vmatpush1.msra.mxu0 0.0
    %4645 = vmatprep.subr.mxu0 0.0
    %4646 = vmatpush1.msra.mxu0 0.0
    %4647 = vmatprep.subr.mxu0 0.0
    %4648 = vmatpush1.msra.mxu0 0.0
    %4649 = vmatprep.subr.mxu0 0.0
    %4650 = vmatpush1.msra.mxu0 0.0
    %4651 = vmatprep.subr.mxu0 0.0
    %4652 = vmatpush1.msra.mxu0 0.0
    %4653 = vmatprep.subr.mxu0 0.0
    %4654 = vmatpush1.msra.mxu0 0.0
    %4655 = vmatprep.subr.mxu0 0.0
    %4656 = vmatpush1.msra.mxu0 0.0
    %4657 = vmatprep.subr.mxu0 0.0
    %4658 = vmatpush1.msra.mxu0 0.0
    %4659 = vmatprep.subr.mxu0 0.0
    %4660 = vmatpush1.msra.mxu0 0.0
    %4661 = vmatprep.subr.mxu0 0.0
    %4662 = vmatpush1.msra.mxu0 0.0
    %4663 = vmatprep.subr.mxu0 0.0
    %4664 = vmatpush1.msra.mxu0 0.0
    %4665 = vmatprep.subr.mxu0 0.0
    %4666 = vmatpush1.msra.mxu0 0.0
    %4667 = vmatprep.subr.mxu0 0.0
    %4668 = vmatpush1.msra.mxu0 %v4613
    %4669 = vmatprep.subr.mxu0 0.0
    %4670 = vmatpush1.msra.mxu0 %v4612
    %4671 = vmatprep.subr.mxu0 0.0
    %4672 = vmatpush1.msra.mxu0 %v4611
    %4673 = vmatprep.subr.mxu0 0.0
    %4674 = vmatpush1.msra.mxu0 %v4610
    %4675 = vmatprep.subr.mxu0 0.0
    %4676 = vmatpush2.msra.mxu0 0.0
    %4677 = vmatprep.subr.mxu0 0.0
    %4678 = vmatpush2.msra.mxu0 0.0
    %4679 = vmatprep.subr.mxu0 0.0
    %4680 = vmatpush2.msra.mxu0 0.0
    %4681 = vmatprep.subr.mxu0 0.0
    %4682 = vmatpush2.msra.mxu0 0.0
    %4683 = vmatprep.subr.mxu0 0.0
    %4684 = vmatpush2.msra.mxu0 0.0
    %4685 = vmatprep.subr.mxu0 0.0
    %4686 = vmatpush2.msra.mxu0 0.0
    %4687 = vmatprep.subr.mxu0 0.0
    %4688 = vmatpush2.msra.mxu0 0.0
    %4689 = vmatprep.subr.mxu0 0.0
    %4690 = vmatpush2.msra.mxu0 0.0
    %4691 = vmatprep.subr.mxu0 0.0
    %4692 = vmatpush2.msra.mxu0 0.0
    %4693 = vmatprep.subr.mxu0 0.0
    %4694 = vmatpush2.msra.mxu0 0.0
    %4695 = vmatprep.subr.mxu0 0.0
    %4696 = vmatpush2.msra.mxu0 0.0
    %4697 = vmatprep.subr.mxu0 0.0
    %4698 = vmatpush2.msra.mxu0 0.0
    %4699 = vmatprep.subr.mxu0 0.0
    %4700 = vmatpush2.msra.mxu0 0.0
    %4701 = vmatprep.subr.mxu0 0.0
    %4702 = vmatpush2.msra.mxu0 0.0
    %4703 = vmatprep.subr.mxu0 0.0
    %4704 = vmatpush2.msra.mxu0 0.0
    %4705 = vmatprep.subr.mxu0 0.0
    %4706 = vmatpush2.msra.mxu0 0.0
    %4707 = vmatprep.mubr.f32.mxu0 0.0
    %4708 = vmatmul.mubr.f32.gmra.mxu0 %v4620
    %v4709 = vpop.f32.mrf.mxu0
    %v4710 = vadd.f32 %v4618, %v4709
    %v4711 = vpop.f32.mrf.mxu0
    %4712 = vmatprep.mubr.f32.mxu0 0.0
    %4713 = vmatmul.mubr.f32.gmra.mxu0 %v4623
    %v4714 = vpop.f32.mrf.mxu0
    %v4715 = vadd.f32 %v4618, %v4714
    %v4716 = vpop.f32.mrf.mxu0
    %4717 = vmatprep.mubr.f32.mxu0 0.0
    %4718 = vmatmul.mubr.f32.gmra.mxu0 %v4626
    %v4719 = vpop.f32.mrf.mxu0
    %v4720 = vadd.f32 %v4618, %v4719
    %v4721 = vpop.f32.mrf.mxu0
    %4722 = vmatprep.mubr.f32.mxu0 0.0
    %4723 = vmatmul.mubr.f32.gmra.mxu0 %v4629
    %v4724 = vpop.f32.mrf.mxu0
    %v4725 = vadd.f32 %v4618, %v4724
    %v4726 = vpop.f32.mrf.mxu0
    %4727 = vmatprep.mubr.f32.mxu0 0.0
    %4728 = vmatmul.mubr.f32.gmra.mxu0 %v4632
    %v4729 = vpop.f32.mrf.mxu0
    %v4730 = vadd.f32 %v4618, %v4729
    %v4731 = vpop.f32.mrf.mxu0
    %4732 = vmatprep.mubr.f32.mxu0 0.0
    %4733 = vmatmul.mubr.f32.gmra.mxu0 %v4635
    %v4734 = vpop.f32.mrf.mxu0
    %v4735 = vadd.f32 %v4618, %v4734
    %v4736 = vpop.f32.mrf.mxu0
    %4737 = vmatprep.mubr.f32.mxu0 0.0
    %4738 = vmatmul.mubr.f32.gmra.mxu0 %v4638
    %v4739 = vpop.f32.mrf.mxu0
    %v4740 = vadd.f32 %v4618, %v4739
    %v4741 = vpop.f32.mrf.mxu0
    %4742 = vmatprep.mubr.f32.mxu0 0.0
    %4743 = vmatmul.mubr.f32.gmra.mxu0 %v4641
    %v4744 = vpop.f32.mrf.mxu0
    %v4745 = vadd.f32 %v4618, %v4744
    %v4746 = vpop.f32.mrf.mxu0
    %4747 = vdwg.mxu0
    %v4748 = vmax.f32 %v4710, 0.0
    %v4749 = vmax.f32 %v4715, 0.0
    %v4750 = vmax.f32 %v4720, 0.0
    %v4751 = vmax.f32 %v4725, 0.0
    %v4752 = vmax.f32 %v4730, 0.0
    %v4753 = vmax.f32 %v4735, 0.0
    %v4754 = vmax.f32 %v4740, 0.0
    %v4755 = vmax.f32 %v4745, 0.0
    %v4756 = vld [vmem:[#allocation2 + $0x140] sm:$0xff]
    %v4757 = vld [vmem:[#allocation2 + $0x148] sm:$0xff]
    %v4758 = vld [vmem:[#allocation2 + $0x150] sm:$0xff]
    %v4759 = vld [vmem:[#allocation2 + $0x158] sm:$0xff]
    %v4760 = vld [vmem:[#allocation2 + $0x160] sm:$0x1]
    %v4761 = vlaneseq
    %v4762 = vshrl.u32 %v4761, 7
    %v4763 = vsub.s32 0, %v4762
    %v4764 = vrot.slane %v4760, %v4763
    %v4766 = vsel %vm186, %v4748, 0
    %v4769 = vsel %vm186, %v4749, 0
    %v4772 = vsel %vm186, %v4750, 0
    %v4775 = vsel %vm186, %v4751, 0
    %v4778 = vsel %vm186, %v4752, 0
    %v4781 = vsel %vm186, %v4753, 0
    %v4784 = vsel %vm186, %v4754, 0
    %v4787 = vsel %vm186, %v4755, 0
    %4789 = vmatprep.subr.mxu0 0.0
    %4790 = vmatpush1.msra.mxu0 0.0
    %4791 = vmatprep.subr.mxu0 0.0
    %4792 = vmatpush1.msra.mxu0 0.0
    %4793 = vmatprep.subr.mxu0 0.0
    %4794 = vmatpush1.msra.mxu0 0.0
    %4795 = vmatprep.subr.mxu0 0.0
    %4796 = vmatpush1.msra.mxu0 0.0
    %4797 = vmatprep.subr.mxu0 0.0
    %4798 = vmatpush1.msra.mxu0 0.0
    %4799 = vmatprep.subr.mxu0 0.0
    %4800 = vmatpush1.msra.mxu0 0.0
    %4801 = vmatprep.subr.mxu0 0.0
    %4802 = vmatpush1.msra.mxu0 0.0
    %4803 = vmatprep.subr.mxu0 0.0
    %4804 = vmatpush1.msra.mxu0 0.0
    %4805 = vmatprep.subr.mxu0 0.0
    %4806 = vmatpush1.msra.mxu0 0.0
    %4807 = vmatprep.subr.mxu0 0.0
    %4808 = vmatpush1.msra.mxu0 0.0
    %4809 = vmatprep.subr.mxu0 0.0
    %4810 = vmatpush1.msra.mxu0 0.0
    %4811 = vmatprep.subr.mxu0 0.0
    %4812 = vmatpush1.msra.mxu0 0.0
    %4813 = vmatprep.subr.mxu0 0.0
    %4814 = vmatpush1.msra.mxu0 %v4759
    %4815 = vmatprep.subr.mxu0 0.0
    %4816 = vmatpush1.msra.mxu0 %v4758
    %4817 = vmatprep.subr.mxu0 0.0
    %4818 = vmatpush1.msra.mxu0 %v4757
    %4819 = vmatprep.subr.mxu0 0.0
    %4820 = vmatpush1.msra.mxu0 %v4756
    %4821 = vmatprep.subr.mxu0 0.0
    %4822 = vmatpush2.msra.mxu0 0.0
    %4823 = vmatprep.subr.mxu0 0.0
    %4824 = vmatpush2.msra.mxu0 0.0
    %4825 = vmatprep.subr.mxu0 0.0
    %4826 = vmatpush2.msra.mxu0 0.0
    %4827 = vmatprep.subr.mxu0 0.0
    %4828 = vmatpush2.msra.mxu0 0.0
    %4829 = vmatprep.subr.mxu0 0.0
    %4830 = vmatpush2.msra.mxu0 0.0
    %4831 = vmatprep.subr.mxu0 0.0
    %4832 = vmatpush2.msra.mxu0 0.0
    %4833 = vmatprep.subr.mxu0 0.0
    %4834 = vmatpush2.msra.mxu0 0.0
    %4835 = vmatprep.subr.mxu0 0.0
    %4836 = vmatpush2.msra.mxu0 0.0
    %4837 = vmatprep.subr.mxu0 0.0
    %4838 = vmatpush2.msra.mxu0 0.0
    %4839 = vmatprep.subr.mxu0 0.0
    %4840 = vmatpush2.msra.mxu0 0.0
    %4841 = vmatprep.subr.mxu0 0.0
    %4842 = vmatpush2.msra.mxu0 0.0
    %4843 = vmatprep.subr.mxu0 0.0
    %4844 = vmatpush2.msra.mxu0 0.0
    %4845 = vmatprep.subr.mxu0 0.0
    %4846 = vmatpush2.msra.mxu0 0.0
    %4847 = vmatprep.subr.mxu0 0.0
    %4848 = vmatpush2.msra.mxu0 0.0
    %4849 = vmatprep.subr.mxu0 0.0
    %4850 = vmatpush2.msra.mxu0 0.0
    %4851 = vmatprep.subr.mxu0 0.0
    %4852 = vmatpush2.msra.mxu0 0.0
    %4853 = vmatprep.mubr.f32.mxu0 0.0
    %4854 = vmatmul.mubr.f32.gmra.mxu0 %v4766
    %v4855 = vpop.f32.mrf.mxu0
    %v4856 = vadd.f32 %v4764, %v4855
    %v4857 = vpop.f32.mrf.mxu0
    %4858 = vmatprep.mubr.f32.mxu0 0.0
    %4859 = vmatmul.mubr.f32.gmra.mxu0 %v4769
    %v4860 = vpop.f32.mrf.mxu0
    %v4861 = vadd.f32 %v4764, %v4860
    %v4862 = vpop.f32.mrf.mxu0
    %4863 = vmatprep.mubr.f32.mxu0 0.0
    %4864 = vmatmul.mubr.f32.gmra.mxu0 %v4772
    %v4865 = vpop.f32.mrf.mxu0
    %v4866 = vadd.f32 %v4764, %v4865
    %v4867 = vpop.f32.mrf.mxu0
    %4868 = vmatprep.mubr.f32.mxu0 0.0
    %4869 = vmatmul.mubr.f32.gmra.mxu0 %v4775
    %v4870 = vpop.f32.mrf.mxu0
    %v4871 = vadd.f32 %v4764, %v4870
    %v4872 = vpop.f32.mrf.mxu0
    %4873 = vmatprep.mubr.f32.mxu0 0.0
    %4874 = vmatmul.mubr.f32.gmra.mxu0 %v4778
    %v4875 = vpop.f32.mrf.mxu0
    %v4876 = vadd.f32 %v4764, %v4875
    %v4877 = vpop.f32.mrf.mxu0
    %4878 = vmatprep.mubr.f32.mxu0 0.0
    %4879 = vmatmul.mubr.f32.gmra.mxu0 %v4781
    %v4880 = vpop.f32.mrf.mxu0
    %v4881 = vadd.f32 %v4764, %v4880
    %v4882 = vpop.f32.mrf.mxu0
    %4883 = vmatprep.mubr.f32.mxu0 0.0
    %4884 = vmatmul.mubr.f32.gmra.mxu0 %v4784
    %v4885 = vpop.f32.mrf.mxu0
    %v4886 = vadd.f32 %v4764, %v4885
    %v4887 = vpop.f32.mrf.mxu0
    %4888 = vmatprep.mubr.f32.mxu0 0.0
    %4889 = vmatmul.mubr.f32.gmra.mxu0 %v4787
    %v4890 = vpop.f32.mrf.mxu0
    %v4891 = vadd.f32 %v4764, %v4890
    %v4892 = vpop.f32.mrf.mxu0
    %4893 = vdwg.mxu0
    %v4894 = vmax.f32 %v4856, 0.0
    %v4895 = vmax.f32 %v4861, 0.0
    %v4896 = vmax.f32 %v4866, 0.0
    %v4897 = vmax.f32 %v4871, 0.0
    %v4898 = vmax.f32 %v4876, 0.0
    %v4899 = vmax.f32 %v4881, 0.0
    %v4900 = vmax.f32 %v4886, 0.0
    %v4901 = vmax.f32 %v4891, 0.0
    %v4902 = vld [vmem:[#allocation2 + $0x168] sm:$0xff]
    %v4903 = vld [vmem:[#allocation2 + $0x170] sm:$0xff]
    %v4904 = vld [vmem:[#allocation2 + $0x178] sm:$0x1]
    %v4905 = vld [vmem:[#allocation2 + $0x180] sm:$0xff]
    %v4906 = vld [vmem:[#allocation2 + $0x188] sm:$0xff]
    %v4907 = vlaneseq
    %v4908 = vshrl.u32 %v4907, 7
    %v4909 = vsub.s32 0, %v4908
    %v4910 = vrot.slane %v4904, %v4909
    %v4912 = vsel %vm2195, %v4894, 0
    %v4915 = vsel %vm2195, %v4895, 0
    %v4918 = vsel %vm2195, %v4896, 0
    %v4921 = vsel %vm2195, %v4897, 0
    %v4924 = vsel %vm2195, %v4898, 0
    %v4927 = vsel %vm2195, %v4899, 0
    %v4930 = vsel %vm2195, %v4900, 0
    %v4933 = vsel %vm2195, %v4901, 0
    %4935 = vmatprep.subr.mxu0 0.0
    %4936 = vmatpush1.msra.mxu0 0.0
    %4937 = vmatprep.subr.mxu0 0.0
    %4938 = vmatpush1.msra.mxu0 0.0
    %4939 = vmatprep.subr.mxu0 0.0
    %4940 = vmatpush1.msra.mxu0 0.0
    %4941 = vmatprep.subr.mxu0 0.0
    %4942 = vmatpush1.msra.mxu0 0.0
    %4943 = vmatprep.subr.mxu0 0.0
    %4944 = vmatpush1.msra.mxu0 0.0
    %4945 = vmatprep.subr.mxu0 0.0
    %4946 = vmatpush1.msra.mxu0 0.0
    %4947 = vmatprep.subr.mxu0 0.0
    %4948 = vmatpush1.msra.mxu0 0.0
    %4949 = vmatprep.subr.mxu0 0.0
    %4950 = vmatpush1.msra.mxu0 0.0
    %4951 = vmatprep.subr.mxu0 0.0
    %4952 = vmatpush1.msra.mxu0 0.0
    %4953 = vmatprep.subr.mxu0 0.0
    %4954 = vmatpush1.msra.mxu0 0.0
    %4955 = vmatprep.subr.mxu0 0.0
    %4956 = vmatpush1.msra.mxu0 0.0
    %4957 = vmatprep.subr.mxu0 0.0
    %4958 = vmatpush1.msra.mxu0 0.0
    %4959 = vmatprep.subr.mxu0 0.0
    %4960 = vmatpush1.msra.mxu0 0.0
    %4961 = vmatprep.subr.mxu0 0.0
    %4962 = vmatpush1.msra.mxu0 0.0
    %4963 = vmatprep.subr.mxu0 0.0
    %4964 = vmatpush1.msra.mxu0 %v4903
    %4965 = vmatprep.subr.mxu0 0.0
    %4966 = vmatpush1.msra.mxu0 %v4902
    %4967 = vmatprep.subr.mxu0 0.0
    %4968 = vmatpush2.msra.mxu0 0.0
    %4969 = vmatprep.subr.mxu0 0.0
    %4970 = vmatpush2.msra.mxu0 0.0
    %4971 = vmatprep.subr.mxu0 0.0
    %4972 = vmatpush2.msra.mxu0 0.0
    %4973 = vmatprep.subr.mxu0 0.0
    %4974 = vmatpush2.msra.mxu0 0.0
    %4975 = vmatprep.subr.mxu0 0.0
    %4976 = vmatpush2.msra.mxu0 0.0
    %4977 = vmatprep.subr.mxu0 0.0
    %4978 = vmatpush2.msra.mxu0 0.0
    %4979 = vmatprep.subr.mxu0 0.0
    %4980 = vmatpush2.msra.mxu0 0.0
    %4981 = vmatprep.subr.mxu0 0.0
    %4982 = vmatpush2.msra.mxu0 0.0
    %4983 = vmatprep.subr.mxu0 0.0
    %4984 = vmatpush2.msra.mxu0 0.0
    %4985 = vmatprep.subr.mxu0 0.0
    %4986 = vmatpush2.msra.mxu0 0.0
    %4987 = vmatprep.subr.mxu0 0.0
    %4988 = vmatpush2.msra.mxu0 0.0
    %4989 = vmatprep.subr.mxu0 0.0
    %4990 = vmatpush2.msra.mxu0 0.0
    %4991 = vmatprep.subr.mxu0 0.0
    %4992 = vmatpush2.msra.mxu0 0.0
    %4993 = vmatprep.subr.mxu0 0.0
    %4994 = vmatpush2.msra.mxu0 0.0
    %4995 = vmatprep.subr.mxu0 0.0
    %4996 = vmatpush2.msra.mxu0 0.0
    %4997 = vmatprep.subr.mxu0 0.0
    %4998 = vmatpush2.msra.mxu0 0.0
    %4999 = vmatprep.mubr.f32.mxu0 0.0
    %5000 = vmatmul.mubr.f32.gmra.mxu0 %v4912
    %v5001 = vpop.f32.mrf.mxu0
    %v5002 = vadd.f32 %v4910, %v5001
    %v5003 = vpop.f32.mrf.mxu0
    %5004 = vmatprep.mubr.f32.mxu0 0.0
    %5005 = vmatmul.mubr.f32.gmra.mxu0 %v4915
    %v5006 = vpop.f32.mrf.mxu0
    %v5007 = vadd.f32 %v4910, %v5006
    %v5008 = vpop.f32.mrf.mxu0
    %5009 = vmatprep.mubr.f32.mxu0 0.0
    %5010 = vmatmul.mubr.f32.gmra.mxu0 %v4918
    %v5011 = vpop.f32.mrf.mxu0
    %v5012 = vadd.f32 %v4910, %v5011
    %v5013 = vpop.f32.mrf.mxu0
    %5014 = vmatprep.mubr.f32.mxu0 0.0
    %5015 = vmatmul.mubr.f32.gmra.mxu0 %v4921
    %v5016 = vpop.f32.mrf.mxu0
    %v5017 = vadd.f32 %v4910, %v5016
    %v5018 = vpop.f32.mrf.mxu0
    %5019 = vmatprep.mubr.f32.mxu0 0.0
    %5020 = vmatmul.mubr.f32.gmra.mxu0 %v4924
    %v5021 = vpop.f32.mrf.mxu0
    %v5022 = vadd.f32 %v4910, %v5021
    %v5023 = vpop.f32.mrf.mxu0
    %5024 = vmatprep.mubr.f32.mxu0 0.0
    %5025 = vmatmul.mubr.f32.gmra.mxu0 %v4927
    %v5026 = vpop.f32.mrf.mxu0
    %v5027 = vadd.f32 %v4910, %v5026
    %v5028 = vpop.f32.mrf.mxu0
    %5029 = vmatprep.mubr.f32.mxu0 0.0
    %5030 = vmatmul.mubr.f32.gmra.mxu0 %v4930
    %v5031 = vpop.f32.mrf.mxu0
    %v5032 = vadd.f32 %v4910, %v5031
    %v5033 = vpop.f32.mrf.mxu0
    %5034 = vmatprep.mubr.f32.mxu0 0.0
    %5035 = vmatmul.mubr.f32.gmra.mxu0 %v4933
    %v5036 = vpop.f32.mrf.mxu0
    %v5037 = vadd.f32 %v4910, %v5036
    %v5038 = vpop.f32.mrf.mxu0
    %5039 = vdwg.mxu0
    %v5040 = vmul.f32 %v5002, %v5002
    %v5041 = vmul.f32 %v5007, %v5007
    %v5042 = vmul.f32 %v5012, %v5012
    %v5043 = vmul.f32 %v5017, %v5017
    %v5044 = vmul.f32 %v5022, %v5022
    %v5045 = vmul.f32 %v5027, %v5027
    %v5046 = vmul.f32 %v5032, %v5032
    %v5047 = vmul.f32 %v5037, %v5037
    %v5048 = vsel %vm39, %v5040, 0.0
    %5049 = vadd.xlane.f32.xlu0 %v5048
    %v5050 = vpop.xlane.xlu0 %5049
    %v5051 = vsel %vm39, %v5041, 0.0
    %5052 = vadd.xlane.f32.xlu0 %v5051
    %v5053 = vpop.xlane.xlu0 %5052
    %v5054 = vsel %vm39, %v5042, 0.0
    %5055 = vadd.xlane.f32.xlu0 %v5054
    %v5056 = vpop.xlane.xlu0 %5055
    %v5057 = vsel %vm39, %v5043, 0.0
    %5058 = vadd.xlane.f32.xlu0 %v5057
    %v5059 = vpop.xlane.xlu0 %5058
    %v5060 = vsel %vm39, %v5044, 0.0
    %5061 = vadd.xlane.f32.xlu0 %v5060
    %v5062 = vpop.xlane.xlu0 %5061
    %v5063 = vsel %vm39, %v5045, 0.0
    %5064 = vadd.xlane.f32.xlu0 %v5063
    %v5065 = vpop.xlane.xlu0 %5064
    %v5066 = vsel %vm39, %v5046, 0.0
    %5067 = vadd.xlane.f32.xlu0 %v5066
    %v5068 = vpop.xlane.xlu0 %5067
    %v5069 = vsel %vm39, %v5047, 0.0
    %5070 = vadd.xlane.f32.xlu0 %v5069
    %v5071 = vpop.xlane.xlu0 %5070
    %v5072 = vmul.f32 %v5002, -2.0
    %v5073 = vmul.f32 %v5007, -2.0
    %v5074 = vmul.f32 %v5012, -2.0
    %v5075 = vmul.f32 %v5017, -2.0
    %v5076 = vmul.f32 %v5022, -2.0
    %v5077 = vmul.f32 %v5027, -2.0
    %v5078 = vmul.f32 %v5032, -2.0
    %v5079 = vmul.f32 %v5037, -2.0
    %v5080 = vsel %vm39, %v5072, 1.0
    %v5081 = vsel %vm39, %v5073, 1.0
    %v5082 = vsel %vm39, %v5074, 1.0
    %v5083 = vsel %vm39, %v5075, 1.0
    %v5084 = vsel %vm39, %v5076, 1.0
    %v5085 = vsel %vm39, %v5077, 1.0
    %v5086 = vsel %vm39, %v5078, 1.0
    %v5087 = vsel %vm39, %v5079, 1.0
    %v5088 = vsel %vm512, %v5080, %v5050
    %v5089 = vsel %vm512, %v5081, %v5053
    %v5090 = vsel %vm512, %v5082, %v5056
    %v5091 = vsel %vm512, %v5083, %v5059
    %v5092 = vsel %vm512, %v5084, %v5062
    %v5093 = vsel %vm512, %v5085, %v5065
    %v5094 = vsel %vm512, %v5086, %v5068
    %v5095 = vsel %vm512, %v5087, %v5071
    %v5096 = vsel %vm39, %v5002, %v5050
    %v5097 = vsel %vm39, %v5007, %v5053
    %v5098 = vsel %vm39, %v5012, %v5056
    %v5099 = vsel %vm39, %v5017, %v5059
    %v5100 = vsel %vm39, %v5022, %v5062
    %v5101 = vsel %vm39, %v5027, %v5065
    %v5102 = vsel %vm39, %v5032, %v5068
    %v5103 = vsel %vm39, %v5037, %v5071
    %v5104 = vsel %vm512, %v5096, 1.0
    %v5105 = vsel %vm512, %v5097, 1.0
    %v5106 = vsel %vm512, %v5098, 1.0
    %v5107 = vsel %vm512, %v5099, 1.0
    %v5108 = vsel %vm512, %v5100, 1.0
    %v5109 = vsel %vm512, %v5101, 1.0
    %v5110 = vsel %vm512, %v5102, 1.0
    %v5111 = vsel %vm512, %v5103, 1.0
    %v5113 = vsel %vm537, %v5088, 0
    %v5116 = vsel %vm537, %v5089, 0
    %v5119 = vsel %vm537, %v5090, 0
    %v5122 = vsel %vm537, %v5091, 0
    %v5125 = vsel %vm537, %v5092, 0
    %v5128 = vsel %vm537, %v5093, 0
    %v5131 = vsel %vm537, %v5094, 0
    %v5134 = vsel %vm537, %v5095, 0
    %v5137 = vsel %vm537, %v5104, 0
    %v5140 = vsel %vm537, %v5105, 0
    %v5143 = vsel %vm537, %v5106, 0
    %v5146 = vsel %vm537, %v5107, 0
    %v5149 = vsel %vm537, %v5108, 0
    %v5152 = vsel %vm537, %v5109, 0
    %v5155 = vsel %vm537, %v5110, 0
    %v5158 = vsel %vm537, %v5111, 0
    %5160 = vmatprep.subr.mxu0 0.0
    %5161 = vmatpush1.xpose.msra.mxu0 0.0
    %5162 = vmatprep.subr.mxu0 0.0
    %5163 = vmatpush1.xpose.msra.mxu0 0.0
    %5164 = vmatprep.subr.mxu0 0.0
    %5165 = vmatpush1.xpose.msra.mxu0 0.0
    %5166 = vmatprep.subr.mxu0 0.0
    %5167 = vmatpush1.xpose.msra.mxu0 0.0
    %5168 = vmatprep.subr.mxu0 0.0
    %5169 = vmatpush1.xpose.msra.mxu0 0.0
    %5170 = vmatprep.subr.mxu0 0.0
    %5171 = vmatpush1.xpose.msra.mxu0 0.0
    %5172 = vmatprep.subr.mxu0 0.0
    %5173 = vmatpush1.xpose.msra.mxu0 0.0
    %5174 = vmatprep.subr.mxu0 0.0
    %5175 = vmatpush1.xpose.msra.mxu0 0.0
    %5176 = vmatprep.subr.mxu0 0.0
    %5177 = vmatpush1.xpose.msra.mxu0 %v5158
    %5178 = vmatprep.subr.mxu0 0.0
    %5179 = vmatpush1.xpose.msra.mxu0 %v5155
    %5180 = vmatprep.subr.mxu0 0.0
    %5181 = vmatpush1.xpose.msra.mxu0 %v5152
    %5182 = vmatprep.subr.mxu0 0.0
    %5183 = vmatpush1.xpose.msra.mxu0 %v5149
    %5184 = vmatprep.subr.mxu0 0.0
    %5185 = vmatpush1.xpose.msra.mxu0 %v5146
    %5186 = vmatprep.subr.mxu0 0.0
    %5187 = vmatpush1.xpose.msra.mxu0 %v5143
    %5188 = vmatprep.subr.mxu0 0.0
    %5189 = vmatpush1.xpose.msra.mxu0 %v5140
    %5190 = vmatprep.subr.mxu0 0.0
    %5191 = vmatpush1.xpose.msra.mxu0 %v5137
    %5192 = vmatprep.subr.mxu0 0.0
    %5193 = vmatpush2.xpose.msra.mxu0 0.0
    %5194 = vmatprep.subr.mxu0 0.0
    %5195 = vmatpush2.xpose.msra.mxu0 0.0
    %5196 = vmatprep.subr.mxu0 0.0
    %5197 = vmatpush2.xpose.msra.mxu0 0.0
    %5198 = vmatprep.subr.mxu0 0.0
    %5199 = vmatpush2.xpose.msra.mxu0 0.0
    %5200 = vmatprep.subr.mxu0 0.0
    %5201 = vmatpush2.xpose.msra.mxu0 0.0
    %5202 = vmatprep.subr.mxu0 0.0
    %5203 = vmatpush2.xpose.msra.mxu0 0.0
    %5204 = vmatprep.subr.mxu0 0.0
    %5205 = vmatpush2.xpose.msra.mxu0 0.0
    %5206 = vmatprep.subr.mxu0 0.0
    %5207 = vmatpush2.xpose.msra.mxu0 0.0
    %5208 = vmatprep.subr.mxu0 0.0
    %5209 = vmatpush2.xpose.msra.mxu0 0.0
    %5210 = vmatprep.subr.mxu0 0.0
    %5211 = vmatpush2.xpose.msra.mxu0 0.0
    %5212 = vmatprep.subr.mxu0 0.0
    %5213 = vmatpush2.xpose.msra.mxu0 0.0
    %5214 = vmatprep.subr.mxu0 0.0
    %5215 = vmatpush2.xpose.msra.mxu0 0.0
    %5216 = vmatprep.subr.mxu0 0.0
    %5217 = vmatpush2.xpose.msra.mxu0 0.0
    %5218 = vmatprep.subr.mxu0 0.0
    %5219 = vmatpush2.xpose.msra.mxu0 0.0
    %5220 = vmatprep.subr.mxu0 0.0
    %5221 = vmatpush2.xpose.msra.mxu0 0.0
    %5222 = vmatprep.subr.mxu0 0.0
    %5223 = vmatpush2.xpose.msra.mxu0 0.0
    %5224 = vmatprep.mubr.f32.mxu0 0.0
    %5225 = vmatmul.mubr.f32.gmra.mxu0 %v5113
    %v5226 = vpop.f32.mrf.mxu0
    %v5227 = vadd.f32 0.0, %v5226
    %v5228 = vpop.f32.mrf.mxu0
    %5229 = vmatprep.mubr.f32.mxu0 0.0
    %5230 = vmatmul.mubr.f32.gmra.mxu0 %v5116
    %v5231 = vpop.f32.mrf.mxu0
    %v5232 = vadd.f32 0.0, %v5231
    %v5233 = vpop.f32.mrf.mxu0
    %5234 = vmatprep.mubr.f32.mxu0 0.0
    %5235 = vmatmul.mubr.f32.gmra.mxu0 %v5119
    %v5236 = vpop.f32.mrf.mxu0
    %v5237 = vadd.f32 0.0, %v5236
    %v5238 = vpop.f32.mrf.mxu0
    %5239 = vmatprep.mubr.f32.mxu0 0.0
    %5240 = vmatmul.mubr.f32.gmra.mxu0 %v5122
    %v5241 = vpop.f32.mrf.mxu0
    %v5242 = vadd.f32 0.0, %v5241
    %v5243 = vpop.f32.mrf.mxu0
    %5244 = vmatprep.mubr.f32.mxu0 0.0
    %5245 = vmatmul.mubr.f32.gmra.mxu0 %v5125
    %v5246 = vpop.f32.mrf.mxu0
    %v5247 = vadd.f32 0.0, %v5246
    %v5248 = vpop.f32.mrf.mxu0
    %5249 = vmatprep.mubr.f32.mxu0 0.0
    %5250 = vmatmul.mubr.f32.gmra.mxu0 %v5128
    %v5251 = vpop.f32.mrf.mxu0
    %v5252 = vadd.f32 0.0, %v5251
    %v5253 = vpop.f32.mrf.mxu0
    %5254 = vmatprep.mubr.f32.mxu0 0.0
    %5255 = vmatmul.mubr.f32.gmra.mxu0 %v5131
    %v5256 = vpop.f32.mrf.mxu0
    %v5257 = vadd.f32 0.0, %v5256
    %v5258 = vpop.f32.mrf.mxu0
    %5259 = vmatprep.mubr.f32.mxu0 0.0
    %5260 = vmatmul.mubr.f32.gmra.mxu0 %v5134
    %v5261 = vpop.f32.mrf.mxu0
    %v5262 = vadd.f32 0.0, %v5261
    %v5263 = vpop.f32.mrf.mxu0
    %5264 = vdwg.mxu0
    %v5265 = vmax.f32 %v5227, 0.0
    %v5266 = vmax.f32 %v5232, 0.0
    %v5267 = vmax.f32 %v5237, 0.0
    %v5268 = vmax.f32 %v5242, 0.0
    %v5269 = vmax.f32 %v5247, 0.0
    %v5270 = vmax.f32 %v5252, 0.0
    %v5271 = vmax.f32 %v5257, 0.0
    %v5272 = vmax.f32 %v5262, 0.0
    %v5281 = vand.u32 %v5265, 4294967232
    %v5282 = vand.u32 %v5266, 4294967232
    %v5283 = vand.u32 %v5267, 4294967232
    %v5284 = vand.u32 %v5268, 4294967232
    %v5285 = vand.u32 %v5269, 4294967232
    %v5286 = vand.u32 %v5270, 4294967232
    %v5287 = vand.u32 %v5271, 4294967232
    %v5288 = vand.u32 %v5272, 4294967232
    %v5289 = vor.u32 %v5281, %v700
    %v5290 = vor.u32 %v5282, %v700
    %v5291 = vor.u32 %v5283, %v700
    %v5292 = vor.u32 %v5284, %v700
    %v5293 = vor.u32 %v5285, %v700
    %v5294 = vor.u32 %v5286, %v700
    %v5295 = vor.u32 %v5287, %v700
    %v5296 = vor.u32 %v5288, %v700
    %v5305 = vsel %vm733, %v5289, inf
    %5306 = vmin.xlane.f32.xlu0 %v5305
    %v5307 = vpop.xlane.xlu0 %5306
    %v5308 = vsel %vm733, %v5290, inf
    %5309 = vmin.xlane.f32.xlu0 %v5308
    %v5310 = vpop.xlane.xlu0 %5309
    %v5311 = vsel %vm733, %v5291, inf
    %5312 = vmin.xlane.f32.xlu0 %v5311
    %v5313 = vpop.xlane.xlu0 %5312
    %v5314 = vsel %vm733, %v5292, inf
    %5315 = vmin.xlane.f32.xlu0 %v5314
    %v5316 = vpop.xlane.xlu0 %5315
    %v5317 = vsel %vm733, %v5293, inf
    %5318 = vmin.xlane.f32.xlu0 %v5317
    %v5319 = vpop.xlane.xlu0 %5318
    %v5320 = vsel %vm733, %v5294, inf
    %5321 = vmin.xlane.f32.xlu0 %v5320
    %v5322 = vpop.xlane.xlu0 %5321
    %v5323 = vsel %vm733, %v5295, inf
    %5324 = vmin.xlane.f32.xlu0 %v5323
    %v5325 = vpop.xlane.xlu0 %5324
    %v5326 = vsel %vm733, %v5296, inf
    %5327 = vmin.xlane.f32.xlu0 %v5326
    %v5328 = vpop.xlane.xlu0 %5327
    %v5337 = vand.u32 %v5307, 63
    %v5338 = vand.u32 %v5310, 63
    %v5339 = vand.u32 %v5313, 63
    %v5340 = vand.u32 %v5316, 63
    %v5341 = vand.u32 %v5319, 63
    %v5342 = vand.u32 %v5322, 63
    %v5343 = vand.u32 %v5325, 63
    %v5344 = vand.u32 %v5328, 63
    %v5345 = vand.u32 %v5307, 4294967232
    %v5346 = vand.u32 %v5310, 4294967232
    %v5347 = vand.u32 %v5313, 4294967232
    %v5348 = vand.u32 %v5316, 4294967232
    %v5349 = vand.u32 %v5319, 4294967232
    %v5350 = vand.u32 %v5322, 4294967232
    %v5351 = vand.u32 %v5325, 4294967232
    %v5352 = vand.u32 %v5328, 4294967232
    %vm5361 = vcmp.eq.s32.totalorder %v700, %v5337
    %vm5362 = vcmp.eq.s32.totalorder %v700, %v5338
    %vm5363 = vcmp.eq.s32.totalorder %v700, %v5339
    %vm5364 = vcmp.eq.s32.totalorder %v700, %v5340
    %vm5365 = vcmp.eq.s32.totalorder %v700, %v5341
    %vm5366 = vcmp.eq.s32.totalorder %v700, %v5342
    %vm5367 = vcmp.eq.s32.totalorder %v700, %v5343
    %vm5368 = vcmp.eq.s32.totalorder %v700, %v5344
    %v5369 = vmul.f32 %v5345, -10.0
    %v5370 = vmul.f32 %v5346, -10.0
    %v5371 = vmul.f32 %v5347, -10.0
    %v5372 = vmul.f32 %v5348, -10.0
    %v5373 = vmul.f32 %v5349, -10.0
    %v5374 = vmul.f32 %v5350, -10.0
    %v5375 = vmul.f32 %v5351, -10.0
    %v5376 = vmul.f32 %v5352, -10.0
    %v5377 = vmul.f32 %v5369, 1.442695
    %v5378 = vpow.pop %v5377
    %v5379 = vmul.f32 %v5370, 1.442695
    %v5380 = vpow.pop %v5379
    %v5381 = vmul.f32 %v5371, 1.442695
    %v5382 = vpow.pop %v5381
    %v5383 = vmul.f32 %v5372, 1.442695
    %v5384 = vpow.pop %v5383
    %v5385 = vmul.f32 %v5373, 1.442695
    %v5386 = vpow.pop %v5385
    %v5387 = vmul.f32 %v5374, 1.442695
    %v5388 = vpow.pop %v5387
    %v5389 = vmul.f32 %v5375, 1.442695
    %v5390 = vpow.pop %v5389
    %v5391 = vmul.f32 %v5376, 1.442695
    %v5392 = vpow.pop %v5391
    %v5393 = vsel %vm5361, 1, 0
    %v5394 = vsel %vm5362, 1, 0
    %v5395 = vsel %vm5363, 1, 0
    %v5396 = vsel %vm5364, 1, 0
    %v5397 = vsel %vm5365, 1, 0
    %v5398 = vsel %vm5366, 1, 0
    %v5399 = vsel %vm5367, 1, 0
    %v5400 = vsel %vm5368, 1, 0
    %v5401 = vcvt.s32.f32 %v5393
    %v5402 = vcvt.s32.f32 %v5394
    %v5403 = vcvt.s32.f32 %v5395
    %v5404 = vcvt.s32.f32 %v5396
    %v5405 = vcvt.s32.f32 %v5397
    %v5406 = vcvt.s32.f32 %v5398
    %v5407 = vcvt.s32.f32 %v5399
    %v5408 = vcvt.s32.f32 %v5400
    %5417 = vrot.lane.b32.xlu0 %v5002, 120
    %v5418 = vpop.permute.xlu0 %5417
    %5419 = vrot.lane.b32.xlu0 %v5007, 120
    %v5420 = vpop.permute.xlu0 %5419
    %5421 = vrot.lane.b32.xlu0 %v5012, 120
    %v5422 = vpop.permute.xlu0 %5421
    %5423 = vrot.lane.b32.xlu0 %v5017, 120
    %v5424 = vpop.permute.xlu0 %5423
    %5425 = vrot.lane.b32.xlu0 %v5022, 120
    %v5426 = vpop.permute.xlu0 %5425
    %5427 = vrot.lane.b32.xlu0 %v5027, 120
    %v5428 = vpop.permute.xlu0 %5427
    %5429 = vrot.lane.b32.xlu0 %v5032, 120
    %v5430 = vpop.permute.xlu0 %5429
    %5431 = vrot.lane.b32.xlu0 %v5037, 120
    %v5432 = vpop.permute.xlu0 %5431
    %v5442 = vsel %vm733, %v5401, 0
    %v5445 = vsel %vm733, %v5402, 0
    %v5448 = vsel %vm733, %v5403, 0
    %v5451 = vsel %vm733, %v5404, 0
    %v5454 = vsel %vm733, %v5405, 0
    %v5457 = vsel %vm733, %v5406, 0
    %v5460 = vsel %vm733, %v5407, 0
    %v5463 = vsel %vm733, %v5408, 0
    %5465 = vmatprep.subr.mxu0 0.0
    %5466 = vmatpush1.msra.mxu0 0.0
    %5467 = vmatprep.subr.mxu0 0.0
    %5468 = vmatpush1.msra.mxu0 0.0
    %5469 = vmatprep.subr.mxu0 0.0
    %5470 = vmatpush1.msra.mxu0 0.0
    %5471 = vmatprep.subr.mxu0 0.0
    %5472 = vmatpush1.msra.mxu0 0.0
    %5473 = vmatprep.subr.mxu0 0.0
    %5474 = vmatpush1.msra.mxu0 0.0
    %5475 = vmatprep.subr.mxu0 0.0
    %5476 = vmatpush1.msra.mxu0 0.0
    %5477 = vmatprep.subr.mxu0 0.0
    %5478 = vmatpush1.msra.mxu0 0.0
    %5479 = vmatprep.subr.mxu0 0.0
    %5480 = vmatpush1.msra.mxu0 0.0
    %5481 = vmatprep.subr.mxu0 0.0
    %5482 = vmatpush1.msra.mxu0 %v5432
    %5483 = vmatprep.subr.mxu0 0.0
    %5484 = vmatpush1.msra.mxu0 %v5430
    %5485 = vmatprep.subr.mxu0 0.0
    %5486 = vmatpush1.msra.mxu0 %v5428
    %5487 = vmatprep.subr.mxu0 0.0
    %5488 = vmatpush1.msra.mxu0 %v5426
    %5489 = vmatprep.subr.mxu0 0.0
    %5490 = vmatpush1.msra.mxu0 %v5424
    %5491 = vmatprep.subr.mxu0 0.0
    %5492 = vmatpush1.msra.mxu0 %v5422
    %5493 = vmatprep.subr.mxu0 0.0
    %5494 = vmatpush1.msra.mxu0 %v5420
    %5495 = vmatprep.subr.mxu0 0.0
    %5496 = vmatpush1.msra.mxu0 %v5418
    %5497 = vmatprep.subr.mxu0 0.0
    %5498 = vmatpush2.msra.mxu0 0.0
    %5499 = vmatprep.subr.mxu0 0.0
    %5500 = vmatpush2.msra.mxu0 0.0
    %5501 = vmatprep.subr.mxu0 0.0
    %5502 = vmatpush2.msra.mxu0 0.0
    %5503 = vmatprep.subr.mxu0 0.0
    %5504 = vmatpush2.msra.mxu0 0.0
    %5505 = vmatprep.subr.mxu0 0.0
    %5506 = vmatpush2.msra.mxu0 0.0
    %5507 = vmatprep.subr.mxu0 0.0
    %5508 = vmatpush2.msra.mxu0 0.0
    %5509 = vmatprep.subr.mxu0 0.0
    %5510 = vmatpush2.msra.mxu0 0.0
    %5511 = vmatprep.subr.mxu0 0.0
    %5512 = vmatpush2.msra.mxu0 0.0
    %5513 = vmatprep.subr.mxu0 0.0
    %5514 = vmatpush2.msra.mxu0 0.0
    %5515 = vmatprep.subr.mxu0 0.0
    %5516 = vmatpush2.msra.mxu0 0.0
    %5517 = vmatprep.subr.mxu0 0.0
    %5518 = vmatpush2.msra.mxu0 0.0
    %5519 = vmatprep.subr.mxu0 0.0
    %5520 = vmatpush2.msra.mxu0 0.0
    %5521 = vmatprep.subr.mxu0 0.0
    %5522 = vmatpush2.msra.mxu0 0.0
    %5523 = vmatprep.subr.mxu0 0.0
    %5524 = vmatpush2.msra.mxu0 0.0
    %5525 = vmatprep.subr.mxu0 0.0
    %5526 = vmatpush2.msra.mxu0 0.0
    %5527 = vmatprep.subr.mxu0 0.0
    %5528 = vmatpush2.msra.mxu0 0.0
    %5529 = vmatprep.mubr.f32.mxu0 0.0
    %5530 = vmatmul.mubr.f32.gmra.mxu0 %v5442
    %v5531 = vpop.f32.mrf.mxu0
    %v5532 = vadd.f32 0.0, %v5531
    %v5533 = vpop.f32.mrf.mxu0
    %5534 = vmatprep.mubr.f32.mxu0 0.0
    %5535 = vmatmul.mubr.f32.gmra.mxu0 %v5445
    %v5536 = vpop.f32.mrf.mxu0
    %v5537 = vadd.f32 0.0, %v5536
    %v5538 = vpop.f32.mrf.mxu0
    %5539 = vmatprep.mubr.f32.mxu0 0.0
    %5540 = vmatmul.mubr.f32.gmra.mxu0 %v5448
    %v5541 = vpop.f32.mrf.mxu0
    %v5542 = vadd.f32 0.0, %v5541
    %v5543 = vpop.f32.mrf.mxu0
    %5544 = vmatprep.mubr.f32.mxu0 0.0
    %5545 = vmatmul.mubr.f32.gmra.mxu0 %v5451
    %v5546 = vpop.f32.mrf.mxu0
    %v5547 = vadd.f32 0.0, %v5546
    %v5548 = vpop.f32.mrf.mxu0
    %5549 = vmatprep.mubr.f32.mxu0 0.0
    %5550 = vmatmul.mubr.f32.gmra.mxu0 %v5454
    %v5551 = vpop.f32.mrf.mxu0
    %v5552 = vadd.f32 0.0, %v5551
    %v5553 = vpop.f32.mrf.mxu0
    %5554 = vmatprep.mubr.f32.mxu0 0.0
    %5555 = vmatmul.mubr.f32.gmra.mxu0 %v5457
    %v5556 = vpop.f32.mrf.mxu0
    %v5557 = vadd.f32 0.0, %v5556
    %v5558 = vpop.f32.mrf.mxu0
    %5559 = vmatprep.mubr.f32.mxu0 0.0
    %5560 = vmatmul.mubr.f32.gmra.mxu0 %v5460
    %v5561 = vpop.f32.mrf.mxu0
    %v5562 = vadd.f32 0.0, %v5561
    %v5563 = vpop.f32.mrf.mxu0
    %5564 = vmatprep.mubr.f32.mxu0 0.0
    %5565 = vmatmul.mubr.f32.gmra.mxu0 %v5463
    %v5566 = vpop.f32.mrf.mxu0
    %v5567 = vadd.f32 0.0, %v5566
    %v5568 = vpop.f32.mrf.mxu0
    %5569 = vdwg.mxu0
    %v5570 = vmul.f32 %v5378, %v5532
    %v5571 = vmul.f32 %v5380, %v5537
    %v5572 = vmul.f32 %v5382, %v5542
    %v5573 = vmul.f32 %v5384, %v5547
    %v5574 = vmul.f32 %v5386, %v5552
    %v5575 = vmul.f32 %v5388, %v5557
    %v5576 = vmul.f32 %v5390, %v5562
    %v5577 = vmul.f32 %v5392, %v5567
    %v5578 = vadd.f32 %v5570, 0.0
    %v5579 = vadd.f32 %v5571, 0.0
    %v5580 = vadd.f32 %v5572, 0.0
    %v5581 = vadd.f32 %v5573, 0.0
    %v5582 = vadd.f32 %v5574, 0.0
    %v5583 = vadd.f32 %v5575, 0.0
    %v5584 = vadd.f32 %v5576, 0.0
    %v5585 = vadd.f32 %v5577, 0.0
    %v5586 = vmax.f32 %v5570, -1e+30
    %v5587 = vmax.f32 %v5571, -1e+30
    %v5588 = vmax.f32 %v5572, -1e+30
    %v5589 = vmax.f32 %v5573, -1e+30
    %v5590 = vmax.f32 %v5574, -1e+30
    %v5591 = vmax.f32 %v5575, -1e+30
    %v5592 = vmax.f32 %v5576, -1e+30
    %v5593 = vmax.f32 %v5577, -1e+30
    %v5594 = vsel %vm5361, 1e+30, %v5289
    %v5595 = vsel %vm5362, 1e+30, %v5290
    %v5596 = vsel %vm5363, 1e+30, %v5291
    %v5597 = vsel %vm5364, 1e+30, %v5292
    %v5598 = vsel %vm5365, 1e+30, %v5293
    %v5599 = vsel %vm5366, 1e+30, %v5294
    %v5600 = vsel %vm5367, 1e+30, %v5295
    %v5601 = vsel %vm5368, 1e+30, %v5296
    %v5602 = vsel %vm733, %v5594, inf
    %5603 = vmin.xlane.f32.xlu0 %v5602
    %v5604 = vpop.xlane.xlu0 %5603
    %v5605 = vsel %vm733, %v5595, inf
    %5606 = vmin.xlane.f32.xlu0 %v5605
    %v5607 = vpop.xlane.xlu0 %5606
    %v5608 = vsel %vm733, %v5596, inf
    %5609 = vmin.xlane.f32.xlu0 %v5608
    %v5610 = vpop.xlane.xlu0 %5609
    %v5611 = vsel %vm733, %v5597, inf
    %5612 = vmin.xlane.f32.xlu0 %v5611
    %v5613 = vpop.xlane.xlu0 %5612
    %v5614 = vsel %vm733, %v5598, inf
    %5615 = vmin.xlane.f32.xlu0 %v5614
    %v5616 = vpop.xlane.xlu0 %5615
    %v5617 = vsel %vm733, %v5599, inf
    %5618 = vmin.xlane.f32.xlu0 %v5617
    %v5619 = vpop.xlane.xlu0 %5618
    %v5620 = vsel %vm733, %v5600, inf
    %5621 = vmin.xlane.f32.xlu0 %v5620
    %v5622 = vpop.xlane.xlu0 %5621
    %v5623 = vsel %vm733, %v5601, inf
    %5624 = vmin.xlane.f32.xlu0 %v5623
    %v5625 = vpop.xlane.xlu0 %5624
    %v5634 = vand.u32 %v5604, 63
    %v5635 = vand.u32 %v5607, 63
    %v5636 = vand.u32 %v5610, 63
    %v5637 = vand.u32 %v5613, 63
    %v5638 = vand.u32 %v5616, 63
    %v5639 = vand.u32 %v5619, 63
    %v5640 = vand.u32 %v5622, 63
    %v5641 = vand.u32 %v5625, 63
    %v5642 = vand.u32 %v5604, 4294967232
    %v5643 = vand.u32 %v5607, 4294967232
    %v5644 = vand.u32 %v5610, 4294967232
    %v5645 = vand.u32 %v5613, 4294967232
    %v5646 = vand.u32 %v5616, 4294967232
    %v5647 = vand.u32 %v5619, 4294967232
    %v5648 = vand.u32 %v5622, 4294967232
    %v5649 = vand.u32 %v5625, 4294967232
    %vm5658 = vcmp.eq.s32.totalorder %v700, %v5634
    %vm5659 = vcmp.eq.s32.totalorder %v700, %v5635
    %vm5660 = vcmp.eq.s32.totalorder %v700, %v5636
    %vm5661 = vcmp.eq.s32.totalorder %v700, %v5637
    %vm5662 = vcmp.eq.s32.totalorder %v700, %v5638
    %vm5663 = vcmp.eq.s32.totalorder %v700, %v5639
    %vm5664 = vcmp.eq.s32.totalorder %v700, %v5640
    %vm5665 = vcmp.eq.s32.totalorder %v700, %v5641
    %v5666 = vmul.f32 %v5642, -10.0
    %v5667 = vmul.f32 %v5643, -10.0
    %v5668 = vmul.f32 %v5644, -10.0
    %v5669 = vmul.f32 %v5645, -10.0
    %v5670 = vmul.f32 %v5646, -10.0
    %v5671 = vmul.f32 %v5647, -10.0
    %v5672 = vmul.f32 %v5648, -10.0
    %v5673 = vmul.f32 %v5649, -10.0
    %v5674 = vmul.f32 %v5666, 1.442695
    %v5675 = vpow.pop %v5674
    %v5676 = vmul.f32 %v5667, 1.442695
    %v5677 = vpow.pop %v5676
    %v5678 = vmul.f32 %v5668, 1.442695
    %v5679 = vpow.pop %v5678
    %v5680 = vmul.f32 %v5669, 1.442695
    %v5681 = vpow.pop %v5680
    %v5682 = vmul.f32 %v5670, 1.442695
    %v5683 = vpow.pop %v5682
    %v5684 = vmul.f32 %v5671, 1.442695
    %v5685 = vpow.pop %v5684
    %v5686 = vmul.f32 %v5672, 1.442695
    %v5687 = vpow.pop %v5686
    %v5688 = vmul.f32 %v5673, 1.442695
    %v5689 = vpow.pop %v5688
    %v5690 = vsel %vm5658, 1, 0
    %v5691 = vsel %vm5659, 1, 0
    %v5692 = vsel %vm5660, 1, 0
    %v5693 = vsel %vm5661, 1, 0
    %v5694 = vsel %vm5662, 1, 0
    %v5695 = vsel %vm5663, 1, 0
    %v5696 = vsel %vm5664, 1, 0
    %v5697 = vsel %vm5665, 1, 0
    %v5698 = vcvt.s32.f32 %v5690
    %v5699 = vcvt.s32.f32 %v5691
    %v5700 = vcvt.s32.f32 %v5692
    %v5701 = vcvt.s32.f32 %v5693
    %v5702 = vcvt.s32.f32 %v5694
    %v5703 = vcvt.s32.f32 %v5695
    %v5704 = vcvt.s32.f32 %v5696
    %v5705 = vcvt.s32.f32 %v5697
    %v5707 = vsel %vm733, %v5698, 0
    %v5710 = vsel %vm733, %v5699, 0
    %v5713 = vsel %vm733, %v5700, 0
    %v5716 = vsel %vm733, %v5701, 0
    %v5719 = vsel %vm733, %v5702, 0
    %v5722 = vsel %vm733, %v5703, 0
    %v5725 = vsel %vm733, %v5704, 0
    %v5728 = vsel %vm733, %v5705, 0
    %5730 = vmatprep.subr.mxu0 0.0
    %5731 = vmatpush1.msra.mxu0 0.0
    %5732 = vmatprep.subr.mxu0 0.0
    %5733 = vmatpush1.msra.mxu0 0.0
    %5734 = vmatprep.subr.mxu0 0.0
    %5735 = vmatpush1.msra.mxu0 0.0
    %5736 = vmatprep.subr.mxu0 0.0
    %5737 = vmatpush1.msra.mxu0 0.0
    %5738 = vmatprep.subr.mxu0 0.0
    %5739 = vmatpush1.msra.mxu0 0.0
    %5740 = vmatprep.subr.mxu0 0.0
    %5741 = vmatpush1.msra.mxu0 0.0
    %5742 = vmatprep.subr.mxu0 0.0
    %5743 = vmatpush1.msra.mxu0 0.0
    %5744 = vmatprep.subr.mxu0 0.0
    %5745 = vmatpush1.msra.mxu0 0.0
    %5746 = vmatprep.subr.mxu0 0.0
    %5747 = vmatpush1.msra.mxu0 %v5432
    %5748 = vmatprep.subr.mxu0 0.0
    %5749 = vmatpush1.msra.mxu0 %v5430
    %5750 = vmatprep.subr.mxu0 0.0
    %5751 = vmatpush1.msra.mxu0 %v5428
    %5752 = vmatprep.subr.mxu0 0.0
    %5753 = vmatpush1.msra.mxu0 %v5426
    %5754 = vmatprep.subr.mxu0 0.0
    %5755 = vmatpush1.msra.mxu0 %v5424
    %5756 = vmatprep.subr.mxu0 0.0
    %5757 = vmatpush1.msra.mxu0 %v5422
    %5758 = vmatprep.subr.mxu0 0.0
    %5759 = vmatpush1.msra.mxu0 %v5420
    %5760 = vmatprep.subr.mxu0 0.0
    %5761 = vmatpush1.msra.mxu0 %v5418
    %5762 = vmatprep.subr.mxu0 0.0
    %5763 = vmatpush2.msra.mxu0 0.0
    %5764 = vmatprep.subr.mxu0 0.0
    %5765 = vmatpush2.msra.mxu0 0.0
    %5766 = vmatprep.subr.mxu0 0.0
    %5767 = vmatpush2.msra.mxu0 0.0
    %5768 = vmatprep.subr.mxu0 0.0
    %5769 = vmatpush2.msra.mxu0 0.0
    %5770 = vmatprep.subr.mxu0 0.0
    %5771 = vmatpush2.msra.mxu0 0.0
    %5772 = vmatprep.subr.mxu0 0.0
    %5773 = vmatpush2.msra.mxu0 0.0
    %5774 = vmatprep.subr.mxu0 0.0
    %5775 = vmatpush2.msra.mxu0 0.0
    %5776 = vmatprep.subr.mxu0 0.0
    %5777 = vmatpush2.msra.mxu0 0.0
    %5778 = vmatprep.subr.mxu0 0.0
    %5779 = vmatpush2.msra.mxu0 0.0
    %5780 = vmatprep.subr.mxu0 0.0
    %5781 = vmatpush2.msra.mxu0 0.0
    %5782 = vmatprep.subr.mxu0 0.0
    %5783 = vmatpush2.msra.mxu0 0.0
    %5784 = vmatprep.subr.mxu0 0.0
    %5785 = vmatpush2.msra.mxu0 0.0
    %5786 = vmatprep.subr.mxu0 0.0
    %5787 = vmatpush2.msra.mxu0 0.0
    %5788 = vmatprep.subr.mxu0 0.0
    %5789 = vmatpush2.msra.mxu0 0.0
    %5790 = vmatprep.subr.mxu0 0.0
    %5791 = vmatpush2.msra.mxu0 0.0
    %5792 = vmatprep.subr.mxu0 0.0
    %5793 = vmatpush2.msra.mxu0 0.0
    %5794 = vmatprep.mubr.f32.mxu0 0.0
    %5795 = vmatmul.mubr.f32.gmra.mxu0 %v5707
    %v5796 = vpop.f32.mrf.mxu0
    %v5797 = vadd.f32 0.0, %v5796
    %v5798 = vpop.f32.mrf.mxu0
    %5799 = vmatprep.mubr.f32.mxu0 0.0
    %5800 = vmatmul.mubr.f32.gmra.mxu0 %v5710
    %v5801 = vpop.f32.mrf.mxu0
    %v5802 = vadd.f32 0.0, %v5801
    %v5803 = vpop.f32.mrf.mxu0
    %5804 = vmatprep.mubr.f32.mxu0 0.0
    %5805 = vmatmul.mubr.f32.gmra.mxu0 %v5713
    %v5806 = vpop.f32.mrf.mxu0
    %v5807 = vadd.f32 0.0, %v5806
    %v5808 = vpop.f32.mrf.mxu0
    %5809 = vmatprep.mubr.f32.mxu0 0.0
    %5810 = vmatmul.mubr.f32.gmra.mxu0 %v5716
    %v5811 = vpop.f32.mrf.mxu0
    %v5812 = vadd.f32 0.0, %v5811
    %v5813 = vpop.f32.mrf.mxu0
    %5814 = vmatprep.mubr.f32.mxu0 0.0
    %5815 = vmatmul.mubr.f32.gmra.mxu0 %v5719
    %v5816 = vpop.f32.mrf.mxu0
    %v5817 = vadd.f32 0.0, %v5816
    %v5818 = vpop.f32.mrf.mxu0
    %5819 = vmatprep.mubr.f32.mxu0 0.0
    %5820 = vmatmul.mubr.f32.gmra.mxu0 %v5722
    %v5821 = vpop.f32.mrf.mxu0
    %v5822 = vadd.f32 0.0, %v5821
    %v5823 = vpop.f32.mrf.mxu0
    %5824 = vmatprep.mubr.f32.mxu0 0.0
    %5825 = vmatmul.mubr.f32.gmra.mxu0 %v5725
    %v5826 = vpop.f32.mrf.mxu0
    %v5827 = vadd.f32 0.0, %v5826
    %v5828 = vpop.f32.mrf.mxu0
    %5829 = vmatprep.mubr.f32.mxu0 0.0
    %5830 = vmatmul.mubr.f32.gmra.mxu0 %v5728
    %v5831 = vpop.f32.mrf.mxu0
    %v5832 = vadd.f32 0.0, %v5831
    %v5833 = vpop.f32.mrf.mxu0
    %5834 = vdwg.mxu0
    %v5835 = vmul.f32 %v5675, %v5797
    %v5836 = vmul.f32 %v5677, %v5802
    %v5837 = vmul.f32 %v5679, %v5807
    %v5838 = vmul.f32 %v5681, %v5812
    %v5839 = vmul.f32 %v5683, %v5817
    %v5840 = vmul.f32 %v5685, %v5822
    %v5841 = vmul.f32 %v5687, %v5827
    %v5842 = vmul.f32 %v5689, %v5832
    %v5843 = vadd.f32 %v5578, %v5835
    %v5844 = vadd.f32 %v5579, %v5836
    %v5845 = vadd.f32 %v5580, %v5837
    %v5846 = vadd.f32 %v5581, %v5838
    %v5847 = vadd.f32 %v5582, %v5839
    %v5848 = vadd.f32 %v5583, %v5840
    %v5849 = vadd.f32 %v5584, %v5841
    %v5850 = vadd.f32 %v5585, %v5842
    %v5851 = vmax.f32 %v5586, %v5835
    %v5852 = vmax.f32 %v5587, %v5836
    %v5853 = vmax.f32 %v5588, %v5837
    %v5854 = vmax.f32 %v5589, %v5838
    %v5855 = vmax.f32 %v5590, %v5839
    %v5856 = vmax.f32 %v5591, %v5840
    %v5857 = vmax.f32 %v5592, %v5841
    %v5858 = vmax.f32 %v5593, %v5842
    %v5859 = vsel %vm5658, 1e+30, %v5594
    %v5860 = vsel %vm5659, 1e+30, %v5595
    %v5861 = vsel %vm5660, 1e+30, %v5596
    %v5862 = vsel %vm5661, 1e+30, %v5597
    %v5863 = vsel %vm5662, 1e+30, %v5598
    %v5864 = vsel %vm5663, 1e+30, %v5599
    %v5865 = vsel %vm5664, 1e+30, %v5600
    %v5866 = vsel %vm5665, 1e+30, %v5601
    %v5867 = vsel %vm733, %v5859, inf
    %5868 = vmin.xlane.f32.xlu0 %v5867
    %v5869 = vpop.xlane.xlu0 %5868
    %v5870 = vsel %vm733, %v5860, inf
    %5871 = vmin.xlane.f32.xlu0 %v5870
    %v5872 = vpop.xlane.xlu0 %5871
    %v5873 = vsel %vm733, %v5861, inf
    %5874 = vmin.xlane.f32.xlu0 %v5873
    %v5875 = vpop.xlane.xlu0 %5874
    %v5876 = vsel %vm733, %v5862, inf
    %5877 = vmin.xlane.f32.xlu0 %v5876
    %v5878 = vpop.xlane.xlu0 %5877
    %v5879 = vsel %vm733, %v5863, inf
    %5880 = vmin.xlane.f32.xlu0 %v5879
    %v5881 = vpop.xlane.xlu0 %5880
    %v5882 = vsel %vm733, %v5864, inf
    %5883 = vmin.xlane.f32.xlu0 %v5882
    %v5884 = vpop.xlane.xlu0 %5883
    %v5885 = vsel %vm733, %v5865, inf
    %5886 = vmin.xlane.f32.xlu0 %v5885
    %v5887 = vpop.xlane.xlu0 %5886
    %v5888 = vsel %vm733, %v5866, inf
    %5889 = vmin.xlane.f32.xlu0 %v5888
    %v5890 = vpop.xlane.xlu0 %5889
    %v5899 = vand.u32 %v5869, 63
    %v5900 = vand.u32 %v5872, 63
    %v5901 = vand.u32 %v5875, 63
    %v5902 = vand.u32 %v5878, 63
    %v5903 = vand.u32 %v5881, 63
    %v5904 = vand.u32 %v5884, 63
    %v5905 = vand.u32 %v5887, 63
    %v5906 = vand.u32 %v5890, 63
    %v5907 = vand.u32 %v5869, 4294967232
    %v5908 = vand.u32 %v5872, 4294967232
    %v5909 = vand.u32 %v5875, 4294967232
    %v5910 = vand.u32 %v5878, 4294967232
    %v5911 = vand.u32 %v5881, 4294967232
    %v5912 = vand.u32 %v5884, 4294967232
    %v5913 = vand.u32 %v5887, 4294967232
    %v5914 = vand.u32 %v5890, 4294967232
    %vm5923 = vcmp.eq.s32.totalorder %v700, %v5899
    %vm5924 = vcmp.eq.s32.totalorder %v700, %v5900
    %vm5925 = vcmp.eq.s32.totalorder %v700, %v5901
    %vm5926 = vcmp.eq.s32.totalorder %v700, %v5902
    %vm5927 = vcmp.eq.s32.totalorder %v700, %v5903
    %vm5928 = vcmp.eq.s32.totalorder %v700, %v5904
    %vm5929 = vcmp.eq.s32.totalorder %v700, %v5905
    %vm5930 = vcmp.eq.s32.totalorder %v700, %v5906
    %v5931 = vmul.f32 %v5907, -10.0
    %v5932 = vmul.f32 %v5908, -10.0
    %v5933 = vmul.f32 %v5909, -10.0
    %v5934 = vmul.f32 %v5910, -10.0
    %v5935 = vmul.f32 %v5911, -10.0
    %v5936 = vmul.f32 %v5912, -10.0
    %v5937 = vmul.f32 %v5913, -10.0
    %v5938 = vmul.f32 %v5914, -10.0
    %v5939 = vmul.f32 %v5931, 1.442695
    %v5940 = vpow.pop %v5939
    %v5941 = vmul.f32 %v5932, 1.442695
    %v5942 = vpow.pop %v5941
    %v5943 = vmul.f32 %v5933, 1.442695
    %v5944 = vpow.pop %v5943
    %v5945 = vmul.f32 %v5934, 1.442695
    %v5946 = vpow.pop %v5945
    %v5947 = vmul.f32 %v5935, 1.442695
    %v5948 = vpow.pop %v5947
    %v5949 = vmul.f32 %v5936, 1.442695
    %v5950 = vpow.pop %v5949
    %v5951 = vmul.f32 %v5937, 1.442695
    %v5952 = vpow.pop %v5951
    %v5953 = vmul.f32 %v5938, 1.442695
    %v5954 = vpow.pop %v5953
    %v5955 = vsel %vm5923, 1, 0
    %v5956 = vsel %vm5924, 1, 0
    %v5957 = vsel %vm5925, 1, 0
    %v5958 = vsel %vm5926, 1, 0
    %v5959 = vsel %vm5927, 1, 0
    %v5960 = vsel %vm5928, 1, 0
    %v5961 = vsel %vm5929, 1, 0
    %v5962 = vsel %vm5930, 1, 0
    %v5963 = vcvt.s32.f32 %v5955
    %v5964 = vcvt.s32.f32 %v5956
    %v5965 = vcvt.s32.f32 %v5957
    %v5966 = vcvt.s32.f32 %v5958
    %v5967 = vcvt.s32.f32 %v5959
    %v5968 = vcvt.s32.f32 %v5960
    %v5969 = vcvt.s32.f32 %v5961
    %v5970 = vcvt.s32.f32 %v5962
    %v5972 = vsel %vm733, %v5963, 0
    %v5975 = vsel %vm733, %v5964, 0
    %v5978 = vsel %vm733, %v5965, 0
    %v5981 = vsel %vm733, %v5966, 0
    %v5984 = vsel %vm733, %v5967, 0
    %v5987 = vsel %vm733, %v5968, 0
    %v5990 = vsel %vm733, %v5969, 0
    %v5993 = vsel %vm733, %v5970, 0
    %5995 = vmatprep.subr.mxu0 0.0
    %5996 = vmatpush1.msra.mxu0 0.0
    %5997 = vmatprep.subr.mxu0 0.0
    %5998 = vmatpush1.msra.mxu0 0.0
    %5999 = vmatprep.subr.mxu0 0.0
    %6000 = vmatpush1.msra.mxu0 0.0
    %6001 = vmatprep.subr.mxu0 0.0
    %6002 = vmatpush1.msra.mxu0 0.0
    %6003 = vmatprep.subr.mxu0 0.0
    %6004 = vmatpush1.msra.mxu0 0.0
    %6005 = vmatprep.subr.mxu0 0.0
    %6006 = vmatpush1.msra.mxu0 0.0
    %6007 = vmatprep.subr.mxu0 0.0
    %6008 = vmatpush1.msra.mxu0 0.0
    %6009 = vmatprep.subr.mxu0 0.0
    %6010 = vmatpush1.msra.mxu0 0.0
    %6011 = vmatprep.subr.mxu0 0.0
    %6012 = vmatpush1.msra.mxu0 %v5432
    %6013 = vmatprep.subr.mxu0 0.0
    %6014 = vmatpush1.msra.mxu0 %v5430
    %6015 = vmatprep.subr.mxu0 0.0
    %6016 = vmatpush1.msra.mxu0 %v5428
    %6017 = vmatprep.subr.mxu0 0.0
    %6018 = vmatpush1.msra.mxu0 %v5426
    %6019 = vmatprep.subr.mxu0 0.0
    %6020 = vmatpush1.msra.mxu0 %v5424
    %6021 = vmatprep.subr.mxu0 0.0
    %6022 = vmatpush1.msra.mxu0 %v5422
    %6023 = vmatprep.subr.mxu0 0.0
    %6024 = vmatpush1.msra.mxu0 %v5420
    %6025 = vmatprep.subr.mxu0 0.0
    %6026 = vmatpush1.msra.mxu0 %v5418
    %6027 = vmatprep.subr.mxu0 0.0
    %6028 = vmatpush2.msra.mxu0 0.0
    %6029 = vmatprep.subr.mxu0 0.0
    %6030 = vmatpush2.msra.mxu0 0.0
    %6031 = vmatprep.subr.mxu0 0.0
    %6032 = vmatpush2.msra.mxu0 0.0
    %6033 = vmatprep.subr.mxu0 0.0
    %6034 = vmatpush2.msra.mxu0 0.0
    %6035 = vmatprep.subr.mxu0 0.0
    %6036 = vmatpush2.msra.mxu0 0.0
    %6037 = vmatprep.subr.mxu0 0.0
    %6038 = vmatpush2.msra.mxu0 0.0
    %6039 = vmatprep.subr.mxu0 0.0
    %6040 = vmatpush2.msra.mxu0 0.0
    %6041 = vmatprep.subr.mxu0 0.0
    %6042 = vmatpush2.msra.mxu0 0.0
    %6043 = vmatprep.subr.mxu0 0.0
    %6044 = vmatpush2.msra.mxu0 0.0
    %6045 = vmatprep.subr.mxu0 0.0
    %6046 = vmatpush2.msra.mxu0 0.0
    %6047 = vmatprep.subr.mxu0 0.0
    %6048 = vmatpush2.msra.mxu0 0.0
    %6049 = vmatprep.subr.mxu0 0.0
    %6050 = vmatpush2.msra.mxu0 0.0
    %6051 = vmatprep.subr.mxu0 0.0
    %6052 = vmatpush2.msra.mxu0 0.0
    %6053 = vmatprep.subr.mxu0 0.0
    %6054 = vmatpush2.msra.mxu0 0.0
    %6055 = vmatprep.subr.mxu0 0.0
    %6056 = vmatpush2.msra.mxu0 0.0
    %6057 = vmatprep.subr.mxu0 0.0
    %6058 = vmatpush2.msra.mxu0 0.0
    %6059 = vmatprep.mubr.f32.mxu0 0.0
    %6060 = vmatmul.mubr.f32.gmra.mxu0 %v5972
    %v6061 = vpop.f32.mrf.mxu0
    %v6062 = vadd.f32 0.0, %v6061
    %v6063 = vpop.f32.mrf.mxu0
    %6064 = vmatprep.mubr.f32.mxu0 0.0
    %6065 = vmatmul.mubr.f32.gmra.mxu0 %v5975
    %v6066 = vpop.f32.mrf.mxu0
    %v6067 = vadd.f32 0.0, %v6066
    %v6068 = vpop.f32.mrf.mxu0
    %6069 = vmatprep.mubr.f32.mxu0 0.0
    %6070 = vmatmul.mubr.f32.gmra.mxu0 %v5978
    %v6071 = vpop.f32.mrf.mxu0
    %v6072 = vadd.f32 0.0, %v6071
    %v6073 = vpop.f32.mrf.mxu0
    %6074 = vmatprep.mubr.f32.mxu0 0.0
    %6075 = vmatmul.mubr.f32.gmra.mxu0 %v5981
    %v6076 = vpop.f32.mrf.mxu0
    %v6077 = vadd.f32 0.0, %v6076
    %v6078 = vpop.f32.mrf.mxu0
    %6079 = vmatprep.mubr.f32.mxu0 0.0
    %6080 = vmatmul.mubr.f32.gmra.mxu0 %v5984
    %v6081 = vpop.f32.mrf.mxu0
    %v6082 = vadd.f32 0.0, %v6081
    %v6083 = vpop.f32.mrf.mxu0
    %6084 = vmatprep.mubr.f32.mxu0 0.0
    %6085 = vmatmul.mubr.f32.gmra.mxu0 %v5987
    %v6086 = vpop.f32.mrf.mxu0
    %v6087 = vadd.f32 0.0, %v6086
    %v6088 = vpop.f32.mrf.mxu0
    %6089 = vmatprep.mubr.f32.mxu0 0.0
    %6090 = vmatmul.mubr.f32.gmra.mxu0 %v5990
    %v6091 = vpop.f32.mrf.mxu0
    %v6092 = vadd.f32 0.0, %v6091
    %v6093 = vpop.f32.mrf.mxu0
    %6094 = vmatprep.mubr.f32.mxu0 0.0
    %6095 = vmatmul.mubr.f32.gmra.mxu0 %v5993
    %v6096 = vpop.f32.mrf.mxu0
    %v6097 = vadd.f32 0.0, %v6096
    %v6098 = vpop.f32.mrf.mxu0
    %6099 = vdwg.mxu0
    %v6100 = vmul.f32 %v5940, %v6062
    %v6101 = vmul.f32 %v5942, %v6067
    %v6102 = vmul.f32 %v5944, %v6072
    %v6103 = vmul.f32 %v5946, %v6077
    %v6104 = vmul.f32 %v5948, %v6082
    %v6105 = vmul.f32 %v5950, %v6087
    %v6106 = vmul.f32 %v5952, %v6092
    %v6107 = vmul.f32 %v5954, %v6097
    %v6108 = vadd.f32 %v5843, %v6100
    %v6109 = vadd.f32 %v5844, %v6101
    %v6110 = vadd.f32 %v5845, %v6102
    %v6111 = vadd.f32 %v5846, %v6103
    %v6112 = vadd.f32 %v5847, %v6104
    %v6113 = vadd.f32 %v5848, %v6105
    %v6114 = vadd.f32 %v5849, %v6106
    %v6115 = vadd.f32 %v5850, %v6107
    %v6116 = vmax.f32 %v5851, %v6100
    %v6117 = vmax.f32 %v5852, %v6101
    %v6118 = vmax.f32 %v5853, %v6102
    %v6119 = vmax.f32 %v5854, %v6103
    %v6120 = vmax.f32 %v5855, %v6104
    %v6121 = vmax.f32 %v5856, %v6105
    %v6122 = vmax.f32 %v5857, %v6106
    %v6123 = vmax.f32 %v5858, %v6107
    %v6124 = vsel %vm5923, 1e+30, %v5859
    %v6125 = vsel %vm5924, 1e+30, %v5860
    %v6126 = vsel %vm5925, 1e+30, %v5861
    %v6127 = vsel %vm5926, 1e+30, %v5862
    %v6128 = vsel %vm5927, 1e+30, %v5863
    %v6129 = vsel %vm5928, 1e+30, %v5864
    %v6130 = vsel %vm5929, 1e+30, %v5865
    %v6131 = vsel %vm5930, 1e+30, %v5866
    %v6132 = vsel %vm733, %v6124, inf
    %6133 = vmin.xlane.f32.xlu0 %v6132
    %v6134 = vpop.xlane.xlu0 %6133
    %v6135 = vsel %vm733, %v6125, inf
    %6136 = vmin.xlane.f32.xlu0 %v6135
    %v6137 = vpop.xlane.xlu0 %6136
    %v6138 = vsel %vm733, %v6126, inf
    %6139 = vmin.xlane.f32.xlu0 %v6138
    %v6140 = vpop.xlane.xlu0 %6139
    %v6141 = vsel %vm733, %v6127, inf
    %6142 = vmin.xlane.f32.xlu0 %v6141
    %v6143 = vpop.xlane.xlu0 %6142
    %v6144 = vsel %vm733, %v6128, inf
    %6145 = vmin.xlane.f32.xlu0 %v6144
    %v6146 = vpop.xlane.xlu0 %6145
    %v6147 = vsel %vm733, %v6129, inf
    %6148 = vmin.xlane.f32.xlu0 %v6147
    %v6149 = vpop.xlane.xlu0 %6148
    %v6150 = vsel %vm733, %v6130, inf
    %6151 = vmin.xlane.f32.xlu0 %v6150
    %v6152 = vpop.xlane.xlu0 %6151
    %v6153 = vsel %vm733, %v6131, inf
    %6154 = vmin.xlane.f32.xlu0 %v6153
    %v6155 = vpop.xlane.xlu0 %6154
    %v6164 = vand.u32 %v6134, 63
    %v6165 = vand.u32 %v6137, 63
    %v6166 = vand.u32 %v6140, 63
    %v6167 = vand.u32 %v6143, 63
    %v6168 = vand.u32 %v6146, 63
    %v6169 = vand.u32 %v6149, 63
    %v6170 = vand.u32 %v6152, 63
    %v6171 = vand.u32 %v6155, 63
    %v6172 = vand.u32 %v6134, 4294967232
    %v6173 = vand.u32 %v6137, 4294967232
    %v6174 = vand.u32 %v6140, 4294967232
    %v6175 = vand.u32 %v6143, 4294967232
    %v6176 = vand.u32 %v6146, 4294967232
    %v6177 = vand.u32 %v6149, 4294967232
    %v6178 = vand.u32 %v6152, 4294967232
    %v6179 = vand.u32 %v6155, 4294967232
    %vm6188 = vcmp.eq.s32.totalorder %v700, %v6164
    %vm6189 = vcmp.eq.s32.totalorder %v700, %v6165
    %vm6190 = vcmp.eq.s32.totalorder %v700, %v6166
    %vm6191 = vcmp.eq.s32.totalorder %v700, %v6167
    %vm6192 = vcmp.eq.s32.totalorder %v700, %v6168
    %vm6193 = vcmp.eq.s32.totalorder %v700, %v6169
    %vm6194 = vcmp.eq.s32.totalorder %v700, %v6170
    %vm6195 = vcmp.eq.s32.totalorder %v700, %v6171
    %v6196 = vmul.f32 %v6172, -10.0
    %v6197 = vmul.f32 %v6173, -10.0
    %v6198 = vmul.f32 %v6174, -10.0
    %v6199 = vmul.f32 %v6175, -10.0
    %v6200 = vmul.f32 %v6176, -10.0
    %v6201 = vmul.f32 %v6177, -10.0
    %v6202 = vmul.f32 %v6178, -10.0
    %v6203 = vmul.f32 %v6179, -10.0
    %v6204 = vmul.f32 %v6196, 1.442695
    %v6205 = vpow.pop %v6204
    %v6206 = vmul.f32 %v6197, 1.442695
    %v6207 = vpow.pop %v6206
    %v6208 = vmul.f32 %v6198, 1.442695
    %v6209 = vpow.pop %v6208
    %v6210 = vmul.f32 %v6199, 1.442695
    %v6211 = vpow.pop %v6210
    %v6212 = vmul.f32 %v6200, 1.442695
    %v6213 = vpow.pop %v6212
    %v6214 = vmul.f32 %v6201, 1.442695
    %v6215 = vpow.pop %v6214
    %v6216 = vmul.f32 %v6202, 1.442695
    %v6217 = vpow.pop %v6216
    %v6218 = vmul.f32 %v6203, 1.442695
    %v6219 = vpow.pop %v6218
    %v6220 = vsel %vm6188, 1, 0
    %v6221 = vsel %vm6189, 1, 0
    %v6222 = vsel %vm6190, 1, 0
    %v6223 = vsel %vm6191, 1, 0
    %v6224 = vsel %vm6192, 1, 0
    %v6225 = vsel %vm6193, 1, 0
    %v6226 = vsel %vm6194, 1, 0
    %v6227 = vsel %vm6195, 1, 0
    %v6228 = vcvt.s32.f32 %v6220
    %v6229 = vcvt.s32.f32 %v6221
    %v6230 = vcvt.s32.f32 %v6222
    %v6231 = vcvt.s32.f32 %v6223
    %v6232 = vcvt.s32.f32 %v6224
    %v6233 = vcvt.s32.f32 %v6225
    %v6234 = vcvt.s32.f32 %v6226
    %v6235 = vcvt.s32.f32 %v6227
    %v6237 = vsel %vm733, %v6228, 0
    %v6240 = vsel %vm733, %v6229, 0
    %v6243 = vsel %vm733, %v6230, 0
    %v6246 = vsel %vm733, %v6231, 0
    %v6249 = vsel %vm733, %v6232, 0
    %v6252 = vsel %vm733, %v6233, 0
    %v6255 = vsel %vm733, %v6234, 0
    %v6258 = vsel %vm733, %v6235, 0
    %6260 = vmatprep.subr.mxu0 0.0
    %6261 = vmatpush1.msra.mxu0 0.0
    %6262 = vmatprep.subr.mxu0 0.0
    %6263 = vmatpush1.msra.mxu0 0.0
    %6264 = vmatprep.subr.mxu0 0.0
    %6265 = vmatpush1.msra.mxu0 0.0
    %6266 = vmatprep.subr.mxu0 0.0
    %6267 = vmatpush1.msra.mxu0 0.0
    %6268 = vmatprep.subr.mxu0 0.0
    %6269 = vmatpush1.msra.mxu0 0.0
    %6270 = vmatprep.subr.mxu0 0.0
    %6271 = vmatpush1.msra.mxu0 0.0
    %6272 = vmatprep.subr.mxu0 0.0
    %6273 = vmatpush1.msra.mxu0 0.0
    %6274 = vmatprep.subr.mxu0 0.0
    %6275 = vmatpush1.msra.mxu0 0.0
    %6276 = vmatprep.subr.mxu0 0.0
    %6277 = vmatpush1.msra.mxu0 %v5432
    %6278 = vmatprep.subr.mxu0 0.0
    %6279 = vmatpush1.msra.mxu0 %v5430
    %6280 = vmatprep.subr.mxu0 0.0
    %6281 = vmatpush1.msra.mxu0 %v5428
    %6282 = vmatprep.subr.mxu0 0.0
    %6283 = vmatpush1.msra.mxu0 %v5426
    %6284 = vmatprep.subr.mxu0 0.0
    %6285 = vmatpush1.msra.mxu0 %v5424
    %6286 = vmatprep.subr.mxu0 0.0
    %6287 = vmatpush1.msra.mxu0 %v5422
    %6288 = vmatprep.subr.mxu0 0.0
    %6289 = vmatpush1.msra.mxu0 %v5420
    %6290 = vmatprep.subr.mxu0 0.0
    %6291 = vmatpush1.msra.mxu0 %v5418
    %6292 = vmatprep.subr.mxu0 0.0
    %6293 = vmatpush2.msra.mxu0 0.0
    %6294 = vmatprep.subr.mxu0 0.0
    %6295 = vmatpush2.msra.mxu0 0.0
    %6296 = vmatprep.subr.mxu0 0.0
    %6297 = vmatpush2.msra.mxu0 0.0
    %6298 = vmatprep.subr.mxu0 0.0
    %6299 = vmatpush2.msra.mxu0 0.0
    %6300 = vmatprep.subr.mxu0 0.0
    %6301 = vmatpush2.msra.mxu0 0.0
    %6302 = vmatprep.subr.mxu0 0.0
    %6303 = vmatpush2.msra.mxu0 0.0
    %6304 = vmatprep.subr.mxu0 0.0
    %6305 = vmatpush2.msra.mxu0 0.0
    %6306 = vmatprep.subr.mxu0 0.0
    %6307 = vmatpush2.msra.mxu0 0.0
    %6308 = vmatprep.subr.mxu0 0.0
    %6309 = vmatpush2.msra.mxu0 0.0
    %6310 = vmatprep.subr.mxu0 0.0
    %6311 = vmatpush2.msra.mxu0 0.0
    %6312 = vmatprep.subr.mxu0 0.0
    %6313 = vmatpush2.msra.mxu0 0.0
    %6314 = vmatprep.subr.mxu0 0.0
    %6315 = vmatpush2.msra.mxu0 0.0
    %6316 = vmatprep.subr.mxu0 0.0
    %6317 = vmatpush2.msra.mxu0 0.0
    %6318 = vmatprep.subr.mxu0 0.0
    %6319 = vmatpush2.msra.mxu0 0.0
    %6320 = vmatprep.subr.mxu0 0.0
    %6321 = vmatpush2.msra.mxu0 0.0
    %6322 = vmatprep.subr.mxu0 0.0
    %6323 = vmatpush2.msra.mxu0 0.0
    %6324 = vmatprep.mubr.f32.mxu0 0.0
    %6325 = vmatmul.mubr.f32.gmra.mxu0 %v6237
    %v6326 = vpop.f32.mrf.mxu0
    %v6327 = vadd.f32 0.0, %v6326
    %v6328 = vpop.f32.mrf.mxu0
    %6329 = vmatprep.mubr.f32.mxu0 0.0
    %6330 = vmatmul.mubr.f32.gmra.mxu0 %v6240
    %v6331 = vpop.f32.mrf.mxu0
    %v6332 = vadd.f32 0.0, %v6331
    %v6333 = vpop.f32.mrf.mxu0
    %6334 = vmatprep.mubr.f32.mxu0 0.0
    %6335 = vmatmul.mubr.f32.gmra.mxu0 %v6243
    %v6336 = vpop.f32.mrf.mxu0
    %v6337 = vadd.f32 0.0, %v6336
    %v6338 = vpop.f32.mrf.mxu0
    %6339 = vmatprep.mubr.f32.mxu0 0.0
    %6340 = vmatmul.mubr.f32.gmra.mxu0 %v6246
    %v6341 = vpop.f32.mrf.mxu0
    %v6342 = vadd.f32 0.0, %v6341
    %v6343 = vpop.f32.mrf.mxu0
    %6344 = vmatprep.mubr.f32.mxu0 0.0
    %6345 = vmatmul.mubr.f32.gmra.mxu0 %v6249
    %v6346 = vpop.f32.mrf.mxu0
    %v6347 = vadd.f32 0.0, %v6346
    %v6348 = vpop.f32.mrf.mxu0
    %6349 = vmatprep.mubr.f32.mxu0 0.0
    %6350 = vmatmul.mubr.f32.gmra.mxu0 %v6252
    %v6351 = vpop.f32.mrf.mxu0
    %v6352 = vadd.f32 0.0, %v6351
    %v6353 = vpop.f32.mrf.mxu0
    %6354 = vmatprep.mubr.f32.mxu0 0.0
    %6355 = vmatmul.mubr.f32.gmra.mxu0 %v6255
    %v6356 = vpop.f32.mrf.mxu0
    %v6357 = vadd.f32 0.0, %v6356
    %v6358 = vpop.f32.mrf.mxu0
    %6359 = vmatprep.mubr.f32.mxu0 0.0
    %6360 = vmatmul.mubr.f32.gmra.mxu0 %v6258
    %v6361 = vpop.f32.mrf.mxu0
    %v6362 = vadd.f32 0.0, %v6361
    %v6363 = vpop.f32.mrf.mxu0
    %6364 = vdwg.mxu0
    %v6365 = vmul.f32 %v6205, %v6327
    %v6366 = vmul.f32 %v6207, %v6332
    %v6367 = vmul.f32 %v6209, %v6337
    %v6368 = vmul.f32 %v6211, %v6342
    %v6369 = vmul.f32 %v6213, %v6347
    %v6370 = vmul.f32 %v6215, %v6352
    %v6371 = vmul.f32 %v6217, %v6357
    %v6372 = vmul.f32 %v6219, %v6362
    %v6373 = vadd.f32 %v6108, %v6365
    %v6374 = vadd.f32 %v6109, %v6366
    %v6375 = vadd.f32 %v6110, %v6367
    %v6376 = vadd.f32 %v6111, %v6368
    %v6377 = vadd.f32 %v6112, %v6369
    %v6378 = vadd.f32 %v6113, %v6370
    %v6379 = vadd.f32 %v6114, %v6371
    %v6380 = vadd.f32 %v6115, %v6372
    %v6381 = vmax.f32 %v6116, %v6365
    %v6382 = vmax.f32 %v6117, %v6366
    %v6383 = vmax.f32 %v6118, %v6367
    %v6384 = vmax.f32 %v6119, %v6368
    %v6385 = vmax.f32 %v6120, %v6369
    %v6386 = vmax.f32 %v6121, %v6370
    %v6387 = vmax.f32 %v6122, %v6371
    %v6388 = vmax.f32 %v6123, %v6372
    %v6389 = vmul.f32 %v6373, 0.25
    %v6390 = vmul.f32 %v6374, 0.25
    %v6391 = vmul.f32 %v6375, 0.25
    %v6392 = vmul.f32 %v6376, 0.25
    %v6393 = vmul.f32 %v6377, 0.25
    %v6394 = vmul.f32 %v6378, 0.25
    %v6395 = vmul.f32 %v6379, 0.25
    %v6396 = vmul.f32 %v6380, 0.25
    %v6398 = vsel %vm39, %v6389, 0
    %v6401 = vsel %vm39, %v6390, 0
    %v6404 = vsel %vm39, %v6391, 0
    %v6407 = vsel %vm39, %v6392, 0
    %v6410 = vsel %vm39, %v6393, 0
    %v6413 = vsel %vm39, %v6394, 0
    %v6416 = vsel %vm39, %v6395, 0
    %v6419 = vsel %vm39, %v6396, 0
    %6421 = vmatprep.subr.mxu0 0.0
    %6422 = vmatpush1.msra.mxu0 0.0
    %6423 = vmatprep.subr.mxu0 0.0
    %6424 = vmatpush1.msra.mxu0 0.0
    %6425 = vmatprep.subr.mxu0 0.0
    %6426 = vmatpush1.msra.mxu0 0.0
    %6427 = vmatprep.subr.mxu0 0.0
    %6428 = vmatpush1.msra.mxu0 0.0
    %6429 = vmatprep.subr.mxu0 0.0
    %6430 = vmatpush1.msra.mxu0 0.0
    %6431 = vmatprep.subr.mxu0 0.0
    %6432 = vmatpush1.msra.mxu0 0.0
    %6433 = vmatprep.subr.mxu0 0.0
    %6434 = vmatpush1.msra.mxu0 0.0
    %6435 = vmatprep.subr.mxu0 0.0
    %6436 = vmatpush1.msra.mxu0 0.0
    %6437 = vmatprep.subr.mxu0 0.0
    %6438 = vmatpush1.msra.mxu0 0.0
    %6439 = vmatprep.subr.mxu0 0.0
    %6440 = vmatpush1.msra.mxu0 0.0
    %6441 = vmatprep.subr.mxu0 0.0
    %6442 = vmatpush1.msra.mxu0 0.0
    %6443 = vmatprep.subr.mxu0 0.0
    %6444 = vmatpush1.msra.mxu0 0.0
    %6445 = vmatprep.subr.mxu0 0.0
    %6446 = vmatpush1.msra.mxu0 0.0
    %6447 = vmatprep.subr.mxu0 0.0
    %6448 = vmatpush1.msra.mxu0 0.0
    %6449 = vmatprep.subr.mxu0 0.0
    %6450 = vmatpush1.msra.mxu0 0.0
    %6451 = vmatprep.subr.mxu0 0.0
    %6452 = vmatpush1.msra.mxu0 %v4905
    %6453 = vmatprep.subr.mxu0 0.0
    %6454 = vmatpush2.msra.mxu0 0.0
    %6455 = vmatprep.subr.mxu0 0.0
    %6456 = vmatpush2.msra.mxu0 0.0
    %6457 = vmatprep.subr.mxu0 0.0
    %6458 = vmatpush2.msra.mxu0 0.0
    %6459 = vmatprep.subr.mxu0 0.0
    %6460 = vmatpush2.msra.mxu0 0.0
    %6461 = vmatprep.subr.mxu0 0.0
    %6462 = vmatpush2.msra.mxu0 0.0
    %6463 = vmatprep.subr.mxu0 0.0
    %6464 = vmatpush2.msra.mxu0 0.0
    %6465 = vmatprep.subr.mxu0 0.0
    %6466 = vmatpush2.msra.mxu0 0.0
    %6467 = vmatprep.subr.mxu0 0.0
    %6468 = vmatpush2.msra.mxu0 0.0
    %6469 = vmatprep.subr.mxu0 0.0
    %6470 = vmatpush2.msra.mxu0 0.0
    %6471 = vmatprep.subr.mxu0 0.0
    %6472 = vmatpush2.msra.mxu0 0.0
    %6473 = vmatprep.subr.mxu0 0.0
    %6474 = vmatpush2.msra.mxu0 0.0
    %6475 = vmatprep.subr.mxu0 0.0
    %6476 = vmatpush2.msra.mxu0 0.0
    %6477 = vmatprep.subr.mxu0 0.0
    %6478 = vmatpush2.msra.mxu0 0.0
    %6479 = vmatprep.subr.mxu0 0.0
    %6480 = vmatpush2.msra.mxu0 0.0
    %6481 = vmatprep.subr.mxu0 0.0
    %6482 = vmatpush2.msra.mxu0 0.0
    %6483 = vmatprep.subr.mxu0 0.0
    %6484 = vmatpush2.msra.mxu0 0.0
    %6485 = vmatprep.mubr.f32.mxu0 0.0
    %6486 = vmatmul.mubr.f32.gmra.mxu0 %v6398
    %v6487 = vpop.f32.mrf.mxu0
    %v6488 = vadd.f32 0.0, %v6487
    %v6489 = vpop.f32.mrf.mxu0
    %6490 = vmatprep.mubr.f32.mxu0 0.0
    %6491 = vmatmul.mubr.f32.gmra.mxu0 %v6401
    %v6492 = vpop.f32.mrf.mxu0
    %v6493 = vadd.f32 0.0, %v6492
    %v6494 = vpop.f32.mrf.mxu0
    %6495 = vmatprep.mubr.f32.mxu0 0.0
    %6496 = vmatmul.mubr.f32.gmra.mxu0 %v6404
    %v6497 = vpop.f32.mrf.mxu0
    %v6498 = vadd.f32 0.0, %v6497
    %v6499 = vpop.f32.mrf.mxu0
    %6500 = vmatprep.mubr.f32.mxu0 0.0
    %6501 = vmatmul.mubr.f32.gmra.mxu0 %v6407
    %v6502 = vpop.f32.mrf.mxu0
    %v6503 = vadd.f32 0.0, %v6502
    %v6504 = vpop.f32.mrf.mxu0
    %6505 = vmatprep.mubr.f32.mxu0 0.0
    %6506 = vmatmul.mubr.f32.gmra.mxu0 %v6410
    %v6507 = vpop.f32.mrf.mxu0
    %v6508 = vadd.f32 0.0, %v6507
    %v6509 = vpop.f32.mrf.mxu0
    %6510 = vmatprep.mubr.f32.mxu0 0.0
    %6511 = vmatmul.mubr.f32.gmra.mxu0 %v6413
    %v6512 = vpop.f32.mrf.mxu0
    %v6513 = vadd.f32 0.0, %v6512
    %v6514 = vpop.f32.mrf.mxu0
    %6515 = vmatprep.mubr.f32.mxu0 0.0
    %6516 = vmatmul.mubr.f32.gmra.mxu0 %v6416
    %v6517 = vpop.f32.mrf.mxu0
    %v6518 = vadd.f32 0.0, %v6517
    %v6519 = vpop.f32.mrf.mxu0
    %6520 = vmatprep.mubr.f32.mxu0 0.0
    %6521 = vmatmul.mubr.f32.gmra.mxu0 %v6419
    %v6522 = vpop.f32.mrf.mxu0
    %v6523 = vadd.f32 0.0, %v6522
    %v6524 = vpop.f32.mrf.mxu0
    %6525 = vdwg.mxu0
    %6534 = vrot.lane.b32.xlu0 %v6488, 16
    %v6535 = vpop.permute.xlu0 %6534
    %6536 = vrot.lane.b32.xlu0 %v6493, 16
    %v6537 = vpop.permute.xlu0 %6536
    %6538 = vrot.lane.b32.xlu0 %v6498, 16
    %v6539 = vpop.permute.xlu0 %6538
    %6540 = vrot.lane.b32.xlu0 %v6503, 16
    %v6541 = vpop.permute.xlu0 %6540
    %6542 = vrot.lane.b32.xlu0 %v6508, 16
    %v6543 = vpop.permute.xlu0 %6542
    %6544 = vrot.lane.b32.xlu0 %v6513, 16
    %v6545 = vpop.permute.xlu0 %6544
    %6546 = vrot.lane.b32.xlu0 %v6518, 16
    %v6547 = vpop.permute.xlu0 %6546
    %6548 = vrot.lane.b32.xlu0 %v6523, 16
    %v6549 = vpop.permute.xlu0 %6548
    %v6558 = vadd.f32 %v5002, %v6535
    %v6559 = vadd.f32 %v5007, %v6537
    %v6560 = vadd.f32 %v5012, %v6539
    %v6561 = vadd.f32 %v5017, %v6541
    %v6562 = vadd.f32 %v5022, %v6543
    %v6563 = vadd.f32 %v5027, %v6545
    %v6564 = vadd.f32 %v5032, %v6547
    %v6565 = vadd.f32 %v5037, %v6549
    %v6567 = vsel %vm39, %v6381, 0
    %v6570 = vsel %vm39, %v6382, 0
    %v6573 = vsel %vm39, %v6383, 0
    %v6576 = vsel %vm39, %v6384, 0
    %v6579 = vsel %vm39, %v6385, 0
    %v6582 = vsel %vm39, %v6386, 0
    %v6585 = vsel %vm39, %v6387, 0
    %v6588 = vsel %vm39, %v6388, 0
    %6590 = vmatprep.subr.mxu0 0.0
    %6591 = vmatpush1.msra.mxu0 0.0
    %6592 = vmatprep.subr.mxu0 0.0
    %6593 = vmatpush1.msra.mxu0 0.0
    %6594 = vmatprep.subr.mxu0 0.0
    %6595 = vmatpush1.msra.mxu0 0.0
    %6596 = vmatprep.subr.mxu0 0.0
    %6597 = vmatpush1.msra.mxu0 0.0
    %6598 = vmatprep.subr.mxu0 0.0
    %6599 = vmatpush1.msra.mxu0 0.0
    %6600 = vmatprep.subr.mxu0 0.0
    %6601 = vmatpush1.msra.mxu0 0.0
    %6602 = vmatprep.subr.mxu0 0.0
    %6603 = vmatpush1.msra.mxu0 0.0
    %6604 = vmatprep.subr.mxu0 0.0
    %6605 = vmatpush1.msra.mxu0 0.0
    %6606 = vmatprep.subr.mxu0 0.0
    %6607 = vmatpush1.msra.mxu0 0.0
    %6608 = vmatprep.subr.mxu0 0.0
    %6609 = vmatpush1.msra.mxu0 0.0
    %6610 = vmatprep.subr.mxu0 0.0
    %6611 = vmatpush1.msra.mxu0 0.0
    %6612 = vmatprep.subr.mxu0 0.0
    %6613 = vmatpush1.msra.mxu0 0.0
    %6614 = vmatprep.subr.mxu0 0.0
    %6615 = vmatpush1.msra.mxu0 0.0
    %6616 = vmatprep.subr.mxu0 0.0
    %6617 = vmatpush1.msra.mxu0 0.0
    %6618 = vmatprep.subr.mxu0 0.0
    %6619 = vmatpush1.msra.mxu0 0.0
    %6620 = vmatprep.subr.mxu0 0.0
    %6621 = vmatpush1.msra.mxu0 %v4906
    %6622 = vmatprep.subr.mxu0 0.0
    %6623 = vmatpush2.msra.mxu0 0.0
    %6624 = vmatprep.subr.mxu0 0.0
    %6625 = vmatpush2.msra.mxu0 0.0
    %6626 = vmatprep.subr.mxu0 0.0
    %6627 = vmatpush2.msra.mxu0 0.0
    %6628 = vmatprep.subr.mxu0 0.0
    %6629 = vmatpush2.msra.mxu0 0.0
    %6630 = vmatprep.subr.mxu0 0.0
    %6631 = vmatpush2.msra.mxu0 0.0
    %6632 = vmatprep.subr.mxu0 0.0
    %6633 = vmatpush2.msra.mxu0 0.0
    %6634 = vmatprep.subr.mxu0 0.0
    %6635 = vmatpush2.msra.mxu0 0.0
    %6636 = vmatprep.subr.mxu0 0.0
    %6637 = vmatpush2.msra.mxu0 0.0
    %6638 = vmatprep.subr.mxu0 0.0
    %6639 = vmatpush2.msra.mxu0 0.0
    %6640 = vmatprep.subr.mxu0 0.0
    %6641 = vmatpush2.msra.mxu0 0.0
    %6642 = vmatprep.subr.mxu0 0.0
    %6643 = vmatpush2.msra.mxu0 0.0
    %6644 = vmatprep.subr.mxu0 0.0
    %6645 = vmatpush2.msra.mxu0 0.0
    %6646 = vmatprep.subr.mxu0 0.0
    %6647 = vmatpush2.msra.mxu0 0.0
    %6648 = vmatprep.subr.mxu0 0.0
    %6649 = vmatpush2.msra.mxu0 0.0
    %6650 = vmatprep.subr.mxu0 0.0
    %6651 = vmatpush2.msra.mxu0 0.0
    %6652 = vmatprep.subr.mxu0 0.0
    %6653 = vmatpush2.msra.mxu0 0.0
    %6654 = vmatprep.mubr.f32.mxu0 0.0
    %6655 = vmatmul.mubr.f32.gmra.mxu0 %v6567
    %v6656 = vpop.f32.mrf.mxu0
    %v6657 = vadd.f32 0.0, %v6656
    %v6658 = vpop.f32.mrf.mxu0
    %6659 = vmatprep.mubr.f32.mxu0 0.0
    %6660 = vmatmul.mubr.f32.gmra.mxu0 %v6570
    %v6661 = vpop.f32.mrf.mxu0
    %v6662 = vadd.f32 0.0, %v6661
    %v6663 = vpop.f32.mrf.mxu0
    %6664 = vmatprep.mubr.f32.mxu0 0.0
    %6665 = vmatmul.mubr.f32.gmra.mxu0 %v6573
    %v6666 = vpop.f32.mrf.mxu0
    %v6667 = vadd.f32 0.0, %v6666
    %v6668 = vpop.f32.mrf.mxu0
    %6669 = vmatprep.mubr.f32.mxu0 0.0
    %6670 = vmatmul.mubr.f32.gmra.mxu0 %v6576
    %v6671 = vpop.f32.mrf.mxu0
    %v6672 = vadd.f32 0.0, %v6671
    %v6673 = vpop.f32.mrf.mxu0
    %6674 = vmatprep.mubr.f32.mxu0 0.0
    %6675 = vmatmul.mubr.f32.gmra.mxu0 %v6579
    %v6676 = vpop.f32.mrf.mxu0
    %v6677 = vadd.f32 0.0, %v6676
    %v6678 = vpop.f32.mrf.mxu0
    %6679 = vmatprep.mubr.f32.mxu0 0.0
    %6680 = vmatmul.mubr.f32.gmra.mxu0 %v6582
    %v6681 = vpop.f32.mrf.mxu0
    %v6682 = vadd.f32 0.0, %v6681
    %v6683 = vpop.f32.mrf.mxu0
    %6684 = vmatprep.mubr.f32.mxu0 0.0
    %6685 = vmatmul.mubr.f32.gmra.mxu0 %v6585
    %v6686 = vpop.f32.mrf.mxu0
    %v6687 = vadd.f32 0.0, %v6686
    %v6688 = vpop.f32.mrf.mxu0
    %6689 = vmatprep.mubr.f32.mxu0 0.0
    %6690 = vmatmul.mubr.f32.gmra.mxu0 %v6588
    %v6691 = vpop.f32.mrf.mxu0
    %v6692 = vadd.f32 0.0, %v6691
    %v6693 = vpop.f32.mrf.mxu0
    %6694 = vdwg.mxu0
    %6703 = vrot.lane.b32.xlu0 %v6657, 16
    %v6704 = vpop.permute.xlu0 %6703
    %6705 = vrot.lane.b32.xlu0 %v6662, 16
    %v6706 = vpop.permute.xlu0 %6705
    %6707 = vrot.lane.b32.xlu0 %v6667, 16
    %v6708 = vpop.permute.xlu0 %6707
    %6709 = vrot.lane.b32.xlu0 %v6672, 16
    %v6710 = vpop.permute.xlu0 %6709
    %6711 = vrot.lane.b32.xlu0 %v6677, 16
    %v6712 = vpop.permute.xlu0 %6711
    %6713 = vrot.lane.b32.xlu0 %v6682, 16
    %v6714 = vpop.permute.xlu0 %6713
    %6715 = vrot.lane.b32.xlu0 %v6687, 16
    %v6716 = vpop.permute.xlu0 %6715
    %6717 = vrot.lane.b32.xlu0 %v6692, 16
    %v6718 = vpop.permute.xlu0 %6717
    %v6727 = vadd.f32 %v6558, %v6704
    %v6728 = vadd.f32 %v6559, %v6706
    %v6729 = vadd.f32 %v6560, %v6708
    %v6730 = vadd.f32 %v6561, %v6710
    %v6731 = vadd.f32 %v6562, %v6712
    %v6732 = vadd.f32 %v6563, %v6714
    %v6733 = vadd.f32 %v6564, %v6716
    %v6734 = vadd.f32 %v6565, %v6718
    %v6735 = vld [vmem:[#allocation2 + $0x190] sm:$0xff]
    %v6736 = vld [vmem:[#allocation2 + $0x198] sm:$0xff]
    %v6737 = vld [vmem:[#allocation2 + $0x1a0] sm:$0x1]
    %v6738 = vlaneseq
    %v6739 = vshrl.u32 %v6738, 7
    %v6740 = vsub.s32 0, %v6739
    %v6741 = vrot.slane %v6737, %v6740
    %6750 = vrot.lane.b32.xlu0 %v6727, 112
    %v6751 = vpop.permute.xlu0 %6750
    %6752 = vrot.lane.b32.xlu0 %v6728, 112
    %v6753 = vpop.permute.xlu0 %6752
    %6754 = vrot.lane.b32.xlu0 %v6729, 112
    %v6755 = vpop.permute.xlu0 %6754
    %6756 = vrot.lane.b32.xlu0 %v6730, 112
    %v6757 = vpop.permute.xlu0 %6756
    %6758 = vrot.lane.b32.xlu0 %v6731, 112
    %v6759 = vpop.permute.xlu0 %6758
    %6760 = vrot.lane.b32.xlu0 %v6732, 112
    %v6761 = vpop.permute.xlu0 %6760
    %6762 = vrot.lane.b32.xlu0 %v6733, 112
    %v6763 = vpop.permute.xlu0 %6762
    %6764 = vrot.lane.b32.xlu0 %v6734, 112
    %v6765 = vpop.permute.xlu0 %6764
    %v6766 = vsel %vm2195, %v6751, 0
    %v6768 = vsel %vm2195, %v6753, 0
    %v6770 = vsel %vm2195, %v6755, 0
    %v6772 = vsel %vm2195, %v6757, 0
    %v6774 = vsel %vm2195, %v6759, 0
    %v6776 = vsel %vm2195, %v6761, 0
    %v6778 = vsel %vm2195, %v6763, 0
    %v6780 = vsel %vm2195, %v6765, 0
    %6782 = vmatprep.subr.mxu0 0.0
    %6783 = vmatpush1.msra.mxu0 0.0
    %6784 = vmatprep.subr.mxu0 0.0
    %6785 = vmatpush1.msra.mxu0 0.0
    %6786 = vmatprep.subr.mxu0 0.0
    %6787 = vmatpush1.msra.mxu0 0.0
    %6788 = vmatprep.subr.mxu0 0.0
    %6789 = vmatpush1.msra.mxu0 0.0
    %6790 = vmatprep.subr.mxu0 0.0
    %6791 = vmatpush1.msra.mxu0 0.0
    %6792 = vmatprep.subr.mxu0 0.0
    %6793 = vmatpush1.msra.mxu0 0.0
    %6794 = vmatprep.subr.mxu0 0.0
    %6795 = vmatpush1.msra.mxu0 0.0
    %6796 = vmatprep.subr.mxu0 0.0
    %6797 = vmatpush1.msra.mxu0 0.0
    %6798 = vmatprep.subr.mxu0 0.0
    %6799 = vmatpush1.msra.mxu0 0.0
    %6800 = vmatprep.subr.mxu0 0.0
    %6801 = vmatpush1.msra.mxu0 0.0
    %6802 = vmatprep.subr.mxu0 0.0
    %6803 = vmatpush1.msra.mxu0 0.0
    %6804 = vmatprep.subr.mxu0 0.0
    %6805 = vmatpush1.msra.mxu0 0.0
    %6806 = vmatprep.subr.mxu0 0.0
    %6807 = vmatpush1.msra.mxu0 0.0
    %6808 = vmatprep.subr.mxu0 0.0
    %6809 = vmatpush1.msra.mxu0 0.0
    %6810 = vmatprep.subr.mxu0 0.0
    %6811 = vmatpush1.msra.mxu0 %v6736
    %6812 = vmatprep.subr.mxu0 0.0
    %6813 = vmatpush1.msra.mxu0 %v6735
    %6814 = vmatprep.subr.mxu0 0.0
    %6815 = vmatpush2.msra.mxu0 0.0
    %6816 = vmatprep.subr.mxu0 0.0
    %6817 = vmatpush2.msra.mxu0 0.0
    %6818 = vmatprep.subr.mxu0 0.0
    %6819 = vmatpush2.msra.mxu0 0.0
    %6820 = vmatprep.subr.mxu0 0.0
    %6821 = vmatpush2.msra.mxu0 0.0
    %6822 = vmatprep.subr.mxu0 0.0
    %6823 = vmatpush2.msra.mxu0 0.0
    %6824 = vmatprep.subr.mxu0 0.0
    %6825 = vmatpush2.msra.mxu0 0.0
    %6826 = vmatprep.subr.mxu0 0.0
    %6827 = vmatpush2.msra.mxu0 0.0
    %6828 = vmatprep.subr.mxu0 0.0
    %6829 = vmatpush2.msra.mxu0 0.0
    %6830 = vmatprep.subr.mxu0 0.0
    %6831 = vmatpush2.msra.mxu0 0.0
    %6832 = vmatprep.subr.mxu0 0.0
    %6833 = vmatpush2.msra.mxu0 0.0
    %6834 = vmatprep.subr.mxu0 0.0
    %6835 = vmatpush2.msra.mxu0 0.0
    %6836 = vmatprep.subr.mxu0 0.0
    %6837 = vmatpush2.msra.mxu0 0.0
    %6838 = vmatprep.subr.mxu0 0.0
    %6839 = vmatpush2.msra.mxu0 0.0
    %6840 = vmatprep.subr.mxu0 0.0
    %6841 = vmatpush2.msra.mxu0 0.0
    %6842 = vmatprep.subr.mxu0 0.0
    %6843 = vmatpush2.msra.mxu0 0.0
    %6844 = vmatprep.subr.mxu0 0.0
    %6845 = vmatpush2.msra.mxu0 0.0
    %6846 = vmatprep.mubr.f32.mxu0 0.0
    %6847 = vmatmul.mubr.f32.gmra.mxu0 %v6766
    %v6848 = vpop.f32.mrf.mxu0
    %v6849 = vadd.f32 %v6741, %v6848
    %v6850 = vpop.f32.mrf.mxu0
    %6851 = vmatprep.mubr.f32.mxu0 0.0
    %6852 = vmatmul.mubr.f32.gmra.mxu0 %v6768
    %v6853 = vpop.f32.mrf.mxu0
    %v6854 = vadd.f32 %v6741, %v6853
    %v6855 = vpop.f32.mrf.mxu0
    %6856 = vmatprep.mubr.f32.mxu0 0.0
    %6857 = vmatmul.mubr.f32.gmra.mxu0 %v6770
    %v6858 = vpop.f32.mrf.mxu0
    %v6859 = vadd.f32 %v6741, %v6858
    %v6860 = vpop.f32.mrf.mxu0
    %6861 = vmatprep.mubr.f32.mxu0 0.0
    %6862 = vmatmul.mubr.f32.gmra.mxu0 %v6772
    %v6863 = vpop.f32.mrf.mxu0
    %v6864 = vadd.f32 %v6741, %v6863
    %v6865 = vpop.f32.mrf.mxu0
    %6866 = vmatprep.mubr.f32.mxu0 0.0
    %6867 = vmatmul.mubr.f32.gmra.mxu0 %v6774
    %v6868 = vpop.f32.mrf.mxu0
    %v6869 = vadd.f32 %v6741, %v6868
    %v6870 = vpop.f32.mrf.mxu0
    %6871 = vmatprep.mubr.f32.mxu0 0.0
    %6872 = vmatmul.mubr.f32.gmra.mxu0 %v6776
    %v6873 = vpop.f32.mrf.mxu0
    %v6874 = vadd.f32 %v6741, %v6873
    %v6875 = vpop.f32.mrf.mxu0
    %6876 = vmatprep.mubr.f32.mxu0 0.0
    %6877 = vmatmul.mubr.f32.gmra.mxu0 %v6778
    %v6878 = vpop.f32.mrf.mxu0
    %v6879 = vadd.f32 %v6741, %v6878
    %v6880 = vpop.f32.mrf.mxu0
    %6881 = vmatprep.mubr.f32.mxu0 0.0
    %6882 = vmatmul.mubr.f32.gmra.mxu0 %v6780
    %v6883 = vpop.f32.mrf.mxu0
    %v6884 = vadd.f32 %v6741, %v6883
    %v6885 = vpop.f32.mrf.mxu0
    %6886 = vdwg.mxu0
    %v6887 = vmax.f32 %v6849, 0.0
    %v6888 = vmax.f32 %v6854, 0.0
    %v6889 = vmax.f32 %v6859, 0.0
    %v6890 = vmax.f32 %v6864, 0.0
    %v6891 = vmax.f32 %v6869, 0.0
    %v6892 = vmax.f32 %v6874, 0.0
    %v6893 = vmax.f32 %v6879, 0.0
    %v6894 = vmax.f32 %v6884, 0.0
    %v6895 = vld [vmem:[#allocation2 + $0x1a8] sm:$0xff]
    %v6896 = vld [vmem:[#allocation2 + $0x1b0] sm:$0xff]
    %v6897 = vld [vmem:[#allocation2 + $0x1b8] sm:$0xff]
    %v6898 = vld [vmem:[#allocation2 + $0x1c0] sm:$0xff]
    %v6899 = vld [vmem:[#allocation2 + $0x1c8] sm:$0x1]
    %v6900 = vlaneseq
    %v6901 = vshrl.u32 %v6900, 7
    %v6902 = vsub.s32 0, %v6901
    %v6903 = vrot.slane %v6899, %v6902
    %v6905 = vsel %vm186, %v6887, 0
    %v6908 = vsel %vm186, %v6888, 0
    %v6911 = vsel %vm186, %v6889, 0
    %v6914 = vsel %vm186, %v6890, 0
    %v6917 = vsel %vm186, %v6891, 0
    %v6920 = vsel %vm186, %v6892, 0
    %v6923 = vsel %vm186, %v6893, 0
    %v6926 = vsel %vm186, %v6894, 0
    %6928 = vmatprep.subr.mxu0 0.0
    %6929 = vmatpush1.msra.mxu0 0.0
    %6930 = vmatprep.subr.mxu0 0.0
    %6931 = vmatpush1.msra.mxu0 0.0
    %6932 = vmatprep.subr.mxu0 0.0
    %6933 = vmatpush1.msra.mxu0 0.0
    %6934 = vmatprep.subr.mxu0 0.0
    %6935 = vmatpush1.msra.mxu0 0.0
    %6936 = vmatprep.subr.mxu0 0.0
    %6937 = vmatpush1.msra.mxu0 0.0
    %6938 = vmatprep.subr.mxu0 0.0
    %6939 = vmatpush1.msra.mxu0 0.0
    %6940 = vmatprep.subr.mxu0 0.0
    %6941 = vmatpush1.msra.mxu0 0.0
    %6942 = vmatprep.subr.mxu0 0.0
    %6943 = vmatpush1.msra.mxu0 0.0
    %6944 = vmatprep.subr.mxu0 0.0
    %6945 = vmatpush1.msra.mxu0 0.0
    %6946 = vmatprep.subr.mxu0 0.0
    %6947 = vmatpush1.msra.mxu0 0.0
    %6948 = vmatprep.subr.mxu0 0.0
    %6949 = vmatpush1.msra.mxu0 0.0
    %6950 = vmatprep.subr.mxu0 0.0
    %6951 = vmatpush1.msra.mxu0 0.0
    %6952 = vmatprep.subr.mxu0 0.0
    %6953 = vmatpush1.msra.mxu0 %v6898
    %6954 = vmatprep.subr.mxu0 0.0
    %6955 = vmatpush1.msra.mxu0 %v6897
    %6956 = vmatprep.subr.mxu0 0.0
    %6957 = vmatpush1.msra.mxu0 %v6896
    %6958 = vmatprep.subr.mxu0 0.0
    %6959 = vmatpush1.msra.mxu0 %v6895
    %6960 = vmatprep.subr.mxu0 0.0
    %6961 = vmatpush2.msra.mxu0 0.0
    %6962 = vmatprep.subr.mxu0 0.0
    %6963 = vmatpush2.msra.mxu0 0.0
    %6964 = vmatprep.subr.mxu0 0.0
    %6965 = vmatpush2.msra.mxu0 0.0
    %6966 = vmatprep.subr.mxu0 0.0
    %6967 = vmatpush2.msra.mxu0 0.0
    %6968 = vmatprep.subr.mxu0 0.0
    %6969 = vmatpush2.msra.mxu0 0.0
    %6970 = vmatprep.subr.mxu0 0.0
    %6971 = vmatpush2.msra.mxu0 0.0
    %6972 = vmatprep.subr.mxu0 0.0
    %6973 = vmatpush2.msra.mxu0 0.0
    %6974 = vmatprep.subr.mxu0 0.0
    %6975 = vmatpush2.msra.mxu0 0.0
    %6976 = vmatprep.subr.mxu0 0.0
    %6977 = vmatpush2.msra.mxu0 0.0
    %6978 = vmatprep.subr.mxu0 0.0
    %6979 = vmatpush2.msra.mxu0 0.0
    %6980 = vmatprep.subr.mxu0 0.0
    %6981 = vmatpush2.msra.mxu0 0.0
    %6982 = vmatprep.subr.mxu0 0.0
    %6983 = vmatpush2.msra.mxu0 0.0
    %6984 = vmatprep.subr.mxu0 0.0
    %6985 = vmatpush2.msra.mxu0 0.0
    %6986 = vmatprep.subr.mxu0 0.0
    %6987 = vmatpush2.msra.mxu0 0.0
    %6988 = vmatprep.subr.mxu0 0.0
    %6989 = vmatpush2.msra.mxu0 0.0
    %6990 = vmatprep.subr.mxu0 0.0
    %6991 = vmatpush2.msra.mxu0 0.0
    %6992 = vmatprep.mubr.f32.mxu0 0.0
    %6993 = vmatmul.mubr.f32.gmra.mxu0 %v6905
    %v6994 = vpop.f32.mrf.mxu0
    %v6995 = vadd.f32 %v6903, %v6994
    %v6996 = vpop.f32.mrf.mxu0
    %6997 = vmatprep.mubr.f32.mxu0 0.0
    %6998 = vmatmul.mubr.f32.gmra.mxu0 %v6908
    %v6999 = vpop.f32.mrf.mxu0
    %v7000 = vadd.f32 %v6903, %v6999
    %v7001 = vpop.f32.mrf.mxu0
    %7002 = vmatprep.mubr.f32.mxu0 0.0
    %7003 = vmatmul.mubr.f32.gmra.mxu0 %v6911
    %v7004 = vpop.f32.mrf.mxu0
    %v7005 = vadd.f32 %v6903, %v7004
    %v7006 = vpop.f32.mrf.mxu0
    %7007 = vmatprep.mubr.f32.mxu0 0.0
    %7008 = vmatmul.mubr.f32.gmra.mxu0 %v6914
    %v7009 = vpop.f32.mrf.mxu0
    %v7010 = vadd.f32 %v6903, %v7009
    %v7011 = vpop.f32.mrf.mxu0
    %7012 = vmatprep.mubr.f32.mxu0 0.0
    %7013 = vmatmul.mubr.f32.gmra.mxu0 %v6917
    %v7014 = vpop.f32.mrf.mxu0
    %v7015 = vadd.f32 %v6903, %v7014
    %v7016 = vpop.f32.mrf.mxu0
    %7017 = vmatprep.mubr.f32.mxu0 0.0
    %7018 = vmatmul.mubr.f32.gmra.mxu0 %v6920
    %v7019 = vpop.f32.mrf.mxu0
    %v7020 = vadd.f32 %v6903, %v7019
    %v7021 = vpop.f32.mrf.mxu0
    %7022 = vmatprep.mubr.f32.mxu0 0.0
    %7023 = vmatmul.mubr.f32.gmra.mxu0 %v6923
    %v7024 = vpop.f32.mrf.mxu0
    %v7025 = vadd.f32 %v6903, %v7024
    %v7026 = vpop.f32.mrf.mxu0
    %7027 = vmatprep.mubr.f32.mxu0 0.0
    %7028 = vmatmul.mubr.f32.gmra.mxu0 %v6926
    %v7029 = vpop.f32.mrf.mxu0
    %v7030 = vadd.f32 %v6903, %v7029
    %v7031 = vpop.f32.mrf.mxu0
    %7032 = vdwg.mxu0
    %v7033 = vmax.f32 %v6995, 0.0
    %v7034 = vmax.f32 %v7000, 0.0
    %v7035 = vmax.f32 %v7005, 0.0
    %v7036 = vmax.f32 %v7010, 0.0
    %v7037 = vmax.f32 %v7015, 0.0
    %v7038 = vmax.f32 %v7020, 0.0
    %v7039 = vmax.f32 %v7025, 0.0
    %v7040 = vmax.f32 %v7030, 0.0
    %v7041 = vld [vmem:[#allocation2 + $0x1d0] sm:$0xff]
    %v7042 = vld [vmem:[#allocation2 + $0x1d8] sm:$0xff]
    %v7043 = vld [vmem:[#allocation2 + $0x1e0] sm:$0xff]
    %v7044 = vld [vmem:[#allocation2 + $0x1e8] sm:$0xff]
    %v7045 = vld [vmem:[#allocation2 + $0x1f0] sm:$0x1]
    %v7046 = vlaneseq
    %v7047 = vshrl.u32 %v7046, 7
    %v7048 = vsub.s32 0, %v7047
    %v7049 = vrot.slane %v7045, %v7048
    %v7051 = vsel %vm186, %v7033, 0
    %v7054 = vsel %vm186, %v7034, 0
    %v7057 = vsel %vm186, %v7035, 0
    %v7060 = vsel %vm186, %v7036, 0
    %v7063 = vsel %vm186, %v7037, 0
    %v7066 = vsel %vm186, %v7038, 0
    %v7069 = vsel %vm186, %v7039, 0
    %v7072 = vsel %vm186, %v7040, 0
    %7074 = vmatprep.subr.mxu0 0.0
    %7075 = vmatpush1.msra.mxu0 0.0
    %7076 = vmatprep.subr.mxu0 0.0
    %7077 = vmatpush1.msra.mxu0 0.0
    %7078 = vmatprep.subr.mxu0 0.0
    %7079 = vmatpush1.msra.mxu0 0.0
    %7080 = vmatprep.subr.mxu0 0.0
    %7081 = vmatpush1.msra.mxu0 0.0
    %7082 = vmatprep.subr.mxu0 0.0
    %7083 = vmatpush1.msra.mxu0 0.0
    %7084 = vmatprep.subr.mxu0 0.0
    %7085 = vmatpush1.msra.mxu0 0.0
    %7086 = vmatprep.subr.mxu0 0.0
    %7087 = vmatpush1.msra.mxu0 0.0
    %7088 = vmatprep.subr.mxu0 0.0
    %7089 = vmatpush1.msra.mxu0 0.0
    %7090 = vmatprep.subr.mxu0 0.0
    %7091 = vmatpush1.msra.mxu0 0.0
    %7092 = vmatprep.subr.mxu0 0.0
    %7093 = vmatpush1.msra.mxu0 0.0
    %7094 = vmatprep.subr.mxu0 0.0
    %7095 = vmatpush1.msra.mxu0 0.0
    %7096 = vmatprep.subr.mxu0 0.0
    %7097 = vmatpush1.msra.mxu0 0.0
    %7098 = vmatprep.subr.mxu0 0.0
    %7099 = vmatpush1.msra.mxu0 %v7044
    %7100 = vmatprep.subr.mxu0 0.0
    %7101 = vmatpush1.msra.mxu0 %v7043
    %7102 = vmatprep.subr.mxu0 0.0
    %7103 = vmatpush1.msra.mxu0 %v7042
    %7104 = vmatprep.subr.mxu0 0.0
    %7105 = vmatpush1.msra.mxu0 %v7041
    %7106 = vmatprep.subr.mxu0 0.0
    %7107 = vmatpush2.msra.mxu0 0.0
    %7108 = vmatprep.subr.mxu0 0.0
    %7109 = vmatpush2.msra.mxu0 0.0
    %7110 = vmatprep.subr.mxu0 0.0
    %7111 = vmatpush2.msra.mxu0 0.0
    %7112 = vmatprep.subr.mxu0 0.0
    %7113 = vmatpush2.msra.mxu0 0.0
    %7114 = vmatprep.subr.mxu0 0.0
    %7115 = vmatpush2.msra.mxu0 0.0
    %7116 = vmatprep.subr.mxu0 0.0
    %7117 = vmatpush2.msra.mxu0 0.0
    %7118 = vmatprep.subr.mxu0 0.0
    %7119 = vmatpush2.msra.mxu0 0.0
    %7120 = vmatprep.subr.mxu0 0.0
    %7121 = vmatpush2.msra.mxu0 0.0
    %7122 = vmatprep.subr.mxu0 0.0
    %7123 = vmatpush2.msra.mxu0 0.0
    %7124 = vmatprep.subr.mxu0 0.0
    %7125 = vmatpush2.msra.mxu0 0.0
    %7126 = vmatprep.subr.mxu0 0.0
    %7127 = vmatpush2.msra.mxu0 0.0
    %7128 = vmatprep.subr.mxu0 0.0
    %7129 = vmatpush2.msra.mxu0 0.0
    %7130 = vmatprep.subr.mxu0 0.0
    %7131 = vmatpush2.msra.mxu0 0.0
    %7132 = vmatprep.subr.mxu0 0.0
    %7133 = vmatpush2.msra.mxu0 0.0
    %7134 = vmatprep.subr.mxu0 0.0
    %7135 = vmatpush2.msra.mxu0 0.0
    %7136 = vmatprep.subr.mxu0 0.0
    %7137 = vmatpush2.msra.mxu0 0.0
    %7138 = vmatprep.mubr.f32.mxu0 0.0
    %7139 = vmatmul.mubr.f32.gmra.mxu0 %v7051
    %v7140 = vpop.f32.mrf.mxu0
    %v7141 = vadd.f32 %v7049, %v7140
    %v7142 = vpop.f32.mrf.mxu0
    %7143 = vmatprep.mubr.f32.mxu0 0.0
    %7144 = vmatmul.mubr.f32.gmra.mxu0 %v7054
    %v7145 = vpop.f32.mrf.mxu0
    %v7146 = vadd.f32 %v7049, %v7145
    %v7147 = vpop.f32.mrf.mxu0
    %7148 = vmatprep.mubr.f32.mxu0 0.0
    %7149 = vmatmul.mubr.f32.gmra.mxu0 %v7057
    %v7150 = vpop.f32.mrf.mxu0
    %v7151 = vadd.f32 %v7049, %v7150
    %v7152 = vpop.f32.mrf.mxu0
    %7153 = vmatprep.mubr.f32.mxu0 0.0
    %7154 = vmatmul.mubr.f32.gmra.mxu0 %v7060
    %v7155 = vpop.f32.mrf.mxu0
    %v7156 = vadd.f32 %v7049, %v7155
    %v7157 = vpop.f32.mrf.mxu0
    %7158 = vmatprep.mubr.f32.mxu0 0.0
    %7159 = vmatmul.mubr.f32.gmra.mxu0 %v7063
    %v7160 = vpop.f32.mrf.mxu0
    %v7161 = vadd.f32 %v7049, %v7160
    %v7162 = vpop.f32.mrf.mxu0
    %7163 = vmatprep.mubr.f32.mxu0 0.0
    %7164 = vmatmul.mubr.f32.gmra.mxu0 %v7066
    %v7165 = vpop.f32.mrf.mxu0
    %v7166 = vadd.f32 %v7049, %v7165
    %v7167 = vpop.f32.mrf.mxu0
    %7168 = vmatprep.mubr.f32.mxu0 0.0
    %7169 = vmatmul.mubr.f32.gmra.mxu0 %v7069
    %v7170 = vpop.f32.mrf.mxu0
    %v7171 = vadd.f32 %v7049, %v7170
    %v7172 = vpop.f32.mrf.mxu0
    %7173 = vmatprep.mubr.f32.mxu0 0.0
    %7174 = vmatmul.mubr.f32.gmra.mxu0 %v7072
    %v7175 = vpop.f32.mrf.mxu0
    %v7176 = vadd.f32 %v7049, %v7175
    %v7177 = vpop.f32.mrf.mxu0
    %7178 = vdwg.mxu0
    %v7179 = vmax.f32 %v7141, 0.0
    %v7180 = vmax.f32 %v7146, 0.0
    %v7181 = vmax.f32 %v7151, 0.0
    %v7182 = vmax.f32 %v7156, 0.0
    %v7183 = vmax.f32 %v7161, 0.0
    %v7184 = vmax.f32 %v7166, 0.0
    %v7185 = vmax.f32 %v7171, 0.0
    %v7186 = vmax.f32 %v7176, 0.0
    %v7187 = vld [vmem:[#allocation2 + $0x1f8] sm:$0xff]
    %v7188 = vld [vmem:[#allocation2 + $0x200] sm:$0xff]
    %v7189 = vld [vmem:[#allocation2 + $0x208] sm:$0x1]
    %v7190 = vld [vmem:[#allocation2 + $0x210] sm:$0xff]
    %v7191 = vld [vmem:[#allocation2 + $0x218] sm:$0xff]
    %v7192 = vlaneseq
    %v7193 = vshrl.u32 %v7192, 7
    %v7194 = vsub.s32 0, %v7193
    %v7195 = vrot.slane %v7189, %v7194
    %v7197 = vsel %vm2195, %v7179, 0
    %v7200 = vsel %vm2195, %v7180, 0
    %v7203 = vsel %vm2195, %v7181, 0
    %v7206 = vsel %vm2195, %v7182, 0
    %v7209 = vsel %vm2195, %v7183, 0
    %v7212 = vsel %vm2195, %v7184, 0
    %v7215 = vsel %vm2195, %v7185, 0
    %v7218 = vsel %vm2195, %v7186, 0
    %7220 = vmatprep.subr.mxu0 0.0
    %7221 = vmatpush1.msra.mxu0 0.0
    %7222 = vmatprep.subr.mxu0 0.0
    %7223 = vmatpush1.msra.mxu0 0.0
    %7224 = vmatprep.subr.mxu0 0.0
    %7225 = vmatpush1.msra.mxu0 0.0
    %7226 = vmatprep.subr.mxu0 0.0
    %7227 = vmatpush1.msra.mxu0 0.0
    %7228 = vmatprep.subr.mxu0 0.0
    %7229 = vmatpush1.msra.mxu0 0.0
    %7230 = vmatprep.subr.mxu0 0.0
    %7231 = vmatpush1.msra.mxu0 0.0
    %7232 = vmatprep.subr.mxu0 0.0
    %7233 = vmatpush1.msra.mxu0 0.0
    %7234 = vmatprep.subr.mxu0 0.0
    %7235 = vmatpush1.msra.mxu0 0.0
    %7236 = vmatprep.subr.mxu0 0.0
    %7237 = vmatpush1.msra.mxu0 0.0
    %7238 = vmatprep.subr.mxu0 0.0
    %7239 = vmatpush1.msra.mxu0 0.0
    %7240 = vmatprep.subr.mxu0 0.0
    %7241 = vmatpush1.msra.mxu0 0.0
    %7242 = vmatprep.subr.mxu0 0.0
    %7243 = vmatpush1.msra.mxu0 0.0
    %7244 = vmatprep.subr.mxu0 0.0
    %7245 = vmatpush1.msra.mxu0 0.0
    %7246 = vmatprep.subr.mxu0 0.0
    %7247 = vmatpush1.msra.mxu0 0.0
    %7248 = vmatprep.subr.mxu0 0.0
    %7249 = vmatpush1.msra.mxu0 %v7188
    %7250 = vmatprep.subr.mxu0 0.0
    %7251 = vmatpush1.msra.mxu0 %v7187
    %7252 = vmatprep.subr.mxu0 0.0
    %7253 = vmatpush2.msra.mxu0 0.0
    %7254 = vmatprep.subr.mxu0 0.0
    %7255 = vmatpush2.msra.mxu0 0.0
    %7256 = vmatprep.subr.mxu0 0.0
    %7257 = vmatpush2.msra.mxu0 0.0
    %7258 = vmatprep.subr.mxu0 0.0
    %7259 = vmatpush2.msra.mxu0 0.0
    %7260 = vmatprep.subr.mxu0 0.0
    %7261 = vmatpush2.msra.mxu0 0.0
    %7262 = vmatprep.subr.mxu0 0.0
    %7263 = vmatpush2.msra.mxu0 0.0
    %7264 = vmatprep.subr.mxu0 0.0
    %7265 = vmatpush2.msra.mxu0 0.0
    %7266 = vmatprep.subr.mxu0 0.0
    %7267 = vmatpush2.msra.mxu0 0.0
    %7268 = vmatprep.subr.mxu0 0.0
    %7269 = vmatpush2.msra.mxu0 0.0
    %7270 = vmatprep.subr.mxu0 0.0
    %7271 = vmatpush2.msra.mxu0 0.0
    %7272 = vmatprep.subr.mxu0 0.0
    %7273 = vmatpush2.msra.mxu0 0.0
    %7274 = vmatprep.subr.mxu0 0.0
    %7275 = vmatpush2.msra.mxu0 0.0
    %7276 = vmatprep.subr.mxu0 0.0
    %7277 = vmatpush2.msra.mxu0 0.0
    %7278 = vmatprep.subr.mxu0 0.0
    %7279 = vmatpush2.msra.mxu0 0.0
    %7280 = vmatprep.subr.mxu0 0.0
    %7281 = vmatpush2.msra.mxu0 0.0
    %7282 = vmatprep.subr.mxu0 0.0
    %7283 = vmatpush2.msra.mxu0 0.0
    %7284 = vmatprep.mubr.f32.mxu0 0.0
    %7285 = vmatmul.mubr.f32.gmra.mxu0 %v7197
    %v7286 = vpop.f32.mrf.mxu0
    %v7287 = vadd.f32 %v7195, %v7286
    %v7288 = vpop.f32.mrf.mxu0
    %7289 = vmatprep.mubr.f32.mxu0 0.0
    %7290 = vmatmul.mubr.f32.gmra.mxu0 %v7200
    %v7291 = vpop.f32.mrf.mxu0
    %v7292 = vadd.f32 %v7195, %v7291
    %v7293 = vpop.f32.mrf.mxu0
    %7294 = vmatprep.mubr.f32.mxu0 0.0
    %7295 = vmatmul.mubr.f32.gmra.mxu0 %v7203
    %v7296 = vpop.f32.mrf.mxu0
    %v7297 = vadd.f32 %v7195, %v7296
    %v7298 = vpop.f32.mrf.mxu0
    %7299 = vmatprep.mubr.f32.mxu0 0.0
    %7300 = vmatmul.mubr.f32.gmra.mxu0 %v7206
    %v7301 = vpop.f32.mrf.mxu0
    %v7302 = vadd.f32 %v7195, %v7301
    %v7303 = vpop.f32.mrf.mxu0
    %7304 = vmatprep.mubr.f32.mxu0 0.0
    %7305 = vmatmul.mubr.f32.gmra.mxu0 %v7209
    %v7306 = vpop.f32.mrf.mxu0
    %v7307 = vadd.f32 %v7195, %v7306
    %v7308 = vpop.f32.mrf.mxu0
    %7309 = vmatprep.mubr.f32.mxu0 0.0
    %7310 = vmatmul.mubr.f32.gmra.mxu0 %v7212
    %v7311 = vpop.f32.mrf.mxu0
    %v7312 = vadd.f32 %v7195, %v7311
    %v7313 = vpop.f32.mrf.mxu0
    %7314 = vmatprep.mubr.f32.mxu0 0.0
    %7315 = vmatmul.mubr.f32.gmra.mxu0 %v7215
    %v7316 = vpop.f32.mrf.mxu0
    %v7317 = vadd.f32 %v7195, %v7316
    %v7318 = vpop.f32.mrf.mxu0
    %7319 = vmatprep.mubr.f32.mxu0 0.0
    %7320 = vmatmul.mubr.f32.gmra.mxu0 %v7218
    %v7321 = vpop.f32.mrf.mxu0
    %v7322 = vadd.f32 %v7195, %v7321
    %v7323 = vpop.f32.mrf.mxu0
    %7324 = vdwg.mxu0
    %v7325 = vmul.f32 %v7287, %v7287
    %v7326 = vmul.f32 %v7292, %v7292
    %v7327 = vmul.f32 %v7297, %v7297
    %v7328 = vmul.f32 %v7302, %v7302
    %v7329 = vmul.f32 %v7307, %v7307
    %v7330 = vmul.f32 %v7312, %v7312
    %v7331 = vmul.f32 %v7317, %v7317
    %v7332 = vmul.f32 %v7322, %v7322
    %v7333 = vsel %vm39, %v7325, 0.0
    %7334 = vadd.xlane.f32.xlu0 %v7333
    %v7335 = vpop.xlane.xlu0 %7334
    %v7336 = vsel %vm39, %v7326, 0.0
    %7337 = vadd.xlane.f32.xlu0 %v7336
    %v7338 = vpop.xlane.xlu0 %7337
    %v7339 = vsel %vm39, %v7327, 0.0
    %7340 = vadd.xlane.f32.xlu0 %v7339
    %v7341 = vpop.xlane.xlu0 %7340
    %v7342 = vsel %vm39, %v7328, 0.0
    %7343 = vadd.xlane.f32.xlu0 %v7342
    %v7344 = vpop.xlane.xlu0 %7343
    %v7345 = vsel %vm39, %v7329, 0.0
    %7346 = vadd.xlane.f32.xlu0 %v7345
    %v7347 = vpop.xlane.xlu0 %7346
    %v7348 = vsel %vm39, %v7330, 0.0
    %7349 = vadd.xlane.f32.xlu0 %v7348
    %v7350 = vpop.xlane.xlu0 %7349
    %v7351 = vsel %vm39, %v7331, 0.0
    %7352 = vadd.xlane.f32.xlu0 %v7351
    %v7353 = vpop.xlane.xlu0 %7352
    %v7354 = vsel %vm39, %v7332, 0.0
    %7355 = vadd.xlane.f32.xlu0 %v7354
    %v7356 = vpop.xlane.xlu0 %7355
    %v7357 = vmul.f32 %v7287, -2.0
    %v7358 = vmul.f32 %v7292, -2.0
    %v7359 = vmul.f32 %v7297, -2.0
    %v7360 = vmul.f32 %v7302, -2.0
    %v7361 = vmul.f32 %v7307, -2.0
    %v7362 = vmul.f32 %v7312, -2.0
    %v7363 = vmul.f32 %v7317, -2.0
    %v7364 = vmul.f32 %v7322, -2.0
    %v7365 = vsel %vm39, %v7357, 1.0
    %v7366 = vsel %vm39, %v7358, 1.0
    %v7367 = vsel %vm39, %v7359, 1.0
    %v7368 = vsel %vm39, %v7360, 1.0
    %v7369 = vsel %vm39, %v7361, 1.0
    %v7370 = vsel %vm39, %v7362, 1.0
    %v7371 = vsel %vm39, %v7363, 1.0
    %v7372 = vsel %vm39, %v7364, 1.0
    %v7373 = vsel %vm512, %v7365, %v7335
    %v7374 = vsel %vm512, %v7366, %v7338
    %v7375 = vsel %vm512, %v7367, %v7341
    %v7376 = vsel %vm512, %v7368, %v7344
    %v7377 = vsel %vm512, %v7369, %v7347
    %v7378 = vsel %vm512, %v7370, %v7350
    %v7379 = vsel %vm512, %v7371, %v7353
    %v7380 = vsel %vm512, %v7372, %v7356
    %v7381 = vsel %vm39, %v7287, %v7335
    %v7382 = vsel %vm39, %v7292, %v7338
    %v7383 = vsel %vm39, %v7297, %v7341
    %v7384 = vsel %vm39, %v7302, %v7344
    %v7385 = vsel %vm39, %v7307, %v7347
    %v7386 = vsel %vm39, %v7312, %v7350
    %v7387 = vsel %vm39, %v7317, %v7353
    %v7388 = vsel %vm39, %v7322, %v7356
    %v7389 = vsel %vm512, %v7381, 1.0
    %v7390 = vsel %vm512, %v7382, 1.0
    %v7391 = vsel %vm512, %v7383, 1.0
    %v7392 = vsel %vm512, %v7384, 1.0
    %v7393 = vsel %vm512, %v7385, 1.0
    %v7394 = vsel %vm512, %v7386, 1.0
    %v7395 = vsel %vm512, %v7387, 1.0
    %v7396 = vsel %vm512, %v7388, 1.0
    %v7398 = vsel %vm537, %v7373, 0
    %v7401 = vsel %vm537, %v7374, 0
    %v7404 = vsel %vm537, %v7375, 0
    %v7407 = vsel %vm537, %v7376, 0
    %v7410 = vsel %vm537, %v7377, 0
    %v7413 = vsel %vm537, %v7378, 0
    %v7416 = vsel %vm537, %v7379, 0
    %v7419 = vsel %vm537, %v7380, 0
    %v7422 = vsel %vm537, %v7389, 0
    %v7425 = vsel %vm537, %v7390, 0
    %v7428 = vsel %vm537, %v7391, 0
    %v7431 = vsel %vm537, %v7392, 0
    %v7434 = vsel %vm537, %v7393, 0
    %v7437 = vsel %vm537, %v7394, 0
    %v7440 = vsel %vm537, %v7395, 0
    %v7443 = vsel %vm537, %v7396, 0
    %7445 = vmatprep.subr.mxu0 0.0
    %7446 = vmatpush1.xpose.msra.mxu0 0.0
    %7447 = vmatprep.subr.mxu0 0.0
    %7448 = vmatpush1.xpose.msra.mxu0 0.0
    %7449 = vmatprep.subr.mxu0 0.0
    %7450 = vmatpush1.xpose.msra.mxu0 0.0
    %7451 = vmatprep.subr.mxu0 0.0
    %7452 = vmatpush1.xpose.msra.mxu0 0.0
    %7453 = vmatprep.subr.mxu0 0.0
    %7454 = vmatpush1.xpose.msra.mxu0 0.0
    %7455 = vmatprep.subr.mxu0 0.0
    %7456 = vmatpush1.xpose.msra.mxu0 0.0
    %7457 = vmatprep.subr.mxu0 0.0
    %7458 = vmatpush1.xpose.msra.mxu0 0.0
    %7459 = vmatprep.subr.mxu0 0.0
    %7460 = vmatpush1.xpose.msra.mxu0 0.0
    %7461 = vmatprep.subr.mxu0 0.0
    %7462 = vmatpush1.xpose.msra.mxu0 %v7443
    %7463 = vmatprep.subr.mxu0 0.0
    %7464 = vmatpush1.xpose.msra.mxu0 %v7440
    %7465 = vmatprep.subr.mxu0 0.0
    %7466 = vmatpush1.xpose.msra.mxu0 %v7437
    %7467 = vmatprep.subr.mxu0 0.0
    %7468 = vmatpush1.xpose.msra.mxu0 %v7434
    %7469 = vmatprep.subr.mxu0 0.0
    %7470 = vmatpush1.xpose.msra.mxu0 %v7431
    %7471 = vmatprep.subr.mxu0 0.0
    %7472 = vmatpush1.xpose.msra.mxu0 %v7428
    %7473 = vmatprep.subr.mxu0 0.0
    %7474 = vmatpush1.xpose.msra.mxu0 %v7425
    %7475 = vmatprep.subr.mxu0 0.0
    %7476 = vmatpush1.xpose.msra.mxu0 %v7422
    %7477 = vmatprep.subr.mxu0 0.0
    %7478 = vmatpush2.xpose.msra.mxu0 0.0
    %7479 = vmatprep.subr.mxu0 0.0
    %7480 = vmatpush2.xpose.msra.mxu0 0.0
    %7481 = vmatprep.subr.mxu0 0.0
    %7482 = vmatpush2.xpose.msra.mxu0 0.0
    %7483 = vmatprep.subr.mxu0 0.0
    %7484 = vmatpush2.xpose.msra.mxu0 0.0
    %7485 = vmatprep.subr.mxu0 0.0
    %7486 = vmatpush2.xpose.msra.mxu0 0.0
    %7487 = vmatprep.subr.mxu0 0.0
    %7488 = vmatpush2.xpose.msra.mxu0 0.0
    %7489 = vmatprep.subr.mxu0 0.0
    %7490 = vmatpush2.xpose.msra.mxu0 0.0
    %7491 = vmatprep.subr.mxu0 0.0
    %7492 = vmatpush2.xpose.msra.mxu0 0.0
    %7493 = vmatprep.subr.mxu0 0.0
    %7494 = vmatpush2.xpose.msra.mxu0 0.0
    %7495 = vmatprep.subr.mxu0 0.0
    %7496 = vmatpush2.xpose.msra.mxu0 0.0
    %7497 = vmatprep.subr.mxu0 0.0
    %7498 = vmatpush2.xpose.msra.mxu0 0.0
    %7499 = vmatprep.subr.mxu0 0.0
    %7500 = vmatpush2.xpose.msra.mxu0 0.0
    %7501 = vmatprep.subr.mxu0 0.0
    %7502 = vmatpush2.xpose.msra.mxu0 0.0
    %7503 = vmatprep.subr.mxu0 0.0
    %7504 = vmatpush2.xpose.msra.mxu0 0.0
    %7505 = vmatprep.subr.mxu0 0.0
    %7506 = vmatpush2.xpose.msra.mxu0 0.0
    %7507 = vmatprep.subr.mxu0 0.0
    %7508 = vmatpush2.xpose.msra.mxu0 0.0
    %7509 = vmatprep.mubr.f32.mxu0 0.0
    %7510 = vmatmul.mubr.f32.gmra.mxu0 %v7398
    %v7511 = vpop.f32.mrf.mxu0
    %v7512 = vadd.f32 0.0, %v7511
    %v7513 = vpop.f32.mrf.mxu0
    %7514 = vmatprep.mubr.f32.mxu0 0.0
    %7515 = vmatmul.mubr.f32.gmra.mxu0 %v7401
    %v7516 = vpop.f32.mrf.mxu0
    %v7517 = vadd.f32 0.0, %v7516
    %v7518 = vpop.f32.mrf.mxu0
    %7519 = vmatprep.mubr.f32.mxu0 0.0
    %7520 = vmatmul.mubr.f32.gmra.mxu0 %v7404
    %v7521 = vpop.f32.mrf.mxu0
    %v7522 = vadd.f32 0.0, %v7521
    %v7523 = vpop.f32.mrf.mxu0
    %7524 = vmatprep.mubr.f32.mxu0 0.0
    %7525 = vmatmul.mubr.f32.gmra.mxu0 %v7407
    %v7526 = vpop.f32.mrf.mxu0
    %v7527 = vadd.f32 0.0, %v7526
    %v7528 = vpop.f32.mrf.mxu0
    %7529 = vmatprep.mubr.f32.mxu0 0.0
    %7530 = vmatmul.mubr.f32.gmra.mxu0 %v7410
    %v7531 = vpop.f32.mrf.mxu0
    %v7532 = vadd.f32 0.0, %v7531
    %v7533 = vpop.f32.mrf.mxu0
    %7534 = vmatprep.mubr.f32.mxu0 0.0
    %7535 = vmatmul.mubr.f32.gmra.mxu0 %v7413
    %v7536 = vpop.f32.mrf.mxu0
    %v7537 = vadd.f32 0.0, %v7536
    %v7538 = vpop.f32.mrf.mxu0
    %7539 = vmatprep.mubr.f32.mxu0 0.0
    %7540 = vmatmul.mubr.f32.gmra.mxu0 %v7416
    %v7541 = vpop.f32.mrf.mxu0
    %v7542 = vadd.f32 0.0, %v7541
    %v7543 = vpop.f32.mrf.mxu0
    %7544 = vmatprep.mubr.f32.mxu0 0.0
    %7545 = vmatmul.mubr.f32.gmra.mxu0 %v7419
    %v7546 = vpop.f32.mrf.mxu0
    %v7547 = vadd.f32 0.0, %v7546
    %v7548 = vpop.f32.mrf.mxu0
    %7549 = vdwg.mxu0
    %v7550 = vmax.f32 %v7512, 0.0
    %v7551 = vmax.f32 %v7517, 0.0
    %v7552 = vmax.f32 %v7522, 0.0
    %v7553 = vmax.f32 %v7527, 0.0
    %v7554 = vmax.f32 %v7532, 0.0
    %v7555 = vmax.f32 %v7537, 0.0
    %v7556 = vmax.f32 %v7542, 0.0
    %v7557 = vmax.f32 %v7547, 0.0
    %v7566 = vand.u32 %v7550, 4294967232
    %v7567 = vand.u32 %v7551, 4294967232
    %v7568 = vand.u32 %v7552, 4294967232
    %v7569 = vand.u32 %v7553, 4294967232
    %v7570 = vand.u32 %v7554, 4294967232
    %v7571 = vand.u32 %v7555, 4294967232
    %v7572 = vand.u32 %v7556, 4294967232
    %v7573 = vand.u32 %v7557, 4294967232
    %v7574 = vor.u32 %v7566, %v700
    %v7575 = vor.u32 %v7567, %v700
    %v7576 = vor.u32 %v7568, %v700
    %v7577 = vor.u32 %v7569, %v700
    %v7578 = vor.u32 %v7570, %v700
    %v7579 = vor.u32 %v7571, %v700
    %v7580 = vor.u32 %v7572, %v700
    %v7581 = vor.u32 %v7573, %v700
    %v7590 = vsel %vm733, %v7574, inf
    %7591 = vmin.xlane.f32.xlu0 %v7590
    %v7592 = vpop.xlane.xlu0 %7591
    %v7593 = vsel %vm733, %v7575, inf
    %7594 = vmin.xlane.f32.xlu0 %v7593
    %v7595 = vpop.xlane.xlu0 %7594
    %v7596 = vsel %vm733, %v7576, inf
    %7597 = vmin.xlane.f32.xlu0 %v7596
    %v7598 = vpop.xlane.xlu0 %7597
    %v7599 = vsel %vm733, %v7577, inf
    %7600 = vmin.xlane.f32.xlu0 %v7599
    %v7601 = vpop.xlane.xlu0 %7600
    %v7602 = vsel %vm733, %v7578, inf
    %7603 = vmin.xlane.f32.xlu0 %v7602
    %v7604 = vpop.xlane.xlu0 %7603
    %v7605 = vsel %vm733, %v7579, inf
    %7606 = vmin.xlane.f32.xlu0 %v7605
    %v7607 = vpop.xlane.xlu0 %7606
    %v7608 = vsel %vm733, %v7580, inf
    %7609 = vmin.xlane.f32.xlu0 %v7608
    %v7610 = vpop.xlane.xlu0 %7609
    %v7611 = vsel %vm733, %v7581, inf
    %7612 = vmin.xlane.f32.xlu0 %v7611
    %v7613 = vpop.xlane.xlu0 %7612
    %v7622 = vand.u32 %v7592, 63
    %v7623 = vand.u32 %v7595, 63
    %v7624 = vand.u32 %v7598, 63
    %v7625 = vand.u32 %v7601, 63
    %v7626 = vand.u32 %v7604, 63
    %v7627 = vand.u32 %v7607, 63
    %v7628 = vand.u32 %v7610, 63
    %v7629 = vand.u32 %v7613, 63
    %v7630 = vand.u32 %v7592, 4294967232
    %v7631 = vand.u32 %v7595, 4294967232
    %v7632 = vand.u32 %v7598, 4294967232
    %v7633 = vand.u32 %v7601, 4294967232
    %v7634 = vand.u32 %v7604, 4294967232
    %v7635 = vand.u32 %v7607, 4294967232
    %v7636 = vand.u32 %v7610, 4294967232
    %v7637 = vand.u32 %v7613, 4294967232
    %vm7646 = vcmp.eq.s32.totalorder %v700, %v7622
    %vm7647 = vcmp.eq.s32.totalorder %v700, %v7623
    %vm7648 = vcmp.eq.s32.totalorder %v700, %v7624
    %vm7649 = vcmp.eq.s32.totalorder %v700, %v7625
    %vm7650 = vcmp.eq.s32.totalorder %v700, %v7626
    %vm7651 = vcmp.eq.s32.totalorder %v700, %v7627
    %vm7652 = vcmp.eq.s32.totalorder %v700, %v7628
    %vm7653 = vcmp.eq.s32.totalorder %v700, %v7629
    %v7654 = vmul.f32 %v7630, -10.0
    %v7655 = vmul.f32 %v7631, -10.0
    %v7656 = vmul.f32 %v7632, -10.0
    %v7657 = vmul.f32 %v7633, -10.0
    %v7658 = vmul.f32 %v7634, -10.0
    %v7659 = vmul.f32 %v7635, -10.0
    %v7660 = vmul.f32 %v7636, -10.0
    %v7661 = vmul.f32 %v7637, -10.0
    %v7662 = vmul.f32 %v7654, 1.442695
    %v7663 = vpow.pop %v7662
    %v7664 = vmul.f32 %v7655, 1.442695
    %v7665 = vpow.pop %v7664
    %v7666 = vmul.f32 %v7656, 1.442695
    %v7667 = vpow.pop %v7666
    %v7668 = vmul.f32 %v7657, 1.442695
    %v7669 = vpow.pop %v7668
    %v7670 = vmul.f32 %v7658, 1.442695
    %v7671 = vpow.pop %v7670
    %v7672 = vmul.f32 %v7659, 1.442695
    %v7673 = vpow.pop %v7672
    %v7674 = vmul.f32 %v7660, 1.442695
    %v7675 = vpow.pop %v7674
    %v7676 = vmul.f32 %v7661, 1.442695
    %v7677 = vpow.pop %v7676
    %v7678 = vsel %vm7646, 1, 0
    %v7679 = vsel %vm7647, 1, 0
    %v7680 = vsel %vm7648, 1, 0
    %v7681 = vsel %vm7649, 1, 0
    %v7682 = vsel %vm7650, 1, 0
    %v7683 = vsel %vm7651, 1, 0
    %v7684 = vsel %vm7652, 1, 0
    %v7685 = vsel %vm7653, 1, 0
    %v7686 = vcvt.s32.f32 %v7678
    %v7687 = vcvt.s32.f32 %v7679
    %v7688 = vcvt.s32.f32 %v7680
    %v7689 = vcvt.s32.f32 %v7681
    %v7690 = vcvt.s32.f32 %v7682
    %v7691 = vcvt.s32.f32 %v7683
    %v7692 = vcvt.s32.f32 %v7684
    %v7693 = vcvt.s32.f32 %v7685
    %7702 = vrot.lane.b32.xlu0 %v7287, 120
    %v7703 = vpop.permute.xlu0 %7702
    %7704 = vrot.lane.b32.xlu0 %v7292, 120
    %v7705 = vpop.permute.xlu0 %7704
    %7706 = vrot.lane.b32.xlu0 %v7297, 120
    %v7707 = vpop.permute.xlu0 %7706
    %7708 = vrot.lane.b32.xlu0 %v7302, 120
    %v7709 = vpop.permute.xlu0 %7708
    %7710 = vrot.lane.b32.xlu0 %v7307, 120
    %v7711 = vpop.permute.xlu0 %7710
    %7712 = vrot.lane.b32.xlu0 %v7312, 120
    %v7713 = vpop.permute.xlu0 %7712
    %7714 = vrot.lane.b32.xlu0 %v7317, 120
    %v7715 = vpop.permute.xlu0 %7714
    %7716 = vrot.lane.b32.xlu0 %v7322, 120
    %v7717 = vpop.permute.xlu0 %7716
    %v7727 = vsel %vm733, %v7686, 0
    %v7730 = vsel %vm733, %v7687, 0
    %v7733 = vsel %vm733, %v7688, 0
    %v7736 = vsel %vm733, %v7689, 0
    %v7739 = vsel %vm733, %v7690, 0
    %v7742 = vsel %vm733, %v7691, 0
    %v7745 = vsel %vm733, %v7692, 0
    %v7748 = vsel %vm733, %v7693, 0
    %7750 = vmatprep.subr.mxu0 0.0
    %7751 = vmatpush1.msra.mxu0 0.0
    %7752 = vmatprep.subr.mxu0 0.0
    %7753 = vmatpush1.msra.mxu0 0.0
    %7754 = vmatprep.subr.mxu0 0.0
    %7755 = vmatpush1.msra.mxu0 0.0
    %7756 = vmatprep.subr.mxu0 0.0
    %7757 = vmatpush1.msra.mxu0 0.0
    %7758 = vmatprep.subr.mxu0 0.0
    %7759 = vmatpush1.msra.mxu0 0.0
    %7760 = vmatprep.subr.mxu0 0.0
    %7761 = vmatpush1.msra.mxu0 0.0
    %7762 = vmatprep.subr.mxu0 0.0
    %7763 = vmatpush1.msra.mxu0 0.0
    %7764 = vmatprep.subr.mxu0 0.0
    %7765 = vmatpush1.msra.mxu0 0.0
    %7766 = vmatprep.subr.mxu0 0.0
    %7767 = vmatpush1.msra.mxu0 %v7717
    %7768 = vmatprep.subr.mxu0 0.0
    %7769 = vmatpush1.msra.mxu0 %v7715
    %7770 = vmatprep.subr.mxu0 0.0
    %7771 = vmatpush1.msra.mxu0 %v7713
    %7772 = vmatprep.subr.mxu0 0.0
    %7773 = vmatpush1.msra.mxu0 %v7711
    %7774 = vmatprep.subr.mxu0 0.0
    %7775 = vmatpush1.msra.mxu0 %v7709
    %7776 = vmatprep.subr.mxu0 0.0
    %7777 = vmatpush1.msra.mxu0 %v7707
    %7778 = vmatprep.subr.mxu0 0.0
    %7779 = vmatpush1.msra.mxu0 %v7705
    %7780 = vmatprep.subr.mxu0 0.0
    %7781 = vmatpush1.msra.mxu0 %v7703
    %7782 = vmatprep.subr.mxu0 0.0
    %7783 = vmatpush2.msra.mxu0 0.0
    %7784 = vmatprep.subr.mxu0 0.0
    %7785 = vmatpush2.msra.mxu0 0.0
    %7786 = vmatprep.subr.mxu0 0.0
    %7787 = vmatpush2.msra.mxu0 0.0
    %7788 = vmatprep.subr.mxu0 0.0
    %7789 = vmatpush2.msra.mxu0 0.0
    %7790 = vmatprep.subr.mxu0 0.0
    %7791 = vmatpush2.msra.mxu0 0.0
    %7792 = vmatprep.subr.mxu0 0.0
    %7793 = vmatpush2.msra.mxu0 0.0
    %7794 = vmatprep.subr.mxu0 0.0
    %7795 = vmatpush2.msra.mxu0 0.0
    %7796 = vmatprep.subr.mxu0 0.0
    %7797 = vmatpush2.msra.mxu0 0.0
    %7798 = vmatprep.subr.mxu0 0.0
    %7799 = vmatpush2.msra.mxu0 0.0
    %7800 = vmatprep.subr.mxu0 0.0
    %7801 = vmatpush2.msra.mxu0 0.0
    %7802 = vmatprep.subr.mxu0 0.0
    %7803 = vmatpush2.msra.mxu0 0.0
    %7804 = vmatprep.subr.mxu0 0.0
    %7805 = vmatpush2.msra.mxu0 0.0
    %7806 = vmatprep.subr.mxu0 0.0
    %7807 = vmatpush2.msra.mxu0 0.0
    %7808 = vmatprep.subr.mxu0 0.0
    %7809 = vmatpush2.msra.mxu0 0.0
    %7810 = vmatprep.subr.mxu0 0.0
    %7811 = vmatpush2.msra.mxu0 0.0
    %7812 = vmatprep.subr.mxu0 0.0
    %7813 = vmatpush2.msra.mxu0 0.0
    %7814 = vmatprep.mubr.f32.mxu0 0.0
    %7815 = vmatmul.mubr.f32.gmra.mxu0 %v7727
    %v7816 = vpop.f32.mrf.mxu0
    %v7817 = vadd.f32 0.0, %v7816
    %v7818 = vpop.f32.mrf.mxu0
    %7819 = vmatprep.mubr.f32.mxu0 0.0
    %7820 = vmatmul.mubr.f32.gmra.mxu0 %v7730
    %v7821 = vpop.f32.mrf.mxu0
    %v7822 = vadd.f32 0.0, %v7821
    %v7823 = vpop.f32.mrf.mxu0
    %7824 = vmatprep.mubr.f32.mxu0 0.0
    %7825 = vmatmul.mubr.f32.gmra.mxu0 %v7733
    %v7826 = vpop.f32.mrf.mxu0
    %v7827 = vadd.f32 0.0, %v7826
    %v7828 = vpop.f32.mrf.mxu0
    %7829 = vmatprep.mubr.f32.mxu0 0.0
    %7830 = vmatmul.mubr.f32.gmra.mxu0 %v7736
    %v7831 = vpop.f32.mrf.mxu0
    %v7832 = vadd.f32 0.0, %v7831
    %v7833 = vpop.f32.mrf.mxu0
    %7834 = vmatprep.mubr.f32.mxu0 0.0
    %7835 = vmatmul.mubr.f32.gmra.mxu0 %v7739
    %v7836 = vpop.f32.mrf.mxu0
    %v7837 = vadd.f32 0.0, %v7836
    %v7838 = vpop.f32.mrf.mxu0
    %7839 = vmatprep.mubr.f32.mxu0 0.0
    %7840 = vmatmul.mubr.f32.gmra.mxu0 %v7742
    %v7841 = vpop.f32.mrf.mxu0
    %v7842 = vadd.f32 0.0, %v7841
    %v7843 = vpop.f32.mrf.mxu0
    %7844 = vmatprep.mubr.f32.mxu0 0.0
    %7845 = vmatmul.mubr.f32.gmra.mxu0 %v7745
    %v7846 = vpop.f32.mrf.mxu0
    %v7847 = vadd.f32 0.0, %v7846
    %v7848 = vpop.f32.mrf.mxu0
    %7849 = vmatprep.mubr.f32.mxu0 0.0
    %7850 = vmatmul.mubr.f32.gmra.mxu0 %v7748
    %v7851 = vpop.f32.mrf.mxu0
    %v7852 = vadd.f32 0.0, %v7851
    %v7853 = vpop.f32.mrf.mxu0
    %7854 = vdwg.mxu0
    %v7855 = vmul.f32 %v7663, %v7817
    %v7856 = vmul.f32 %v7665, %v7822
    %v7857 = vmul.f32 %v7667, %v7827
    %v7858 = vmul.f32 %v7669, %v7832
    %v7859 = vmul.f32 %v7671, %v7837
    %v7860 = vmul.f32 %v7673, %v7842
    %v7861 = vmul.f32 %v7675, %v7847
    %v7862 = vmul.f32 %v7677, %v7852
    %v7863 = vadd.f32 %v7855, 0.0
    %v7864 = vadd.f32 %v7856, 0.0
    %v7865 = vadd.f32 %v7857, 0.0
    %v7866 = vadd.f32 %v7858, 0.0
    %v7867 = vadd.f32 %v7859, 0.0
    %v7868 = vadd.f32 %v7860, 0.0
    %v7869 = vadd.f32 %v7861, 0.0
    %v7870 = vadd.f32 %v7862, 0.0
    %v7871 = vmax.f32 %v7855, -1e+30
    %v7872 = vmax.f32 %v7856, -1e+30
    %v7873 = vmax.f32 %v7857, -1e+30
    %v7874 = vmax.f32 %v7858, -1e+30
    %v7875 = vmax.f32 %v7859, -1e+30
    %v7876 = vmax.f32 %v7860, -1e+30
    %v7877 = vmax.f32 %v7861, -1e+30
    %v7878 = vmax.f32 %v7862, -1e+30
    %v7879 = vsel %vm7646, 1e+30, %v7574
    %v7880 = vsel %vm7647, 1e+30, %v7575
    %v7881 = vsel %vm7648, 1e+30, %v7576
    %v7882 = vsel %vm7649, 1e+30, %v7577
    %v7883 = vsel %vm7650, 1e+30, %v7578
    %v7884 = vsel %vm7651, 1e+30, %v7579
    %v7885 = vsel %vm7652, 1e+30, %v7580
    %v7886 = vsel %vm7653, 1e+30, %v7581
    %v7887 = vsel %vm733, %v7879, inf
    %7888 = vmin.xlane.f32.xlu0 %v7887
    %v7889 = vpop.xlane.xlu0 %7888
    %v7890 = vsel %vm733, %v7880, inf
    %7891 = vmin.xlane.f32.xlu0 %v7890
    %v7892 = vpop.xlane.xlu0 %7891
    %v7893 = vsel %vm733, %v7881, inf
    %7894 = vmin.xlane.f32.xlu0 %v7893
    %v7895 = vpop.xlane.xlu0 %7894
    %v7896 = vsel %vm733, %v7882, inf
    %7897 = vmin.xlane.f32.xlu0 %v7896
    %v7898 = vpop.xlane.xlu0 %7897
    %v7899 = vsel %vm733, %v7883, inf
    %7900 = vmin.xlane.f32.xlu0 %v7899
    %v7901 = vpop.xlane.xlu0 %7900
    %v7902 = vsel %vm733, %v7884, inf
    %7903 = vmin.xlane.f32.xlu0 %v7902
    %v7904 = vpop.xlane.xlu0 %7903
    %v7905 = vsel %vm733, %v7885, inf
    %7906 = vmin.xlane.f32.xlu0 %v7905
    %v7907 = vpop.xlane.xlu0 %7906
    %v7908 = vsel %vm733, %v7886, inf
    %7909 = vmin.xlane.f32.xlu0 %v7908
    %v7910 = vpop.xlane.xlu0 %7909
    %v7919 = vand.u32 %v7889, 63
    %v7920 = vand.u32 %v7892, 63
    %v7921 = vand.u32 %v7895, 63
    %v7922 = vand.u32 %v7898, 63
    %v7923 = vand.u32 %v7901, 63
    %v7924 = vand.u32 %v7904, 63
    %v7925 = vand.u32 %v7907, 63
    %v7926 = vand.u32 %v7910, 63
    %v7927 = vand.u32 %v7889, 4294967232
    %v7928 = vand.u32 %v7892, 4294967232
    %v7929 = vand.u32 %v7895, 4294967232
    %v7930 = vand.u32 %v7898, 4294967232
    %v7931 = vand.u32 %v7901, 4294967232
    %v7932 = vand.u32 %v7904, 4294967232
    %v7933 = vand.u32 %v7907, 4294967232
    %v7934 = vand.u32 %v7910, 4294967232
    %vm7943 = vcmp.eq.s32.totalorder %v700, %v7919
    %vm7944 = vcmp.eq.s32.totalorder %v700, %v7920
    %vm7945 = vcmp.eq.s32.totalorder %v700, %v7921
    %vm7946 = vcmp.eq.s32.totalorder %v700, %v7922
    %vm7947 = vcmp.eq.s32.totalorder %v700, %v7923
    %vm7948 = vcmp.eq.s32.totalorder %v700, %v7924
    %vm7949 = vcmp.eq.s32.totalorder %v700, %v7925
    %vm7950 = vcmp.eq.s32.totalorder %v700, %v7926
    %v7951 = vmul.f32 %v7927, -10.0
    %v7952 = vmul.f32 %v7928, -10.0
    %v7953 = vmul.f32 %v7929, -10.0
    %v7954 = vmul.f32 %v7930, -10.0
    %v7955 = vmul.f32 %v7931, -10.0
    %v7956 = vmul.f32 %v7932, -10.0
    %v7957 = vmul.f32 %v7933, -10.0
    %v7958 = vmul.f32 %v7934, -10.0
    %v7959 = vmul.f32 %v7951, 1.442695
    %v7960 = vpow.pop %v7959
    %v7961 = vmul.f32 %v7952, 1.442695
    %v7962 = vpow.pop %v7961
    %v7963 = vmul.f32 %v7953, 1.442695
    %v7964 = vpow.pop %v7963
    %v7965 = vmul.f32 %v7954, 1.442695
    %v7966 = vpow.pop %v7965
    %v7967 = vmul.f32 %v7955, 1.442695
    %v7968 = vpow.pop %v7967
    %v7969 = vmul.f32 %v7956, 1.442695
    %v7970 = vpow.pop %v7969
    %v7971 = vmul.f32 %v7957, 1.442695
    %v7972 = vpow.pop %v7971
    %v7973 = vmul.f32 %v7958, 1.442695
    %v7974 = vpow.pop %v7973
    %v7975 = vsel %vm7943, 1, 0
    %v7976 = vsel %vm7944, 1, 0
    %v7977 = vsel %vm7945, 1, 0
    %v7978 = vsel %vm7946, 1, 0
    %v7979 = vsel %vm7947, 1, 0
    %v7980 = vsel %vm7948, 1, 0
    %v7981 = vsel %vm7949, 1, 0
    %v7982 = vsel %vm7950, 1, 0
    %v7983 = vcvt.s32.f32 %v7975
    %v7984 = vcvt.s32.f32 %v7976
    %v7985 = vcvt.s32.f32 %v7977
    %v7986 = vcvt.s32.f32 %v7978
    %v7987 = vcvt.s32.f32 %v7979
    %v7988 = vcvt.s32.f32 %v7980
    %v7989 = vcvt.s32.f32 %v7981
    %v7990 = vcvt.s32.f32 %v7982
    %v7992 = vsel %vm733, %v7983, 0
    %v7995 = vsel %vm733, %v7984, 0
    %v7998 = vsel %vm733, %v7985, 0
    %v8001 = vsel %vm733, %v7986, 0
    %v8004 = vsel %vm733, %v7987, 0
    %v8007 = vsel %vm733, %v7988, 0
    %v8010 = vsel %vm733, %v7989, 0
    %v8013 = vsel %vm733, %v7990, 0
    %8015 = vmatprep.subr.mxu0 0.0
    %8016 = vmatpush1.msra.mxu0 0.0
    %8017 = vmatprep.subr.mxu0 0.0
    %8018 = vmatpush1.msra.mxu0 0.0
    %8019 = vmatprep.subr.mxu0 0.0
    %8020 = vmatpush1.msra.mxu0 0.0
    %8021 = vmatprep.subr.mxu0 0.0
    %8022 = vmatpush1.msra.mxu0 0.0
    %8023 = vmatprep.subr.mxu0 0.0
    %8024 = vmatpush1.msra.mxu0 0.0
    %8025 = vmatprep.subr.mxu0 0.0
    %8026 = vmatpush1.msra.mxu0 0.0
    %8027 = vmatprep.subr.mxu0 0.0
    %8028 = vmatpush1.msra.mxu0 0.0
    %8029 = vmatprep.subr.mxu0 0.0
    %8030 = vmatpush1.msra.mxu0 0.0
    %8031 = vmatprep.subr.mxu0 0.0
    %8032 = vmatpush1.msra.mxu0 %v7717
    %8033 = vmatprep.subr.mxu0 0.0
    %8034 = vmatpush1.msra.mxu0 %v7715
    %8035 = vmatprep.subr.mxu0 0.0
    %8036 = vmatpush1.msra.mxu0 %v7713
    %8037 = vmatprep.subr.mxu0 0.0
    %8038 = vmatpush1.msra.mxu0 %v7711
    %8039 = vmatprep.subr.mxu0 0.0
    %8040 = vmatpush1.msra.mxu0 %v7709
    %8041 = vmatprep.subr.mxu0 0.0
    %8042 = vmatpush1.msra.mxu0 %v7707
    %8043 = vmatprep.subr.mxu0 0.0
    %8044 = vmatpush1.msra.mxu0 %v7705
    %8045 = vmatprep.subr.mxu0 0.0
    %8046 = vmatpush1.msra.mxu0 %v7703
    %8047 = vmatprep.subr.mxu0 0.0
    %8048 = vmatpush2.msra.mxu0 0.0
    %8049 = vmatprep.subr.mxu0 0.0
    %8050 = vmatpush2.msra.mxu0 0.0
    %8051 = vmatprep.subr.mxu0 0.0
    %8052 = vmatpush2.msra.mxu0 0.0
    %8053 = vmatprep.subr.mxu0 0.0
    %8054 = vmatpush2.msra.mxu0 0.0
    %8055 = vmatprep.subr.mxu0 0.0
    %8056 = vmatpush2.msra.mxu0 0.0
    %8057 = vmatprep.subr.mxu0 0.0
    %8058 = vmatpush2.msra.mxu0 0.0
    %8059 = vmatprep.subr.mxu0 0.0
    %8060 = vmatpush2.msra.mxu0 0.0
    %8061 = vmatprep.subr.mxu0 0.0
    %8062 = vmatpush2.msra.mxu0 0.0
    %8063 = vmatprep.subr.mxu0 0.0
    %8064 = vmatpush2.msra.mxu0 0.0
    %8065 = vmatprep.subr.mxu0 0.0
    %8066 = vmatpush2.msra.mxu0 0.0
    %8067 = vmatprep.subr.mxu0 0.0
    %8068 = vmatpush2.msra.mxu0 0.0
    %8069 = vmatprep.subr.mxu0 0.0
    %8070 = vmatpush2.msra.mxu0 0.0
    %8071 = vmatprep.subr.mxu0 0.0
    %8072 = vmatpush2.msra.mxu0 0.0
    %8073 = vmatprep.subr.mxu0 0.0
    %8074 = vmatpush2.msra.mxu0 0.0
    %8075 = vmatprep.subr.mxu0 0.0
    %8076 = vmatpush2.msra.mxu0 0.0
    %8077 = vmatprep.subr.mxu0 0.0
    %8078 = vmatpush2.msra.mxu0 0.0
    %8079 = vmatprep.mubr.f32.mxu0 0.0
    %8080 = vmatmul.mubr.f32.gmra.mxu0 %v7992
    %v8081 = vpop.f32.mrf.mxu0
    %v8082 = vadd.f32 0.0, %v8081
    %v8083 = vpop.f32.mrf.mxu0
    %8084 = vmatprep.mubr.f32.mxu0 0.0
    %8085 = vmatmul.mubr.f32.gmra.mxu0 %v7995
    %v8086 = vpop.f32.mrf.mxu0
    %v8087 = vadd.f32 0.0, %v8086
    %v8088 = vpop.f32.mrf.mxu0
    %8089 = vmatprep.mubr.f32.mxu0 0.0
    %8090 = vmatmul.mubr.f32.gmra.mxu0 %v7998
    %v8091 = vpop.f32.mrf.mxu0
    %v8092 = vadd.f32 0.0, %v8091
    %v8093 = vpop.f32.mrf.mxu0
    %8094 = vmatprep.mubr.f32.mxu0 0.0
    %8095 = vmatmul.mubr.f32.gmra.mxu0 %v8001
    %v8096 = vpop.f32.mrf.mxu0
    %v8097 = vadd.f32 0.0, %v8096
    %v8098 = vpop.f32.mrf.mxu0
    %8099 = vmatprep.mubr.f32.mxu0 0.0
    %8100 = vmatmul.mubr.f32.gmra.mxu0 %v8004
    %v8101 = vpop.f32.mrf.mxu0
    %v8102 = vadd.f32 0.0, %v8101
    %v8103 = vpop.f32.mrf.mxu0
    %8104 = vmatprep.mubr.f32.mxu0 0.0
    %8105 = vmatmul.mubr.f32.gmra.mxu0 %v8007
    %v8106 = vpop.f32.mrf.mxu0
    %v8107 = vadd.f32 0.0, %v8106
    %v8108 = vpop.f32.mrf.mxu0
    %8109 = vmatprep.mubr.f32.mxu0 0.0
    %8110 = vmatmul.mubr.f32.gmra.mxu0 %v8010
    %v8111 = vpop.f32.mrf.mxu0
    %v8112 = vadd.f32 0.0, %v8111
    %v8113 = vpop.f32.mrf.mxu0
    %8114 = vmatprep.mubr.f32.mxu0 0.0
    %8115 = vmatmul.mubr.f32.gmra.mxu0 %v8013
    %v8116 = vpop.f32.mrf.mxu0
    %v8117 = vadd.f32 0.0, %v8116
    %v8118 = vpop.f32.mrf.mxu0
    %8119 = vdwg.mxu0
    %v8120 = vmul.f32 %v7960, %v8082
    %v8121 = vmul.f32 %v7962, %v8087
    %v8122 = vmul.f32 %v7964, %v8092
    %v8123 = vmul.f32 %v7966, %v8097
    %v8124 = vmul.f32 %v7968, %v8102
    %v8125 = vmul.f32 %v7970, %v8107
    %v8126 = vmul.f32 %v7972, %v8112
    %v8127 = vmul.f32 %v7974, %v8117
    %v8128 = vadd.f32 %v7863, %v8120
    %v8129 = vadd.f32 %v7864, %v8121
    %v8130 = vadd.f32 %v7865, %v8122
    %v8131 = vadd.f32 %v7866, %v8123
    %v8132 = vadd.f32 %v7867, %v8124
    %v8133 = vadd.f32 %v7868, %v8125
    %v8134 = vadd.f32 %v7869, %v8126
    %v8135 = vadd.f32 %v7870, %v8127
    %v8136 = vmax.f32 %v7871, %v8120
    %v8137 = vmax.f32 %v7872, %v8121
    %v8138 = vmax.f32 %v7873, %v8122
    %v8139 = vmax.f32 %v7874, %v8123
    %v8140 = vmax.f32 %v7875, %v8124
    %v8141 = vmax.f32 %v7876, %v8125
    %v8142 = vmax.f32 %v7877, %v8126
    %v8143 = vmax.f32 %v7878, %v8127
    %v8144 = vsel %vm7943, 1e+30, %v7879
    %v8145 = vsel %vm7944, 1e+30, %v7880
    %v8146 = vsel %vm7945, 1e+30, %v7881
    %v8147 = vsel %vm7946, 1e+30, %v7882
    %v8148 = vsel %vm7947, 1e+30, %v7883
    %v8149 = vsel %vm7948, 1e+30, %v7884
    %v8150 = vsel %vm7949, 1e+30, %v7885
    %v8151 = vsel %vm7950, 1e+30, %v7886
    %v8152 = vsel %vm733, %v8144, inf
    %8153 = vmin.xlane.f32.xlu0 %v8152
    %v8154 = vpop.xlane.xlu0 %8153
    %v8155 = vsel %vm733, %v8145, inf
    %8156 = vmin.xlane.f32.xlu0 %v8155
    %v8157 = vpop.xlane.xlu0 %8156
    %v8158 = vsel %vm733, %v8146, inf
    %8159 = vmin.xlane.f32.xlu0 %v8158
    %v8160 = vpop.xlane.xlu0 %8159
    %v8161 = vsel %vm733, %v8147, inf
    %8162 = vmin.xlane.f32.xlu0 %v8161
    %v8163 = vpop.xlane.xlu0 %8162
    %v8164 = vsel %vm733, %v8148, inf
    %8165 = vmin.xlane.f32.xlu0 %v8164
    %v8166 = vpop.xlane.xlu0 %8165
    %v8167 = vsel %vm733, %v8149, inf
    %8168 = vmin.xlane.f32.xlu0 %v8167
    %v8169 = vpop.xlane.xlu0 %8168
    %v8170 = vsel %vm733, %v8150, inf
    %8171 = vmin.xlane.f32.xlu0 %v8170
    %v8172 = vpop.xlane.xlu0 %8171
    %v8173 = vsel %vm733, %v8151, inf
    %8174 = vmin.xlane.f32.xlu0 %v8173
    %v8175 = vpop.xlane.xlu0 %8174
    %v8184 = vand.u32 %v8154, 63
    %v8185 = vand.u32 %v8157, 63
    %v8186 = vand.u32 %v8160, 63
    %v8187 = vand.u32 %v8163, 63
    %v8188 = vand.u32 %v8166, 63
    %v8189 = vand.u32 %v8169, 63
    %v8190 = vand.u32 %v8172, 63
    %v8191 = vand.u32 %v8175, 63
    %v8192 = vand.u32 %v8154, 4294967232
    %v8193 = vand.u32 %v8157, 4294967232
    %v8194 = vand.u32 %v8160, 4294967232
    %v8195 = vand.u32 %v8163, 4294967232
    %v8196 = vand.u32 %v8166, 4294967232
    %v8197 = vand.u32 %v8169, 4294967232
    %v8198 = vand.u32 %v8172, 4294967232
    %v8199 = vand.u32 %v8175, 4294967232
    %vm8208 = vcmp.eq.s32.totalorder %v700, %v8184
    %vm8209 = vcmp.eq.s32.totalorder %v700, %v8185
    %vm8210 = vcmp.eq.s32.totalorder %v700, %v8186
    %vm8211 = vcmp.eq.s32.totalorder %v700, %v8187
    %vm8212 = vcmp.eq.s32.totalorder %v700, %v8188
    %vm8213 = vcmp.eq.s32.totalorder %v700, %v8189
    %vm8214 = vcmp.eq.s32.totalorder %v700, %v8190
    %vm8215 = vcmp.eq.s32.totalorder %v700, %v8191
    %v8216 = vmul.f32 %v8192, -10.0
    %v8217 = vmul.f32 %v8193, -10.0
    %v8218 = vmul.f32 %v8194, -10.0
    %v8219 = vmul.f32 %v8195, -10.0
    %v8220 = vmul.f32 %v8196, -10.0
    %v8221 = vmul.f32 %v8197, -10.0
    %v8222 = vmul.f32 %v8198, -10.0
    %v8223 = vmul.f32 %v8199, -10.0
    %v8224 = vmul.f32 %v8216, 1.442695
    %v8225 = vpow.pop %v8224
    %v8226 = vmul.f32 %v8217, 1.442695
    %v8227 = vpow.pop %v8226
    %v8228 = vmul.f32 %v8218, 1.442695
    %v8229 = vpow.pop %v8228
    %v8230 = vmul.f32 %v8219, 1.442695
    %v8231 = vpow.pop %v8230
    %v8232 = vmul.f32 %v8220, 1.442695
    %v8233 = vpow.pop %v8232
    %v8234 = vmul.f32 %v8221, 1.442695
    %v8235 = vpow.pop %v8234
    %v8236 = vmul.f32 %v8222, 1.442695
    %v8237 = vpow.pop %v8236
    %v8238 = vmul.f32 %v8223, 1.442695
    %v8239 = vpow.pop %v8238
    %v8240 = vsel %vm8208, 1, 0
    %v8241 = vsel %vm8209, 1, 0
    %v8242 = vsel %vm8210, 1, 0
    %v8243 = vsel %vm8211, 1, 0
    %v8244 = vsel %vm8212, 1, 0
    %v8245 = vsel %vm8213, 1, 0
    %v8246 = vsel %vm8214, 1, 0
    %v8247 = vsel %vm8215, 1, 0
    %v8248 = vcvt.s32.f32 %v8240
    %v8249 = vcvt.s32.f32 %v8241
    %v8250 = vcvt.s32.f32 %v8242
    %v8251 = vcvt.s32.f32 %v8243
    %v8252 = vcvt.s32.f32 %v8244
    %v8253 = vcvt.s32.f32 %v8245
    %v8254 = vcvt.s32.f32 %v8246
    %v8255 = vcvt.s32.f32 %v8247
    %v8257 = vsel %vm733, %v8248, 0
    %v8260 = vsel %vm733, %v8249, 0
    %v8263 = vsel %vm733, %v8250, 0
    %v8266 = vsel %vm733, %v8251, 0
    %v8269 = vsel %vm733, %v8252, 0
    %v8272 = vsel %vm733, %v8253, 0
    %v8275 = vsel %vm733, %v8254, 0
    %v8278 = vsel %vm733, %v8255, 0
    %8280 = vmatprep.subr.mxu0 0.0
    %8281 = vmatpush1.msra.mxu0 0.0
    %8282 = vmatprep.subr.mxu0 0.0
    %8283 = vmatpush1.msra.mxu0 0.0
    %8284 = vmatprep.subr.mxu0 0.0
    %8285 = vmatpush1.msra.mxu0 0.0
    %8286 = vmatprep.subr.mxu0 0.0
    %8287 = vmatpush1.msra.mxu0 0.0
    %8288 = vmatprep.subr.mxu0 0.0
    %8289 = vmatpush1.msra.mxu0 0.0
    %8290 = vmatprep.subr.mxu0 0.0
    %8291 = vmatpush1.msra.mxu0 0.0
    %8292 = vmatprep.subr.mxu0 0.0
    %8293 = vmatpush1.msra.mxu0 0.0
    %8294 = vmatprep.subr.mxu0 0.0
    %8295 = vmatpush1.msra.mxu0 0.0
    %8296 = vmatprep.subr.mxu0 0.0
    %8297 = vmatpush1.msra.mxu0 %v7717
    %8298 = vmatprep.subr.mxu0 0.0
    %8299 = vmatpush1.msra.mxu0 %v7715
    %8300 = vmatprep.subr.mxu0 0.0
    %8301 = vmatpush1.msra.mxu0 %v7713
    %8302 = vmatprep.subr.mxu0 0.0
    %8303 = vmatpush1.msra.mxu0 %v7711
    %8304 = vmatprep.subr.mxu0 0.0
    %8305 = vmatpush1.msra.mxu0 %v7709
    %8306 = vmatprep.subr.mxu0 0.0
    %8307 = vmatpush1.msra.mxu0 %v7707
    %8308 = vmatprep.subr.mxu0 0.0
    %8309 = vmatpush1.msra.mxu0 %v7705
    %8310 = vmatprep.subr.mxu0 0.0
    %8311 = vmatpush1.msra.mxu0 %v7703
    %8312 = vmatprep.subr.mxu0 0.0
    %8313 = vmatpush2.msra.mxu0 0.0
    %8314 = vmatprep.subr.mxu0 0.0
    %8315 = vmatpush2.msra.mxu0 0.0
    %8316 = vmatprep.subr.mxu0 0.0
    %8317 = vmatpush2.msra.mxu0 0.0
    %8318 = vmatprep.subr.mxu0 0.0
    %8319 = vmatpush2.msra.mxu0 0.0
    %8320 = vmatprep.subr.mxu0 0.0
    %8321 = vmatpush2.msra.mxu0 0.0
    %8322 = vmatprep.subr.mxu0 0.0
    %8323 = vmatpush2.msra.mxu0 0.0
    %8324 = vmatprep.subr.mxu0 0.0
    %8325 = vmatpush2.msra.mxu0 0.0
    %8326 = vmatprep.subr.mxu0 0.0
    %8327 = vmatpush2.msra.mxu0 0.0
    %8328 = vmatprep.subr.mxu0 0.0
    %8329 = vmatpush2.msra.mxu0 0.0
    %8330 = vmatprep.subr.mxu0 0.0
    %8331 = vmatpush2.msra.mxu0 0.0
    %8332 = vmatprep.subr.mxu0 0.0
    %8333 = vmatpush2.msra.mxu0 0.0
    %8334 = vmatprep.subr.mxu0 0.0
    %8335 = vmatpush2.msra.mxu0 0.0
    %8336 = vmatprep.subr.mxu0 0.0
    %8337 = vmatpush2.msra.mxu0 0.0
    %8338 = vmatprep.subr.mxu0 0.0
    %8339 = vmatpush2.msra.mxu0 0.0
    %8340 = vmatprep.subr.mxu0 0.0
    %8341 = vmatpush2.msra.mxu0 0.0
    %8342 = vmatprep.subr.mxu0 0.0
    %8343 = vmatpush2.msra.mxu0 0.0
    %8344 = vmatprep.mubr.f32.mxu0 0.0
    %8345 = vmatmul.mubr.f32.gmra.mxu0 %v8257
    %v8346 = vpop.f32.mrf.mxu0
    %v8347 = vadd.f32 0.0, %v8346
    %v8348 = vpop.f32.mrf.mxu0
    %8349 = vmatprep.mubr.f32.mxu0 0.0
    %8350 = vmatmul.mubr.f32.gmra.mxu0 %v8260
    %v8351 = vpop.f32.mrf.mxu0
    %v8352 = vadd.f32 0.0, %v8351
    %v8353 = vpop.f32.mrf.mxu0
    %8354 = vmatprep.mubr.f32.mxu0 0.0
    %8355 = vmatmul.mubr.f32.gmra.mxu0 %v8263
    %v8356 = vpop.f32.mrf.mxu0
    %v8357 = vadd.f32 0.0, %v8356
    %v8358 = vpop.f32.mrf.mxu0
    %8359 = vmatprep.mubr.f32.mxu0 0.0
    %8360 = vmatmul.mubr.f32.gmra.mxu0 %v8266
    %v8361 = vpop.f32.mrf.mxu0
    %v8362 = vadd.f32 0.0, %v8361
    %v8363 = vpop.f32.mrf.mxu0
    %8364 = vmatprep.mubr.f32.mxu0 0.0
    %8365 = vmatmul.mubr.f32.gmra.mxu0 %v8269
    %v8366 = vpop.f32.mrf.mxu0
    %v8367 = vadd.f32 0.0, %v8366
    %v8368 = vpop.f32.mrf.mxu0
    %8369 = vmatprep.mubr.f32.mxu0 0.0
    %8370 = vmatmul.mubr.f32.gmra.mxu0 %v8272
    %v8371 = vpop.f32.mrf.mxu0
    %v8372 = vadd.f32 0.0, %v8371
    %v8373 = vpop.f32.mrf.mxu0
    %8374 = vmatprep.mubr.f32.mxu0 0.0
    %8375 = vmatmul.mubr.f32.gmra.mxu0 %v8275
    %v8376 = vpop.f32.mrf.mxu0
    %v8377 = vadd.f32 0.0, %v8376
    %v8378 = vpop.f32.mrf.mxu0
    %8379 = vmatprep.mubr.f32.mxu0 0.0
    %8380 = vmatmul.mubr.f32.gmra.mxu0 %v8278
    %v8381 = vpop.f32.mrf.mxu0
    %v8382 = vadd.f32 0.0, %v8381
    %v8383 = vpop.f32.mrf.mxu0
    %8384 = vdwg.mxu0
    %v8385 = vmul.f32 %v8225, %v8347
    %v8386 = vmul.f32 %v8227, %v8352
    %v8387 = vmul.f32 %v8229, %v8357
    %v8388 = vmul.f32 %v8231, %v8362
    %v8389 = vmul.f32 %v8233, %v8367
    %v8390 = vmul.f32 %v8235, %v8372
    %v8391 = vmul.f32 %v8237, %v8377
    %v8392 = vmul.f32 %v8239, %v8382
    %v8393 = vadd.f32 %v8128, %v8385
    %v8394 = vadd.f32 %v8129, %v8386
    %v8395 = vadd.f32 %v8130, %v8387
    %v8396 = vadd.f32 %v8131, %v8388
    %v8397 = vadd.f32 %v8132, %v8389
    %v8398 = vadd.f32 %v8133, %v8390
    %v8399 = vadd.f32 %v8134, %v8391
    %v8400 = vadd.f32 %v8135, %v8392
    %v8401 = vmax.f32 %v8136, %v8385
    %v8402 = vmax.f32 %v8137, %v8386
    %v8403 = vmax.f32 %v8138, %v8387
    %v8404 = vmax.f32 %v8139, %v8388
    %v8405 = vmax.f32 %v8140, %v8389
    %v8406 = vmax.f32 %v8141, %v8390
    %v8407 = vmax.f32 %v8142, %v8391
    %v8408 = vmax.f32 %v8143, %v8392
    %v8409 = vsel %vm8208, 1e+30, %v8144
    %v8410 = vsel %vm8209, 1e+30, %v8145
    %v8411 = vsel %vm8210, 1e+30, %v8146
    %v8412 = vsel %vm8211, 1e+30, %v8147
    %v8413 = vsel %vm8212, 1e+30, %v8148
    %v8414 = vsel %vm8213, 1e+30, %v8149
    %v8415 = vsel %vm8214, 1e+30, %v8150
    %v8416 = vsel %vm8215, 1e+30, %v8151
    %v8417 = vsel %vm733, %v8409, inf
    %8418 = vmin.xlane.f32.xlu0 %v8417
    %v8419 = vpop.xlane.xlu0 %8418
    %v8420 = vsel %vm733, %v8410, inf
    %8421 = vmin.xlane.f32.xlu0 %v8420
    %v8422 = vpop.xlane.xlu0 %8421
    %v8423 = vsel %vm733, %v8411, inf
    %8424 = vmin.xlane.f32.xlu0 %v8423
    %v8425 = vpop.xlane.xlu0 %8424
    %v8426 = vsel %vm733, %v8412, inf
    %8427 = vmin.xlane.f32.xlu0 %v8426
    %v8428 = vpop.xlane.xlu0 %8427
    %v8429 = vsel %vm733, %v8413, inf
    %8430 = vmin.xlane.f32.xlu0 %v8429
    %v8431 = vpop.xlane.xlu0 %8430
    %v8432 = vsel %vm733, %v8414, inf
    %8433 = vmin.xlane.f32.xlu0 %v8432
    %v8434 = vpop.xlane.xlu0 %8433
    %v8435 = vsel %vm733, %v8415, inf
    %8436 = vmin.xlane.f32.xlu0 %v8435
    %v8437 = vpop.xlane.xlu0 %8436
    %v8438 = vsel %vm733, %v8416, inf
    %8439 = vmin.xlane.f32.xlu0 %v8438
    %v8440 = vpop.xlane.xlu0 %8439
    %v8449 = vand.u32 %v8419, 63
    %v8450 = vand.u32 %v8422, 63
    %v8451 = vand.u32 %v8425, 63
    %v8452 = vand.u32 %v8428, 63
    %v8453 = vand.u32 %v8431, 63
    %v8454 = vand.u32 %v8434, 63
    %v8455 = vand.u32 %v8437, 63
    %v8456 = vand.u32 %v8440, 63
    %v8457 = vand.u32 %v8419, 4294967232
    %v8458 = vand.u32 %v8422, 4294967232
    %v8459 = vand.u32 %v8425, 4294967232
    %v8460 = vand.u32 %v8428, 4294967232
    %v8461 = vand.u32 %v8431, 4294967232
    %v8462 = vand.u32 %v8434, 4294967232
    %v8463 = vand.u32 %v8437, 4294967232
    %v8464 = vand.u32 %v8440, 4294967232
    %vm8473 = vcmp.eq.s32.totalorder %v700, %v8449
    %vm8474 = vcmp.eq.s32.totalorder %v700, %v8450
    %vm8475 = vcmp.eq.s32.totalorder %v700, %v8451
    %vm8476 = vcmp.eq.s32.totalorder %v700, %v8452
    %vm8477 = vcmp.eq.s32.totalorder %v700, %v8453
    %vm8478 = vcmp.eq.s32.totalorder %v700, %v8454
    %vm8479 = vcmp.eq.s32.totalorder %v700, %v8455
    %vm8480 = vcmp.eq.s32.totalorder %v700, %v8456
    %v8481 = vmul.f32 %v8457, -10.0
    %v8482 = vmul.f32 %v8458, -10.0
    %v8483 = vmul.f32 %v8459, -10.0
    %v8484 = vmul.f32 %v8460, -10.0
    %v8485 = vmul.f32 %v8461, -10.0
    %v8486 = vmul.f32 %v8462, -10.0
    %v8487 = vmul.f32 %v8463, -10.0
    %v8488 = vmul.f32 %v8464, -10.0
    %v8489 = vmul.f32 %v8481, 1.442695
    %v8490 = vpow.pop %v8489
    %v8491 = vmul.f32 %v8482, 1.442695
    %v8492 = vpow.pop %v8491
    %v8493 = vmul.f32 %v8483, 1.442695
    %v8494 = vpow.pop %v8493
    %v8495 = vmul.f32 %v8484, 1.442695
    %v8496 = vpow.pop %v8495
    %v8497 = vmul.f32 %v8485, 1.442695
    %v8498 = vpow.pop %v8497
    %v8499 = vmul.f32 %v8486, 1.442695
    %v8500 = vpow.pop %v8499
    %v8501 = vmul.f32 %v8487, 1.442695
    %v8502 = vpow.pop %v8501
    %v8503 = vmul.f32 %v8488, 1.442695
    %v8504 = vpow.pop %v8503
    %v8505 = vsel %vm8473, 1, 0
    %v8506 = vsel %vm8474, 1, 0
    %v8507 = vsel %vm8475, 1, 0
    %v8508 = vsel %vm8476, 1, 0
    %v8509 = vsel %vm8477, 1, 0
    %v8510 = vsel %vm8478, 1, 0
    %v8511 = vsel %vm8479, 1, 0
    %v8512 = vsel %vm8480, 1, 0
    %v8513 = vcvt.s32.f32 %v8505
    %v8514 = vcvt.s32.f32 %v8506
    %v8515 = vcvt.s32.f32 %v8507
    %v8516 = vcvt.s32.f32 %v8508
    %v8517 = vcvt.s32.f32 %v8509
    %v8518 = vcvt.s32.f32 %v8510
    %v8519 = vcvt.s32.f32 %v8511
    %v8520 = vcvt.s32.f32 %v8512
    %v8522 = vsel %vm733, %v8513, 0
    %v8525 = vsel %vm733, %v8514, 0
    %v8528 = vsel %vm733, %v8515, 0
    %v8531 = vsel %vm733, %v8516, 0
    %v8534 = vsel %vm733, %v8517, 0
    %v8537 = vsel %vm733, %v8518, 0
    %v8540 = vsel %vm733, %v8519, 0
    %v8543 = vsel %vm733, %v8520, 0
    %8545 = vmatprep.subr.mxu0 0.0
    %8546 = vmatpush1.msra.mxu0 0.0
    %8547 = vmatprep.subr.mxu0 0.0
    %8548 = vmatpush1.msra.mxu0 0.0
    %8549 = vmatprep.subr.mxu0 0.0
    %8550 = vmatpush1.msra.mxu0 0.0
    %8551 = vmatprep.subr.mxu0 0.0
    %8552 = vmatpush1.msra.mxu0 0.0
    %8553 = vmatprep.subr.mxu0 0.0
    %8554 = vmatpush1.msra.mxu0 0.0
    %8555 = vmatprep.subr.mxu0 0.0
    %8556 = vmatpush1.msra.mxu0 0.0
    %8557 = vmatprep.subr.mxu0 0.0
    %8558 = vmatpush1.msra.mxu0 0.0
    %8559 = vmatprep.subr.mxu0 0.0
    %8560 = vmatpush1.msra.mxu0 0.0
    %8561 = vmatprep.subr.mxu0 0.0
    %8562 = vmatpush1.msra.mxu0 %v7717
    %8563 = vmatprep.subr.mxu0 0.0
    %8564 = vmatpush1.msra.mxu0 %v7715
    %8565 = vmatprep.subr.mxu0 0.0
    %8566 = vmatpush1.msra.mxu0 %v7713
    %8567 = vmatprep.subr.mxu0 0.0
    %8568 = vmatpush1.msra.mxu0 %v7711
    %8569 = vmatprep.subr.mxu0 0.0
    %8570 = vmatpush1.msra.mxu0 %v7709
    %8571 = vmatprep.subr.mxu0 0.0
    %8572 = vmatpush1.msra.mxu0 %v7707
    %8573 = vmatprep.subr.mxu0 0.0
    %8574 = vmatpush1.msra.mxu0 %v7705
    %8575 = vmatprep.subr.mxu0 0.0
    %8576 = vmatpush1.msra.mxu0 %v7703
    %8577 = vmatprep.subr.mxu0 0.0
    %8578 = vmatpush2.msra.mxu0 0.0
    %8579 = vmatprep.subr.mxu0 0.0
    %8580 = vmatpush2.msra.mxu0 0.0
    %8581 = vmatprep.subr.mxu0 0.0
    %8582 = vmatpush2.msra.mxu0 0.0
    %8583 = vmatprep.subr.mxu0 0.0
    %8584 = vmatpush2.msra.mxu0 0.0
    %8585 = vmatprep.subr.mxu0 0.0
    %8586 = vmatpush2.msra.mxu0 0.0
    %8587 = vmatprep.subr.mxu0 0.0
    %8588 = vmatpush2.msra.mxu0 0.0
    %8589 = vmatprep.subr.mxu0 0.0
    %8590 = vmatpush2.msra.mxu0 0.0
    %8591 = vmatprep.subr.mxu0 0.0
    %8592 = vmatpush2.msra.mxu0 0.0
    %8593 = vmatprep.subr.mxu0 0.0
    %8594 = vmatpush2.msra.mxu0 0.0
    %8595 = vmatprep.subr.mxu0 0.0
    %8596 = vmatpush2.msra.mxu0 0.0
    %8597 = vmatprep.subr.mxu0 0.0
    %8598 = vmatpush2.msra.mxu0 0.0
    %8599 = vmatprep.subr.mxu0 0.0
    %8600 = vmatpush2.msra.mxu0 0.0
    %8601 = vmatprep.subr.mxu0 0.0
    %8602 = vmatpush2.msra.mxu0 0.0
    %8603 = vmatprep.subr.mxu0 0.0
    %8604 = vmatpush2.msra.mxu0 0.0
    %8605 = vmatprep.subr.mxu0 0.0
    %8606 = vmatpush2.msra.mxu0 0.0
    %8607 = vmatprep.subr.mxu0 0.0
    %8608 = vmatpush2.msra.mxu0 0.0
    %8609 = vmatprep.mubr.f32.mxu0 0.0
    %8610 = vmatmul.mubr.f32.gmra.mxu0 %v8522
    %v8611 = vpop.f32.mrf.mxu0
    %v8612 = vadd.f32 0.0, %v8611
    %v8613 = vpop.f32.mrf.mxu0
    %8614 = vmatprep.mubr.f32.mxu0 0.0
    %8615 = vmatmul.mubr.f32.gmra.mxu0 %v8525
    %v8616 = vpop.f32.mrf.mxu0
    %v8617 = vadd.f32 0.0, %v8616
    %v8618 = vpop.f32.mrf.mxu0
    %8619 = vmatprep.mubr.f32.mxu0 0.0
    %8620 = vmatmul.mubr.f32.gmra.mxu0 %v8528
    %v8621 = vpop.f32.mrf.mxu0
    %v8622 = vadd.f32 0.0, %v8621
    %v8623 = vpop.f32.mrf.mxu0
    %8624 = vmatprep.mubr.f32.mxu0 0.0
    %8625 = vmatmul.mubr.f32.gmra.mxu0 %v8531
    %v8626 = vpop.f32.mrf.mxu0
    %v8627 = vadd.f32 0.0, %v8626
    %v8628 = vpop.f32.mrf.mxu0
    %8629 = vmatprep.mubr.f32.mxu0 0.0
    %8630 = vmatmul.mubr.f32.gmra.mxu0 %v8534
    %v8631 = vpop.f32.mrf.mxu0
    %v8632 = vadd.f32 0.0, %v8631
    %v8633 = vpop.f32.mrf.mxu0
    %8634 = vmatprep.mubr.f32.mxu0 0.0
    %8635 = vmatmul.mubr.f32.gmra.mxu0 %v8537
    %v8636 = vpop.f32.mrf.mxu0
    %v8637 = vadd.f32 0.0, %v8636
    %v8638 = vpop.f32.mrf.mxu0
    %8639 = vmatprep.mubr.f32.mxu0 0.0
    %8640 = vmatmul.mubr.f32.gmra.mxu0 %v8540
    %v8641 = vpop.f32.mrf.mxu0
    %v8642 = vadd.f32 0.0, %v8641
    %v8643 = vpop.f32.mrf.mxu0
    %8644 = vmatprep.mubr.f32.mxu0 0.0
    %8645 = vmatmul.mubr.f32.gmra.mxu0 %v8543
    %v8646 = vpop.f32.mrf.mxu0
    %v8647 = vadd.f32 0.0, %v8646
    %v8648 = vpop.f32.mrf.mxu0
    %8649 = vdwg.mxu0
    %v8650 = vmul.f32 %v8490, %v8612
    %v8651 = vmul.f32 %v8492, %v8617
    %v8652 = vmul.f32 %v8494, %v8622
    %v8653 = vmul.f32 %v8496, %v8627
    %v8654 = vmul.f32 %v8498, %v8632
    %v8655 = vmul.f32 %v8500, %v8637
    %v8656 = vmul.f32 %v8502, %v8642
    %v8657 = vmul.f32 %v8504, %v8647
    %v8658 = vadd.f32 %v8393, %v8650
    %v8659 = vadd.f32 %v8394, %v8651
    %v8660 = vadd.f32 %v8395, %v8652
    %v8661 = vadd.f32 %v8396, %v8653
    %v8662 = vadd.f32 %v8397, %v8654
    %v8663 = vadd.f32 %v8398, %v8655
    %v8664 = vadd.f32 %v8399, %v8656
    %v8665 = vadd.f32 %v8400, %v8657
    %v8666 = vmax.f32 %v8401, %v8650
    %v8667 = vmax.f32 %v8402, %v8651
    %v8668 = vmax.f32 %v8403, %v8652
    %v8669 = vmax.f32 %v8404, %v8653
    %v8670 = vmax.f32 %v8405, %v8654
    %v8671 = vmax.f32 %v8406, %v8655
    %v8672 = vmax.f32 %v8407, %v8656
    %v8673 = vmax.f32 %v8408, %v8657
    %v8674 = vmul.f32 %v8658, 0.25
    %v8675 = vmul.f32 %v8659, 0.25
    %v8676 = vmul.f32 %v8660, 0.25
    %v8677 = vmul.f32 %v8661, 0.25
    %v8678 = vmul.f32 %v8662, 0.25
    %v8679 = vmul.f32 %v8663, 0.25
    %v8680 = vmul.f32 %v8664, 0.25
    %v8681 = vmul.f32 %v8665, 0.25
    %v8683 = vsel %vm39, %v8674, 0
    %v8686 = vsel %vm39, %v8675, 0
    %v8689 = vsel %vm39, %v8676, 0
    %v8692 = vsel %vm39, %v8677, 0
    %v8695 = vsel %vm39, %v8678, 0
    %v8698 = vsel %vm39, %v8679, 0
    %v8701 = vsel %vm39, %v8680, 0
    %v8704 = vsel %vm39, %v8681, 0
    %8706 = vmatprep.subr.mxu0 0.0
    %8707 = vmatpush1.msra.mxu0 0.0
    %8708 = vmatprep.subr.mxu0 0.0
    %8709 = vmatpush1.msra.mxu0 0.0
    %8710 = vmatprep.subr.mxu0 0.0
    %8711 = vmatpush1.msra.mxu0 0.0
    %8712 = vmatprep.subr.mxu0 0.0
    %8713 = vmatpush1.msra.mxu0 0.0
    %8714 = vmatprep.subr.mxu0 0.0
    %8715 = vmatpush1.msra.mxu0 0.0
    %8716 = vmatprep.subr.mxu0 0.0
    %8717 = vmatpush1.msra.mxu0 0.0
    %8718 = vmatprep.subr.mxu0 0.0
    %8719 = vmatpush1.msra.mxu0 0.0
    %8720 = vmatprep.subr.mxu0 0.0
    %8721 = vmatpush1.msra.mxu0 0.0
    %8722 = vmatprep.subr.mxu0 0.0
    %8723 = vmatpush1.msra.mxu0 0.0
    %8724 = vmatprep.subr.mxu0 0.0
    %8725 = vmatpush1.msra.mxu0 0.0
    %8726 = vmatprep.subr.mxu0 0.0
    %8727 = vmatpush1.msra.mxu0 0.0
    %8728 = vmatprep.subr.mxu0 0.0
    %8729 = vmatpush1.msra.mxu0 0.0
    %8730 = vmatprep.subr.mxu0 0.0
    %8731 = vmatpush1.msra.mxu0 0.0
    %8732 = vmatprep.subr.mxu0 0.0
    %8733 = vmatpush1.msra.mxu0 0.0
    %8734 = vmatprep.subr.mxu0 0.0
    %8735 = vmatpush1.msra.mxu0 0.0
    %8736 = vmatprep.subr.mxu0 0.0
    %8737 = vmatpush1.msra.mxu0 %v7190
    %8738 = vmatprep.subr.mxu0 0.0
    %8739 = vmatpush2.msra.mxu0 0.0
    %8740 = vmatprep.subr.mxu0 0.0
    %8741 = vmatpush2.msra.mxu0 0.0
    %8742 = vmatprep.subr.mxu0 0.0
    %8743 = vmatpush2.msra.mxu0 0.0
    %8744 = vmatprep.subr.mxu0 0.0
    %8745 = vmatpush2.msra.mxu0 0.0
    %8746 = vmatprep.subr.mxu0 0.0
    %8747 = vmatpush2.msra.mxu0 0.0
    %8748 = vmatprep.subr.mxu0 0.0
    %8749 = vmatpush2.msra.mxu0 0.0
    %8750 = vmatprep.subr.mxu0 0.0
    %8751 = vmatpush2.msra.mxu0 0.0
    %8752 = vmatprep.subr.mxu0 0.0
    %8753 = vmatpush2.msra.mxu0 0.0
    %8754 = vmatprep.subr.mxu0 0.0
    %8755 = vmatpush2.msra.mxu0 0.0
    %8756 = vmatprep.subr.mxu0 0.0
    %8757 = vmatpush2.msra.mxu0 0.0
    %8758 = vmatprep.subr.mxu0 0.0
    %8759 = vmatpush2.msra.mxu0 0.0
    %8760 = vmatprep.subr.mxu0 0.0
    %8761 = vmatpush2.msra.mxu0 0.0
    %8762 = vmatprep.subr.mxu0 0.0
    %8763 = vmatpush2.msra.mxu0 0.0
    %8764 = vmatprep.subr.mxu0 0.0
    %8765 = vmatpush2.msra.mxu0 0.0
    %8766 = vmatprep.subr.mxu0 0.0
    %8767 = vmatpush2.msra.mxu0 0.0
    %8768 = vmatprep.subr.mxu0 0.0
    %8769 = vmatpush2.msra.mxu0 0.0
    %8770 = vmatprep.mubr.f32.mxu0 0.0
    %8771 = vmatmul.mubr.f32.gmra.mxu0 %v8683
    %v8772 = vpop.f32.mrf.mxu0
    %v8773 = vadd.f32 0.0, %v8772
    %v8774 = vpop.f32.mrf.mxu0
    %8775 = vmatprep.mubr.f32.mxu0 0.0
    %8776 = vmatmul.mubr.f32.gmra.mxu0 %v8686
    %v8777 = vpop.f32.mrf.mxu0
    %v8778 = vadd.f32 0.0, %v8777
    %v8779 = vpop.f32.mrf.mxu0
    %8780 = vmatprep.mubr.f32.mxu0 0.0
    %8781 = vmatmul.mubr.f32.gmra.mxu0 %v8689
    %v8782 = vpop.f32.mrf.mxu0
    %v8783 = vadd.f32 0.0, %v8782
    %v8784 = vpop.f32.mrf.mxu0
    %8785 = vmatprep.mubr.f32.mxu0 0.0
    %8786 = vmatmul.mubr.f32.gmra.mxu0 %v8692
    %v8787 = vpop.f32.mrf.mxu0
    %v8788 = vadd.f32 0.0, %v8787
    %v8789 = vpop.f32.mrf.mxu0
    %8790 = vmatprep.mubr.f32.mxu0 0.0
    %8791 = vmatmul.mubr.f32.gmra.mxu0 %v8695
    %v8792 = vpop.f32.mrf.mxu0
    %v8793 = vadd.f32 0.0, %v8792
    %v8794 = vpop.f32.mrf.mxu0
    %8795 = vmatprep.mubr.f32.mxu0 0.0
    %8796 = vmatmul.mubr.f32.gmra.mxu0 %v8698
    %v8797 = vpop.f32.mrf.mxu0
    %v8798 = vadd.f32 0.0, %v8797
    %v8799 = vpop.f32.mrf.mxu0
    %8800 = vmatprep.mubr.f32.mxu0 0.0
    %8801 = vmatmul.mubr.f32.gmra.mxu0 %v8701
    %v8802 = vpop.f32.mrf.mxu0
    %v8803 = vadd.f32 0.0, %v8802
    %v8804 = vpop.f32.mrf.mxu0
    %8805 = vmatprep.mubr.f32.mxu0 0.0
    %8806 = vmatmul.mubr.f32.gmra.mxu0 %v8704
    %v8807 = vpop.f32.mrf.mxu0
    %v8808 = vadd.f32 0.0, %v8807
    %v8809 = vpop.f32.mrf.mxu0
    %8810 = vdwg.mxu0
    %8819 = vrot.lane.b32.xlu0 %v8773, 16
    %v8820 = vpop.permute.xlu0 %8819
    %8821 = vrot.lane.b32.xlu0 %v8778, 16
    %v8822 = vpop.permute.xlu0 %8821
    %8823 = vrot.lane.b32.xlu0 %v8783, 16
    %v8824 = vpop.permute.xlu0 %8823
    %8825 = vrot.lane.b32.xlu0 %v8788, 16
    %v8826 = vpop.permute.xlu0 %8825
    %8827 = vrot.lane.b32.xlu0 %v8793, 16
    %v8828 = vpop.permute.xlu0 %8827
    %8829 = vrot.lane.b32.xlu0 %v8798, 16
    %v8830 = vpop.permute.xlu0 %8829
    %8831 = vrot.lane.b32.xlu0 %v8803, 16
    %v8832 = vpop.permute.xlu0 %8831
    %8833 = vrot.lane.b32.xlu0 %v8808, 16
    %v8834 = vpop.permute.xlu0 %8833
    %v8843 = vadd.f32 %v7287, %v8820
    %v8844 = vadd.f32 %v7292, %v8822
    %v8845 = vadd.f32 %v7297, %v8824
    %v8846 = vadd.f32 %v7302, %v8826
    %v8847 = vadd.f32 %v7307, %v8828
    %v8848 = vadd.f32 %v7312, %v8830
    %v8849 = vadd.f32 %v7317, %v8832
    %v8850 = vadd.f32 %v7322, %v8834
    %v8852 = vsel %vm39, %v8666, 0
    %v8855 = vsel %vm39, %v8667, 0
    %v8858 = vsel %vm39, %v8668, 0
    %v8861 = vsel %vm39, %v8669, 0
    %v8864 = vsel %vm39, %v8670, 0
    %v8867 = vsel %vm39, %v8671, 0
    %v8870 = vsel %vm39, %v8672, 0
    %v8873 = vsel %vm39, %v8673, 0
    %8875 = vmatprep.subr.mxu0 0.0
    %8876 = vmatpush1.msra.mxu0 0.0
    %8877 = vmatprep.subr.mxu0 0.0
    %8878 = vmatpush1.msra.mxu0 0.0
    %8879 = vmatprep.subr.mxu0 0.0
    %8880 = vmatpush1.msra.mxu0 0.0
    %8881 = vmatprep.subr.mxu0 0.0
    %8882 = vmatpush1.msra.mxu0 0.0
    %8883 = vmatprep.subr.mxu0 0.0
    %8884 = vmatpush1.msra.mxu0 0.0
    %8885 = vmatprep.subr.mxu0 0.0
    %8886 = vmatpush1.msra.mxu0 0.0
    %8887 = vmatprep.subr.mxu0 0.0
    %8888 = vmatpush1.msra.mxu0 0.0
    %8889 = vmatprep.subr.mxu0 0.0
    %8890 = vmatpush1.msra.mxu0 0.0
    %8891 = vmatprep.subr.mxu0 0.0
    %8892 = vmatpush1.msra.mxu0 0.0
    %8893 = vmatprep.subr.mxu0 0.0
    %8894 = vmatpush1.msra.mxu0 0.0
    %8895 = vmatprep.subr.mxu0 0.0
    %8896 = vmatpush1.msra.mxu0 0.0
    %8897 = vmatprep.subr.mxu0 0.0
    %8898 = vmatpush1.msra.mxu0 0.0
    %8899 = vmatprep.subr.mxu0 0.0
    %8900 = vmatpush1.msra.mxu0 0.0
    %8901 = vmatprep.subr.mxu0 0.0
    %8902 = vmatpush1.msra.mxu0 0.0
    %8903 = vmatprep.subr.mxu0 0.0
    %8904 = vmatpush1.msra.mxu0 0.0
    %8905 = vmatprep.subr.mxu0 0.0
    %8906 = vmatpush1.msra.mxu0 %v7191
    %8907 = vmatprep.subr.mxu0 0.0
    %8908 = vmatpush2.msra.mxu0 0.0
    %8909 = vmatprep.subr.mxu0 0.0
    %8910 = vmatpush2.msra.mxu0 0.0
    %8911 = vmatprep.subr.mxu0 0.0
    %8912 = vmatpush2.msra.mxu0 0.0
    %8913 = vmatprep.subr.mxu0 0.0
    %8914 = vmatpush2.msra.mxu0 0.0
    %8915 = vmatprep.subr.mxu0 0.0
    %8916 = vmatpush2.msra.mxu0 0.0
    %8917 = vmatprep.subr.mxu0 0.0
    %8918 = vmatpush2.msra.mxu0 0.0
    %8919 = vmatprep.subr.mxu0 0.0
    %8920 = vmatpush2.msra.mxu0 0.0
    %8921 = vmatprep.subr.mxu0 0.0
    %8922 = vmatpush2.msra.mxu0 0.0
    %8923 = vmatprep.subr.mxu0 0.0
    %8924 = vmatpush2.msra.mxu0 0.0
    %8925 = vmatprep.subr.mxu0 0.0
    %8926 = vmatpush2.msra.mxu0 0.0
    %8927 = vmatprep.subr.mxu0 0.0
    %8928 = vmatpush2.msra.mxu0 0.0
    %8929 = vmatprep.subr.mxu0 0.0
    %8930 = vmatpush2.msra.mxu0 0.0
    %8931 = vmatprep.subr.mxu0 0.0
    %8932 = vmatpush2.msra.mxu0 0.0
    %8933 = vmatprep.subr.mxu0 0.0
    %8934 = vmatpush2.msra.mxu0 0.0
    %8935 = vmatprep.subr.mxu0 0.0
    %8936 = vmatpush2.msra.mxu0 0.0
    %8937 = vmatprep.subr.mxu0 0.0
    %8938 = vmatpush2.msra.mxu0 0.0
    %8939 = vmatprep.mubr.f32.mxu0 0.0
    %8940 = vmatmul.mubr.f32.gmra.mxu0 %v8852
    %v8941 = vpop.f32.mrf.mxu0
    %v8942 = vadd.f32 0.0, %v8941
    %v8943 = vpop.f32.mrf.mxu0
    %8944 = vmatprep.mubr.f32.mxu0 0.0
    %8945 = vmatmul.mubr.f32.gmra.mxu0 %v8855
    %v8946 = vpop.f32.mrf.mxu0
    %v8947 = vadd.f32 0.0, %v8946
    %v8948 = vpop.f32.mrf.mxu0
    %8949 = vmatprep.mubr.f32.mxu0 0.0
    %8950 = vmatmul.mubr.f32.gmra.mxu0 %v8858
    %v8951 = vpop.f32.mrf.mxu0
    %v8952 = vadd.f32 0.0, %v8951
    %v8953 = vpop.f32.mrf.mxu0
    %8954 = vmatprep.mubr.f32.mxu0 0.0
    %8955 = vmatmul.mubr.f32.gmra.mxu0 %v8861
    %v8956 = vpop.f32.mrf.mxu0
    %v8957 = vadd.f32 0.0, %v8956
    %v8958 = vpop.f32.mrf.mxu0
    %8959 = vmatprep.mubr.f32.mxu0 0.0
    %8960 = vmatmul.mubr.f32.gmra.mxu0 %v8864
    %v8961 = vpop.f32.mrf.mxu0
    %v8962 = vadd.f32 0.0, %v8961
    %v8963 = vpop.f32.mrf.mxu0
    %8964 = vmatprep.mubr.f32.mxu0 0.0
    %8965 = vmatmul.mubr.f32.gmra.mxu0 %v8867
    %v8966 = vpop.f32.mrf.mxu0
    %v8967 = vadd.f32 0.0, %v8966
    %v8968 = vpop.f32.mrf.mxu0
    %8969 = vmatprep.mubr.f32.mxu0 0.0
    %8970 = vmatmul.mubr.f32.gmra.mxu0 %v8870
    %v8971 = vpop.f32.mrf.mxu0
    %v8972 = vadd.f32 0.0, %v8971
    %v8973 = vpop.f32.mrf.mxu0
    %8974 = vmatprep.mubr.f32.mxu0 0.0
    %8975 = vmatmul.mubr.f32.gmra.mxu0 %v8873
    %v8976 = vpop.f32.mrf.mxu0
    %v8977 = vadd.f32 0.0, %v8976
    %v8978 = vpop.f32.mrf.mxu0
    %8979 = vdwg.mxu0
    %8988 = vrot.lane.b32.xlu0 %v8942, 16
    %v8989 = vpop.permute.xlu0 %8988
    %8990 = vrot.lane.b32.xlu0 %v8947, 16
    %v8991 = vpop.permute.xlu0 %8990
    %8992 = vrot.lane.b32.xlu0 %v8952, 16
    %v8993 = vpop.permute.xlu0 %8992
    %8994 = vrot.lane.b32.xlu0 %v8957, 16
    %v8995 = vpop.permute.xlu0 %8994
    %8996 = vrot.lane.b32.xlu0 %v8962, 16
    %v8997 = vpop.permute.xlu0 %8996
    %8998 = vrot.lane.b32.xlu0 %v8967, 16
    %v8999 = vpop.permute.xlu0 %8998
    %9000 = vrot.lane.b32.xlu0 %v8972, 16
    %v9001 = vpop.permute.xlu0 %9000
    %9002 = vrot.lane.b32.xlu0 %v8977, 16
    %v9003 = vpop.permute.xlu0 %9002
    %v9012 = vadd.f32 %v8843, %v8989
    %v9013 = vadd.f32 %v8844, %v8991
    %v9014 = vadd.f32 %v8845, %v8993
    %v9015 = vadd.f32 %v8846, %v8995
    %v9016 = vadd.f32 %v8847, %v8997
    %v9017 = vadd.f32 %v8848, %v8999
    %v9018 = vadd.f32 %v8849, %v9001
    %v9019 = vadd.f32 %v8850, %v9003
    %v9020 = vld [vmem:[#allocation2 + $0x220] sm:$0xff]
    %v9021 = vld [vmem:[#allocation2 + $0x228] sm:$0xff]
    %v9022 = vld [vmem:[#allocation2 + $0x230] sm:$0x1]
    %v9023 = vlaneseq
    %v9024 = vshrl.u32 %v9023, 7
    %v9025 = vsub.s32 0, %v9024
    %v9026 = vrot.slane %v9022, %v9025
    %9035 = vrot.lane.b32.xlu0 %v9012, 112
    %v9036 = vpop.permute.xlu0 %9035
    %9037 = vrot.lane.b32.xlu0 %v9013, 112
    %v9038 = vpop.permute.xlu0 %9037
    %9039 = vrot.lane.b32.xlu0 %v9014, 112
    %v9040 = vpop.permute.xlu0 %9039
    %9041 = vrot.lane.b32.xlu0 %v9015, 112
    %v9042 = vpop.permute.xlu0 %9041
    %9043 = vrot.lane.b32.xlu0 %v9016, 112
    %v9044 = vpop.permute.xlu0 %9043
    %9045 = vrot.lane.b32.xlu0 %v9017, 112
    %v9046 = vpop.permute.xlu0 %9045
    %9047 = vrot.lane.b32.xlu0 %v9018, 112
    %v9048 = vpop.permute.xlu0 %9047
    %9049 = vrot.lane.b32.xlu0 %v9019, 112
    %v9050 = vpop.permute.xlu0 %9049
    %v9051 = vsel %vm2195, %v9036, 0
    %v9053 = vsel %vm2195, %v9038, 0
    %v9055 = vsel %vm2195, %v9040, 0
    %v9057 = vsel %vm2195, %v9042, 0
    %v9059 = vsel %vm2195, %v9044, 0
    %v9061 = vsel %vm2195, %v9046, 0
    %v9063 = vsel %vm2195, %v9048, 0
    %v9065 = vsel %vm2195, %v9050, 0
    %9067 = vmatprep.subr.mxu0 0.0
    %9068 = vmatpush1.msra.mxu0 0.0
    %9069 = vmatprep.subr.mxu0 0.0
    %9070 = vmatpush1.msra.mxu0 0.0
    %9071 = vmatprep.subr.mxu0 0.0
    %9072 = vmatpush1.msra.mxu0 0.0
    %9073 = vmatprep.subr.mxu0 0.0
    %9074 = vmatpush1.msra.mxu0 0.0
    %9075 = vmatprep.subr.mxu0 0.0
    %9076 = vmatpush1.msra.mxu0 0.0
    %9077 = vmatprep.subr.mxu0 0.0
    %9078 = vmatpush1.msra.mxu0 0.0
    %9079 = vmatprep.subr.mxu0 0.0
    %9080 = vmatpush1.msra.mxu0 0.0
    %9081 = vmatprep.subr.mxu0 0.0
    %9082 = vmatpush1.msra.mxu0 0.0
    %9083 = vmatprep.subr.mxu0 0.0
    %9084 = vmatpush1.msra.mxu0 0.0
    %9085 = vmatprep.subr.mxu0 0.0
    %9086 = vmatpush1.msra.mxu0 0.0
    %9087 = vmatprep.subr.mxu0 0.0
    %9088 = vmatpush1.msra.mxu0 0.0
    %9089 = vmatprep.subr.mxu0 0.0
    %9090 = vmatpush1.msra.mxu0 0.0
    %9091 = vmatprep.subr.mxu0 0.0
    %9092 = vmatpush1.msra.mxu0 0.0
    %9093 = vmatprep.subr.mxu0 0.0
    %9094 = vmatpush1.msra.mxu0 0.0
    %9095 = vmatprep.subr.mxu0 0.0
    %9096 = vmatpush1.msra.mxu0 %v9021
    %9097 = vmatprep.subr.mxu0 0.0
    %9098 = vmatpush1.msra.mxu0 %v9020
    %9099 = vmatprep.subr.mxu0 0.0
    %9100 = vmatpush2.msra.mxu0 0.0
    %9101 = vmatprep.subr.mxu0 0.0
    %9102 = vmatpush2.msra.mxu0 0.0
    %9103 = vmatprep.subr.mxu0 0.0
    %9104 = vmatpush2.msra.mxu0 0.0
    %9105 = vmatprep.subr.mxu0 0.0
    %9106 = vmatpush2.msra.mxu0 0.0
    %9107 = vmatprep.subr.mxu0 0.0
    %9108 = vmatpush2.msra.mxu0 0.0
    %9109 = vmatprep.subr.mxu0 0.0
    %9110 = vmatpush2.msra.mxu0 0.0
    %9111 = vmatprep.subr.mxu0 0.0
    %9112 = vmatpush2.msra.mxu0 0.0
    %9113 = vmatprep.subr.mxu0 0.0
    %9114 = vmatpush2.msra.mxu0 0.0
    %9115 = vmatprep.subr.mxu0 0.0
    %9116 = vmatpush2.msra.mxu0 0.0
    %9117 = vmatprep.subr.mxu0 0.0
    %9118 = vmatpush2.msra.mxu0 0.0
    %9119 = vmatprep.subr.mxu0 0.0
    %9120 = vmatpush2.msra.mxu0 0.0
    %9121 = vmatprep.subr.mxu0 0.0
    %9122 = vmatpush2.msra.mxu0 0.0
    %9123 = vmatprep.subr.mxu0 0.0
    %9124 = vmatpush2.msra.mxu0 0.0
    %9125 = vmatprep.subr.mxu0 0.0
    %9126 = vmatpush2.msra.mxu0 0.0
    %9127 = vmatprep.subr.mxu0 0.0
    %9128 = vmatpush2.msra.mxu0 0.0
    %9129 = vmatprep.subr.mxu0 0.0
    %9130 = vmatpush2.msra.mxu0 0.0
    %9131 = vmatprep.mubr.f32.mxu0 0.0
    %9132 = vmatmul.mubr.f32.gmra.mxu0 %v9051
    %v9133 = vpop.f32.mrf.mxu0
    %v9134 = vadd.f32 %v9026, %v9133
    %v9135 = vpop.f32.mrf.mxu0
    %9136 = vmatprep.mubr.f32.mxu0 0.0
    %9137 = vmatmul.mubr.f32.gmra.mxu0 %v9053
    %v9138 = vpop.f32.mrf.mxu0
    %v9139 = vadd.f32 %v9026, %v9138
    %v9140 = vpop.f32.mrf.mxu0
    %9141 = vmatprep.mubr.f32.mxu0 0.0
    %9142 = vmatmul.mubr.f32.gmra.mxu0 %v9055
    %v9143 = vpop.f32.mrf.mxu0
    %v9144 = vadd.f32 %v9026, %v9143
    %v9145 = vpop.f32.mrf.mxu0
    %9146 = vmatprep.mubr.f32.mxu0 0.0
    %9147 = vmatmul.mubr.f32.gmra.mxu0 %v9057
    %v9148 = vpop.f32.mrf.mxu0
    %v9149 = vadd.f32 %v9026, %v9148
    %v9150 = vpop.f32.mrf.mxu0
    %9151 = vmatprep.mubr.f32.mxu0 0.0
    %9152 = vmatmul.mubr.f32.gmra.mxu0 %v9059
    %v9153 = vpop.f32.mrf.mxu0
    %v9154 = vadd.f32 %v9026, %v9153
    %v9155 = vpop.f32.mrf.mxu0
    %9156 = vmatprep.mubr.f32.mxu0 0.0
    %9157 = vmatmul.mubr.f32.gmra.mxu0 %v9061
    %v9158 = vpop.f32.mrf.mxu0
    %v9159 = vadd.f32 %v9026, %v9158
    %v9160 = vpop.f32.mrf.mxu0
    %9161 = vmatprep.mubr.f32.mxu0 0.0
    %9162 = vmatmul.mubr.f32.gmra.mxu0 %v9063
    %v9163 = vpop.f32.mrf.mxu0
    %v9164 = vadd.f32 %v9026, %v9163
    %v9165 = vpop.f32.mrf.mxu0
    %9166 = vmatprep.mubr.f32.mxu0 0.0
    %9167 = vmatmul.mubr.f32.gmra.mxu0 %v9065
    %v9168 = vpop.f32.mrf.mxu0
    %v9169 = vadd.f32 %v9026, %v9168
    %v9170 = vpop.f32.mrf.mxu0
    %9171 = vdwg.mxu0
    %v9172 = vmax.f32 %v9134, 0.0
    %v9173 = vmax.f32 %v9139, 0.0
    %v9174 = vmax.f32 %v9144, 0.0
    %v9175 = vmax.f32 %v9149, 0.0
    %v9176 = vmax.f32 %v9154, 0.0
    %v9177 = vmax.f32 %v9159, 0.0
    %v9178 = vmax.f32 %v9164, 0.0
    %v9179 = vmax.f32 %v9169, 0.0
    %v9180 = vld [vmem:[#allocation2 + $0x238] sm:$0xff]
    %v9181 = vld [vmem:[#allocation2 + $0x240] sm:$0xff]
    %v9182 = vld [vmem:[#allocation2 + $0x248] sm:$0xff]
    %v9183 = vld [vmem:[#allocation2 + $0x250] sm:$0xff]
    %v9184 = vld [vmem:[#allocation2 + $0x258] sm:$0x1]
    %v9185 = vlaneseq
    %v9186 = vshrl.u32 %v9185, 7
    %v9187 = vsub.s32 0, %v9186
    %v9188 = vrot.slane %v9184, %v9187
    %v9190 = vsel %vm186, %v9172, 0
    %v9193 = vsel %vm186, %v9173, 0
    %v9196 = vsel %vm186, %v9174, 0
    %v9199 = vsel %vm186, %v9175, 0
    %v9202 = vsel %vm186, %v9176, 0
    %v9205 = vsel %vm186, %v9177, 0
    %v9208 = vsel %vm186, %v9178, 0
    %v9211 = vsel %vm186, %v9179, 0
    %9213 = vmatprep.subr.mxu0 0.0
    %9214 = vmatpush1.msra.mxu0 0.0
    %9215 = vmatprep.subr.mxu0 0.0
    %9216 = vmatpush1.msra.mxu0 0.0
    %9217 = vmatprep.subr.mxu0 0.0
    %9218 = vmatpush1.msra.mxu0 0.0
    %9219 = vmatprep.subr.mxu0 0.0
    %9220 = vmatpush1.msra.mxu0 0.0
    %9221 = vmatprep.subr.mxu0 0.0
    %9222 = vmatpush1.msra.mxu0 0.0
    %9223 = vmatprep.subr.mxu0 0.0
    %9224 = vmatpush1.msra.mxu0 0.0
    %9225 = vmatprep.subr.mxu0 0.0
    %9226 = vmatpush1.msra.mxu0 0.0
    %9227 = vmatprep.subr.mxu0 0.0
    %9228 = vmatpush1.msra.mxu0 0.0
    %9229 = vmatprep.subr.mxu0 0.0
    %9230 = vmatpush1.msra.mxu0 0.0
    %9231 = vmatprep.subr.mxu0 0.0
    %9232 = vmatpush1.msra.mxu0 0.0
    %9233 = vmatprep.subr.mxu0 0.0
    %9234 = vmatpush1.msra.mxu0 0.0
    %9235 = vmatprep.subr.mxu0 0.0
    %9236 = vmatpush1.msra.mxu0 0.0
    %9237 = vmatprep.subr.mxu0 0.0
    %9238 = vmatpush1.msra.mxu0 %v9183
    %9239 = vmatprep.subr.mxu0 0.0
    %9240 = vmatpush1.msra.mxu0 %v9182
    %9241 = vmatprep.subr.mxu0 0.0
    %9242 = vmatpush1.msra.mxu0 %v9181
    %9243 = vmatprep.subr.mxu0 0.0
    %9244 = vmatpush1.msra.mxu0 %v9180
    %9245 = vmatprep.subr.mxu0 0.0
    %9246 = vmatpush2.msra.mxu0 0.0
    %9247 = vmatprep.subr.mxu0 0.0
    %9248 = vmatpush2.msra.mxu0 0.0
    %9249 = vmatprep.subr.mxu0 0.0
    %9250 = vmatpush2.msra.mxu0 0.0
    %9251 = vmatprep.subr.mxu0 0.0
    %9252 = vmatpush2.msra.mxu0 0.0
    %9253 = vmatprep.subr.mxu0 0.0
    %9254 = vmatpush2.msra.mxu0 0.0
    %9255 = vmatprep.subr.mxu0 0.0
    %9256 = vmatpush2.msra.mxu0 0.0
    %9257 = vmatprep.subr.mxu0 0.0
    %9258 = vmatpush2.msra.mxu0 0.0
    %9259 = vmatprep.subr.mxu0 0.0
    %9260 = vmatpush2.msra.mxu0 0.0
    %9261 = vmatprep.subr.mxu0 0.0
    %9262 = vmatpush2.msra.mxu0 0.0
    %9263 = vmatprep.subr.mxu0 0.0
    %9264 = vmatpush2.msra.mxu0 0.0
    %9265 = vmatprep.subr.mxu0 0.0
    %9266 = vmatpush2.msra.mxu0 0.0
    %9267 = vmatprep.subr.mxu0 0.0
    %9268 = vmatpush2.msra.mxu0 0.0
    %9269 = vmatprep.subr.mxu0 0.0
    %9270 = vmatpush2.msra.mxu0 0.0
    %9271 = vmatprep.subr.mxu0 0.0
    %9272 = vmatpush2.msra.mxu0 0.0
    %9273 = vmatprep.subr.mxu0 0.0
    %9274 = vmatpush2.msra.mxu0 0.0
    %9275 = vmatprep.subr.mxu0 0.0
    %9276 = vmatpush2.msra.mxu0 0.0
    %9277 = vmatprep.mubr.f32.mxu0 0.0
    %9278 = vmatmul.mubr.f32.gmra.mxu0 %v9190
    %v9279 = vpop.f32.mrf.mxu0
    %v9280 = vadd.f32 %v9188, %v9279
    %v9281 = vpop.f32.mrf.mxu0
    %9282 = vmatprep.mubr.f32.mxu0 0.0
    %9283 = vmatmul.mubr.f32.gmra.mxu0 %v9193
    %v9284 = vpop.f32.mrf.mxu0
    %v9285 = vadd.f32 %v9188, %v9284
    %v9286 = vpop.f32.mrf.mxu0
    %9287 = vmatprep.mubr.f32.mxu0 0.0
    %9288 = vmatmul.mubr.f32.gmra.mxu0 %v9196
    %v9289 = vpop.f32.mrf.mxu0
    %v9290 = vadd.f32 %v9188, %v9289
    %v9291 = vpop.f32.mrf.mxu0
    %9292 = vmatprep.mubr.f32.mxu0 0.0
    %9293 = vmatmul.mubr.f32.gmra.mxu0 %v9199
    %v9294 = vpop.f32.mrf.mxu0
    %v9295 = vadd.f32 %v9188, %v9294
    %v9296 = vpop.f32.mrf.mxu0
    %9297 = vmatprep.mubr.f32.mxu0 0.0
    %9298 = vmatmul.mubr.f32.gmra.mxu0 %v9202
    %v9299 = vpop.f32.mrf.mxu0
    %v9300 = vadd.f32 %v9188, %v9299
    %v9301 = vpop.f32.mrf.mxu0
    %9302 = vmatprep.mubr.f32.mxu0 0.0
    %9303 = vmatmul.mubr.f32.gmra.mxu0 %v9205
    %v9304 = vpop.f32.mrf.mxu0
    %v9305 = vadd.f32 %v9188, %v9304
    %v9306 = vpop.f32.mrf.mxu0
    %9307 = vmatprep.mubr.f32.mxu0 0.0
    %9308 = vmatmul.mubr.f32.gmra.mxu0 %v9208
    %v9309 = vpop.f32.mrf.mxu0
    %v9310 = vadd.f32 %v9188, %v9309
    %v9311 = vpop.f32.mrf.mxu0
    %9312 = vmatprep.mubr.f32.mxu0 0.0
    %9313 = vmatmul.mubr.f32.gmra.mxu0 %v9211
    %v9314 = vpop.f32.mrf.mxu0
    %v9315 = vadd.f32 %v9188, %v9314
    %v9316 = vpop.f32.mrf.mxu0
    %9317 = vdwg.mxu0
    %v9318 = vmax.f32 %v9280, 0.0
    %v9319 = vmax.f32 %v9285, 0.0
    %v9320 = vmax.f32 %v9290, 0.0
    %v9321 = vmax.f32 %v9295, 0.0
    %v9322 = vmax.f32 %v9300, 0.0
    %v9323 = vmax.f32 %v9305, 0.0
    %v9324 = vmax.f32 %v9310, 0.0
    %v9325 = vmax.f32 %v9315, 0.0
    %v9326 = vld [vmem:[#allocation2 + $0x260] sm:$0xff]
    %v9327 = vld [vmem:[#allocation2 + $0x268] sm:$0xff]
    %v9328 = vld [vmem:[#allocation2 + $0x270] sm:$0xff]
    %v9329 = vld [vmem:[#allocation2 + $0x278] sm:$0xff]
    %v9330 = vld [vmem:[#allocation2 + $0x280] sm:$0x1]
    %v9331 = vlaneseq
    %v9332 = vshrl.u32 %v9331, 7
    %v9333 = vsub.s32 0, %v9332
    %v9334 = vrot.slane %v9330, %v9333
    %v9336 = vsel %vm186, %v9318, 0
    %v9339 = vsel %vm186, %v9319, 0
    %v9342 = vsel %vm186, %v9320, 0
    %v9345 = vsel %vm186, %v9321, 0
    %v9348 = vsel %vm186, %v9322, 0
    %v9351 = vsel %vm186, %v9323, 0
    %v9354 = vsel %vm186, %v9324, 0
    %v9357 = vsel %vm186, %v9325, 0
    %9359 = vmatprep.subr.mxu0 0.0
    %9360 = vmatpush1.msra.mxu0 0.0
    %9361 = vmatprep.subr.mxu0 0.0
    %9362 = vmatpush1.msra.mxu0 0.0
    %9363 = vmatprep.subr.mxu0 0.0
    %9364 = vmatpush1.msra.mxu0 0.0
    %9365 = vmatprep.subr.mxu0 0.0
    %9366 = vmatpush1.msra.mxu0 0.0
    %9367 = vmatprep.subr.mxu0 0.0
    %9368 = vmatpush1.msra.mxu0 0.0
    %9369 = vmatprep.subr.mxu0 0.0
    %9370 = vmatpush1.msra.mxu0 0.0
    %9371 = vmatprep.subr.mxu0 0.0
    %9372 = vmatpush1.msra.mxu0 0.0
    %9373 = vmatprep.subr.mxu0 0.0
    %9374 = vmatpush1.msra.mxu0 0.0
    %9375 = vmatprep.subr.mxu0 0.0
    %9376 = vmatpush1.msra.mxu0 0.0
    %9377 = vmatprep.subr.mxu0 0.0
    %9378 = vmatpush1.msra.mxu0 0.0
    %9379 = vmatprep.subr.mxu0 0.0
    %9380 = vmatpush1.msra.mxu0 0.0
    %9381 = vmatprep.subr.mxu0 0.0
    %9382 = vmatpush1.msra.mxu0 0.0
    %9383 = vmatprep.subr.mxu0 0.0
    %9384 = vmatpush1.msra.mxu0 %v9329
    %9385 = vmatprep.subr.mxu0 0.0
    %9386 = vmatpush1.msra.mxu0 %v9328
    %9387 = vmatprep.subr.mxu0 0.0
    %9388 = vmatpush1.msra.mxu0 %v9327
    %9389 = vmatprep.subr.mxu0 0.0
    %9390 = vmatpush1.msra.mxu0 %v9326
    %9391 = vmatprep.subr.mxu0 0.0
    %9392 = vmatpush2.msra.mxu0 0.0
    %9393 = vmatprep.subr.mxu0 0.0
    %9394 = vmatpush2.msra.mxu0 0.0
    %9395 = vmatprep.subr.mxu0 0.0
    %9396 = vmatpush2.msra.mxu0 0.0
    %9397 = vmatprep.subr.mxu0 0.0
    %9398 = vmatpush2.msra.mxu0 0.0
    %9399 = vmatprep.subr.mxu0 0.0
    %9400 = vmatpush2.msra.mxu0 0.0
    %9401 = vmatprep.subr.mxu0 0.0
    %9402 = vmatpush2.msra.mxu0 0.0
    %9403 = vmatprep.subr.mxu0 0.0
    %9404 = vmatpush2.msra.mxu0 0.0
    %9405 = vmatprep.subr.mxu0 0.0
    %9406 = vmatpush2.msra.mxu0 0.0
    %9407 = vmatprep.subr.mxu0 0.0
    %9408 = vmatpush2.msra.mxu0 0.0
    %9409 = vmatprep.subr.mxu0 0.0
    %9410 = vmatpush2.msra.mxu0 0.0
    %9411 = vmatprep.subr.mxu0 0.0
    %9412 = vmatpush2.msra.mxu0 0.0
    %9413 = vmatprep.subr.mxu0 0.0
    %9414 = vmatpush2.msra.mxu0 0.0
    %9415 = vmatprep.subr.mxu0 0.0
    %9416 = vmatpush2.msra.mxu0 0.0
    %9417 = vmatprep.subr.mxu0 0.0
    %9418 = vmatpush2.msra.mxu0 0.0
    %9419 = vmatprep.subr.mxu0 0.0
    %9420 = vmatpush2.msra.mxu0 0.0
    %9421 = vmatprep.subr.mxu0 0.0
    %9422 = vmatpush2.msra.mxu0 0.0
    %9423 = vmatprep.mubr.f32.mxu0 0.0
    %9424 = vmatmul.mubr.f32.gmra.mxu0 %v9336
    %v9425 = vpop.f32.mrf.mxu0
    %v9426 = vadd.f32 %v9334, %v9425
    %v9427 = vpop.f32.mrf.mxu0
    %9428 = vmatprep.mubr.f32.mxu0 0.0
    %9429 = vmatmul.mubr.f32.gmra.mxu0 %v9339
    %v9430 = vpop.f32.mrf.mxu0
    %v9431 = vadd.f32 %v9334, %v9430
    %v9432 = vpop.f32.mrf.mxu0
    %9433 = vmatprep.mubr.f32.mxu0 0.0
    %9434 = vmatmul.mubr.f32.gmra.mxu0 %v9342
    %v9435 = vpop.f32.mrf.mxu0
    %v9436 = vadd.f32 %v9334, %v9435
    %v9437 = vpop.f32.mrf.mxu0
    %9438 = vmatprep.mubr.f32.mxu0 0.0
    %9439 = vmatmul.mubr.f32.gmra.mxu0 %v9345
    %v9440 = vpop.f32.mrf.mxu0
    %v9441 = vadd.f32 %v9334, %v9440
    %v9442 = vpop.f32.mrf.mxu0
    %9443 = vmatprep.mubr.f32.mxu0 0.0
    %9444 = vmatmul.mubr.f32.gmra.mxu0 %v9348
    %v9445 = vpop.f32.mrf.mxu0
    %v9446 = vadd.f32 %v9334, %v9445
    %v9447 = vpop.f32.mrf.mxu0
    %9448 = vmatprep.mubr.f32.mxu0 0.0
    %9449 = vmatmul.mubr.f32.gmra.mxu0 %v9351
    %v9450 = vpop.f32.mrf.mxu0
    %v9451 = vadd.f32 %v9334, %v9450
    %v9452 = vpop.f32.mrf.mxu0
    %9453 = vmatprep.mubr.f32.mxu0 0.0
    %9454 = vmatmul.mubr.f32.gmra.mxu0 %v9354
    %v9455 = vpop.f32.mrf.mxu0
    %v9456 = vadd.f32 %v9334, %v9455
    %v9457 = vpop.f32.mrf.mxu0
    %9458 = vmatprep.mubr.f32.mxu0 0.0
    %9459 = vmatmul.mubr.f32.gmra.mxu0 %v9357
    %v9460 = vpop.f32.mrf.mxu0
    %v9461 = vadd.f32 %v9334, %v9460
    %v9462 = vpop.f32.mrf.mxu0
    %9463 = vdwg.mxu0
    %v9464 = vmax.f32 %v9426, 0.0
    %v9465 = vmax.f32 %v9431, 0.0
    %v9466 = vmax.f32 %v9436, 0.0
    %v9467 = vmax.f32 %v9441, 0.0
    %v9468 = vmax.f32 %v9446, 0.0
    %v9469 = vmax.f32 %v9451, 0.0
    %v9470 = vmax.f32 %v9456, 0.0
    %v9471 = vmax.f32 %v9461, 0.0
    %v9472 = vld [vmem:[#allocation2 + $0x288] sm:$0xff]
    %v9473 = vld [vmem:[#allocation2 + $0x290] sm:$0xff]
    %v9474 = vld [vmem:[#allocation2 + $0x298] sm:$0x1]
    %v9475 = vlaneseq
    %v9476 = vshrl.u32 %v9475, 7
    %v9477 = vsub.s32 0, %v9476
    %v9478 = vrot.slane %v9474, %v9477
    %v9480 = vsel %vm2195, %v9464, 0
    %v9483 = vsel %vm2195, %v9465, 0
    %v9486 = vsel %vm2195, %v9466, 0
    %v9489 = vsel %vm2195, %v9467, 0
    %v9492 = vsel %vm2195, %v9468, 0
    %v9495 = vsel %vm2195, %v9469, 0
    %v9498 = vsel %vm2195, %v9470, 0
    %v9501 = vsel %vm2195, %v9471, 0
    %9503 = vmatprep.subr.mxu0 0.0
    %9504 = vmatpush1.msra.mxu0 0.0
    %9505 = vmatprep.subr.mxu0 0.0
    %9506 = vmatpush1.msra.mxu0 0.0
    %9507 = vmatprep.subr.mxu0 0.0
    %9508 = vmatpush1.msra.mxu0 0.0
    %9509 = vmatprep.subr.mxu0 0.0
    %9510 = vmatpush1.msra.mxu0 0.0
    %9511 = vmatprep.subr.mxu0 0.0
    %9512 = vmatpush1.msra.mxu0 0.0
    %9513 = vmatprep.subr.mxu0 0.0
    %9514 = vmatpush1.msra.mxu0 0.0
    %9515 = vmatprep.subr.mxu0 0.0
    %9516 = vmatpush1.msra.mxu0 0.0
    %9517 = vmatprep.subr.mxu0 0.0
    %9518 = vmatpush1.msra.mxu0 0.0
    %9519 = vmatprep.subr.mxu0 0.0
    %9520 = vmatpush1.msra.mxu0 0.0
    %9521 = vmatprep.subr.mxu0 0.0
    %9522 = vmatpush1.msra.mxu0 0.0
    %9523 = vmatprep.subr.mxu0 0.0
    %9524 = vmatpush1.msra.mxu0 0.0
    %9525 = vmatprep.subr.mxu0 0.0
    %9526 = vmatpush1.msra.mxu0 0.0
    %9527 = vmatprep.subr.mxu0 0.0
    %9528 = vmatpush1.msra.mxu0 0.0
    %9529 = vmatprep.subr.mxu0 0.0
    %9530 = vmatpush1.msra.mxu0 0.0
    %9531 = vmatprep.subr.mxu0 0.0
    %9532 = vmatpush1.msra.mxu0 %v9473
    %9533 = vmatprep.subr.mxu0 0.0
    %9534 = vmatpush1.msra.mxu0 %v9472
    %9535 = vmatprep.subr.mxu0 0.0
    %9536 = vmatpush2.msra.mxu0 0.0
    %9537 = vmatprep.subr.mxu0 0.0
    %9538 = vmatpush2.msra.mxu0 0.0
    %9539 = vmatprep.subr.mxu0 0.0
    %9540 = vmatpush2.msra.mxu0 0.0
    %9541 = vmatprep.subr.mxu0 0.0
    %9542 = vmatpush2.msra.mxu0 0.0
    %9543 = vmatprep.subr.mxu0 0.0
    %9544 = vmatpush2.msra.mxu0 0.0
    %9545 = vmatprep.subr.mxu0 0.0
    %9546 = vmatpush2.msra.mxu0 0.0
    %9547 = vmatprep.subr.mxu0 0.0
    %9548 = vmatpush2.msra.mxu0 0.0
    %9549 = vmatprep.subr.mxu0 0.0
    %9550 = vmatpush2.msra.mxu0 0.0
    %9551 = vmatprep.subr.mxu0 0.0
    %9552 = vmatpush2.msra.mxu0 0.0
    %9553 = vmatprep.subr.mxu0 0.0
    %9554 = vmatpush2.msra.mxu0 0.0
    %9555 = vmatprep.subr.mxu0 0.0
    %9556 = vmatpush2.msra.mxu0 0.0
    %9557 = vmatprep.subr.mxu0 0.0
    %9558 = vmatpush2.msra.mxu0 0.0
    %9559 = vmatprep.subr.mxu0 0.0
    %9560 = vmatpush2.msra.mxu0 0.0
    %9561 = vmatprep.subr.mxu0 0.0
    %9562 = vmatpush2.msra.mxu0 0.0
    %9563 = vmatprep.subr.mxu0 0.0
    %9564 = vmatpush2.msra.mxu0 0.0
    %9565 = vmatprep.subr.mxu0 0.0
    %9566 = vmatpush2.msra.mxu0 0.0
    %9567 = vmatprep.mubr.f32.mxu0 0.0
    %9568 = vmatmul.mubr.f32.gmra.mxu0 %v9480
    %v9569 = vpop.f32.mrf.mxu0
    %v9570 = vadd.f32 %v9478, %v9569
    %v9571 = vpop.f32.mrf.mxu0
    %9572 = vmatprep.mubr.f32.mxu0 0.0
    %9573 = vmatmul.mubr.f32.gmra.mxu0 %v9483
    %v9574 = vpop.f32.mrf.mxu0
    %v9575 = vadd.f32 %v9478, %v9574
    %v9576 = vpop.f32.mrf.mxu0
    %9577 = vmatprep.mubr.f32.mxu0 0.0
    %9578 = vmatmul.mubr.f32.gmra.mxu0 %v9486
    %v9579 = vpop.f32.mrf.mxu0
    %v9580 = vadd.f32 %v9478, %v9579
    %v9581 = vpop.f32.mrf.mxu0
    %9582 = vmatprep.mubr.f32.mxu0 0.0
    %9583 = vmatmul.mubr.f32.gmra.mxu0 %v9489
    %v9584 = vpop.f32.mrf.mxu0
    %v9585 = vadd.f32 %v9478, %v9584
    %v9586 = vpop.f32.mrf.mxu0
    %9587 = vmatprep.mubr.f32.mxu0 0.0
    %9588 = vmatmul.mubr.f32.gmra.mxu0 %v9492
    %v9589 = vpop.f32.mrf.mxu0
    %v9590 = vadd.f32 %v9478, %v9589
    %v9591 = vpop.f32.mrf.mxu0
    %9592 = vmatprep.mubr.f32.mxu0 0.0
    %9593 = vmatmul.mubr.f32.gmra.mxu0 %v9495
    %v9594 = vpop.f32.mrf.mxu0
    %v9595 = vadd.f32 %v9478, %v9594
    %v9596 = vpop.f32.mrf.mxu0
    %9597 = vmatprep.mubr.f32.mxu0 0.0
    %9598 = vmatmul.mubr.f32.gmra.mxu0 %v9498
    %v9599 = vpop.f32.mrf.mxu0
    %v9600 = vadd.f32 %v9478, %v9599
    %v9601 = vpop.f32.mrf.mxu0
    %9602 = vmatprep.mubr.f32.mxu0 0.0
    %9603 = vmatmul.mubr.f32.gmra.mxu0 %v9501
    %v9604 = vpop.f32.mrf.mxu0
    %v9605 = vadd.f32 %v9478, %v9604
    %v9606 = vpop.f32.mrf.mxu0
    %9607 = vdwg.mxu0
    %v9608 = vmax.f32 %v9570, 0.0
    %v9609 = vmax.f32 %v9575, 0.0
    %v9610 = vmax.f32 %v9580, 0.0
    %v9611 = vmax.f32 %v9585, 0.0
    %v9612 = vmax.f32 %v9590, 0.0
    %v9613 = vmax.f32 %v9595, 0.0
    %v9614 = vmax.f32 %v9600, 0.0
    %v9615 = vmax.f32 %v9605, 0.0
    %v9616 = vld [vmem:[#allocation2 + $0x2a0] sm:$0xff]
    %v9617 = vld [vmem:[#allocation2 + $0x2a8] sm:$0xff]
    %v9618 = vld [vmem:[#allocation2 + $0x2b0] sm:$0xff]
    %v9619 = vld [vmem:[#allocation2 + $0x2b8] sm:$0xff]
    %v9620 = vld [vmem:[#allocation2 + $0x2c0] sm:$0x1]
    %v9621 = vlaneseq
    %v9622 = vshrl.u32 %v9621, 7
    %v9623 = vsub.s32 0, %v9622
    %v9624 = vrot.slane %v9620, %v9623
    %v9626 = vsel %vm186, %v9608, 0
    %v9629 = vsel %vm186, %v9609, 0
    %v9632 = vsel %vm186, %v9610, 0
    %v9635 = vsel %vm186, %v9611, 0
    %v9638 = vsel %vm186, %v9612, 0
    %v9641 = vsel %vm186, %v9613, 0
    %v9644 = vsel %vm186, %v9614, 0
    %v9647 = vsel %vm186, %v9615, 0
    %9649 = vmatprep.subr.mxu0 0.0
    %9650 = vmatpush1.msra.mxu0 0.0
    %9651 = vmatprep.subr.mxu0 0.0
    %9652 = vmatpush1.msra.mxu0 0.0
    %9653 = vmatprep.subr.mxu0 0.0
    %9654 = vmatpush1.msra.mxu0 0.0
    %9655 = vmatprep.subr.mxu0 0.0
    %9656 = vmatpush1.msra.mxu0 0.0
    %9657 = vmatprep.subr.mxu0 0.0
    %9658 = vmatpush1.msra.mxu0 0.0
    %9659 = vmatprep.subr.mxu0 0.0
    %9660 = vmatpush1.msra.mxu0 0.0
    %9661 = vmatprep.subr.mxu0 0.0
    %9662 = vmatpush1.msra.mxu0 0.0
    %9663 = vmatprep.subr.mxu0 0.0
    %9664 = vmatpush1.msra.mxu0 0.0
    %9665 = vmatprep.subr.mxu0 0.0
    %9666 = vmatpush1.msra.mxu0 0.0
    %9667 = vmatprep.subr.mxu0 0.0
    %9668 = vmatpush1.msra.mxu0 0.0
    %9669 = vmatprep.subr.mxu0 0.0
    %9670 = vmatpush1.msra.mxu0 0.0
    %9671 = vmatprep.subr.mxu0 0.0
    %9672 = vmatpush1.msra.mxu0 0.0
    %9673 = vmatprep.subr.mxu0 0.0
    %9674 = vmatpush1.msra.mxu0 %v9619
    %9675 = vmatprep.subr.mxu0 0.0
    %9676 = vmatpush1.msra.mxu0 %v9618
    %9677 = vmatprep.subr.mxu0 0.0
    %9678 = vmatpush1.msra.mxu0 %v9617
    %9679 = vmatprep.subr.mxu0 0.0
    %9680 = vmatpush1.msra.mxu0 %v9616
    %9681 = vmatprep.subr.mxu0 0.0
    %9682 = vmatpush2.msra.mxu0 0.0
    %9683 = vmatprep.subr.mxu0 0.0
    %9684 = vmatpush2.msra.mxu0 0.0
    %9685 = vmatprep.subr.mxu0 0.0
    %9686 = vmatpush2.msra.mxu0 0.0
    %9687 = vmatprep.subr.mxu0 0.0
    %9688 = vmatpush2.msra.mxu0 0.0
    %9689 = vmatprep.subr.mxu0 0.0
    %9690 = vmatpush2.msra.mxu0 0.0
    %9691 = vmatprep.subr.mxu0 0.0
    %9692 = vmatpush2.msra.mxu0 0.0
    %9693 = vmatprep.subr.mxu0 0.0
    %9694 = vmatpush2.msra.mxu0 0.0
    %9695 = vmatprep.subr.mxu0 0.0
    %9696 = vmatpush2.msra.mxu0 0.0
    %9697 = vmatprep.subr.mxu0 0.0
    %9698 = vmatpush2.msra.mxu0 0.0
    %9699 = vmatprep.subr.mxu0 0.0
    %9700 = vmatpush2.msra.mxu0 0.0
    %9701 = vmatprep.subr.mxu0 0.0
    %9702 = vmatpush2.msra.mxu0 0.0
    %9703 = vmatprep.subr.mxu0 0.0
    %9704 = vmatpush2.msra.mxu0 0.0
    %9705 = vmatprep.subr.mxu0 0.0
    %9706 = vmatpush2.msra.mxu0 0.0
    %9707 = vmatprep.subr.mxu0 0.0
    %9708 = vmatpush2.msra.mxu0 0.0
    %9709 = vmatprep.subr.mxu0 0.0
    %9710 = vmatpush2.msra.mxu0 0.0
    %9711 = vmatprep.subr.mxu0 0.0
    %9712 = vmatpush2.msra.mxu0 0.0
    %9713 = vmatprep.mubr.f32.mxu0 0.0
    %9714 = vmatmul.mubr.f32.gmra.mxu0 %v9626
    %v9715 = vpop.f32.mrf.mxu0
    %v9716 = vadd.f32 %v9624, %v9715
    %v9717 = vpop.f32.mrf.mxu0
    %9718 = vmatprep.mubr.f32.mxu0 0.0
    %9719 = vmatmul.mubr.f32.gmra.mxu0 %v9629
    %v9720 = vpop.f32.mrf.mxu0
    %v9721 = vadd.f32 %v9624, %v9720
    %v9722 = vpop.f32.mrf.mxu0
    %9723 = vmatprep.mubr.f32.mxu0 0.0
    %9724 = vmatmul.mubr.f32.gmra.mxu0 %v9632
    %v9725 = vpop.f32.mrf.mxu0
    %v9726 = vadd.f32 %v9624, %v9725
    %v9727 = vpop.f32.mrf.mxu0
    %9728 = vmatprep.mubr.f32.mxu0 0.0
    %9729 = vmatmul.mubr.f32.gmra.mxu0 %v9635
    %v9730 = vpop.f32.mrf.mxu0
    %v9731 = vadd.f32 %v9624, %v9730
    %v9732 = vpop.f32.mrf.mxu0
    %9733 = vmatprep.mubr.f32.mxu0 0.0
    %9734 = vmatmul.mubr.f32.gmra.mxu0 %v9638
    %v9735 = vpop.f32.mrf.mxu0
    %v9736 = vadd.f32 %v9624, %v9735
    %v9737 = vpop.f32.mrf.mxu0
    %9738 = vmatprep.mubr.f32.mxu0 0.0
    %9739 = vmatmul.mubr.f32.gmra.mxu0 %v9641
    %v9740 = vpop.f32.mrf.mxu0
    %v9741 = vadd.f32 %v9624, %v9740
    %v9742 = vpop.f32.mrf.mxu0
    %9743 = vmatprep.mubr.f32.mxu0 0.0
    %9744 = vmatmul.mubr.f32.gmra.mxu0 %v9644
    %v9745 = vpop.f32.mrf.mxu0
    %v9746 = vadd.f32 %v9624, %v9745
    %v9747 = vpop.f32.mrf.mxu0
    %9748 = vmatprep.mubr.f32.mxu0 0.0
    %9749 = vmatmul.mubr.f32.gmra.mxu0 %v9647
    %v9750 = vpop.f32.mrf.mxu0
    %v9751 = vadd.f32 %v9624, %v9750
    %v9752 = vpop.f32.mrf.mxu0
    %9753 = vdwg.mxu0
    %9754 = vst.msk [vmem:[%s2] sm:$0xff] %vm39, %v9716
    %9755 = vst.msk [vmem:[%s2 + $0x8] sm:$0xff] %vm39, %v9721
    %9756 = vst.msk [vmem:[%s2 + $0x10] sm:$0xff] %vm39, %v9726
    %9757 = vst.msk [vmem:[%s2 + $0x18] sm:$0xff] %vm39, %v9731
    %9758 = vst.msk [vmem:[%s2 + $0x20] sm:$0xff] %vm39, %v9736
    %9759 = vst.msk [vmem:[%s2 + $0x28] sm:$0xff] %vm39, %v9741
    %9760 = vst.msk [vmem:[%s2 + $0x30] sm:$0xff] %vm39, %v9746
    %9761 = vst.msk [vmem:[%s2 + $0x38] sm:$0xff] %vm39, %v9751
    // Predicated region
    $region14: #{forward.1} parent=1 // pred_check
      _
    $region15: #{forward.1} parent=1 // pred_check_branch
      %9763 = sbr.rel (0) target = $region17
    $region16: #{forward.1} parent=1 // pred_region
      _
    $region17: #{forward.1} parent=1 // pred_fallthru
      _
    // Predicated region
    $region18: #{forward.1} parent=1 // pred_check
      _
    $region19: #{forward.1} parent=1 // pred_check_branch
      %9765 = sbr.rel (0) target = $region21
    $region20: #{forward.1} parent=1 // pred_region
      _
    $region21: #{forward.1} parent=1 // pred_fallthru
      _
    %9766 = vsyncpa [#allocation3], 1

</llo_original>
